<compile_context>
chip_gen: v7x
topology: tpu7x:2x2x1
jax: 0.10.0
libtpu: 0.0.40
codegen_flags: <defaults>
</compile_context>

<pallas_src>
import numpy as np

import jax
import jax.numpy as jnp
from jax.experimental import pallas as pl
from jax.experimental.pallas import tpu as pltpu

BF16 = jnp.bfloat16
F32 = jnp.float32


# ----------------------------- small helpers --------------------------------

def _relu6(x):
    return jnp.clip(x, 0.0, 6.0)


def _pad8(n):
    return ((n + 7) // 8) * 8


def _tap_gather(N, H, W, stride):
    """0/1 gather matrix G (9*S_out, S_in) for a 3x3 / pad-1 convolution.

    (G @ A)[t*S_out + o, :] = A[input row of tap t at output o, :] and is an
    all-zero row when tap t falls in the zero-padding region.  Tap blocks are
    ordered t = ki*3 + kj, matching weight.reshape(9, ...) ordering.
    """
    Ho = (H + 2 - 3) // stride + 1
    Wo = (W + 2 - 3) // stride + 1
    S_in, S_out = N * H * W, N * Ho * Wo
    G = np.zeros((9 * S_out, S_in), np.float32)
    for n in range(N):
        for io in range(Ho):
            for jo in range(Wo):
                o = (n * Ho + io) * Wo + jo
                for ki in range(3):
                    for kj in range(3):
                        ii = io * stride + ki - 1
                        jj = jo * stride + kj - 1
                        if 0 <= ii < H and 0 <= jj < W:
                            G[(ki * 3 + kj) * S_out + o, (n * H + ii) * W + jj] = 1.0
    return G, Ho, Wo, S_out


class _Slab:
    """Packs many small 2-D constants into one array (8-row-aligned offsets)."""

    def __init__(self, width):
        self.width = width
        self._parts = []
        self._off = 0

    def add(self, arr):
        arr = np.asarray(arr, np.float32)
        if arr.ndim == 1:
            arr = arr[None, :]
        r, c = arr.shape
        assert c <= self.width, (arr.shape, self.width)
        rp = _pad8(r)
        buf = np.zeros((rp, self.width), np.float32)
        buf[:r, :c] = arr
        self._parts.append(buf)
        entry = (self._off, r, c)          # static (row_offset, rows, cols)
        self._off += rp
        return entry

    def build(self, dtype):
        if not self._parts:
            self._parts.append(np.zeros((8, self.width), np.float32))
        return jnp.asarray(np.concatenate(self._parts, axis=0)).astype(dtype)


# ----------------------------- parameter setup ------------------------------

def build_model(seed=0, N=2, H=16, W=16, Cin=4):
    rng = np.random.RandomState(seed)

    def conv_bn(shape_w, cout):            # fold BN into conv weight / bias
        w = 0.1 * rng.randn(*shape_w).astype(np.float32)
        gamma = 1.0 + 0.1 * rng.randn(cout).astype(np.float32)
        beta = 0.1 * rng.randn(cout).astype(np.float32)
        mean = 0.1 * rng.randn(cout).astype(np.float32)
        var = 1.0 + 0.1 * np.abs(rng.randn(cout)).astype(np.float32)
        scale = (gamma / np.sqrt(var + 1e-5)).astype(np.float32)
        return (w * scale).astype(np.float32), (beta - mean * scale).astype(np.float32)

    def conv_plain(shape_w, cout):
        return (0.1 * rng.randn(*shape_w).astype(np.float32),
                0.1 * rng.randn(cout).astype(np.float32))

    wslab = _Slab(64)      # bf16: conv weights, narrow gathers, expanded dw taps
    gslab = _Slab(128)     # bf16: 128-wide gathers + extras helpers
    bslab = _Slab(64)      # f32 : every bias row

    gathers = {}

    def get_gather(h, w, stride):
        key = (h, w, stride)
        if key not in gathers:
            G, ho, wo, so = _tap_gather(N, h, w, stride)
            if G.shape[1] > 64:
                gathers[key] = (gslab.add(G), "g", ho, wo, so)
            else:
                gathers[key] = (wslab.add(G), "w", ho, wo, so)
        return gathers[key]

    # ---- features[0]: ConvBNReLU6 3x3 / stride 2 : Cin -> 8 (in-kernel im2col)
    w0, b0 = conv_bn((3, 3, Cin, 8), 8)
    G0, H0, W0_, S0 = _tap_gather(N, H, W, 2)
    g_stem = jnp.asarray(G0).astype(BF16)                     # (9*S0, N*H*W)
    stem_w = [wslab.add(w0.reshape(9, Cin, 8)[t]) for t in range(9)]
    stem_b = bslab.add(b0[None, :])
    h, w, c = H0, W0_, 8

    # ---- features[1:9]: inverted residual blocks (expansion factor 2)
    ir_cfg = [(8, 8, 1), (8, 16, 2), (16, 16, 1), (16, 16, 1), (16, 16, 1),
              (16, 16, 1), (16, 32, 2), (32, 32, 1)]
    ir_plan, src_meta = [], []
    for idx, (ci, co, stride) in enumerate(ir_cfg):
        hid = ci * 2
        ew, eb = conv_bn((ci, hid), hid)
        dw, db = conv_bn((3, 3, hid), hid)
        pw, pb = conv_bn((hid, co), co)
        g_entry, g_slab, ho, wo, s_out = get_gather(h, w, stride)
        # pre-expand depthwise tap weights: row t*s_out+o holds dw tap t (item 7)
        dwf = np.repeat(dw.reshape(9, hid), s_out, axis=0)    # (9*s_out, hid)
        ir_plan.append(dict(
            exp_w=wslab.add(ew), exp_b=bslab.add(eb[None, :]),
            gat=g_entry, gat_slab=g_slab, s_out=s_out, hid=hid,
            dw_w=wslab.add(dwf), dw_b=bslab.add(db[None, :]),
            proj_w=wslab.add(pw), proj_b=bslab.add(pb[None, :]),
            use_res=bool(stride == 1 and ci == co)))
        h, w, c = ho, wo, co
        if idx == 5:                              # after vgg.features[6] -> src 0
            src_meta.append((h, w, c))
    src_meta.append((h, w, c))                    # after vgg.features[-1] -> src 1

    # ---- extras: [1x1 conv c->16, 3x3/s2 conv 16->32] x 2 (F.relu fused in-kernel)
    ex_plan = []
    for _ in range(2):
        we, be = conv_plain((c, 16), 16)
        ex_plan.append(dict(kind="pw", w=wslab.add(we), b=bslab.add(be[None, :]),
                            head=False))
        c = 16
        we, be = conv_plain((3, 3, c, 32), 32)
        wt = we.reshape(9, c, 32)
        if h == 2 and w == 2:
            # 2x2 -> 1x1, stride 2, pad 1: only taps (1,1),(1,2),(2,1),(2,2) are
            # in-image; input row n*4+k feeds exactly tap t(k), k=(ki-1)*2+(kj-1).
            taps = [4, 5, 7, 8]
            vbig = np.concatenate([wt[t] for t in taps], axis=1)      # (16, 128)
            mask = np.zeros((N * 4, 4 * 32), np.float32)              # keep block r%4
            for r in range(N * 4):
                k = r % 4
                mask[r, k * 32:(k + 1) * 32] = 1.0
            ssum = np.concatenate([np.eye(32, dtype=np.float32)] * 4, axis=0)
            rmat = np.zeros((N * 4, N * 4), np.float32)               # sum rows 4n..4n+3
            for n in range(N):
                rmat[n, n * 4:(n + 1) * 4] = 1.0
            ex_plan.append(dict(kind="conv2x2s2", vbig=gslab.add(vbig),
                                mask=gslab.add(mask), ssum=wslab.add(ssum),
                                rmat=wslab.add(rmat), b=bslab.add(be[None, :]),
                                cout=32, head=False))
        else:
            # 1x1 -> 1x1, stride 2, pad 1: only the centre tap sees real data.
            ex_plan.append(dict(kind="conv1x1s2", w=wslab.add(wt[4]),
                                b=bslab.add(be[None, :]), head=False))
        h, w = (h + 2 - 3) // 2 + 1, (w + 2 - 3) // 2 + 1
        c = 32
        src_meta.append((h, w, c))
    for k in (1, 3):                              # extras_head_pos = (1, 3)
        ex_plan[k]["head"] = True

    consts = dict(g_stem=g_stem, gslab=gslab.build(BF16),
                  wslab=wslab.build(BF16), bslab=bslab.build(F32))
    static = dict(N=N, H=H, W=W, Cin=Cin, S0=S0, stem_w=stem_w, stem_b=stem_b,
                  ir=ir_plan, ex=ex_plan, src_meta=src_meta, src0_after_ir=5)
    return consts, static


# -------------------------- fused forward builder ---------------------------

def build_forward(consts, static):
    N, H, W, Cin = static["N"], static["H"], static["W"], static["Cin"]
    S0 = static["S0"]
    stem_w, stem_b = static["stem_w"], static["stem_b"]
    ir_plan, ex_plan = static["ir"], static["ex"]
    src_meta = static["src_meta"]
    src0_after_ir = static["src0_after_ir"]

    out_shapes = tuple(jax.ShapeDtypeStruct((N * hh * ww, cc), F32)
                       for (hh, ww, cc) in src_meta)

    def kernel(x_ref, gstem_ref, gslab_ref, wslab_ref, bslab_ref,
               o0_ref, o1_ref, o2_ref, o3_ref):
        out_refs = (o0_ref, o1_ref, o2_ref, o3_ref)

        def cw(entry):                      # carve from bf16 weight slab
            r0, r, c = entry
            return wslab_ref[r0:r0 + r, 0:c]

        def cg(entry):                      # carve from bf16 128-wide slab
            r0, r, c = entry
            return gslab_ref[r0:r0 + r, 0:c]

        def cb(entry):                      # carve an f32 (1, c) bias row
            r0, r, c = entry
            return bslab_ref[r0:r0 + r, 0:c]

        def mm(a_f32, w_bf16):              # MXU: bf16 operands, f32 accumulate
            return jnp.dot(a_f32.astype(BF16), w_bf16,
                           preferred_element_type=F32)

        # ---- features[0]: 3x3/s2 Conv+BN+ReLU6, im2col done in-kernel via a
        #      bf16 0/1 tap-gather matmul (review item 5).
        xb = x_ref[...].astype(BF16)                               # (N*H*W, Cin)
        selb = jnp.dot(gstem_ref[...], xb,
                       preferred_element_type=F32).astype(BF16)    # (9*S0, Cin)
        acc = jnp.dot(selb[0:S0, :], cw(stem_w[0]), preferred_element_type=F32)
        for t in range(1, 9):
            acc = acc + jnp.dot(selb[t * S0:(t + 1) * S0, :], cw(stem_w[t]),
                                preferred_element_type=F32)
        a = _relu6(acc + cb(stem_b))                               # (S0, 8) f32

        # ---- features[1:]: 8 inverted-residual blocks, fully VMEM resident
        src_idx = 0
        for i, blk in enumerate(ir_plan):
            s_out = blk["s_out"]
            # 1x1 expand + ReLU6  (MXU)
            h1 = _relu6(mm(a, cw(blk["exp_w"])) + cb(blk["exp_b"]))
            # 3x3 depthwise + ReLU6: ONE bf16 gather matmul collects the nine
            # zero-padded/strided taps, then one f32 multiply against the
            # pre-expanded per-tap weights and 8 sublane-aligned slab adds.
            g = cg(blk["gat"]) if blk["gat_slab"] == "g" else cw(blk["gat"])
            sel = jnp.dot(g, h1.astype(BF16), preferred_element_type=F32)
            prod = sel * cw(blk["dw_w"]).astype(F32)               # (9*s_out, hid)
            accd = prod[0:s_out, :]
            for t in range(1, 9):
                accd = accd + prod[t * s_out:(t + 1) * s_out, :]
            h2 = _relu6(accd + cb(blk["dw_b"]))
            # 1x1 linear projection; residual added AFTER the linear projection.
            out = mm(h2, cw(blk["proj_w"])) + cb(blk["proj_b"])
            if blk["use_res"]:
                out = out + a
            a = out
            if i == src0_after_ir:                 # after vgg.features[6]
                out_refs[src_idx][...] = a
                src_idx += 1
        out_refs[src_idx][...] = a                 # after vgg.features[-1]
        src_idx += 1

        # ---- extras (conv + fused F.relu); heads after extras 1 and 3.
        for lay in ex_plan:
            if lay["kind"] == "pw":
                a = jnp.maximum(mm(a, cw(lay["w"])) + cb(lay["b"]), 0.0)
            elif lay["kind"] == "conv2x2s2":
                # pointwise-first: one lane-dense matmul against the 4 in-image
                # tap weights, a constant 0/1 mask keeping lane-block (row % 4),
                # then two tiny constant combine matmuls (review item 3).
                co = lay["cout"]
                y = mm(a, cg(lay["vbig"]))                         # (N*4, 4*co)
                y = y * cg(lay["mask"]).astype(F32)
                z = jnp.dot(y.astype(BF16), cw(lay["ssum"]),
                            preferred_element_type=F32)            # (N*4, co)
                out = jnp.dot(cw(lay["rmat"]), z.astype(BF16),
                              preferred_element_type=F32)          # rows >= N are 0
                a = jnp.maximum(out + cb(lay["b"]), 0.0)
            else:  # "conv1x1s2": only the centre tap ever reads non-padding data
                a = jnp.maximum(mm(a, cw(lay["w"])) + cb(lay["b"]), 0.0)
            if lay["head"]:
                hh, ww, cc = src_meta[src_idx]
                out_refs[src_idx][...] = a[0:N * hh * ww, :]
                src_idx += 1

    fused = pl.pallas_call(
        kernel,
        out_shape=out_shapes,
        compiler_params=pltpu.CompilerParams(
            vmem_limit_bytes=12 * 1024 * 1024),     # honest limit (~3 MB actual)
    )

    g_stem = consts["g_stem"]
    gslab = consts["gslab"]
    wslab = consts["wslab"]
    bslab = consts["bslab"]

    def forward(x_nchw):
        # QuantStub is identity in fp32.  The only wrapper glue left is the
        # NCHW -> (N*H*W, C) relayout of the raw input (review item 5).
        x = jnp.transpose(x_nchw, (0, 2, 3, 1)).reshape(N * H * W, Cin)
        outs = fused(x.astype(F32), g_stem, gslab, wslab, bslab)
        # (N*h*w, C) -> NCHW, matching the PyTorch module's outputs.
        return [jnp.transpose(o.reshape(N, hh, ww, cc), (0, 3, 1, 2))
                for o, (hh, ww, cc) in zip(outs, src_meta)]

    return forward


# ----------------------------------- main ------------------------------------

if __name__ == "__main__":
    consts, static = build_model(seed=0)
    fwd = jax.jit(build_forward(consts, static))

    x = jax.random.normal(jax.random.PRNGKey(0), (2, 4, 16, 16), jnp.float32)
    outs = jax.block_until_ready(fwd(x))

    expected = [(2, 16, 4, 4), (2, 32, 2, 2), (2, 32, 1, 1), (2, 32, 1, 1)]
    assert [tuple(o.shape) for o in outs] == expected, [o.shape for o in outs]
    assert all(bool(jnp.all(jnp.isfinite(o))) for o in outs)
    print("KERNEL_OK")
</pallas_src>

<mosaic_0001>
module attributes {stable_mosaic.version = 11 : i64} {
  func.func @kernel(%arg0: memref<512x4xf32, #tpu.memory_space<vmem>>, %arg1: memref<1152x512xbf16, #tpu.memory_space<vmem>>, %arg2: memref<1464x128xbf16, #tpu.memory_space<vmem>>, %arg3: memref<3840x64xbf16, #tpu.memory_space<vmem>>, %arg4: memref<232x64xf32, #tpu.memory_space<vmem>>, %arg5: memref<32x16xf32, #tpu.memory_space<vmem>>, %arg6: memref<8x32xf32, #tpu.memory_space<vmem>>, %arg7: memref<2x32xf32, #tpu.memory_space<vmem>>, %arg8: memref<2x32xf32, #tpu.memory_space<vmem>>) attributes {dimension_semantics = [], scalar_prefetch = 0 : i64, scratch_operands = 0 : i64, tpu.core_type = #tpu.core_type<tc>} {
    %c0 = arith.constant 0 : index
    %c0_0 = arith.constant 0 : index
    %0 = vector.load %arg0[%c0, %c0_0] : memref<512x4xf32, #tpu.memory_space<vmem>>, vector<512x4xf32>
    %1 = arith.truncf %0 : vector<512x4xf32> to vector<512x4xbf16>
    %c0_1 = arith.constant 0 : index
    %c0_2 = arith.constant 0 : index
    %2 = vector.load %arg1[%c0_1, %c0_2] : memref<1152x512xbf16, #tpu.memory_space<vmem>>, vector<1152x512xbf16>
    %cst = arith.constant dense<0.000000e+00> : vector<1152x4xf32>
    %3 = tpu.matmul %2, %1, %cst {dimension_numbers = #tpu.dot_dimension_numbers<[1], [0], [0], [1], [0, 0, 1, 1], [], []>} : vector<1152x512xbf16>, vector<512x4xbf16>, vector<1152x4xf32> -> vector<1152x4xf32>
    %4 = arith.truncf %3 : vector<1152x4xf32> to vector<1152x4xbf16>
    %5 = vector.extract_strided_slice %4 {offsets = [0, 0], sizes = [128, 4], strides = [1, 1]} : vector<1152x4xbf16> to vector<128x4xbf16>
    %c0_3 = arith.constant 0 : index
    %c0_4 = arith.constant 0 : index
    %6 = vector.load %arg3[%c0_3, %c0_4] : memref<3840x64xbf16, #tpu.memory_space<vmem>>, vector<4x8xbf16>
    %cst_5 = arith.constant dense<0.000000e+00> : vector<128x8xf32>
    %7 = tpu.matmul %5, %6, %cst_5 {dimension_numbers = #tpu.dot_dimension_numbers<[1], [0], [0], [1], [0, 0, 1, 1], [], []>} : vector<128x4xbf16>, vector<4x8xbf16>, vector<128x8xf32> -> vector<128x8xf32>
    %8 = vector.extract_strided_slice %4 {offsets = [128, 0], sizes = [128, 4], strides = [1, 1]} : vector<1152x4xbf16> to vector<128x4xbf16>
    %c8 = arith.constant 8 : index
    %c0_6 = arith.constant 0 : index
    %9 = vector.load %arg3[%c8, %c0_6] : memref<3840x64xbf16, #tpu.memory_space<vmem>>, vector<4x8xbf16>
    %cst_7 = arith.constant dense<0.000000e+00> : vector<128x8xf32>
    %10 = tpu.matmul %8, %9, %cst_7 {dimension_numbers = #tpu.dot_dimension_numbers<[1], [0], [0], [1], [0, 0, 1, 1], [], []>} : vector<128x4xbf16>, vector<4x8xbf16>, vector<128x8xf32> -> vector<128x8xf32>
    %11 = arith.addf %7, %10 : vector<128x8xf32>
    %12 = vector.extract_strided_slice %4 {offsets = [256, 0], sizes = [128, 4], strides = [1, 1]} : vector<1152x4xbf16> to vector<128x4xbf16>
    %c16 = arith.constant 16 : index
    %c0_8 = arith.constant 0 : index
    %13 = vector.load %arg3[%c16, %c0_8] : memref<3840x64xbf16, #tpu.memory_space<vmem>>, vector<4x8xbf16>
    %cst_9 = arith.constant dense<0.000000e+00> : vector<128x8xf32>
    %14 = tpu.matmul %12, %13, %cst_9 {dimension_numbers = #tpu.dot_dimension_numbers<[1], [0], [0], [1], [0, 0, 1, 1], [], []>} : vector<128x4xbf16>, vector<4x8xbf16>, vector<128x8xf32> -> vector<128x8xf32>
    %15 = arith.addf %11, %14 : vector<128x8xf32>
    %16 = vector.extract_strided_slice %4 {offsets = [384, 0], sizes = [128, 4], strides = [1, 1]} : vector<1152x4xbf16> to vector<128x4xbf16>
    %c24 = arith.constant 24 : index
    %c0_10 = arith.constant 0 : index
    %17 = vector.load %arg3[%c24, %c0_10] : memref<3840x64xbf16, #tpu.memory_space<vmem>>, vector<4x8xbf16>
    %cst_11 = arith.constant dense<0.000000e+00> : vector<128x8xf32>
    %18 = tpu.matmul %16, %17, %cst_11 {dimension_numbers = #tpu.dot_dimension_numbers<[1], [0], [0], [1], [0, 0, 1, 1], [], []>} : vector<128x4xbf16>, vector<4x8xbf16>, vector<128x8xf32> -> vector<128x8xf32>
    %19 = arith.addf %15, %18 : vector<128x8xf32>
    %20 = vector.extract_strided_slice %4 {offsets = [512, 0], sizes = [128, 4], strides = [1, 1]} : vector<1152x4xbf16> to vector<128x4xbf16>
    %c32 = arith.constant 32 : index
    %c0_12 = arith.constant 0 : index
    %21 = vector.load %arg3[%c32, %c0_12] : memref<3840x64xbf16, #tpu.memory_space<vmem>>, vector<4x8xbf16>
    %cst_13 = arith.constant dense<0.000000e+00> : vector<128x8xf32>
    %22 = tpu.matmul %20, %21, %cst_13 {dimension_numbers = #tpu.dot_dimension_numbers<[1], [0], [0], [1], [0, 0, 1, 1], [], []>} : vector<128x4xbf16>, vector<4x8xbf16>, vector<128x8xf32> -> vector<128x8xf32>
    %23 = arith.addf %19, %22 : vector<128x8xf32>
    %24 = vector.extract_strided_slice %4 {offsets = [640, 0], sizes = [128, 4], strides = [1, 1]} : vector<1152x4xbf16> to vector<128x4xbf16>
    %c40 = arith.constant 40 : index
    %c0_14 = arith.constant 0 : index
    %25 = vector.load %arg3[%c40, %c0_14] : memref<3840x64xbf16, #tpu.memory_space<vmem>>, vector<4x8xbf16>
    %cst_15 = arith.constant dense<0.000000e+00> : vector<128x8xf32>
    %26 = tpu.matmul %24, %25, %cst_15 {dimension_numbers = #tpu.dot_dimension_numbers<[1], [0], [0], [1], [0, 0, 1, 1], [], []>} : vector<128x4xbf16>, vector<4x8xbf16>, vector<128x8xf32> -> vector<128x8xf32>
    %27 = arith.addf %23, %26 : vector<128x8xf32>
    %28 = vector.extract_strided_slice %4 {offsets = [768, 0], sizes = [128, 4], strides = [1, 1]} : vector<1152x4xbf16> to vector<128x4xbf16>
    %c48 = arith.constant 48 : index
    %c0_16 = arith.constant 0 : index
    %29 = vector.load %arg3[%c48, %c0_16] : memref<3840x64xbf16, #tpu.memory_space<vmem>>, vector<4x8xbf16>
    %cst_17 = arith.constant dense<0.000000e+00> : vector<128x8xf32>
    %30 = tpu.matmul %28, %29, %cst_17 {dimension_numbers = #tpu.dot_dimension_numbers<[1], [0], [0], [1], [0, 0, 1, 1], [], []>} : vector<128x4xbf16>, vector<4x8xbf16>, vector<128x8xf32> -> vector<128x8xf32>
    %31 = arith.addf %27, %30 : vector<128x8xf32>
    %32 = vector.extract_strided_slice %4 {offsets = [896, 0], sizes = [128, 4], strides = [1, 1]} : vector<1152x4xbf16> to vector<128x4xbf16>
    %c56 = arith.constant 56 : index
    %c0_18 = arith.constant 0 : index
    %33 = vector.load %arg3[%c56, %c0_18] : memref<3840x64xbf16, #tpu.memory_space<vmem>>, vector<4x8xbf16>
    %cst_19 = arith.constant dense<0.000000e+00> : vector<128x8xf32>
    %34 = tpu.matmul %32, %33, %cst_19 {dimension_numbers = #tpu.dot_dimension_numbers<[1], [0], [0], [1], [0, 0, 1, 1], [], []>} : vector<128x4xbf16>, vector<4x8xbf16>, vector<128x8xf32> -> vector<128x8xf32>
    %35 = arith.addf %31, %34 : vector<128x8xf32>
    %36 = vector.extract_strided_slice %4 {offsets = [1024, 0], sizes = [128, 4], strides = [1, 1]} : vector<1152x4xbf16> to vector<128x4xbf16>
    %c64 = arith.constant 64 : index
    %c0_20 = arith.constant 0 : index
    %37 = vector.load %arg3[%c64, %c0_20] : memref<3840x64xbf16, #tpu.memory_space<vmem>>, vector<4x8xbf16>
    %cst_21 = arith.constant dense<0.000000e+00> : vector<128x8xf32>
    %38 = tpu.matmul %36, %37, %cst_21 {dimension_numbers = #tpu.dot_dimension_numbers<[1], [0], [0], [1], [0, 0, 1, 1], [], []>} : vector<128x4xbf16>, vector<4x8xbf16>, vector<128x8xf32> -> vector<128x8xf32>
    %39 = arith.addf %35, %38 : vector<128x8xf32>
    %c0_22 = arith.constant 0 : index
    %c0_23 = arith.constant 0 : index
    %40 = vector.load %arg4[%c0_22, %c0_23] : memref<232x64xf32, #tpu.memory_space<vmem>>, vector<1x8xf32>
    %41 = vector.broadcast %40 : vector<1x8xf32> to vector<128x8xf32>
    %42 = arith.addf %39, %41 : vector<128x8xf32>
    %cst_24 = arith.constant 0.000000e+00 : f32
    %cst_25 = arith.constant 6.000000e+00 : f32
    %43 = vector.broadcast %cst_24 : f32 to vector<128x8xf32>
    %44 = arith.maximumf %43, %42 : vector<128x8xf32>
    %45 = vector.broadcast %cst_25 : f32 to vector<128x8xf32>
    %46 = arith.minimumf %45, %44 : vector<128x8xf32>
    %c72 = arith.constant 72 : index
    %c0_26 = arith.constant 0 : index
    %47 = vector.load %arg3[%c72, %c0_26] : memref<3840x64xbf16, #tpu.memory_space<vmem>>, vector<8x16xbf16>
    %48 = arith.truncf %46 : vector<128x8xf32> to vector<128x8xbf16>
    %cst_27 = arith.constant dense<0.000000e+00> : vector<128x16xf32>
    %49 = tpu.matmul %48, %47, %cst_27 {dimension_numbers = #tpu.dot_dimension_numbers<[1], [0], [0], [1], [0, 0, 1, 1], [], []>} : vector<128x8xbf16>, vector<8x16xbf16>, vector<128x16xf32> -> vector<128x16xf32>
    %c8_28 = arith.constant 8 : index
    %c0_29 = arith.constant 0 : index
    %50 = vector.load %arg4[%c8_28, %c0_29] : memref<232x64xf32, #tpu.memory_space<vmem>>, vector<1x16xf32>
    %51 = vector.broadcast %50 : vector<1x16xf32> to vector<128x16xf32>
    %52 = arith.addf %49, %51 : vector<128x16xf32>
    %cst_30 = arith.constant 0.000000e+00 : f32
    %cst_31 = arith.constant 6.000000e+00 : f32
    %53 = vector.broadcast %cst_30 : f32 to vector<128x16xf32>
    %54 = arith.maximumf %53, %52 : vector<128x16xf32>
    %55 = vector.broadcast %cst_31 : f32 to vector<128x16xf32>
    %56 = arith.minimumf %55, %54 : vector<128x16xf32>
    %c0_32 = arith.constant 0 : index
    %c0_33 = arith.constant 0 : index
    %57 = vector.load %arg2[%c0_32, %c0_33] : memref<1464x128xbf16, #tpu.memory_space<vmem>>, vector<1152x128xbf16>
    %58 = arith.truncf %56 : vector<128x16xf32> to vector<128x16xbf16>
    %cst_34 = arith.constant dense<0.000000e+00> : vector<1152x16xf32>
    %59 = tpu.matmul %57, %58, %cst_34 {dimension_numbers = #tpu.dot_dimension_numbers<[1], [0], [0], [1], [0, 0, 1, 1], [], []>} : vector<1152x128xbf16>, vector<128x16xbf16>, vector<1152x16xf32> -> vector<1152x16xf32>
    %c80 = arith.constant 80 : index
    %c0_35 = arith.constant 0 : index
    %60 = vector.load %arg3[%c80, %c0_35] : memref<3840x64xbf16, #tpu.memory_space<vmem>>, vector<1152x16xbf16>
    %61 = arith.extf %60 : vector<1152x16xbf16> to vector<1152x16xf32>
    %62 = arith.mulf %59, %61 : vector<1152x16xf32>
    %63 = vector.extract_strided_slice %62 {offsets = [0, 0], sizes = [128, 16], strides = [1, 1]} : vector<1152x16xf32> to vector<128x16xf32>
    %64 = vector.extract_strided_slice %62 {offsets = [128, 0], sizes = [128, 16], strides = [1, 1]} : vector<1152x16xf32> to vector<128x16xf32>
    %65 = arith.addf %63, %64 : vector<128x16xf32>
    %66 = vector.extract_strided_slice %62 {offsets = [256, 0], sizes = [128, 16], strides = [1, 1]} : vector<1152x16xf32> to vector<128x16xf32>
    %67 = arith.addf %65, %66 : vector<128x16xf32>
    %68 = vector.extract_strided_slice %62 {offsets = [384, 0], sizes = [128, 16], strides = [1, 1]} : vector<1152x16xf32> to vector<128x16xf32>
    %69 = arith.addf %67, %68 : vector<128x16xf32>
    %70 = vector.extract_strided_slice %62 {offsets = [512, 0], sizes = [128, 16], strides = [1, 1]} : vector<1152x16xf32> to vector<128x16xf32>
    %71 = arith.addf %69, %70 : vector<128x16xf32>
    %72 = vector.extract_strided_slice %62 {offsets = [640, 0], sizes = [128, 16], strides = [1, 1]} : vector<1152x16xf32> to vector<128x16xf32>
    %73 = arith.addf %71, %72 : vector<128x16xf32>
    %74 = vector.extract_strided_slice %62 {offsets = [768, 0], sizes = [128, 16], strides = [1, 1]} : vector<1152x16xf32> to vector<128x16xf32>
    %75 = arith.addf %73, %74 : vector<128x16xf32>
    %76 = vector.extract_strided_slice %62 {offsets = [896, 0], sizes = [128, 16], strides = [1, 1]} : vector<1152x16xf32> to vector<128x16xf32>
    %77 = arith.addf %75, %76 : vector<128x16xf32>
    %78 = vector.extract_strided_slice %62 {offsets = [1024, 0], sizes = [128, 16], strides = [1, 1]} : vector<1152x16xf32> to vector<128x16xf32>
    %79 = arith.addf %77, %78 : vector<128x16xf32>
    %c16_36 = arith.constant 16 : index
    %c0_37 = arith.constant 0 : index
    %80 = vector.load %arg4[%c16_36, %c0_37] : memref<232x64xf32, #tpu.memory_space<vmem>>, vector<1x16xf32>
    %81 = vector.broadcast %80 : vector<1x16xf32> to vector<128x16xf32>
    %82 = arith.addf %79, %81 : vector<128x16xf32>
    %cst_38 = arith.constant 0.000000e+00 : f32
    %cst_39 = arith.constant 6.000000e+00 : f32
    %83 = vector.broadcast %cst_38 : f32 to vector<128x16xf32>
    %84 = arith.maximumf %83, %82 : vector<128x16xf32>
    %85 = vector.broadcast %cst_39 : f32 to vector<128x16xf32>
    %86 = arith.minimumf %85, %84 : vector<128x16xf32>
    %c1232 = arith.constant 1232 : index
    %c0_40 = arith.constant 0 : index
    %87 = vector.load %arg3[%c1232, %c0_40] : memref<3840x64xbf16, #tpu.memory_space<vmem>>, vector<16x8xbf16>
    %88 = arith.truncf %86 : vector<128x16xf32> to vector<128x16xbf16>
    %cst_41 = arith.constant dense<0.000000e+00> : vector<128x8xf32>
    %89 = tpu.matmul %88, %87, %cst_41 {dimension_numbers = #tpu.dot_dimension_numbers<[1], [0], [0], [1], [0, 0, 1, 1], [], []>} : vector<128x16xbf16>, vector<16x8xbf16>, vector<128x8xf32> -> vector<128x8xf32>
    %c24_42 = arith.constant 24 : index
    %c0_43 = arith.constant 0 : index
    %90 = vector.load %arg4[%c24_42, %c0_43] : memref<232x64xf32, #tpu.memory_space<vmem>>, vector<1x8xf32>
    %91 = vector.broadcast %90 : vector<1x8xf32> to vector<128x8xf32>
    %92 = arith.addf %89, %91 : vector<128x8xf32>
    %93 = arith.addf %92, %46 : vector<128x8xf32>
    %c1248 = arith.constant 1248 : index
    %c0_44 = arith.constant 0 : index
    %94 = vector.load %arg3[%c1248, %c0_44] : memref<3840x64xbf16, #tpu.memory_space<vmem>>, vector<8x16xbf16>
    %95 = arith.truncf %93 : vector<128x8xf32> to vector<128x8xbf16>
    %cst_45 = arith.constant dense<0.000000e+00> : vector<128x16xf32>
    %96 = tpu.matmul %95, %94, %cst_45 {dimension_numbers = #tpu.dot_dimension_numbers<[1], [0], [0], [1], [0, 0, 1, 1], [], []>} : vector<128x8xbf16>, vector<8x16xbf16>, vector<128x16xf32> -> vector<128x16xf32>
    %c32_46 = arith.constant 32 : index
    %c0_47 = arith.constant 0 : index
    %97 = vector.load %arg4[%c32_46, %c0_47] : memref<232x64xf32, #tpu.memory_space<vmem>>, vector<1x16xf32>
    %98 = vector.broadcast %97 : vector<1x16xf32> to vector<128x16xf32>
    %99 = arith.addf %96, %98 : vector<128x16xf32>
    %cst_48 = arith.constant 0.000000e+00 : f32
    %cst_49 = arith.constant 6.000000e+00 : f32
    %100 = vector.broadcast %cst_48 : f32 to vector<128x16xf32>
    %101 = arith.maximumf %100, %99 : vector<128x16xf32>
    %102 = vector.broadcast %cst_49 : f32 to vector<128x16xf32>
    %103 = arith.minimumf %102, %101 : vector<128x16xf32>
    %c1152 = arith.constant 1152 : index
    %c0_50 = arith.constant 0 : index
    %104 = vector.load %arg2[%c1152, %c0_50] : memref<1464x128xbf16, #tpu.memory_space<vmem>>, vector<288x128xbf16>
    %105 = arith.truncf %103 : vector<128x16xf32> to vector<128x16xbf16>
    %cst_51 = arith.constant dense<0.000000e+00> : vector<288x16xf32>
    %106 = tpu.matmul %104, %105, %cst_51 {dimension_numbers = #tpu.dot_dimension_numbers<[1], [0], [0], [1], [0, 0, 1, 1], [], []>} : vector<288x128xbf16>, vector<128x16xbf16>, vector<288x16xf32> -> vector<288x16xf32>
    %c1256 = arith.constant 1256 : index
    %c0_52 = arith.constant 0 : index
    %107 = vector.load %arg3[%c1256, %c0_52] : memref<3840x64xbf16, #tpu.memory_space<vmem>>, vector<288x16xbf16>
    %108 = arith.extf %107 : vector<288x16xbf16> to vector<288x16xf32>
    %109 = arith.mulf %106, %108 : vector<288x16xf32>
    %110 = vector.extract_strided_slice %109 {offsets = [0, 0], sizes = [32, 16], strides = [1, 1]} : vector<288x16xf32> to vector<32x16xf32>
    %111 = vector.extract_strided_slice %109 {offsets = [32, 0], sizes = [32, 16], strides = [1, 1]} : vector<288x16xf32> to vector<32x16xf32>
    %112 = arith.addf %110, %111 : vector<32x16xf32>
    %113 = vector.extract_strided_slice %109 {offsets = [64, 0], sizes = [32, 16], strides = [1, 1]} : vector<288x16xf32> to vector<32x16xf32>
    %114 = arith.addf %112, %113 : vector<32x16xf32>
    %115 = vector.extract_strided_slice %109 {offsets = [96, 0], sizes = [32, 16], strides = [1, 1]} : vector<288x16xf32> to vector<32x16xf32>
    %116 = arith.addf %114, %115 : vector<32x16xf32>
    %117 = vector.extract_strided_slice %109 {offsets = [128, 0], sizes = [32, 16], strides = [1, 1]} : vector<288x16xf32> to vector<32x16xf32>
    %118 = arith.addf %116, %117 : vector<32x16xf32>
    %119 = vector.extract_strided_slice %109 {offsets = [160, 0], sizes = [32, 16], strides = [1, 1]} : vector<288x16xf32> to vector<32x16xf32>
    %120 = arith.addf %118, %119 : vector<32x16xf32>
    %121 = vector.extract_strided_slice %109 {offsets = [192, 0], sizes = [32, 16], strides = [1, 1]} : vector<288x16xf32> to vector<32x16xf32>
    %122 = arith.addf %120, %121 : vector<32x16xf32>
    %123 = vector.extract_strided_slice %109 {offsets = [224, 0], sizes = [32, 16], strides = [1, 1]} : vector<288x16xf32> to vector<32x16xf32>
    %124 = arith.addf %122, %123 : vector<32x16xf32>
    %125 = vector.extract_strided_slice %109 {offsets = [256, 0], sizes = [32, 16], strides = [1, 1]} : vector<288x16xf32> to vector<32x16xf32>
    %126 = arith.addf %124, %125 : vector<32x16xf32>
    %c40_53 = arith.constant 40 : index
    %c0_54 = arith.constant 0 : index
    %127 = vector.load %arg4[%c40_53, %c0_54] : memref<232x64xf32, #tpu.memory_space<vmem>>, vector<1x16xf32>
    %128 = vector.broadcast %127 : vector<1x16xf32> to vector<32x16xf32>
    %129 = arith.addf %126, %128 : vector<32x16xf32>
    %cst_55 = arith.constant 0.000000e+00 : f32
    %cst_56 = arith.constant 6.000000e+00 : f32
    %130 = vector.broadcast %cst_55 : f32 to vector<32x16xf32>
    %131 = arith.maximumf %130, %129 : vector<32x16xf32>
    %132 = vector.broadcast %cst_56 : f32 to vector<32x16xf32>
    %133 = arith.minimumf %132, %131 : vector<32x16xf32>
    %c1544 = arith.constant 1544 : index
    %c0_57 = arith.constant 0 : index
    %134 = vector.load %arg3[%c1544, %c0_57] : memref<3840x64xbf16, #tpu.memory_space<vmem>>, vector<16x16xbf16>
    %135 = arith.truncf %133 : vector<32x16xf32> to vector<32x16xbf16>
    %cst_58 = arith.constant dense<0.000000e+00> : vector<32x16xf32>
    %136 = tpu.matmul %135, %134, %cst_58 {dimension_numbers = #tpu.dot_dimension_numbers<[1], [0], [0], [1], [0, 0, 1, 1], [], []>} : vector<32x16xbf16>, vector<16x16xbf16>, vector<32x16xf32> -> vector<32x16xf32>
    %c48_59 = arith.constant 48 : index
    %c0_60 = arith.constant 0 : index
    %137 = vector.load %arg4[%c48_59, %c0_60] : memref<232x64xf32, #tpu.memory_space<vmem>>, vector<1x16xf32>
    %138 = vector.broadcast %137 : vector<1x16xf32> to vector<32x16xf32>
    %139 = arith.addf %136, %138 : vector<32x16xf32>
    %c1848 = arith.constant 1848 : index
    %c0_61 = arith.constant 0 : index
    %140 = vector.load %arg3[%c1848, %c0_61] : memref<3840x64xbf16, #tpu.memory_space<vmem>>, vector<16x32xbf16>
    %141 = arith.truncf %139 : vector<32x16xf32> to vector<32x16xbf16>
    %cst_62 = arith.constant dense<0.000000e+00> : vector<32x32xf32>
    %142 = tpu.matmul %141, %140, %cst_62 {dimension_numbers = #tpu.dot_dimension_numbers<[1], [0], [0], [1], [0, 0, 1, 1], [], []>} : vector<32x16xbf16>, vector<16x32xbf16>, vector<32x32xf32> -> vector<32x32xf32>
    %c56_63 = arith.constant 56 : index
    %c0_64 = arith.constant 0 : index
    %143 = vector.load %arg4[%c56_63, %c0_64] : memref<232x64xf32, #tpu.memory_space<vmem>>, vector<1x32xf32>
    %144 = vector.broadcast %143 : vector<1x32xf32> to vector<32x32xf32>
    %145 = arith.addf %142, %144 : vector<32x32xf32>
    %cst_65 = arith.constant 0.000000e+00 : f32
    %cst_66 = arith.constant 6.000000e+00 : f32
    %146 = vector.broadcast %cst_65 : f32 to vector<32x32xf32>
    %147 = arith.maximumf %146, %145 : vector<32x32xf32>
    %148 = vector.broadcast %cst_66 : f32 to vector<32x32xf32>
    %149 = arith.minimumf %148, %147 : vector<32x32xf32>
    %c1560 = arith.constant 1560 : index
    %c0_67 = arith.constant 0 : index
    %150 = vector.load %arg3[%c1560, %c0_67] : memref<3840x64xbf16, #tpu.memory_space<vmem>>, vector<288x32xbf16>
    %151 = arith.truncf %149 : vector<32x32xf32> to vector<32x32xbf16>
    %cst_68 = arith.constant dense<0.000000e+00> : vector<288x32xf32>
    %152 = tpu.matmul %150, %151, %cst_68 {dimension_numbers = #tpu.dot_dimension_numbers<[1], [0], [0], [1], [0, 0, 1, 1], [], []>} : vector<288x32xbf16>, vector<32x32xbf16>, vector<288x32xf32> -> vector<288x32xf32>
    %c1864 = arith.constant 1864 : index
    %c0_69 = arith.constant 0 : index
    %153 = vector.load %arg3[%c1864, %c0_69] : memref<3840x64xbf16, #tpu.memory_space<vmem>>, vector<288x32xbf16>
    %154 = arith.extf %153 : vector<288x32xbf16> to vector<288x32xf32>
    %155 = arith.mulf %152, %154 : vector<288x32xf32>
    %156 = vector.extract_strided_slice %155 {offsets = [0, 0], sizes = [32, 32], strides = [1, 1]} : vector<288x32xf32> to vector<32x32xf32>
    %157 = vector.extract_strided_slice %155 {offsets = [32, 0], sizes = [32, 32], strides = [1, 1]} : vector<288x32xf32> to vector<32x32xf32>
    %158 = arith.addf %156, %157 : vector<32x32xf32>
    %159 = vector.extract_strided_slice %155 {offsets = [64, 0], sizes = [32, 32], strides = [1, 1]} : vector<288x32xf32> to vector<32x32xf32>
    %160 = arith.addf %158, %159 : vector<32x32xf32>
    %161 = vector.extract_strided_slice %155 {offsets = [96, 0], sizes = [32, 32], strides = [1, 1]} : vector<288x32xf32> to vector<32x32xf32>
    %162 = arith.addf %160, %161 : vector<32x32xf32>
    %163 = vector.extract_strided_slice %155 {offsets = [128, 0], sizes = [32, 32], strides = [1, 1]} : vector<288x32xf32> to vector<32x32xf32>
    %164 = arith.addf %162, %163 : vector<32x32xf32>
    %165 = vector.extract_strided_slice %155 {offsets = [160, 0], sizes = [32, 32], strides = [1, 1]} : vector<288x32xf32> to vector<32x32xf32>
    %166 = arith.addf %164, %165 : vector<32x32xf32>
    %167 = vector.extract_strided_slice %155 {offsets = [192, 0], sizes = [32, 32], strides = [1, 1]} : vector<288x32xf32> to vector<32x32xf32>
    %168 = arith.addf %166, %167 : vector<32x32xf32>
    %169 = vector.extract_strided_slice %155 {offsets = [224, 0], sizes = [32, 32], strides = [1, 1]} : vector<288x32xf32> to vector<32x32xf32>
    %170 = arith.addf %168, %169 : vector<32x32xf32>
    %171 = vector.extract_strided_slice %155 {offsets = [256, 0], sizes = [32, 32], strides = [1, 1]} : vector<288x32xf32> to vector<32x32xf32>
    %172 = arith.addf %170, %171 : vector<32x32xf32>
    %c64_70 = arith.constant 64 : index
    %c0_71 = arith.constant 0 : index
    %173 = vector.load %arg4[%c64_70, %c0_71] : memref<232x64xf32, #tpu.memory_space<vmem>>, vector<1x32xf32>
    %174 = vector.broadcast %173 : vector<1x32xf32> to vector<32x32xf32>
    %175 = arith.addf %172, %174 : vector<32x32xf32>
    %cst_72 = arith.constant 0.000000e+00 : f32
    %cst_73 = arith.constant 6.000000e+00 : f32
    %176 = vector.broadcast %cst_72 : f32 to vector<32x32xf32>
    %177 = arith.maximumf %176, %175 : vector<32x32xf32>
    %178 = vector.broadcast %cst_73 : f32 to vector<32x32xf32>
    %179 = arith.minimumf %178, %177 : vector<32x32xf32>
    %c2152 = arith.constant 2152 : index
    %c0_74 = arith.constant 0 : index
    %180 = vector.load %arg3[%c2152, %c0_74] : memref<3840x64xbf16, #tpu.memory_space<vmem>>, vector<32x16xbf16>
    %181 = arith.truncf %179 : vector<32x32xf32> to vector<32x32xbf16>
    %cst_75 = arith.constant dense<0.000000e+00> : vector<32x16xf32>
    %182 = tpu.matmul %181, %180, %cst_75 {dimension_numbers = #tpu.dot_dimension_numbers<[1], [0], [0], [1], [0, 0, 1, 1], [], []>} : vector<32x32xbf16>, vector<32x16xbf16>, vector<32x16xf32> -> vector<32x16xf32>
    %c72_76 = arith.constant 72 : index
    %c0_77 = arith.constant 0 : index
    %183 = vector.load %arg4[%c72_76, %c0_77] : memref<232x64xf32, #tpu.memory_space<vmem>>, vector<1x16xf32>
    %184 = vector.broadcast %183 : vector<1x16xf32> to vector<32x16xf32>
    %185 = arith.addf %182, %184 : vector<32x16xf32>
    %186 = arith.addf %185, %139 : vector<32x16xf32>
    %c2184 = arith.constant 2184 : index
    %c0_78 = arith.constant 0 : index
    %187 = vector.load %arg3[%c2184, %c0_78] : memref<3840x64xbf16, #tpu.memory_space<vmem>>, vector<16x32xbf16>
    %188 = arith.truncf %186 : vector<32x16xf32> to vector<32x16xbf16>
    %cst_79 = arith.constant dense<0.000000e+00> : vector<32x32xf32>
    %189 = tpu.matmul %188, %187, %cst_79 {dimension_numbers = #tpu.dot_dimension_numbers<[1], [0], [0], [1], [0, 0, 1, 1], [], []>} : vector<32x16xbf16>, vector<16x32xbf16>, vector<32x32xf32> -> vector<32x32xf32>
    %c80_80 = arith.constant 80 : index
    %c0_81 = arith.constant 0 : index
    %190 = vector.load %arg4[%c80_80, %c0_81] : memref<232x64xf32, #tpu.memory_space<vmem>>, vector<1x32xf32>
    %191 = vector.broadcast %190 : vector<1x32xf32> to vector<32x32xf32>
    %192 = arith.addf %189, %191 : vector<32x32xf32>
    %cst_82 = arith.constant 0.000000e+00 : f32
    %cst_83 = arith.constant 6.000000e+00 : f32
    %193 = vector.broadcast %cst_82 : f32 to vector<32x32xf32>
    %194 = arith.maximumf %193, %192 : vector<32x32xf32>
    %195 = vector.broadcast %cst_83 : f32 to vector<32x32xf32>
    %196 = arith.minimumf %195, %194 : vector<32x32xf32>
    %c1560_84 = arith.constant 1560 : index
    %c0_85 = arith.constant 0 : index
    %197 = vector.load %arg3[%c1560_84, %c0_85] : memref<3840x64xbf16, #tpu.memory_space<vmem>>, vector<288x32xbf16>
    %198 = arith.truncf %196 : vector<32x32xf32> to vector<32x32xbf16>
    %cst_86 = arith.constant dense<0.000000e+00> : vector<288x32xf32>
    %199 = tpu.matmul %197, %198, %cst_86 {dimension_numbers = #tpu.dot_dimension_numbers<[1], [0], [0], [1], [0, 0, 1, 1], [], []>} : vector<288x32xbf16>, vector<32x32xbf16>, vector<288x32xf32> -> vector<288x32xf32>
    %c2200 = arith.constant 2200 : index
    %c0_87 = arith.constant 0 : index
    %200 = vector.load %arg3[%c2200, %c0_87] : memref<3840x64xbf16, #tpu.memory_space<vmem>>, vector<288x32xbf16>
    %201 = arith.extf %200 : vector<288x32xbf16> to vector<288x32xf32>
    %202 = arith.mulf %199, %201 : vector<288x32xf32>
    %203 = vector.extract_strided_slice %202 {offsets = [0, 0], sizes = [32, 32], strides = [1, 1]} : vector<288x32xf32> to vector<32x32xf32>
    %204 = vector.extract_strided_slice %202 {offsets = [32, 0], sizes = [32, 32], strides = [1, 1]} : vector<288x32xf32> to vector<32x32xf32>
    %205 = arith.addf %203, %204 : vector<32x32xf32>
    %206 = vector.extract_strided_slice %202 {offsets = [64, 0], sizes = [32, 32], strides = [1, 1]} : vector<288x32xf32> to vector<32x32xf32>
    %207 = arith.addf %205, %206 : vector<32x32xf32>
    %208 = vector.extract_strided_slice %202 {offsets = [96, 0], sizes = [32, 32], strides = [1, 1]} : vector<288x32xf32> to vector<32x32xf32>
    %209 = arith.addf %207, %208 : vector<32x32xf32>
    %210 = vector.extract_strided_slice %202 {offsets = [128, 0], sizes = [32, 32], strides = [1, 1]} : vector<288x32xf32> to vector<32x32xf32>
    %211 = arith.addf %209, %210 : vector<32x32xf32>
    %212 = vector.extract_strided_slice %202 {offsets = [160, 0], sizes = [32, 32], strides = [1, 1]} : vector<288x32xf32> to vector<32x32xf32>
    %213 = arith.addf %211, %212 : vector<32x32xf32>
    %214 = vector.extract_strided_slice %202 {offsets = [192, 0], sizes = [32, 32], strides = [1, 1]} : vector<288x32xf32> to vector<32x32xf32>
    %215 = arith.addf %213, %214 : vector<32x32xf32>
    %216 = vector.extract_strided_slice %202 {offsets = [224, 0], sizes = [32, 32], strides = [1, 1]} : vector<288x32xf32> to vector<32x32xf32>
    %217 = arith.addf %215, %216 : vector<32x32xf32>
    %218 = vector.extract_strided_slice %202 {offsets = [256, 0], sizes = [32, 32], strides = [1, 1]} : vector<288x32xf32> to vector<32x32xf32>
    %219 = arith.addf %217, %218 : vector<32x32xf32>
    %c88 = arith.constant 88 : index
    %c0_88 = arith.constant 0 : index
    %220 = vector.load %arg4[%c88, %c0_88] : memref<232x64xf32, #tpu.memory_space<vmem>>, vector<1x32xf32>
    %221 = vector.broadcast %220 : vector<1x32xf32> to vector<32x32xf32>
    %222 = arith.addf %219, %221 : vector<32x32xf32>
    %cst_89 = arith.constant 0.000000e+00 : f32
    %cst_90 = arith.constant 6.000000e+00 : f32
    %223 = vector.broadcast %cst_89 : f32 to vector<32x32xf32>
    %224 = arith.maximumf %223, %222 : vector<32x32xf32>
    %225 = vector.broadcast %cst_90 : f32 to vector<32x32xf32>
    %226 = arith.minimumf %225, %224 : vector<32x32xf32>
    %c2488 = arith.constant 2488 : index
    %c0_91 = arith.constant 0 : index
    %227 = vector.load %arg3[%c2488, %c0_91] : memref<3840x64xbf16, #tpu.memory_space<vmem>>, vector<32x16xbf16>
    %228 = arith.truncf %226 : vector<32x32xf32> to vector<32x32xbf16>
    %cst_92 = arith.constant dense<0.000000e+00> : vector<32x16xf32>
    %229 = tpu.matmul %228, %227, %cst_92 {dimension_numbers = #tpu.dot_dimension_numbers<[1], [0], [0], [1], [0, 0, 1, 1], [], []>} : vector<32x32xbf16>, vector<32x16xbf16>, vector<32x16xf32> -> vector<32x16xf32>
    %c96 = arith.constant 96 : index
    %c0_93 = arith.constant 0 : index
    %230 = vector.load %arg4[%c96, %c0_93] : memref<232x64xf32, #tpu.memory_space<vmem>>, vector<1x16xf32>
    %231 = vector.broadcast %230 : vector<1x16xf32> to vector<32x16xf32>
    %232 = arith.addf %229, %231 : vector<32x16xf32>
    %233 = arith.addf %232, %186 : vector<32x16xf32>
    %c2520 = arith.constant 2520 : index
    %c0_94 = arith.constant 0 : index
    %234 = vector.load %arg3[%c2520, %c0_94] : memref<3840x64xbf16, #tpu.memory_space<vmem>>, vector<16x32xbf16>
    %235 = arith.truncf %233 : vector<32x16xf32> to vector<32x16xbf16>
    %cst_95 = arith.constant dense<0.000000e+00> : vector<32x32xf32>
    %236 = tpu.matmul %235, %234, %cst_95 {dimension_numbers = #tpu.dot_dimension_numbers<[1], [0], [0], [1], [0, 0, 1, 1], [], []>} : vector<32x16xbf16>, vector<16x32xbf16>, vector<32x32xf32> -> vector<32x32xf32>
    %c104 = arith.constant 104 : index
    %c0_96 = arith.constant 0 : index
    %237 = vector.load %arg4[%c104, %c0_96] : memref<232x64xf32, #tpu.memory_space<vmem>>, vector<1x32xf32>
    %238 = vector.broadcast %237 : vector<1x32xf32> to vector<32x32xf32>
    %239 = arith.addf %236, %238 : vector<32x32xf32>
    %cst_97 = arith.constant 0.000000e+00 : f32
    %cst_98 = arith.constant 6.000000e+00 : f32
    %240 = vector.broadcast %cst_97 : f32 to vector<32x32xf32>
    %241 = arith.maximumf %240, %239 : vector<32x32xf32>
    %242 = vector.broadcast %cst_98 : f32 to vector<32x32xf32>
    %243 = arith.minimumf %242, %241 : vector<32x32xf32>
    %c1560_99 = arith.constant 1560 : index
    %c0_100 = arith.constant 0 : index
    %244 = vector.load %arg3[%c1560_99, %c0_100] : memref<3840x64xbf16, #tpu.memory_space<vmem>>, vector<288x32xbf16>
    %245 = arith.truncf %243 : vector<32x32xf32> to vector<32x32xbf16>
    %cst_101 = arith.constant dense<0.000000e+00> : vector<288x32xf32>
    %246 = tpu.matmul %244, %245, %cst_101 {dimension_numbers = #tpu.dot_dimension_numbers<[1], [0], [0], [1], [0, 0, 1, 1], [], []>} : vector<288x32xbf16>, vector<32x32xbf16>, vector<288x32xf32> -> vector<288x32xf32>
    %c2536 = arith.constant 2536 : index
    %c0_102 = arith.constant 0 : index
    %247 = vector.load %arg3[%c2536, %c0_102] : memref<3840x64xbf16, #tpu.memory_space<vmem>>, vector<288x32xbf16>
    %248 = arith.extf %247 : vector<288x32xbf16> to vector<288x32xf32>
    %249 = arith.mulf %246, %248 : vector<288x32xf32>
    %250 = vector.extract_strided_slice %249 {offsets = [0, 0], sizes = [32, 32], strides = [1, 1]} : vector<288x32xf32> to vector<32x32xf32>
    %251 = vector.extract_strided_slice %249 {offsets = [32, 0], sizes = [32, 32], strides = [1, 1]} : vector<288x32xf32> to vector<32x32xf32>
    %252 = arith.addf %250, %251 : vector<32x32xf32>
    %253 = vector.extract_strided_slice %249 {offsets = [64, 0], sizes = [32, 32], strides = [1, 1]} : vector<288x32xf32> to vector<32x32xf32>
    %254 = arith.addf %252, %253 : vector<32x32xf32>
    %255 = vector.extract_strided_slice %249 {offsets = [96, 0], sizes = [32, 32], strides = [1, 1]} : vector<288x32xf32> to vector<32x32xf32>
    %256 = arith.addf %254, %255 : vector<32x32xf32>
    %257 = vector.extract_strided_slice %249 {offsets = [128, 0], sizes = [32, 32], strides = [1, 1]} : vector<288x32xf32> to vector<32x32xf32>
    %258 = arith.addf %256, %257 : vector<32x32xf32>
    %259 = vector.extract_strided_slice %249 {offsets = [160, 0], sizes = [32, 32], strides = [1, 1]} : vector<288x32xf32> to vector<32x32xf32>
    %260 = arith.addf %258, %259 : vector<32x32xf32>
    %261 = vector.extract_strided_slice %249 {offsets = [192, 0], sizes = [32, 32], strides = [1, 1]} : vector<288x32xf32> to vector<32x32xf32>
    %262 = arith.addf %260, %261 : vector<32x32xf32>
    %263 = vector.extract_strided_slice %249 {offsets = [224, 0], sizes = [32, 32], strides = [1, 1]} : vector<288x32xf32> to vector<32x32xf32>
    %264 = arith.addf %262, %263 : vector<32x32xf32>
    %265 = vector.extract_strided_slice %249 {offsets = [256, 0], sizes = [32, 32], strides = [1, 1]} : vector<288x32xf32> to vector<32x32xf32>
    %266 = arith.addf %264, %265 : vector<32x32xf32>
    %c112 = arith.constant 112 : index
    %c0_103 = arith.constant 0 : index
    %267 = vector.load %arg4[%c112, %c0_103] : memref<232x64xf32, #tpu.memory_space<vmem>>, vector<1x32xf32>
    %268 = vector.broadcast %267 : vector<1x32xf32> to vector<32x32xf32>
    %269 = arith.addf %266, %268 : vector<32x32xf32>
    %cst_104 = arith.constant 0.000000e+00 : f32
    %cst_105 = arith.constant 6.000000e+00 : f32
    %270 = vector.broadcast %cst_104 : f32 to vector<32x32xf32>
    %271 = arith.maximumf %270, %269 : vector<32x32xf32>
    %272 = vector.broadcast %cst_105 : f32 to vector<32x32xf32>
    %273 = arith.minimumf %272, %271 : vector<32x32xf32>
    %c2824 = arith.constant 2824 : index
    %c0_106 = arith.constant 0 : index
    %274 = vector.load %arg3[%c2824, %c0_106] : memref<3840x64xbf16, #tpu.memory_space<vmem>>, vector<32x16xbf16>
    %275 = arith.truncf %273 : vector<32x32xf32> to vector<32x32xbf16>
    %cst_107 = arith.constant dense<0.000000e+00> : vector<32x16xf32>
    %276 = tpu.matmul %275, %274, %cst_107 {dimension_numbers = #tpu.dot_dimension_numbers<[1], [0], [0], [1], [0, 0, 1, 1], [], []>} : vector<32x32xbf16>, vector<32x16xbf16>, vector<32x16xf32> -> vector<32x16xf32>
    %c120 = arith.constant 120 : index
    %c0_108 = arith.constant 0 : index
    %277 = vector.load %arg4[%c120, %c0_108] : memref<232x64xf32, #tpu.memory_space<vmem>>, vector<1x16xf32>
    %278 = vector.broadcast %277 : vector<1x16xf32> to vector<32x16xf32>
    %279 = arith.addf %276, %278 : vector<32x16xf32>
    %280 = arith.addf %279, %233 : vector<32x16xf32>
    %c2856 = arith.constant 2856 : index
    %c0_109 = arith.constant 0 : index
    %281 = vector.load %arg3[%c2856, %c0_109] : memref<3840x64xbf16, #tpu.memory_space<vmem>>, vector<16x32xbf16>
    %282 = arith.truncf %280 : vector<32x16xf32> to vector<32x16xbf16>
    %cst_110 = arith.constant dense<0.000000e+00> : vector<32x32xf32>
    %283 = tpu.matmul %282, %281, %cst_110 {dimension_numbers = #tpu.dot_dimension_numbers<[1], [0], [0], [1], [0, 0, 1, 1], [], []>} : vector<32x16xbf16>, vector<16x32xbf16>, vector<32x32xf32> -> vector<32x32xf32>
    %c128 = arith.constant 128 : index
    %c0_111 = arith.constant 0 : index
    %284 = vector.load %arg4[%c128, %c0_111] : memref<232x64xf32, #tpu.memory_space<vmem>>, vector<1x32xf32>
    %285 = vector.broadcast %284 : vector<1x32xf32> to vector<32x32xf32>
    %286 = arith.addf %283, %285 : vector<32x32xf32>
    %cst_112 = arith.constant 0.000000e+00 : f32
    %cst_113 = arith.constant 6.000000e+00 : f32
    %287 = vector.broadcast %cst_112 : f32 to vector<32x32xf32>
    %288 = arith.maximumf %287, %286 : vector<32x32xf32>
    %289 = vector.broadcast %cst_113 : f32 to vector<32x32xf32>
    %290 = arith.minimumf %289, %288 : vector<32x32xf32>
    %c1560_114 = arith.constant 1560 : index
    %c0_115 = arith.constant 0 : index
    %291 = vector.load %arg3[%c1560_114, %c0_115] : memref<3840x64xbf16, #tpu.memory_space<vmem>>, vector<288x32xbf16>
    %292 = arith.truncf %290 : vector<32x32xf32> to vector<32x32xbf16>
    %cst_116 = arith.constant dense<0.000000e+00> : vector<288x32xf32>
    %293 = tpu.matmul %291, %292, %cst_116 {dimension_numbers = #tpu.dot_dimension_numbers<[1], [0], [0], [1], [0, 0, 1, 1], [], []>} : vector<288x32xbf16>, vector<32x32xbf16>, vector<288x32xf32> -> vector<288x32xf32>
    %c2872 = arith.constant 2872 : index
    %c0_117 = arith.constant 0 : index
    %294 = vector.load %arg3[%c2872, %c0_117] : memref<3840x64xbf16, #tpu.memory_space<vmem>>, vector<288x32xbf16>
    %295 = arith.extf %294 : vector<288x32xbf16> to vector<288x32xf32>
    %296 = arith.mulf %293, %295 : vector<288x32xf32>
    %297 = vector.extract_strided_slice %296 {offsets = [0, 0], sizes = [32, 32], strides = [1, 1]} : vector<288x32xf32> to vector<32x32xf32>
    %298 = vector.extract_strided_slice %296 {offsets = [32, 0], sizes = [32, 32], strides = [1, 1]} : vector<288x32xf32> to vector<32x32xf32>
    %299 = arith.addf %297, %298 : vector<32x32xf32>
    %300 = vector.extract_strided_slice %296 {offsets = [64, 0], sizes = [32, 32], strides = [1, 1]} : vector<288x32xf32> to vector<32x32xf32>
    %301 = arith.addf %299, %300 : vector<32x32xf32>
    %302 = vector.extract_strided_slice %296 {offsets = [96, 0], sizes = [32, 32], strides = [1, 1]} : vector<288x32xf32> to vector<32x32xf32>
    %303 = arith.addf %301, %302 : vector<32x32xf32>
    %304 = vector.extract_strided_slice %296 {offsets = [128, 0], sizes = [32, 32], strides = [1, 1]} : vector<288x32xf32> to vector<32x32xf32>
    %305 = arith.addf %303, %304 : vector<32x32xf32>
    %306 = vector.extract_strided_slice %296 {offsets = [160, 0], sizes = [32, 32], strides = [1, 1]} : vector<288x32xf32> to vector<32x32xf32>
    %307 = arith.addf %305, %306 : vector<32x32xf32>
    %308 = vector.extract_strided_slice %296 {offsets = [192, 0], sizes = [32, 32], strides = [1, 1]} : vector<288x32xf32> to vector<32x32xf32>
    %309 = arith.addf %307, %308 : vector<32x32xf32>
    %310 = vector.extract_strided_slice %296 {offsets = [224, 0], sizes = [32, 32], strides = [1, 1]} : vector<288x32xf32> to vector<32x32xf32>
    %311 = arith.addf %309, %310 : vector<32x32xf32>
    %312 = vector.extract_strided_slice %296 {offsets = [256, 0], sizes = [32, 32], strides = [1, 1]} : vector<288x32xf32> to vector<32x32xf32>
    %313 = arith.addf %311, %312 : vector<32x32xf32>
    %c136 = arith.constant 136 : index
    %c0_118 = arith.constant 0 : index
    %314 = vector.load %arg4[%c136, %c0_118] : memref<232x64xf32, #tpu.memory_space<vmem>>, vector<1x32xf32>
    %315 = vector.broadcast %314 : vector<1x32xf32> to vector<32x32xf32>
    %316 = arith.addf %313, %315 : vector<32x32xf32>
    %cst_119 = arith.constant 0.000000e+00 : f32
    %cst_120 = arith.constant 6.000000e+00 : f32
    %317 = vector.broadcast %cst_119 : f32 to vector<32x32xf32>
    %318 = arith.maximumf %317, %316 : vector<32x32xf32>
    %319 = vector.broadcast %cst_120 : f32 to vector<32x32xf32>
    %320 = arith.minimumf %319, %318 : vector<32x32xf32>
    %c3160 = arith.constant 3160 : index
    %c0_121 = arith.constant 0 : index
    %321 = vector.load %arg3[%c3160, %c0_121] : memref<3840x64xbf16, #tpu.memory_space<vmem>>, vector<32x16xbf16>
    %322 = arith.truncf %320 : vector<32x32xf32> to vector<32x32xbf16>
    %cst_122 = arith.constant dense<0.000000e+00> : vector<32x16xf32>
    %323 = tpu.matmul %322, %321, %cst_122 {dimension_numbers = #tpu.dot_dimension_numbers<[1], [0], [0], [1], [0, 0, 1, 1], [], []>} : vector<32x32xbf16>, vector<32x16xbf16>, vector<32x16xf32> -> vector<32x16xf32>
    %c144 = arith.constant 144 : index
    %c0_123 = arith.constant 0 : index
    %324 = vector.load %arg4[%c144, %c0_123] : memref<232x64xf32, #tpu.memory_space<vmem>>, vector<1x16xf32>
    %325 = vector.broadcast %324 : vector<1x16xf32> to vector<32x16xf32>
    %326 = arith.addf %323, %325 : vector<32x16xf32>
    %327 = arith.addf %326, %280 : vector<32x16xf32>
    %c0_124 = arith.constant 0 : index
    %c0_125 = arith.constant 0 : index
    %328 = vector.load %arg5[%c0_124, %c0_125] : memref<32x16xf32, #tpu.memory_space<vmem>>, vector<32x16xf32>
    tpu.vector_store %arg5[%c0_124, %c0_125], %327 {strides = array<i32>} : memref<32x16xf32, #tpu.memory_space<vmem>>, vector<32x16xf32>,
    %c3264 = arith.constant 3264 : index
    %c0_126 = arith.constant 0 : index
    %329 = vector.load %arg3[%c3264, %c0_126] : memref<3840x64xbf16, #tpu.memory_space<vmem>>, vector<16x32xbf16>
    %330 = arith.truncf %327 : vector<32x16xf32> to vector<32x16xbf16>
    %cst_127 = arith.constant dense<0.000000e+00> : vector<32x32xf32>
    %331 = tpu.matmul %330, %329, %cst_127 {dimension_numbers = #tpu.dot_dimension_numbers<[1], [0], [0], [1], [0, 0, 1, 1], [], []>} : vector<32x16xbf16>, vector<16x32xbf16>, vector<32x32xf32> -> vector<32x32xf32>
    %c152 = arith.constant 152 : index
    %c0_128 = arith.constant 0 : index
    %332 = vector.load %arg4[%c152, %c0_128] : memref<232x64xf32, #tpu.memory_space<vmem>>, vector<1x32xf32>
    %333 = vector.broadcast %332 : vector<1x32xf32> to vector<32x32xf32>
    %334 = arith.addf %331, %333 : vector<32x32xf32>
    %cst_129 = arith.constant 0.000000e+00 : f32
    %cst_130 = arith.constant 6.000000e+00 : f32
    %335 = vector.broadcast %cst_129 : f32 to vector<32x32xf32>
    %336 = arith.maximumf %335, %334 : vector<32x32xf32>
    %337 = vector.broadcast %cst_130 : f32 to vector<32x32xf32>
    %338 = arith.minimumf %337, %336 : vector<32x32xf32>
    %c3192 = arith.constant 3192 : index
    %c0_131 = arith.constant 0 : index
    %339 = vector.load %arg3[%c3192, %c0_131] : memref<3840x64xbf16, #tpu.memory_space<vmem>>, vector<72x32xbf16>
    %340 = arith.truncf %338 : vector<32x32xf32> to vector<32x32xbf16>
    %cst_132 = arith.constant dense<0.000000e+00> : vector<72x32xf32>
    %341 = tpu.matmul %339, %340, %cst_132 {dimension_numbers = #tpu.dot_dimension_numbers<[1], [0], [0], [1], [0, 0, 1, 1], [], []>} : vector<72x32xbf16>, vector<32x32xbf16>, vector<72x32xf32> -> vector<72x32xf32>
    %c3280 = arith.constant 3280 : index
    %c0_133 = arith.constant 0 : index
    %342 = vector.load %arg3[%c3280, %c0_133] : memref<3840x64xbf16, #tpu.memory_space<vmem>>, vector<72x32xbf16>
    %343 = arith.extf %342 : vector<72x32xbf16> to vector<72x32xf32>
    %344 = arith.mulf %341, %343 : vector<72x32xf32>
    %345 = vector.extract_strided_slice %344 {offsets = [0, 0], sizes = [8, 32], strides = [1, 1]} : vector<72x32xf32> to vector<8x32xf32>
    %346 = vector.extract_strided_slice %344 {offsets = [8, 0], sizes = [8, 32], strides = [1, 1]} : vector<72x32xf32> to vector<8x32xf32>
    %347 = arith.addf %345, %346 : vector<8x32xf32>
    %348 = vector.extract_strided_slice %344 {offsets = [16, 0], sizes = [8, 32], strides = [1, 1]} : vector<72x32xf32> to vector<8x32xf32>
    %349 = arith.addf %347, %348 : vector<8x32xf32>
    %350 = vector.extract_strided_slice %344 {offsets = [24, 0], sizes = [8, 32], strides = [1, 1]} : vector<72x32xf32> to vector<8x32xf32>
    %351 = arith.addf %349, %350 : vector<8x32xf32>
    %352 = vector.extract_strided_slice %344 {offsets = [32, 0], sizes = [8, 32], strides = [1, 1]} : vector<72x32xf32> to vector<8x32xf32>
    %353 = arith.addf %351, %352 : vector<8x32xf32>
    %354 = vector.extract_strided_slice %344 {offsets = [40, 0], sizes = [8, 32], strides = [1, 1]} : vector<72x32xf32> to vector<8x32xf32>
    %355 = arith.addf %353, %354 : vector<8x32xf32>
    %356 = vector.extract_strided_slice %344 {offsets = [48, 0], sizes = [8, 32], strides = [1, 1]} : vector<72x32xf32> to vector<8x32xf32>
    %357 = arith.addf %355, %356 : vector<8x32xf32>
    %358 = vector.extract_strided_slice %344 {offsets = [56, 0], sizes = [8, 32], strides = [1, 1]} : vector<72x32xf32> to vector<8x32xf32>
    %359 = arith.addf %357, %358 : vector<8x32xf32>
    %360 = vector.extract_strided_slice %344 {offsets = [64, 0], sizes = [8, 32], strides = [1, 1]} : vector<72x32xf32> to vector<8x32xf32>
    %361 = arith.addf %359, %360 : vector<8x32xf32>
    %c160 = arith.constant 160 : index
    %c0_134 = arith.constant 0 : index
    %362 = vector.load %arg4[%c160, %c0_134] : memref<232x64xf32, #tpu.memory_space<vmem>>, vector<1x32xf32>
    %363 = vector.broadcast %362 : vector<1x32xf32> to vector<8x32xf32>
    %364 = arith.addf %361, %363 : vector<8x32xf32>
    %cst_135 = arith.constant 0.000000e+00 : f32
    %cst_136 = arith.constant 6.000000e+00 : f32
    %365 = vector.broadcast %cst_135 : f32 to vector<8x32xf32>
    %366 = arith.maximumf %365, %364 : vector<8x32xf32>
    %367 = vector.broadcast %cst_136 : f32 to vector<8x32xf32>
    %368 = arith.minimumf %367, %366 : vector<8x32xf32>
    %c3352 = arith.constant 3352 : index
    %c0_137 = arith.constant 0 : index
    %369 = vector.load %arg3[%c3352, %c0_137] : memref<3840x64xbf16, #tpu.memory_space<vmem>>, vector<32x32xbf16>
    %370 = arith.truncf %368 : vector<8x32xf32> to vector<8x32xbf16>
    %cst_138 = arith.constant dense<0.000000e+00> : vector<8x32xf32>
    %371 = tpu.matmul %370, %369, %cst_138 {dimension_numbers = #tpu.dot_dimension_numbers<[1], [0], [0], [1], [0, 0, 1, 1], [], []>} : vector<8x32xbf16>, vector<32x32xbf16>, vector<8x32xf32> -> vector<8x32xf32>
    %c168 = arith.constant 168 : index
    %c0_139 = arith.constant 0 : index
    %372 = vector.load %arg4[%c168, %c0_139] : memref<232x64xf32, #tpu.memory_space<vmem>>, vector<1x32xf32>
    %373 = vector.broadcast %372 : vector<1x32xf32> to vector<8x32xf32>
    %374 = arith.addf %371, %373 : vector<8x32xf32>
    %c3456 = arith.constant 3456 : index
    %c0_140 = arith.constant 0 : index
    %375 = vector.load %arg3[%c3456, %c0_140] : memref<3840x64xbf16, #tpu.memory_space<vmem>>, vector<32x64xbf16>
    %376 = arith.truncf %374 : vector<8x32xf32> to vector<8x32xbf16>
    %cst_141 = arith.constant dense<0.000000e+00> : vector<8x64xf32>
    %377 = tpu.matmul %376, %375, %cst_141 {dimension_numbers = #tpu.dot_dimension_numbers<[1], [0], [0], [1], [0, 0, 1, 1], [], []>} : vector<8x32xbf16>, vector<32x64xbf16>, vector<8x64xf32> -> vector<8x64xf32>
    %c176 = arith.constant 176 : index
    %c0_142 = arith.constant 0 : index
    %378 = vector.load %arg4[%c176, %c0_142] : memref<232x64xf32, #tpu.memory_space<vmem>>, vector<1x64xf32>
    %379 = vector.broadcast %378 : vector<1x64xf32> to vector<8x64xf32>
    %380 = arith.addf %377, %379 : vector<8x64xf32>
    %cst_143 = arith.constant 0.000000e+00 : f32
    %cst_144 = arith.constant 6.000000e+00 : f32
    %381 = vector.broadcast %cst_143 : f32 to vector<8x64xf32>
    %382 = arith.maximumf %381, %380 : vector<8x64xf32>
    %383 = vector.broadcast %cst_144 : f32 to vector<8x64xf32>
    %384 = arith.minimumf %383, %382 : vector<8x64xf32>
    %c3384 = arith.constant 3384 : index
    %c0_145 = arith.constant 0 : index
    %385 = vector.load %arg3[%c3384, %c0_145] : memref<3840x64xbf16, #tpu.memory_space<vmem>>, vector<72x8xbf16>
    %386 = arith.truncf %384 : vector<8x64xf32> to vector<8x64xbf16>
    %cst_146 = arith.constant dense<0.000000e+00> : vector<72x64xf32>
    %387 = tpu.matmul %385, %386, %cst_146 {dimension_numbers = #tpu.dot_dimension_numbers<[1], [0], [0], [1], [0, 0, 1, 1], [], []>} : vector<72x8xbf16>, vector<8x64xbf16>, vector<72x64xf32> -> vector<72x64xf32>
    %c3488 = arith.constant 3488 : index
    %c0_147 = arith.constant 0 : index
    %388 = vector.load %arg3[%c3488, %c0_147] : memref<3840x64xbf16, #tpu.memory_space<vmem>>, vector<72x64xbf16>
    %389 = arith.extf %388 : vector<72x64xbf16> to vector<72x64xf32>
    %390 = arith.mulf %387, %389 : vector<72x64xf32>
    %391 = vector.extract_strided_slice %390 {offsets = [0, 0], sizes = [8, 64], strides = [1, 1]} : vector<72x64xf32> to vector<8x64xf32>
    %392 = vector.extract_strided_slice %390 {offsets = [8, 0], sizes = [8, 64], strides = [1, 1]} : vector<72x64xf32> to vector<8x64xf32>
    %393 = arith.addf %391, %392 : vector<8x64xf32>
    %394 = vector.extract_strided_slice %390 {offsets = [16, 0], sizes = [8, 64], strides = [1, 1]} : vector<72x64xf32> to vector<8x64xf32>
    %395 = arith.addf %393, %394 : vector<8x64xf32>
    %396 = vector.extract_strided_slice %390 {offsets = [24, 0], sizes = [8, 64], strides = [1, 1]} : vector<72x64xf32> to vector<8x64xf32>
    %397 = arith.addf %395, %396 : vector<8x64xf32>
    %398 = vector.extract_strided_slice %390 {offsets = [32, 0], sizes = [8, 64], strides = [1, 1]} : vector<72x64xf32> to vector<8x64xf32>
    %399 = arith.addf %397, %398 : vector<8x64xf32>
    %400 = vector.extract_strided_slice %390 {offsets = [40, 0], sizes = [8, 64], strides = [1, 1]} : vector<72x64xf32> to vector<8x64xf32>
    %401 = arith.addf %399, %400 : vector<8x64xf32>
    %402 = vector.extract_strided_slice %390 {offsets = [48, 0], sizes = [8, 64], strides = [1, 1]} : vector<72x64xf32> to vector<8x64xf32>
    %403 = arith.addf %401, %402 : vector<8x64xf32>
    %404 = vector.extract_strided_slice %390 {offsets = [56, 0], sizes = [8, 64], strides = [1, 1]} : vector<72x64xf32> to vector<8x64xf32>
    %405 = arith.addf %403, %404 : vector<8x64xf32>
    %406 = vector.extract_strided_slice %390 {offsets = [64, 0], sizes = [8, 64], strides = [1, 1]} : vector<72x64xf32> to vector<8x64xf32>
    %407 = arith.addf %405, %406 : vector<8x64xf32>
    %c184 = arith.constant 184 : index
    %c0_148 = arith.constant 0 : index
    %408 = vector.load %arg4[%c184, %c0_148] : memref<232x64xf32, #tpu.memory_space<vmem>>, vector<1x64xf32>
    %409 = vector.broadcast %408 : vector<1x64xf32> to vector<8x64xf32>
    %410 = arith.addf %407, %409 : vector<8x64xf32>
    %cst_149 = arith.constant 0.000000e+00 : f32
    %cst_150 = arith.constant 6.000000e+00 : f32
    %411 = vector.broadcast %cst_149 : f32 to vector<8x64xf32>
    %412 = arith.maximumf %411, %410 : vector<8x64xf32>
    %413 = vector.broadcast %cst_150 : f32 to vector<8x64xf32>
    %414 = arith.minimumf %413, %412 : vector<8x64xf32>
    %c3560 = arith.constant 3560 : index
    %c0_151 = arith.constant 0 : index
    %415 = vector.load %arg3[%c3560, %c0_151] : memref<3840x64xbf16, #tpu.memory_space<vmem>>, vector<64x32xbf16>
    %416 = arith.truncf %414 : vector<8x64xf32> to vector<8x64xbf16>
    %cst_152 = arith.constant dense<0.000000e+00> : vector<8x32xf32>
    %417 = tpu.matmul %416, %415, %cst_152 {dimension_numbers = #tpu.dot_dimension_numbers<[1], [0], [0], [1], [0, 0, 1, 1], [], []>} : vector<8x64xbf16>, vector<64x32xbf16>, vector<8x32xf32> -> vector<8x32xf32>
    %c192 = arith.constant 192 : index
    %c0_153 = arith.constant 0 : index
    %418 = vector.load %arg4[%c192, %c0_153] : memref<232x64xf32, #tpu.memory_space<vmem>>, vector<1x32xf32>
    %419 = vector.broadcast %418 : vector<1x32xf32> to vector<8x32xf32>
    %420 = arith.addf %417, %419 : vector<8x32xf32>
    %421 = arith.addf %420, %374 : vector<8x32xf32>
    %c0_154 = arith.constant 0 : index
    %c0_155 = arith.constant 0 : index
    %422 = vector.load %arg6[%c0_154, %c0_155] : memref<8x32xf32, #tpu.memory_space<vmem>>, vector<8x32xf32>
    tpu.vector_store %arg6[%c0_154, %c0_155], %421 {strides = array<i32>} : memref<8x32xf32, #tpu.memory_space<vmem>>, vector<8x32xf32>,
    %c3624 = arith.constant 3624 : index
    %c0_156 = arith.constant 0 : index
    %423 = vector.load %arg3[%c3624, %c0_156] : memref<3840x64xbf16, #tpu.memory_space<vmem>>, vector<32x16xbf16>
    %424 = arith.truncf %421 : vector<8x32xf32> to vector<8x32xbf16>
    %cst_157 = arith.constant dense<0.000000e+00> : vector<8x16xf32>
    %425 = tpu.matmul %424, %423, %cst_157 {dimension_numbers = #tpu.dot_dimension_numbers<[1], [0], [0], [1], [0, 0, 1, 1], [], []>} : vector<8x32xbf16>, vector<32x16xbf16>, vector<8x16xf32> -> vector<8x16xf32>
    %c200 = arith.constant 200 : index
    %c0_158 = arith.constant 0 : index
    %426 = vector.load %arg4[%c200, %c0_158] : memref<232x64xf32, #tpu.memory_space<vmem>>, vector<1x16xf32>
    %427 = vector.broadcast %426 : vector<1x16xf32> to vector<8x16xf32>
    %428 = arith.addf %425, %427 : vector<8x16xf32>
    %cst_159 = arith.constant 0.000000e+00 : f32
    %429 = vector.broadcast %cst_159 : f32 to vector<8x16xf32>
    %430 = arith.maximumf %428, %429 : vector<8x16xf32>
    %c1440 = arith.constant 1440 : index
    %c0_160 = arith.constant 0 : index
    %431 = vector.load %arg2[%c1440, %c0_160] : memref<1464x128xbf16, #tpu.memory_space<vmem>>, vector<16x128xbf16>
    %432 = arith.truncf %430 : vector<8x16xf32> to vector<8x16xbf16>
    %cst_161 = arith.constant dense<0.000000e+00> : vector<8x128xf32>
    %433 = tpu.matmul %432, %431, %cst_161 {dimension_numbers = #tpu.dot_dimension_numbers<[1], [0], [0], [1], [0, 0, 1, 1], [], []>} : vector<8x16xbf16>, vector<16x128xbf16>, vector<8x128xf32> -> vector<8x128xf32>
    %c1456 = arith.constant 1456 : index
    %c0_162 = arith.constant 0 : index
    %434 = vector.load %arg2[%c1456, %c0_162] : memref<1464x128xbf16, #tpu.memory_space<vmem>>, vector<8x128xbf16>
    %435 = arith.extf %434 : vector<8x128xbf16> to vector<8x128xf32>
    %436 = arith.mulf %433, %435 : vector<8x128xf32>
    %437 = arith.truncf %436 : vector<8x128xf32> to vector<8x128xbf16>
    %c3656 = arith.constant 3656 : index
    %c0_163 = arith.constant 0 : index
    %438 = vector.load %arg3[%c3656, %c0_163] : memref<3840x64xbf16, #tpu.memory_space<vmem>>, vector<128x32xbf16>
    %cst_164 = arith.constant dense<0.000000e+00> : vector<8x32xf32>
    %439 = tpu.matmul %437, %438, %cst_164 {dimension_numbers = #tpu.dot_dimension_numbers<[1], [0], [0], [1], [0, 0, 1, 1], [], []>} : vector<8x128xbf16>, vector<128x32xbf16>, vector<8x32xf32> -> vector<8x32xf32>
    %c3784 = arith.constant 3784 : index
    %c0_165 = arith.constant 0 : index
    %440 = vector.load %arg3[%c3784, %c0_165] : memref<3840x64xbf16, #tpu.memory_space<vmem>>, vector<8x8xbf16>
    %441 = arith.truncf %439 : vector<8x32xf32> to vector<8x32xbf16>
    %cst_166 = arith.constant dense<0.000000e+00> : vector<8x32xf32>
    %442 = tpu.matmul %440, %441, %cst_166 {dimension_numbers = #tpu.dot_dimension_numbers<[1], [0], [0], [1], [0, 0, 1, 1], [], []>} : vector<8x8xbf16>, vector<8x32xbf16>, vector<8x32xf32> -> vector<8x32xf32>
    %c208 = arith.constant 208 : index
    %c0_167 = arith.constant 0 : index
    %443 = vector.load %arg4[%c208, %c0_167] : memref<232x64xf32, #tpu.memory_space<vmem>>, vector<1x32xf32>
    %444 = vector.broadcast %443 : vector<1x32xf32> to vector<8x32xf32>
    %445 = arith.addf %442, %444 : vector<8x32xf32>
    %cst_168 = arith.constant 0.000000e+00 : f32
    %446 = vector.broadcast %cst_168 : f32 to vector<8x32xf32>
    %447 = arith.maximumf %445, %446 : vector<8x32xf32>
    %448 = vector.extract_strided_slice %447 {offsets = [0, 0], sizes = [2, 32], strides = [1, 1]} : vector<8x32xf32> to vector<2x32xf32>
    %c0_169 = arith.constant 0 : index
    %c0_170 = arith.constant 0 : index
    %449 = vector.load %arg7[%c0_169, %c0_170] : memref<2x32xf32, #tpu.memory_space<vmem>>, vector<2x32xf32>
    tpu.vector_store %arg7[%c0_169, %c0_170], %448 {strides = array<i32>} : memref<2x32xf32, #tpu.memory_space<vmem>>, vector<2x32xf32>,
    %c3792 = arith.constant 3792 : index
    %c0_171 = arith.constant 0 : index
    %450 = vector.load %arg3[%c3792, %c0_171] : memref<3840x64xbf16, #tpu.memory_space<vmem>>, vector<32x16xbf16>
    %451 = arith.truncf %447 : vector<8x32xf32> to vector<8x32xbf16>
    %cst_172 = arith.constant dense<0.000000e+00> : vector<8x16xf32>
    %452 = tpu.matmul %451, %450, %cst_172 {dimension_numbers = #tpu.dot_dimension_numbers<[1], [0], [0], [1], [0, 0, 1, 1], [], []>} : vector<8x32xbf16>, vector<32x16xbf16>, vector<8x16xf32> -> vector<8x16xf32>
    %c216 = arith.constant 216 : index
    %c0_173 = arith.constant 0 : index
    %453 = vector.load %arg4[%c216, %c0_173] : memref<232x64xf32, #tpu.memory_space<vmem>>, vector<1x16xf32>
    %454 = vector.broadcast %453 : vector<1x16xf32> to vector<8x16xf32>
    %455 = arith.addf %452, %454 : vector<8x16xf32>
    %cst_174 = arith.constant 0.000000e+00 : f32
    %456 = vector.broadcast %cst_174 : f32 to vector<8x16xf32>
    %457 = arith.maximumf %455, %456 : vector<8x16xf32>
    %c3824 = arith.constant 3824 : index
    %c0_175 = arith.constant 0 : index
    %458 = vector.load %arg3[%c3824, %c0_175] : memref<3840x64xbf16, #tpu.memory_space<vmem>>, vector<16x32xbf16>
    %459 = arith.truncf %457 : vector<8x16xf32> to vector<8x16xbf16>
    %cst_176 = arith.constant dense<0.000000e+00> : vector<8x32xf32>
    %460 = tpu.matmul %459, %458, %cst_176 {dimension_numbers = #tpu.dot_dimension_numbers<[1], [0], [0], [1], [0, 0, 1, 1], [], []>} : vector<8x16xbf16>, vector<16x32xbf16>, vector<8x32xf32> -> vector<8x32xf32>
    %c224 = arith.constant 224 : index
    %c0_177 = arith.constant 0 : index
    %461 = vector.load %arg4[%c224, %c0_177] : memref<232x64xf32, #tpu.memory_space<vmem>>, vector<1x32xf32>
    %462 = vector.broadcast %461 : vector<1x32xf32> to vector<8x32xf32>
    %463 = arith.addf %460, %462 : vector<8x32xf32>
    %cst_178 = arith.constant 0.000000e+00 : f32
    %464 = vector.broadcast %cst_178 : f32 to vector<8x32xf32>
    %465 = arith.maximumf %463, %464 : vector<8x32xf32>
    %466 = vector.extract_strided_slice %465 {offsets = [0, 0], sizes = [2, 32], strides = [1, 1]} : vector<8x32xf32> to vector<2x32xf32>
    %c0_179 = arith.constant 0 : index
    %c0_180 = arith.constant 0 : index
    %467 = vector.load %arg8[%c0_179, %c0_180] : memref<2x32xf32, #tpu.memory_space<vmem>>, vector<2x32xf32>
    tpu.vector_store %arg8[%c0_179, %c0_180], %466 {strides = array<i32>} : memref<2x32xf32, #tpu.memory_space<vmem>>, vector<2x32xf32>,
    return
  }
}

</mosaic_0001>

<llo_original>
// kernel: forward.1
$region0: #{forward.1}
  #allocation0 [shape = 'u32[]', space=smem, size = 0x4, offset = 0x4, fixed_abs, tag = 'smem constant byte address 0x4 - core index']
  #allocation1 [shape = 'u32[144,128]{1,0:T(1,128)}', space=vmem, size = 0x12000, scoped, tag = 'internal scratch']
  %s0 = inlined_call_operand.vmem [shape: f32[512,4], index: 0, kind: input, shape index: {}]
  %s1 = inlined_call_operand.vmem [shape: bf16[1152,512], index: 1, kind: input, shape index: {}]
  %s2 = inlined_call_operand.vmem [shape: bf16[1464,128], index: 2, kind: input, shape index: {}]
  %s3 = inlined_call_operand.vmem [shape: bf16[3840,64], index: 3, kind: input, shape index: {}]
  %s4 = inlined_call_operand.vmem [shape: f32[232,64], index: 4, kind: input, shape index: {}]
  %s5 = inlined_call_operand.hbm [shape: f32[32,16], index: 5, kind: output, shape index: {0}]
  %s6 = inlined_call_operand.hbm [shape: f32[8,32], index: 6, kind: output, shape index: {1}]
  %s7 = inlined_call_operand.hbm [shape: f32[2,32], index: 7, kind: output, shape index: {2}]
  %s8 = inlined_call_operand.hbm [shape: f32[2,32], index: 8, kind: output, shape index: {3}]
  %9 = xla_tuple %s5, %s6, %s7, %s8
  %s10 = sld [smem:[#allocation0]]
  $region54: #{forward.1} parent=0
    _
  %s12 = ssub.s32 1, %s10
  %s13 = scalar_select 0, %s12, %s10
  $region1: #{forward.1} parent=0
    #allocation2 [shape = 'u8[16384]{0}', space=vmem, size = 0x4000, scoped, tag = 'output window, operand 0, single buffered']
    #allocation3 [shape = 's32[1]{0}', space=sflag, size = 0x4, scoped, tag = 'scoped memory for forward.1']
    #allocation4 [shape = 'u8[4096]{0}', space=vmem, size = 0x1000, scoped, tag = 'output window, operand 1, single buffered']
    #allocation5 [shape = 's32[1]{0}', space=sflag, size = 0x4, scoped, tag = 'scoped memory for forward.1']
    #allocation6 [shape = 'u8[1024]{0}', space=vmem, size = 0x400, scoped, tag = 'output window, operand 2, single buffered']
    #allocation7 [shape = 'u8[1024]{0}', space=vmem, size = 0x400, scoped, tag = 'output window, operand 3, single buffered']
    #allocation8 [shape = 's32[1]{0}', space=sflag, size = 0x4, scoped, tag = 'scoped memory for forward.1']
    %14 = vsyncpa [#allocation3], 0
    %15 = vsyncpa [#allocation5], 0
    %16 = vsyncpa [#allocation8], 0
    // Predicated region
    $region2: #{forward.1} parent=1 // pred_check
      _
    $region3: #{forward.1} parent=1 // pred_check_branch
      %18 = sbr.rel (0) target = $region5
    $region4: #{forward.1} parent=1 // pred_region
      _
    $region5: #{forward.1} parent=1 // pred_fallthru
      _
    // Predicated region
    $region6: #{forward.1} parent=1 // pred_check
      _
    $region7: #{forward.1} parent=1 // pred_check_branch
      %20 = sbr.rel (0) target = $region9
    $region8: #{forward.1} parent=1 // pred_region
      _
    $region9: #{forward.1} parent=1 // pred_fallthru
      _
    // Predicated region
    $region10: #{forward.1} parent=1 // pred_check
      _
    $region11: #{forward.1} parent=1 // pred_check_branch
      %22 = sbr.rel (0) target = $region13
    $region12: #{forward.1} parent=1 // pred_region
      _
    $region13: #{forward.1} parent=1 // pred_fallthru
      _
    // Predicated region
    $region14: #{forward.1} parent=1 // pred_check
      _
    $region15: #{forward.1} parent=1 // pred_check_branch
      %24 = sbr.rel (0) target = $region17
    $region16: #{forward.1} parent=1 // pred_region
      _
    $region17: #{forward.1} parent=1 // pred_fallthru
      _
    // Predicated region
    $region18: #{forward.1} parent=1 // pred_check
      _
    $region19: #{forward.1} parent=1 // pred_check_branch
      %26 = sbr.rel (0) target = $region21
    $region20: #{forward.1} parent=1 // pred_region
      _
    $region21: #{forward.1} parent=1 // pred_fallthru
      _
    %v28 = vld [vmem:[%s0] sm:$0xff]
    %v29 = vld [vmem:[%s0 + $0x8] sm:$0xff]
    %v30 = vld [vmem:[%s0 + $0x10] sm:$0xff]
    %v31 = vld [vmem:[%s0 + $0x18] sm:$0xff]
    %v32 = vld [vmem:[%s0 + $0x20] sm:$0xff]
    %v33 = vld [vmem:[%s0 + $0x28] sm:$0xff]
    %v34 = vld [vmem:[%s0 + $0x30] sm:$0xff]
    %v35 = vld [vmem:[%s0 + $0x38] sm:$0xff]
    %v36 = vld [vmem:[%s0 + $0x40] sm:$0xff]
    %v37 = vld [vmem:[%s0 + $0x48] sm:$0xff]
    %v38 = vld [vmem:[%s0 + $0x50] sm:$0xff]
    %v39 = vld [vmem:[%s0 + $0x58] sm:$0xff]
    %v40 = vld [vmem:[%s0 + $0x60] sm:$0xff]
    %v41 = vld [vmem:[%s0 + $0x68] sm:$0xff]
    %v42 = vld [vmem:[%s0 + $0x70] sm:$0xff]
    %v43 = vld [vmem:[%s0 + $0x78] sm:$0xff]
    %v44 = vld [vmem:[%s0 + $0x80] sm:$0xff]
    %v45 = vld [vmem:[%s0 + $0x88] sm:$0xff]
    %v46 = vld [vmem:[%s0 + $0x90] sm:$0xff]
    %v47 = vld [vmem:[%s0 + $0x98] sm:$0xff]
    %v48 = vld [vmem:[%s0 + $0xa0] sm:$0xff]
    %v49 = vld [vmem:[%s0 + $0xa8] sm:$0xff]
    %v50 = vld [vmem:[%s0 + $0xb0] sm:$0xff]
    %v51 = vld [vmem:[%s0 + $0xb8] sm:$0xff]
    %v52 = vld [vmem:[%s0 + $0xc0] sm:$0xff]
    %v53 = vld [vmem:[%s0 + $0xc8] sm:$0xff]
    %v54 = vld [vmem:[%s0 + $0xd0] sm:$0xff]
    %v55 = vld [vmem:[%s0 + $0xd8] sm:$0xff]
    %v56 = vld [vmem:[%s0 + $0xe0] sm:$0xff]
    %v57 = vld [vmem:[%s0 + $0xe8] sm:$0xff]
    %v58 = vld [vmem:[%s0 + $0xf0] sm:$0xff]
    %v59 = vld [vmem:[%s0 + $0xf8] sm:$0xff]
    %v60 = vld [vmem:[%s0 + $0x100] sm:$0xff]
    %v61 = vld [vmem:[%s0 + $0x108] sm:$0xff]
    %v62 = vld [vmem:[%s0 + $0x110] sm:$0xff]
    %v63 = vld [vmem:[%s0 + $0x118] sm:$0xff]
    %v64 = vld [vmem:[%s0 + $0x120] sm:$0xff]
    %v65 = vld [vmem:[%s0 + $0x128] sm:$0xff]
    %v66 = vld [vmem:[%s0 + $0x130] sm:$0xff]
    %v67 = vld [vmem:[%s0 + $0x138] sm:$0xff]
    %v68 = vld [vmem:[%s0 + $0x140] sm:$0xff]
    %v69 = vld [vmem:[%s0 + $0x148] sm:$0xff]
    %v70 = vld [vmem:[%s0 + $0x150] sm:$0xff]
    %v71 = vld [vmem:[%s0 + $0x158] sm:$0xff]
    %v72 = vld [vmem:[%s0 + $0x160] sm:$0xff]
    %v73 = vld [vmem:[%s0 + $0x168] sm:$0xff]
    %v74 = vld [vmem:[%s0 + $0x170] sm:$0xff]
    %v75 = vld [vmem:[%s0 + $0x178] sm:$0xff]
    %v76 = vld [vmem:[%s0 + $0x180] sm:$0xff]
    %v77 = vld [vmem:[%s0 + $0x188] sm:$0xff]
    %v78 = vld [vmem:[%s0 + $0x190] sm:$0xff]
    %v79 = vld [vmem:[%s0 + $0x198] sm:$0xff]
    %v80 = vld [vmem:[%s0 + $0x1a0] sm:$0xff]
    %v81 = vld [vmem:[%s0 + $0x1a8] sm:$0xff]
    %v82 = vld [vmem:[%s0 + $0x1b0] sm:$0xff]
    %v83 = vld [vmem:[%s0 + $0x1b8] sm:$0xff]
    %v84 = vld [vmem:[%s0 + $0x1c0] sm:$0xff]
    %v85 = vld [vmem:[%s0 + $0x1c8] sm:$0xff]
    %v86 = vld [vmem:[%s0 + $0x1d0] sm:$0xff]
    %v87 = vld [vmem:[%s0 + $0x1d8] sm:$0xff]
    %v88 = vld [vmem:[%s0 + $0x1e0] sm:$0xff]
    %v89 = vld [vmem:[%s0 + $0x1e8] sm:$0xff]
    %v90 = vld [vmem:[%s0 + $0x1f0] sm:$0xff]
    %v91 = vld [vmem:[%s0 + $0x1f8] sm:$0xff]
    %v92 = vpack.c.bf16 %v29, %v28
    %v93 = vpack.c.bf16 %v31, %v30
    %v94 = vpack.c.bf16 %v33, %v32
    %v95 = vpack.c.bf16 %v35, %v34
    %v96 = vpack.c.bf16 %v37, %v36
    %v97 = vpack.c.bf16 %v39, %v38
    %v98 = vpack.c.bf16 %v41, %v40
    %v99 = vpack.c.bf16 %v43, %v42
    %v100 = vpack.c.bf16 %v45, %v44
    %v101 = vpack.c.bf16 %v47, %v46
    %v102 = vpack.c.bf16 %v49, %v48
    %v103 = vpack.c.bf16 %v51, %v50
    %v104 = vpack.c.bf16 %v53, %v52
    %v105 = vpack.c.bf16 %v55, %v54
    %v106 = vpack.c.bf16 %v57, %v56
    %v107 = vpack.c.bf16 %v59, %v58
    %v108 = vpack.c.bf16 %v61, %v60
    %v109 = vpack.c.bf16 %v63, %v62
    %v110 = vpack.c.bf16 %v65, %v64
    %v111 = vpack.c.bf16 %v67, %v66
    %v112 = vpack.c.bf16 %v69, %v68
    %v113 = vpack.c.bf16 %v71, %v70
    %v114 = vpack.c.bf16 %v73, %v72
    %v115 = vpack.c.bf16 %v75, %v74
    %v116 = vpack.c.bf16 %v77, %v76
    %v117 = vpack.c.bf16 %v79, %v78
    %v118 = vpack.c.bf16 %v81, %v80
    %v119 = vpack.c.bf16 %v83, %v82
    %v120 = vpack.c.bf16 %v85, %v84
    %v121 = vpack.c.bf16 %v87, %v86
    %v122 = vpack.c.bf16 %v89, %v88
    %v123 = vpack.c.bf16 %v91, %v90
    %v124 = vld [vmem:[%s1] sm:$0xff]
    %v125 = vld [vmem:[%s1 + $0x8] sm:$0xff]
    %v126 = vld [vmem:[%s1 + $0x10] sm:$0xff]
    %v127 = vld [vmem:[%s1 + $0x18] sm:$0xff]
    %v128 = vld [vmem:[%s1 + $0x20] sm:$0xff]
    %v129 = vld [vmem:[%s1 + $0x28] sm:$0xff]
    %v130 = vld [vmem:[%s1 + $0x30] sm:$0xff]
    %v131 = vld [vmem:[%s1 + $0x38] sm:$0xff]
    %v132 = vld [vmem:[%s1 + $0x40] sm:$0xff]
    %v133 = vld [vmem:[%s1 + $0x48] sm:$0xff]
    %v134 = vld [vmem:[%s1 + $0x50] sm:$0xff]
    %v135 = vld [vmem:[%s1 + $0x58] sm:$0xff]
    %v136 = vld [vmem:[%s1 + $0x60] sm:$0xff]
    %v137 = vld [vmem:[%s1 + $0x68] sm:$0xff]
    %v138 = vld [vmem:[%s1 + $0x70] sm:$0xff]
    %v139 = vld [vmem:[%s1 + $0x78] sm:$0xff]
    %v140 = vld [vmem:[%s1 + $0x80] sm:$0xff]
    %v141 = vld [vmem:[%s1 + $0x88] sm:$0xff]
    %v142 = vld [vmem:[%s1 + $0x90] sm:$0xff]
    %v143 = vld [vmem:[%s1 + $0x98] sm:$0xff]
    %v144 = vld [vmem:[%s1 + $0xa0] sm:$0xff]
    %v145 = vld [vmem:[%s1 + $0xa8] sm:$0xff]
    %v146 = vld [vmem:[%s1 + $0xb0] sm:$0xff]
    %v147 = vld [vmem:[%s1 + $0xb8] sm:$0xff]
    %v148 = vld [vmem:[%s1 + $0xc0] sm:$0xff]
    %v149 = vld [vmem:[%s1 + $0xc8] sm:$0xff]
    %v150 = vld [vmem:[%s1 + $0xd0] sm:$0xff]
    %v151 = vld [vmem:[%s1 + $0xd8] sm:$0xff]
    %v152 = vld [vmem:[%s1 + $0xe0] sm:$0xff]
    %v153 = vld [vmem:[%s1 + $0xe8] sm:$0xff]
    %v154 = vld [vmem:[%s1 + $0xf0] sm:$0xff]
    %v155 = vld [vmem:[%s1 + $0xf8] sm:$0xff]
    %v156 = vld [vmem:[%s1 + $0x100] sm:$0xff]
    %v157 = vld [vmem:[%s1 + $0x108] sm:$0xff]
    %v158 = vld [vmem:[%s1 + $0x110] sm:$0xff]
    %v159 = vld [vmem:[%s1 + $0x118] sm:$0xff]
    %v160 = vld [vmem:[%s1 + $0x120] sm:$0xff]
    %v161 = vld [vmem:[%s1 + $0x128] sm:$0xff]
    %v162 = vld [vmem:[%s1 + $0x130] sm:$0xff]
    %v163 = vld [vmem:[%s1 + $0x138] sm:$0xff]
    %v164 = vld [vmem:[%s1 + $0x140] sm:$0xff]
    %v165 = vld [vmem:[%s1 + $0x148] sm:$0xff]
    %v166 = vld [vmem:[%s1 + $0x150] sm:$0xff]
    %v167 = vld [vmem:[%s1 + $0x158] sm:$0xff]
    %v168 = vld [vmem:[%s1 + $0x160] sm:$0xff]
    %v169 = vld [vmem:[%s1 + $0x168] sm:$0xff]
    %v170 = vld [vmem:[%s1 + $0x170] sm:$0xff]
    %v171 = vld [vmem:[%s1 + $0x178] sm:$0xff]
    %v172 = vld [vmem:[%s1 + $0x180] sm:$0xff]
    %v173 = vld [vmem:[%s1 + $0x188] sm:$0xff]
    %v174 = vld [vmem:[%s1 + $0x190] sm:$0xff]
    %v175 = vld [vmem:[%s1 + $0x198] sm:$0xff]
    %v176 = vld [vmem:[%s1 + $0x1a0] sm:$0xff]
    %v177 = vld [vmem:[%s1 + $0x1a8] sm:$0xff]
    %v178 = vld [vmem:[%s1 + $0x1b0] sm:$0xff]
    %v179 = vld [vmem:[%s1 + $0x1b8] sm:$0xff]
    %v180 = vld [vmem:[%s1 + $0x1c0] sm:$0xff]
    %v181 = vld [vmem:[%s1 + $0x1c8] sm:$0xff]
    %v182 = vld [vmem:[%s1 + $0x1d0] sm:$0xff]
    %v183 = vld [vmem:[%s1 + $0x1d8] sm:$0xff]
    %v184 = vld [vmem:[%s1 + $0x1e0] sm:$0xff]
    %v185 = vld [vmem:[%s1 + $0x1e8] sm:$0xff]
    %v186 = vld [vmem:[%s1 + $0x1f0] sm:$0xff]
    %v187 = vld [vmem:[%s1 + $0x1f8] sm:$0xff]
    %v188 = vld [vmem:[%s1 + $0x200] sm:$0xff]
    %v189 = vld [vmem:[%s1 + $0x208] sm:$0xff]
    %v190 = vld [vmem:[%s1 + $0x210] sm:$0xff]
    %v191 = vld [vmem:[%s1 + $0x218] sm:$0xff]
    %v192 = vld [vmem:[%s1 + $0x220] sm:$0xff]
    %v193 = vld [vmem:[%s1 + $0x228] sm:$0xff]
    %v194 = vld [vmem:[%s1 + $0x230] sm:$0xff]
    %v195 = vld [vmem:[%s1 + $0x238] sm:$0xff]
    %v196 = vld [vmem:[%s1 + $0x240] sm:$0xff]
    %v197 = vld [vmem:[%s1 + $0x248] sm:$0xff]
    %v198 = vld [vmem:[%s1 + $0x250] sm:$0xff]
    %v199 = vld [vmem:[%s1 + $0x258] sm:$0xff]
    %v200 = vld [vmem:[%s1 + $0x260] sm:$0xff]
    %v201 = vld [vmem:[%s1 + $0x268] sm:$0xff]
    %v202 = vld [vmem:[%s1 + $0x270] sm:$0xff]
    %v203 = vld [vmem:[%s1 + $0x278] sm:$0xff]
    %v204 = vld [vmem:[%s1 + $0x280] sm:$0xff]
    %v205 = vld [vmem:[%s1 + $0x288] sm:$0xff]
    %v206 = vld [vmem:[%s1 + $0x290] sm:$0xff]
    %v207 = vld [vmem:[%s1 + $0x298] sm:$0xff]
    %v208 = vld [vmem:[%s1 + $0x2a0] sm:$0xff]
    %v209 = vld [vmem:[%s1 + $0x2a8] sm:$0xff]
    %v210 = vld [vmem:[%s1 + $0x2b0] sm:$0xff]
    %v211 = vld [vmem:[%s1 + $0x2b8] sm:$0xff]
    %v212 = vld [vmem:[%s1 + $0x2c0] sm:$0xff]
    %v213 = vld [vmem:[%s1 + $0x2c8] sm:$0xff]
    %v214 = vld [vmem:[%s1 + $0x2d0] sm:$0xff]
    %v215 = vld [vmem:[%s1 + $0x2d8] sm:$0xff]
    %v216 = vld [vmem:[%s1 + $0x2e0] sm:$0xff]
    %v217 = vld [vmem:[%s1 + $0x2e8] sm:$0xff]
    %v218 = vld [vmem:[%s1 + $0x2f0] sm:$0xff]
    %v219 = vld [vmem:[%s1 + $0x2f8] sm:$0xff]
    %v220 = vld [vmem:[%s1 + $0x300] sm:$0xff]
    %v221 = vld [vmem:[%s1 + $0x308] sm:$0xff]
    %v222 = vld [vmem:[%s1 + $0x310] sm:$0xff]
    %v223 = vld [vmem:[%s1 + $0x318] sm:$0xff]
    %v224 = vld [vmem:[%s1 + $0x320] sm:$0xff]
    %v225 = vld [vmem:[%s1 + $0x328] sm:$0xff]
    %v226 = vld [vmem:[%s1 + $0x330] sm:$0xff]
    %v227 = vld [vmem:[%s1 + $0x338] sm:$0xff]
    %v228 = vld [vmem:[%s1 + $0x340] sm:$0xff]
    %v229 = vld [vmem:[%s1 + $0x348] sm:$0xff]
    %v230 = vld [vmem:[%s1 + $0x350] sm:$0xff]
    %v231 = vld [vmem:[%s1 + $0x358] sm:$0xff]
    %v232 = vld [vmem:[%s1 + $0x360] sm:$0xff]
    %v233 = vld [vmem:[%s1 + $0x368] sm:$0xff]
    %v234 = vld [vmem:[%s1 + $0x370] sm:$0xff]
    %v235 = vld [vmem:[%s1 + $0x378] sm:$0xff]
    %v236 = vld [vmem:[%s1 + $0x380] sm:$0xff]
    %v237 = vld [vmem:[%s1 + $0x388] sm:$0xff]
    %v238 = vld [vmem:[%s1 + $0x390] sm:$0xff]
    %v239 = vld [vmem:[%s1 + $0x398] sm:$0xff]
    %v240 = vld [vmem:[%s1 + $0x3a0] sm:$0xff]
    %v241 = vld [vmem:[%s1 + $0x3a8] sm:$0xff]
    %v242 = vld [vmem:[%s1 + $0x3b0] sm:$0xff]
    %v243 = vld [vmem:[%s1 + $0x3b8] sm:$0xff]
    %v244 = vld [vmem:[%s1 + $0x3c0] sm:$0xff]
    %v245 = vld [vmem:[%s1 + $0x3c8] sm:$0xff]
    %v246 = vld [vmem:[%s1 + $0x3d0] sm:$0xff]
    %v247 = vld [vmem:[%s1 + $0x3d8] sm:$0xff]
    %v248 = vld [vmem:[%s1 + $0x3e0] sm:$0xff]
    %v249 = vld [vmem:[%s1 + $0x3e8] sm:$0xff]
    %v250 = vld [vmem:[%s1 + $0x3f0] sm:$0xff]
    %v251 = vld [vmem:[%s1 + $0x3f8] sm:$0xff]
    %v252 = vld [vmem:[%s1 + $0x400] sm:$0xff]
    %v253 = vld [vmem:[%s1 + $0x408] sm:$0xff]
    %v254 = vld [vmem:[%s1 + $0x410] sm:$0xff]
    %v255 = vld [vmem:[%s1 + $0x418] sm:$0xff]
    %v256 = vld [vmem:[%s1 + $0x420] sm:$0xff]
    %v257 = vld [vmem:[%s1 + $0x428] sm:$0xff]
    %v258 = vld [vmem:[%s1 + $0x430] sm:$0xff]
    %v259 = vld [vmem:[%s1 + $0x438] sm:$0xff]
    %v260 = vld [vmem:[%s1 + $0x440] sm:$0xff]
    %v261 = vld [vmem:[%s1 + $0x448] sm:$0xff]
    %v262 = vld [vmem:[%s1 + $0x450] sm:$0xff]
    %v263 = vld [vmem:[%s1 + $0x458] sm:$0xff]
    %v264 = vld [vmem:[%s1 + $0x460] sm:$0xff]
    %v265 = vld [vmem:[%s1 + $0x468] sm:$0xff]
    %v266 = vld [vmem:[%s1 + $0x470] sm:$0xff]
    %v267 = vld [vmem:[%s1 + $0x478] sm:$0xff]
    %v268 = vld [vmem:[%s1 + $0x480] sm:$0xff]
    %v269 = vld [vmem:[%s1 + $0x488] sm:$0xff]
    %v270 = vld [vmem:[%s1 + $0x490] sm:$0xff]
    %v271 = vld [vmem:[%s1 + $0x498] sm:$0xff]
    %v272 = vld [vmem:[%s1 + $0x4a0] sm:$0xff]
    %v273 = vld [vmem:[%s1 + $0x4a8] sm:$0xff]
    %v274 = vld [vmem:[%s1 + $0x4b0] sm:$0xff]
    %v275 = vld [vmem:[%s1 + $0x4b8] sm:$0xff]
    %v276 = vld [vmem:[%s1 + $0x4c0] sm:$0xff]
    %v277 = vld [vmem:[%s1 + $0x4c8] sm:$0xff]
    %v278 = vld [vmem:[%s1 + $0x4d0] sm:$0xff]
    %v279 = vld [vmem:[%s1 + $0x4d8] sm:$0xff]
    %v280 = vld [vmem:[%s1 + $0x4e0] sm:$0xff]
    %v281 = vld [vmem:[%s1 + $0x4e8] sm:$0xff]
    %v282 = vld [vmem:[%s1 + $0x4f0] sm:$0xff]
    %v283 = vld [vmem:[%s1 + $0x4f8] sm:$0xff]
    %v284 = vld [vmem:[%s1 + $0x500] sm:$0xff]
    %v285 = vld [vmem:[%s1 + $0x508] sm:$0xff]
    %v286 = vld [vmem:[%s1 + $0x510] sm:$0xff]
    %v287 = vld [vmem:[%s1 + $0x518] sm:$0xff]
    %v288 = vld [vmem:[%s1 + $0x520] sm:$0xff]
    %v289 = vld [vmem:[%s1 + $0x528] sm:$0xff]
    %v290 = vld [vmem:[%s1 + $0x530] sm:$0xff]
    %v291 = vld [vmem:[%s1 + $0x538] sm:$0xff]
    %v292 = vld [vmem:[%s1 + $0x540] sm:$0xff]
    %v293 = vld [vmem:[%s1 + $0x548] sm:$0xff]
    %v294 = vld [vmem:[%s1 + $0x550] sm:$0xff]
    %v295 = vld [vmem:[%s1 + $0x558] sm:$0xff]
    %v296 = vld [vmem:[%s1 + $0x560] sm:$0xff]
    %v297 = vld [vmem:[%s1 + $0x568] sm:$0xff]
    %v298 = vld [vmem:[%s1 + $0x570] sm:$0xff]
    %v299 = vld [vmem:[%s1 + $0x578] sm:$0xff]
    %v300 = vld [vmem:[%s1 + $0x580] sm:$0xff]
    %v301 = vld [vmem:[%s1 + $0x588] sm:$0xff]
    %v302 = vld [vmem:[%s1 + $0x590] sm:$0xff]
    %v303 = vld [vmem:[%s1 + $0x598] sm:$0xff]
    %v304 = vld [vmem:[%s1 + $0x5a0] sm:$0xff]
    %v305 = vld [vmem:[%s1 + $0x5a8] sm:$0xff]
    %v306 = vld [vmem:[%s1 + $0x5b0] sm:$0xff]
    %v307 = vld [vmem:[%s1 + $0x5b8] sm:$0xff]
    %v308 = vld [vmem:[%s1 + $0x5c0] sm:$0xff]
    %v309 = vld [vmem:[%s1 + $0x5c8] sm:$0xff]
    %v310 = vld [vmem:[%s1 + $0x5d0] sm:$0xff]
    %v311 = vld [vmem:[%s1 + $0x5d8] sm:$0xff]
    %v312 = vld [vmem:[%s1 + $0x5e0] sm:$0xff]
    %v313 = vld [vmem:[%s1 + $0x5e8] sm:$0xff]
    %v314 = vld [vmem:[%s1 + $0x5f0] sm:$0xff]
    %v315 = vld [vmem:[%s1 + $0x5f8] sm:$0xff]
    %v316 = vld [vmem:[%s1 + $0x600] sm:$0xff]
    %v317 = vld [vmem:[%s1 + $0x608] sm:$0xff]
    %v318 = vld [vmem:[%s1 + $0x610] sm:$0xff]
    %v319 = vld [vmem:[%s1 + $0x618] sm:$0xff]
    %v320 = vld [vmem:[%s1 + $0x620] sm:$0xff]
    %v321 = vld [vmem:[%s1 + $0x628] sm:$0xff]
    %v322 = vld [vmem:[%s1 + $0x630] sm:$0xff]
    %v323 = vld [vmem:[%s1 + $0x638] sm:$0xff]
    %v324 = vld [vmem:[%s1 + $0x640] sm:$0xff]
    %v325 = vld [vmem:[%s1 + $0x648] sm:$0xff]
    %v326 = vld [vmem:[%s1 + $0x650] sm:$0xff]
    %v327 = vld [vmem:[%s1 + $0x658] sm:$0xff]
    %v328 = vld [vmem:[%s1 + $0x660] sm:$0xff]
    %v329 = vld [vmem:[%s1 + $0x668] sm:$0xff]
    %v330 = vld [vmem:[%s1 + $0x670] sm:$0xff]
    %v331 = vld [vmem:[%s1 + $0x678] sm:$0xff]
    %v332 = vld [vmem:[%s1 + $0x680] sm:$0xff]
    %v333 = vld [vmem:[%s1 + $0x688] sm:$0xff]
    %v334 = vld [vmem:[%s1 + $0x690] sm:$0xff]
    %v335 = vld [vmem:[%s1 + $0x698] sm:$0xff]
    %v336 = vld [vmem:[%s1 + $0x6a0] sm:$0xff]
    %v337 = vld [vmem:[%s1 + $0x6a8] sm:$0xff]
    %v338 = vld [vmem:[%s1 + $0x6b0] sm:$0xff]
    %v339 = vld [vmem:[%s1 + $0x6b8] sm:$0xff]
    %v340 = vld [vmem:[%s1 + $0x6c0] sm:$0xff]
    %v341 = vld [vmem:[%s1 + $0x6c8] sm:$0xff]
    %v342 = vld [vmem:[%s1 + $0x6d0] sm:$0xff]
    %v343 = vld [vmem:[%s1 + $0x6d8] sm:$0xff]
    %v344 = vld [vmem:[%s1 + $0x6e0] sm:$0xff]
    %v345 = vld [vmem:[%s1 + $0x6e8] sm:$0xff]
    %v346 = vld [vmem:[%s1 + $0x6f0] sm:$0xff]
    %v347 = vld [vmem:[%s1 + $0x6f8] sm:$0xff]
    %v348 = vld [vmem:[%s1 + $0x700] sm:$0xff]
    %v349 = vld [vmem:[%s1 + $0x708] sm:$0xff]
    %v350 = vld [vmem:[%s1 + $0x710] sm:$0xff]
    %v351 = vld [vmem:[%s1 + $0x718] sm:$0xff]
    %v352 = vld [vmem:[%s1 + $0x720] sm:$0xff]
    %v353 = vld [vmem:[%s1 + $0x728] sm:$0xff]
    %v354 = vld [vmem:[%s1 + $0x730] sm:$0xff]
    %v355 = vld [vmem:[%s1 + $0x738] sm:$0xff]
    %v356 = vld [vmem:[%s1 + $0x740] sm:$0xff]
    %v357 = vld [vmem:[%s1 + $0x748] sm:$0xff]
    %v358 = vld [vmem:[%s1 + $0x750] sm:$0xff]
    %v359 = vld [vmem:[%s1 + $0x758] sm:$0xff]
    %v360 = vld [vmem:[%s1 + $0x760] sm:$0xff]
    %v361 = vld [vmem:[%s1 + $0x768] sm:$0xff]
    %v362 = vld [vmem:[%s1 + $0x770] sm:$0xff]
    %v363 = vld [vmem:[%s1 + $0x778] sm:$0xff]
    %v364 = vld [vmem:[%s1 + $0x780] sm:$0xff]
    %v365 = vld [vmem:[%s1 + $0x788] sm:$0xff]
    %v366 = vld [vmem:[%s1 + $0x790] sm:$0xff]
    %v367 = vld [vmem:[%s1 + $0x798] sm:$0xff]
    %v368 = vld [vmem:[%s1 + $0x7a0] sm:$0xff]
    %v369 = vld [vmem:[%s1 + $0x7a8] sm:$0xff]
    %v370 = vld [vmem:[%s1 + $0x7b0] sm:$0xff]
    %v371 = vld [vmem:[%s1 + $0x7b8] sm:$0xff]
    %v372 = vld [vmem:[%s1 + $0x7c0] sm:$0xff]
    %v373 = vld [vmem:[%s1 + $0x7c8] sm:$0xff]
    %v374 = vld [vmem:[%s1 + $0x7d0] sm:$0xff]
    %v375 = vld [vmem:[%s1 + $0x7d8] sm:$0xff]
    %v376 = vld [vmem:[%s1 + $0x7e0] sm:$0xff]
    %v377 = vld [vmem:[%s1 + $0x7e8] sm:$0xff]
    %v378 = vld [vmem:[%s1 + $0x7f0] sm:$0xff]
    %v379 = vld [vmem:[%s1 + $0x7f8] sm:$0xff]
    %v380 = vld [vmem:[%s1 + $0x800] sm:$0xff]
    %v381 = vld [vmem:[%s1 + $0x808] sm:$0xff]
    %v382 = vld [vmem:[%s1 + $0x810] sm:$0xff]
    %v383 = vld [vmem:[%s1 + $0x818] sm:$0xff]
    %v384 = vld [vmem:[%s1 + $0x820] sm:$0xff]
    %v385 = vld [vmem:[%s1 + $0x828] sm:$0xff]
    %v386 = vld [vmem:[%s1 + $0x830] sm:$0xff]
    %v387 = vld [vmem:[%s1 + $0x838] sm:$0xff]
    %v388 = vld [vmem:[%s1 + $0x840] sm:$0xff]
    %v389 = vld [vmem:[%s1 + $0x848] sm:$0xff]
    %v390 = vld [vmem:[%s1 + $0x850] sm:$0xff]
    %v391 = vld [vmem:[%s1 + $0x858] sm:$0xff]
    %v392 = vld [vmem:[%s1 + $0x860] sm:$0xff]
    %v393 = vld [vmem:[%s1 + $0x868] sm:$0xff]
    %v394 = vld [vmem:[%s1 + $0x870] sm:$0xff]
    %v395 = vld [vmem:[%s1 + $0x878] sm:$0xff]
    %v396 = vld [vmem:[%s1 + $0x880] sm:$0xff]
    %v397 = vld [vmem:[%s1 + $0x888] sm:$0xff]
    %v398 = vld [vmem:[%s1 + $0x890] sm:$0xff]
    %v399 = vld [vmem:[%s1 + $0x898] sm:$0xff]
    %v400 = vld [vmem:[%s1 + $0x8a0] sm:$0xff]
    %v401 = vld [vmem:[%s1 + $0x8a8] sm:$0xff]
    %v402 = vld [vmem:[%s1 + $0x8b0] sm:$0xff]
    %v403 = vld [vmem:[%s1 + $0x8b8] sm:$0xff]
    %v404 = vld [vmem:[%s1 + $0x8c0] sm:$0xff]
    %v405 = vld [vmem:[%s1 + $0x8c8] sm:$0xff]
    %v406 = vld [vmem:[%s1 + $0x8d0] sm:$0xff]
    %v407 = vld [vmem:[%s1 + $0x8d8] sm:$0xff]
    %v408 = vld [vmem:[%s1 + $0x8e0] sm:$0xff]
    %v409 = vld [vmem:[%s1 + $0x8e8] sm:$0xff]
    %v410 = vld [vmem:[%s1 + $0x8f0] sm:$0xff]
    %v411 = vld [vmem:[%s1 + $0x8f8] sm:$0xff]
    %v700 = vunpack.c.l.b16 %v124
    %v701 = vunpack.c.h.b16 %v124
    %v702 = vunpack.c.l.b16 %v125
    %v703 = vunpack.c.h.b16 %v125
    %v704 = vunpack.c.l.b16 %v126
    %v705 = vunpack.c.h.b16 %v126
    %v706 = vunpack.c.l.b16 %v127
    %v707 = vunpack.c.h.b16 %v127
    %v708 = vunpack.c.l.b16 %v128
    %v709 = vunpack.c.h.b16 %v128
    %v710 = vunpack.c.l.b16 %v129
    %v711 = vunpack.c.h.b16 %v129
    %v712 = vunpack.c.l.b16 %v130
    %v713 = vunpack.c.h.b16 %v130
    %v714 = vunpack.c.l.b16 %v131
    %v715 = vunpack.c.h.b16 %v131
    %v716 = vunpack.c.l.b16 %v132
    %v717 = vunpack.c.h.b16 %v132
    %v718 = vunpack.c.l.b16 %v133
    %v719 = vunpack.c.h.b16 %v133
    %v720 = vunpack.c.l.b16 %v134
    %v721 = vunpack.c.h.b16 %v134
    %v722 = vunpack.c.l.b16 %v135
    %v723 = vunpack.c.h.b16 %v135
    %v724 = vunpack.c.l.b16 %v136
    %v725 = vunpack.c.h.b16 %v136
    %v726 = vunpack.c.l.b16 %v137
    %v727 = vunpack.c.h.b16 %v137
    %v728 = vunpack.c.l.b16 %v138
    %v729 = vunpack.c.h.b16 %v138
    %v730 = vunpack.c.l.b16 %v139
    %v731 = vunpack.c.h.b16 %v139
    %v732 = vunpack.c.l.b16 %v140
    %v733 = vunpack.c.h.b16 %v140
    %v734 = vunpack.c.l.b16 %v141
    %v735 = vunpack.c.h.b16 %v141
    %v736 = vunpack.c.l.b16 %v142
    %v737 = vunpack.c.h.b16 %v142
    %v738 = vunpack.c.l.b16 %v143
    %v739 = vunpack.c.h.b16 %v143
    %v740 = vunpack.c.l.b16 %v144
    %v741 = vunpack.c.h.b16 %v144
    %v742 = vunpack.c.l.b16 %v145
    %v743 = vunpack.c.h.b16 %v145
    %v744 = vunpack.c.l.b16 %v146
    %v745 = vunpack.c.h.b16 %v146
    %v746 = vunpack.c.l.b16 %v147
    %v747 = vunpack.c.h.b16 %v147
    %v748 = vunpack.c.l.b16 %v148
    %v749 = vunpack.c.h.b16 %v148
    %v750 = vunpack.c.l.b16 %v149
    %v751 = vunpack.c.h.b16 %v149
    %v752 = vunpack.c.l.b16 %v150
    %v753 = vunpack.c.h.b16 %v150
    %v754 = vunpack.c.l.b16 %v151
    %v755 = vunpack.c.h.b16 %v151
    %v756 = vunpack.c.l.b16 %v152
    %v757 = vunpack.c.h.b16 %v152
    %v758 = vunpack.c.l.b16 %v153
    %v759 = vunpack.c.h.b16 %v153
    %v760 = vunpack.c.l.b16 %v154
    %v761 = vunpack.c.h.b16 %v154
    %v762 = vunpack.c.l.b16 %v155
    %v763 = vunpack.c.h.b16 %v155
    %v764 = vunpack.c.l.b16 %v156
    %v765 = vunpack.c.h.b16 %v156
    %v766 = vunpack.c.l.b16 %v157
    %v767 = vunpack.c.h.b16 %v157
    %v768 = vunpack.c.l.b16 %v158
    %v769 = vunpack.c.h.b16 %v158
    %v770 = vunpack.c.l.b16 %v159
    %v771 = vunpack.c.h.b16 %v159
    %v772 = vunpack.c.l.b16 %v160
    %v773 = vunpack.c.h.b16 %v160
    %v774 = vunpack.c.l.b16 %v161
    %v775 = vunpack.c.h.b16 %v161
    %v776 = vunpack.c.l.b16 %v162
    %v777 = vunpack.c.h.b16 %v162
    %v778 = vunpack.c.l.b16 %v163
    %v779 = vunpack.c.h.b16 %v163
    %v780 = vunpack.c.l.b16 %v164
    %v781 = vunpack.c.h.b16 %v164
    %v782 = vunpack.c.l.b16 %v165
    %v783 = vunpack.c.h.b16 %v165
    %v784 = vunpack.c.l.b16 %v166
    %v785 = vunpack.c.h.b16 %v166
    %v786 = vunpack.c.l.b16 %v167
    %v787 = vunpack.c.h.b16 %v167
    %v788 = vunpack.c.l.b16 %v168
    %v789 = vunpack.c.h.b16 %v168
    %v790 = vunpack.c.l.b16 %v169
    %v791 = vunpack.c.h.b16 %v169
    %v792 = vunpack.c.l.b16 %v170
    %v793 = vunpack.c.h.b16 %v170
    %v794 = vunpack.c.l.b16 %v171
    %v795 = vunpack.c.h.b16 %v171
    %v796 = vunpack.c.l.b16 %v172
    %v797 = vunpack.c.h.b16 %v172
    %v798 = vunpack.c.l.b16 %v173
    %v799 = vunpack.c.h.b16 %v173
    %v800 = vunpack.c.l.b16 %v174
    %v801 = vunpack.c.h.b16 %v174
    %v802 = vunpack.c.l.b16 %v175
    %v803 = vunpack.c.h.b16 %v175
    %v804 = vunpack.c.l.b16 %v176
    %v805 = vunpack.c.h.b16 %v176
    %v806 = vunpack.c.l.b16 %v177
    %v807 = vunpack.c.h.b16 %v177
    %v808 = vunpack.c.l.b16 %v178
    %v809 = vunpack.c.h.b16 %v178
    %v810 = vunpack.c.l.b16 %v179
    %v811 = vunpack.c.h.b16 %v179
    %v812 = vunpack.c.l.b16 %v180
    %v813 = vunpack.c.h.b16 %v180
    %v814 = vunpack.c.l.b16 %v181
    %v815 = vunpack.c.h.b16 %v181
    %v816 = vunpack.c.l.b16 %v182
    %v817 = vunpack.c.h.b16 %v182
    %v818 = vunpack.c.l.b16 %v183
    %v819 = vunpack.c.h.b16 %v183
    %v820 = vunpack.c.l.b16 %v184
    %v821 = vunpack.c.h.b16 %v184
    %v822 = vunpack.c.l.b16 %v185
    %v823 = vunpack.c.h.b16 %v185
    %v824 = vunpack.c.l.b16 %v186
    %v825 = vunpack.c.h.b16 %v186
    %v826 = vunpack.c.l.b16 %v187
    %v827 = vunpack.c.h.b16 %v187
    %v828 = vunpack.c.l.b16 %v188
    %v829 = vunpack.c.h.b16 %v188
    %v830 = vunpack.c.l.b16 %v189
    %v831 = vunpack.c.h.b16 %v189
    %v832 = vunpack.c.l.b16 %v190
    %v833 = vunpack.c.h.b16 %v190
    %v834 = vunpack.c.l.b16 %v191
    %v835 = vunpack.c.h.b16 %v191
    %v836 = vunpack.c.l.b16 %v192
    %v837 = vunpack.c.h.b16 %v192
    %v838 = vunpack.c.l.b16 %v193
    %v839 = vunpack.c.h.b16 %v193
    %v840 = vunpack.c.l.b16 %v194
    %v841 = vunpack.c.h.b16 %v194
    %v842 = vunpack.c.l.b16 %v195
    %v843 = vunpack.c.h.b16 %v195
    %v844 = vunpack.c.l.b16 %v196
    %v845 = vunpack.c.h.b16 %v196
    %v846 = vunpack.c.l.b16 %v197
    %v847 = vunpack.c.h.b16 %v197
    %v848 = vunpack.c.l.b16 %v198
    %v849 = vunpack.c.h.b16 %v198
    %v850 = vunpack.c.l.b16 %v199
    %v851 = vunpack.c.h.b16 %v199
    %v852 = vunpack.c.l.b16 %v200
    %v853 = vunpack.c.h.b16 %v200
    %v854 = vunpack.c.l.b16 %v201
    %v855 = vunpack.c.h.b16 %v201
    %v856 = vunpack.c.l.b16 %v202
    %v857 = vunpack.c.h.b16 %v202
    %v858 = vunpack.c.l.b16 %v203
    %v859 = vunpack.c.h.b16 %v203
    %v860 = vunpack.c.l.b16 %v204
    %v861 = vunpack.c.h.b16 %v204
    %v862 = vunpack.c.l.b16 %v205
    %v863 = vunpack.c.h.b16 %v205
    %v864 = vunpack.c.l.b16 %v206
    %v865 = vunpack.c.h.b16 %v206
    %v866 = vunpack.c.l.b16 %v207
    %v867 = vunpack.c.h.b16 %v207
    %v868 = vunpack.c.l.b16 %v208
    %v869 = vunpack.c.h.b16 %v208
    %v870 = vunpack.c.l.b16 %v209
    %v871 = vunpack.c.h.b16 %v209
    %v872 = vunpack.c.l.b16 %v210
    %v873 = vunpack.c.h.b16 %v210
    %v874 = vunpack.c.l.b16 %v211
    %v875 = vunpack.c.h.b16 %v211
    %v876 = vunpack.c.l.b16 %v212
    %v877 = vunpack.c.h.b16 %v212
    %v878 = vunpack.c.l.b16 %v213
    %v879 = vunpack.c.h.b16 %v213
    %v880 = vunpack.c.l.b16 %v214
    %v881 = vunpack.c.h.b16 %v214
    %v882 = vunpack.c.l.b16 %v215
    %v883 = vunpack.c.h.b16 %v215
    %v884 = vunpack.c.l.b16 %v216
    %v885 = vunpack.c.h.b16 %v216
    %v886 = vunpack.c.l.b16 %v217
    %v887 = vunpack.c.h.b16 %v217
    %v888 = vunpack.c.l.b16 %v218
    %v889 = vunpack.c.h.b16 %v218
    %v890 = vunpack.c.l.b16 %v219
    %v891 = vunpack.c.h.b16 %v219
    %v892 = vunpack.c.l.b16 %v220
    %v893 = vunpack.c.h.b16 %v220
    %v894 = vunpack.c.l.b16 %v221
    %v895 = vunpack.c.h.b16 %v221
    %v896 = vunpack.c.l.b16 %v222
    %v897 = vunpack.c.h.b16 %v222
    %v898 = vunpack.c.l.b16 %v223
    %v899 = vunpack.c.h.b16 %v223
    %v900 = vunpack.c.l.b16 %v224
    %v901 = vunpack.c.h.b16 %v224
    %v902 = vunpack.c.l.b16 %v225
    %v903 = vunpack.c.h.b16 %v225
    %v904 = vunpack.c.l.b16 %v226
    %v905 = vunpack.c.h.b16 %v226
    %v906 = vunpack.c.l.b16 %v227
    %v907 = vunpack.c.h.b16 %v227
    %v908 = vunpack.c.l.b16 %v228
    %v909 = vunpack.c.h.b16 %v228
    %v910 = vunpack.c.l.b16 %v229
    %v911 = vunpack.c.h.b16 %v229
    %v912 = vunpack.c.l.b16 %v230
    %v913 = vunpack.c.h.b16 %v230
    %v914 = vunpack.c.l.b16 %v231
    %v915 = vunpack.c.h.b16 %v231
    %v916 = vunpack.c.l.b16 %v232
    %v917 = vunpack.c.h.b16 %v232
    %v918 = vunpack.c.l.b16 %v233
    %v919 = vunpack.c.h.b16 %v233
    %v920 = vunpack.c.l.b16 %v234
    %v921 = vunpack.c.h.b16 %v234
    %v922 = vunpack.c.l.b16 %v235
    %v923 = vunpack.c.h.b16 %v235
    %v924 = vunpack.c.l.b16 %v236
    %v925 = vunpack.c.h.b16 %v236
    %v926 = vunpack.c.l.b16 %v237
    %v927 = vunpack.c.h.b16 %v237
    %v928 = vunpack.c.l.b16 %v238
    %v929 = vunpack.c.h.b16 %v238
    %v930 = vunpack.c.l.b16 %v239
    %v931 = vunpack.c.h.b16 %v239
    %v932 = vunpack.c.l.b16 %v240
    %v933 = vunpack.c.h.b16 %v240
    %v934 = vunpack.c.l.b16 %v241
    %v935 = vunpack.c.h.b16 %v241
    %v936 = vunpack.c.l.b16 %v242
    %v937 = vunpack.c.h.b16 %v242
    %v938 = vunpack.c.l.b16 %v243
    %v939 = vunpack.c.h.b16 %v243
    %v940 = vunpack.c.l.b16 %v244
    %v941 = vunpack.c.h.b16 %v244
    %v942 = vunpack.c.l.b16 %v245
    %v943 = vunpack.c.h.b16 %v245
    %v944 = vunpack.c.l.b16 %v246
    %v945 = vunpack.c.h.b16 %v246
    %v946 = vunpack.c.l.b16 %v247
    %v947 = vunpack.c.h.b16 %v247
    %v948 = vunpack.c.l.b16 %v248
    %v949 = vunpack.c.h.b16 %v248
    %v950 = vunpack.c.l.b16 %v249
    %v951 = vunpack.c.h.b16 %v249
    %v952 = vunpack.c.l.b16 %v250
    %v953 = vunpack.c.h.b16 %v250
    %v954 = vunpack.c.l.b16 %v251
    %v955 = vunpack.c.h.b16 %v251
    %v956 = vunpack.c.l.b16 %v252
    %v957 = vunpack.c.h.b16 %v252
    %v958 = vunpack.c.l.b16 %v253
    %v959 = vunpack.c.h.b16 %v253
    %v960 = vunpack.c.l.b16 %v254
    %v961 = vunpack.c.h.b16 %v254
    %v962 = vunpack.c.l.b16 %v255
    %v963 = vunpack.c.h.b16 %v255
    %v964 = vunpack.c.l.b16 %v256
    %v965 = vunpack.c.h.b16 %v256
    %v966 = vunpack.c.l.b16 %v257
    %v967 = vunpack.c.h.b16 %v257
    %v968 = vunpack.c.l.b16 %v258
    %v969 = vunpack.c.h.b16 %v258
    %v970 = vunpack.c.l.b16 %v259
    %v971 = vunpack.c.h.b16 %v259
    %v972 = vunpack.c.l.b16 %v260
    %v973 = vunpack.c.h.b16 %v260
    %v974 = vunpack.c.l.b16 %v261
    %v975 = vunpack.c.h.b16 %v261
    %v976 = vunpack.c.l.b16 %v262
    %v977 = vunpack.c.h.b16 %v262
    %v978 = vunpack.c.l.b16 %v263
    %v979 = vunpack.c.h.b16 %v263
    %v980 = vunpack.c.l.b16 %v264
    %v981 = vunpack.c.h.b16 %v264
    %v982 = vunpack.c.l.b16 %v265
    %v983 = vunpack.c.h.b16 %v265
    %v984 = vunpack.c.l.b16 %v266
    %v985 = vunpack.c.h.b16 %v266
    %v986 = vunpack.c.l.b16 %v267
    %v987 = vunpack.c.h.b16 %v267
    %v988 = vunpack.c.l.b16 %v268
    %v989 = vunpack.c.h.b16 %v268
    %v990 = vunpack.c.l.b16 %v269
    %v991 = vunpack.c.h.b16 %v269
    %v992 = vunpack.c.l.b16 %v270
    %v993 = vunpack.c.h.b16 %v270
    %v994 = vunpack.c.l.b16 %v271
    %v995 = vunpack.c.h.b16 %v271
    %v996 = vunpack.c.l.b16 %v272
    %v997 = vunpack.c.h.b16 %v272
    %v998 = vunpack.c.l.b16 %v273
    %v999 = vunpack.c.h.b16 %v273
    %v1000 = vunpack.c.l.b16 %v274
    %v1001 = vunpack.c.h.b16 %v274
    %v1002 = vunpack.c.l.b16 %v275
    %v1003 = vunpack.c.h.b16 %v275
    %v1004 = vunpack.c.l.b16 %v276
    %v1005 = vunpack.c.h.b16 %v276
    %v1006 = vunpack.c.l.b16 %v277
    %v1007 = vunpack.c.h.b16 %v277
    %v1008 = vunpack.c.l.b16 %v278
    %v1009 = vunpack.c.h.b16 %v278
    %v1010 = vunpack.c.l.b16 %v279
    %v1011 = vunpack.c.h.b16 %v279
    %v1012 = vunpack.c.l.b16 %v280
    %v1013 = vunpack.c.h.b16 %v280
    %v1014 = vunpack.c.l.b16 %v281
    %v1015 = vunpack.c.h.b16 %v281
    %v1016 = vunpack.c.l.b16 %v282
    %v1017 = vunpack.c.h.b16 %v282
    %v1018 = vunpack.c.l.b16 %v283
    %v1019 = vunpack.c.h.b16 %v283
    %v1020 = vunpack.c.l.b16 %v284
    %v1021 = vunpack.c.h.b16 %v284
    %v1022 = vunpack.c.l.b16 %v285
    %v1023 = vunpack.c.h.b16 %v285
    %v1024 = vunpack.c.l.b16 %v286
    %v1025 = vunpack.c.h.b16 %v286
    %v1026 = vunpack.c.l.b16 %v287
    %v1027 = vunpack.c.h.b16 %v287
    %v1028 = vunpack.c.l.b16 %v288
    %v1029 = vunpack.c.h.b16 %v288
    %v1030 = vunpack.c.l.b16 %v289
    %v1031 = vunpack.c.h.b16 %v289
    %v1032 = vunpack.c.l.b16 %v290
    %v1033 = vunpack.c.h.b16 %v290
    %v1034 = vunpack.c.l.b16 %v291
    %v1035 = vunpack.c.h.b16 %v291
    %v1036 = vunpack.c.l.b16 %v292
    %v1037 = vunpack.c.h.b16 %v292
    %v1038 = vunpack.c.l.b16 %v293
    %v1039 = vunpack.c.h.b16 %v293
    %v1040 = vunpack.c.l.b16 %v294
    %v1041 = vunpack.c.h.b16 %v294
    %v1042 = vunpack.c.l.b16 %v295
    %v1043 = vunpack.c.h.b16 %v295
    %v1044 = vunpack.c.l.b16 %v296
    %v1045 = vunpack.c.h.b16 %v296
    %v1046 = vunpack.c.l.b16 %v297
    %v1047 = vunpack.c.h.b16 %v297
    %v1048 = vunpack.c.l.b16 %v298
    %v1049 = vunpack.c.h.b16 %v298
    %v1050 = vunpack.c.l.b16 %v299
    %v1051 = vunpack.c.h.b16 %v299
    %v1052 = vunpack.c.l.b16 %v300
    %v1053 = vunpack.c.h.b16 %v300
    %v1054 = vunpack.c.l.b16 %v301
    %v1055 = vunpack.c.h.b16 %v301
    %v1056 = vunpack.c.l.b16 %v302
    %v1057 = vunpack.c.h.b16 %v302
    %v1058 = vunpack.c.l.b16 %v303
    %v1059 = vunpack.c.h.b16 %v303
    %v1060 = vunpack.c.l.b16 %v304
    %v1061 = vunpack.c.h.b16 %v304
    %v1062 = vunpack.c.l.b16 %v305
    %v1063 = vunpack.c.h.b16 %v305
    %v1064 = vunpack.c.l.b16 %v306
    %v1065 = vunpack.c.h.b16 %v306
    %v1066 = vunpack.c.l.b16 %v307
    %v1067 = vunpack.c.h.b16 %v307
    %v1068 = vunpack.c.l.b16 %v308
    %v1069 = vunpack.c.h.b16 %v308
    %v1070 = vunpack.c.l.b16 %v309
    %v1071 = vunpack.c.h.b16 %v309
    %v1072 = vunpack.c.l.b16 %v310
    %v1073 = vunpack.c.h.b16 %v310
    %v1074 = vunpack.c.l.b16 %v311
    %v1075 = vunpack.c.h.b16 %v311
    %v1076 = vunpack.c.l.b16 %v312
    %v1077 = vunpack.c.h.b16 %v312
    %v1078 = vunpack.c.l.b16 %v313
    %v1079 = vunpack.c.h.b16 %v313
    %v1080 = vunpack.c.l.b16 %v314
    %v1081 = vunpack.c.h.b16 %v314
    %v1082 = vunpack.c.l.b16 %v315
    %v1083 = vunpack.c.h.b16 %v315
    %v1084 = vunpack.c.l.b16 %v316
    %v1085 = vunpack.c.h.b16 %v316
    %v1086 = vunpack.c.l.b16 %v317
    %v1087 = vunpack.c.h.b16 %v317
    %v1088 = vunpack.c.l.b16 %v318
    %v1089 = vunpack.c.h.b16 %v318
    %v1090 = vunpack.c.l.b16 %v319
    %v1091 = vunpack.c.h.b16 %v319
    %v1092 = vunpack.c.l.b16 %v320
    %v1093 = vunpack.c.h.b16 %v320
    %v1094 = vunpack.c.l.b16 %v321
    %v1095 = vunpack.c.h.b16 %v321
    %v1096 = vunpack.c.l.b16 %v322
    %v1097 = vunpack.c.h.b16 %v322
    %v1098 = vunpack.c.l.b16 %v323
    %v1099 = vunpack.c.h.b16 %v323
    %v1100 = vunpack.c.l.b16 %v324
    %v1101 = vunpack.c.h.b16 %v324
    %v1102 = vunpack.c.l.b16 %v325
    %v1103 = vunpack.c.h.b16 %v325
    %v1104 = vunpack.c.l.b16 %v326
    %v1105 = vunpack.c.h.b16 %v326
    %v1106 = vunpack.c.l.b16 %v327
    %v1107 = vunpack.c.h.b16 %v327
    %v1108 = vunpack.c.l.b16 %v328
    %v1109 = vunpack.c.h.b16 %v328
    %v1110 = vunpack.c.l.b16 %v329
    %v1111 = vunpack.c.h.b16 %v329
    %v1112 = vunpack.c.l.b16 %v330
    %v1113 = vunpack.c.h.b16 %v330
    %v1114 = vunpack.c.l.b16 %v331
    %v1115 = vunpack.c.h.b16 %v331
    %v1116 = vunpack.c.l.b16 %v332
    %v1117 = vunpack.c.h.b16 %v332
    %v1118 = vunpack.c.l.b16 %v333
    %v1119 = vunpack.c.h.b16 %v333
    %v1120 = vunpack.c.l.b16 %v334
    %v1121 = vunpack.c.h.b16 %v334
    %v1122 = vunpack.c.l.b16 %v335
    %v1123 = vunpack.c.h.b16 %v335
    %v1124 = vunpack.c.l.b16 %v336
    %v1125 = vunpack.c.h.b16 %v336
    %v1126 = vunpack.c.l.b16 %v337
    %v1127 = vunpack.c.h.b16 %v337
    %v1128 = vunpack.c.l.b16 %v338
    %v1129 = vunpack.c.h.b16 %v338
    %v1130 = vunpack.c.l.b16 %v339
    %v1131 = vunpack.c.h.b16 %v339
    %v1132 = vunpack.c.l.b16 %v340
    %v1133 = vunpack.c.h.b16 %v340
    %v1134 = vunpack.c.l.b16 %v341
    %v1135 = vunpack.c.h.b16 %v341
    %v1136 = vunpack.c.l.b16 %v342
    %v1137 = vunpack.c.h.b16 %v342
    %v1138 = vunpack.c.l.b16 %v343
    %v1139 = vunpack.c.h.b16 %v343
    %v1140 = vunpack.c.l.b16 %v344
    %v1141 = vunpack.c.h.b16 %v344
    %v1142 = vunpack.c.l.b16 %v345
    %v1143 = vunpack.c.h.b16 %v345
    %v1144 = vunpack.c.l.b16 %v346
    %v1145 = vunpack.c.h.b16 %v346
    %v1146 = vunpack.c.l.b16 %v347
    %v1147 = vunpack.c.h.b16 %v347
    %v1148 = vunpack.c.l.b16 %v348
    %v1149 = vunpack.c.h.b16 %v348
    %v1150 = vunpack.c.l.b16 %v349
    %v1151 = vunpack.c.h.b16 %v349
    %v1152 = vunpack.c.l.b16 %v350
    %v1153 = vunpack.c.h.b16 %v350
    %v1154 = vunpack.c.l.b16 %v351
    %v1155 = vunpack.c.h.b16 %v351
    %v1156 = vunpack.c.l.b16 %v352
    %v1157 = vunpack.c.h.b16 %v352
    %v1158 = vunpack.c.l.b16 %v353
    %v1159 = vunpack.c.h.b16 %v353
    %v1160 = vunpack.c.l.b16 %v354
    %v1161 = vunpack.c.h.b16 %v354
    %v1162 = vunpack.c.l.b16 %v355
    %v1163 = vunpack.c.h.b16 %v355
    %v1164 = vunpack.c.l.b16 %v356
    %v1165 = vunpack.c.h.b16 %v356
    %v1166 = vunpack.c.l.b16 %v357
    %v1167 = vunpack.c.h.b16 %v357
    %v1168 = vunpack.c.l.b16 %v358
    %v1169 = vunpack.c.h.b16 %v358
    %v1170 = vunpack.c.l.b16 %v359
    %v1171 = vunpack.c.h.b16 %v359
    %v1172 = vunpack.c.l.b16 %v360
    %v1173 = vunpack.c.h.b16 %v360
    %v1174 = vunpack.c.l.b16 %v361
    %v1175 = vunpack.c.h.b16 %v361
    %v1176 = vunpack.c.l.b16 %v362
    %v1177 = vunpack.c.h.b16 %v362
    %v1178 = vunpack.c.l.b16 %v363
    %v1179 = vunpack.c.h.b16 %v363
    %v1180 = vunpack.c.l.b16 %v364
    %v1181 = vunpack.c.h.b16 %v364
    %v1182 = vunpack.c.l.b16 %v365
    %v1183 = vunpack.c.h.b16 %v365
    %v1184 = vunpack.c.l.b16 %v366
    %v1185 = vunpack.c.h.b16 %v366
    %v1186 = vunpack.c.l.b16 %v367
    %v1187 = vunpack.c.h.b16 %v367
    %v1188 = vunpack.c.l.b16 %v368
    %v1189 = vunpack.c.h.b16 %v368
    %v1190 = vunpack.c.l.b16 %v369
    %v1191 = vunpack.c.h.b16 %v369
    %v1192 = vunpack.c.l.b16 %v370
    %v1193 = vunpack.c.h.b16 %v370
    %v1194 = vunpack.c.l.b16 %v371
    %v1195 = vunpack.c.h.b16 %v371
    %v1196 = vunpack.c.l.b16 %v372
    %v1197 = vunpack.c.h.b16 %v372
    %v1198 = vunpack.c.l.b16 %v373
    %v1199 = vunpack.c.h.b16 %v373
    %v1200 = vunpack.c.l.b16 %v374
    %v1201 = vunpack.c.h.b16 %v374
    %v1202 = vunpack.c.l.b16 %v375
    %v1203 = vunpack.c.h.b16 %v375
    %v1204 = vunpack.c.l.b16 %v376
    %v1205 = vunpack.c.h.b16 %v376
    %v1206 = vunpack.c.l.b16 %v377
    %v1207 = vunpack.c.h.b16 %v377
    %v1208 = vunpack.c.l.b16 %v378
    %v1209 = vunpack.c.h.b16 %v378
    %v1210 = vunpack.c.l.b16 %v379
    %v1211 = vunpack.c.h.b16 %v379
    %v1212 = vunpack.c.l.b16 %v380
    %v1213 = vunpack.c.h.b16 %v380
    %v1214 = vunpack.c.l.b16 %v381
    %v1215 = vunpack.c.h.b16 %v381
    %v1216 = vunpack.c.l.b16 %v382
    %v1217 = vunpack.c.h.b16 %v382
    %v1218 = vunpack.c.l.b16 %v383
    %v1219 = vunpack.c.h.b16 %v383
    %v1220 = vunpack.c.l.b16 %v384
    %v1221 = vunpack.c.h.b16 %v384
    %v1222 = vunpack.c.l.b16 %v385
    %v1223 = vunpack.c.h.b16 %v385
    %v1224 = vunpack.c.l.b16 %v386
    %v1225 = vunpack.c.h.b16 %v386
    %v1226 = vunpack.c.l.b16 %v387
    %v1227 = vunpack.c.h.b16 %v387
    %v1228 = vunpack.c.l.b16 %v388
    %v1229 = vunpack.c.h.b16 %v388
    %v1230 = vunpack.c.l.b16 %v389
    %v1231 = vunpack.c.h.b16 %v389
    %v1232 = vunpack.c.l.b16 %v390
    %v1233 = vunpack.c.h.b16 %v390
    %v1234 = vunpack.c.l.b16 %v391
    %v1235 = vunpack.c.h.b16 %v391
    %v1236 = vunpack.c.l.b16 %v392
    %v1237 = vunpack.c.h.b16 %v392
    %v1238 = vunpack.c.l.b16 %v393
    %v1239 = vunpack.c.h.b16 %v393
    %v1240 = vunpack.c.l.b16 %v394
    %v1241 = vunpack.c.h.b16 %v394
    %v1242 = vunpack.c.l.b16 %v395
    %v1243 = vunpack.c.h.b16 %v395
    %v1244 = vunpack.c.l.b16 %v396
    %v1245 = vunpack.c.h.b16 %v396
    %v1246 = vunpack.c.l.b16 %v397
    %v1247 = vunpack.c.h.b16 %v397
    %v1248 = vunpack.c.l.b16 %v398
    %v1249 = vunpack.c.h.b16 %v398
    %v1250 = vunpack.c.l.b16 %v399
    %v1251 = vunpack.c.h.b16 %v399
    %v1252 = vunpack.c.l.b16 %v400
    %v1253 = vunpack.c.h.b16 %v400
    %v1254 = vunpack.c.l.b16 %v401
    %v1255 = vunpack.c.h.b16 %v401
    %v1256 = vunpack.c.l.b16 %v402
    %v1257 = vunpack.c.h.b16 %v402
    %v1258 = vunpack.c.l.b16 %v403
    %v1259 = vunpack.c.h.b16 %v403
    %v1260 = vunpack.c.l.b16 %v404
    %v1261 = vunpack.c.h.b16 %v404
    %v1262 = vunpack.c.l.b16 %v405
    %v1263 = vunpack.c.h.b16 %v405
    %v1264 = vunpack.c.l.b16 %v406
    %v1265 = vunpack.c.h.b16 %v406
    %v1266 = vunpack.c.l.b16 %v407
    %v1267 = vunpack.c.h.b16 %v407
    %v1268 = vunpack.c.l.b16 %v408
    %v1269 = vunpack.c.h.b16 %v408
    %v1270 = vunpack.c.l.b16 %v409
    %v1271 = vunpack.c.h.b16 %v409
    %v1272 = vunpack.c.l.b16 %v410
    %v1273 = vunpack.c.h.b16 %v410
    %v1274 = vunpack.c.l.b16 %v411
    %v1275 = vunpack.c.h.b16 %v411
    %v1276 = vpack.c.b16 %v704, %v700
    %v1277 = vpack.c.b16 %v705, %v701
    %v1278 = vpack.c.b16 %v706, %v702
    %v1279 = vpack.c.b16 %v707, %v703
    %v1280 = vpack.c.b16 %v712, %v708
    %v1281 = vpack.c.b16 %v713, %v709
    %v1282 = vpack.c.b16 %v714, %v710
    %v1283 = vpack.c.b16 %v715, %v711
    %v1284 = vpack.c.b16 %v720, %v716
    %v1285 = vpack.c.b16 %v721, %v717
    %v1286 = vpack.c.b16 %v722, %v718
    %v1287 = vpack.c.b16 %v723, %v719
    %v1288 = vpack.c.b16 %v728, %v724
    %v1289 = vpack.c.b16 %v729, %v725
    %v1290 = vpack.c.b16 %v730, %v726
    %v1291 = vpack.c.b16 %v731, %v727
    %v1292 = vpack.c.b16 %v736, %v732
    %v1293 = vpack.c.b16 %v737, %v733
    %v1294 = vpack.c.b16 %v738, %v734
    %v1295 = vpack.c.b16 %v739, %v735
    %v1296 = vpack.c.b16 %v744, %v740
    %v1297 = vpack.c.b16 %v745, %v741
    %v1298 = vpack.c.b16 %v746, %v742
    %v1299 = vpack.c.b16 %v747, %v743
    %v1300 = vpack.c.b16 %v752, %v748
    %v1301 = vpack.c.b16 %v753, %v749
    %v1302 = vpack.c.b16 %v754, %v750
    %v1303 = vpack.c.b16 %v755, %v751
    %v1304 = vpack.c.b16 %v760, %v756
    %v1305 = vpack.c.b16 %v761, %v757
    %v1306 = vpack.c.b16 %v762, %v758
    %v1307 = vpack.c.b16 %v763, %v759
    %v1308 = vpack.c.b16 %v768, %v764
    %v1309 = vpack.c.b16 %v769, %v765
    %v1310 = vpack.c.b16 %v770, %v766
    %v1311 = vpack.c.b16 %v771, %v767
    %v1312 = vpack.c.b16 %v776, %v772
    %v1313 = vpack.c.b16 %v777, %v773
    %v1314 = vpack.c.b16 %v778, %v774
    %v1315 = vpack.c.b16 %v779, %v775
    %v1316 = vpack.c.b16 %v784, %v780
    %v1317 = vpack.c.b16 %v785, %v781
    %v1318 = vpack.c.b16 %v786, %v782
    %v1319 = vpack.c.b16 %v787, %v783
    %v1320 = vpack.c.b16 %v792, %v788
    %v1321 = vpack.c.b16 %v793, %v789
    %v1322 = vpack.c.b16 %v794, %v790
    %v1323 = vpack.c.b16 %v795, %v791
    %v1324 = vpack.c.b16 %v800, %v796
    %v1325 = vpack.c.b16 %v801, %v797
    %v1326 = vpack.c.b16 %v802, %v798
    %v1327 = vpack.c.b16 %v803, %v799
    %v1328 = vpack.c.b16 %v808, %v804
    %v1329 = vpack.c.b16 %v809, %v805
    %v1330 = vpack.c.b16 %v810, %v806
    %v1331 = vpack.c.b16 %v811, %v807
    %v1332 = vpack.c.b16 %v816, %v812
    %v1333 = vpack.c.b16 %v817, %v813
    %v1334 = vpack.c.b16 %v818, %v814
    %v1335 = vpack.c.b16 %v819, %v815
    %v1336 = vpack.c.b16 %v824, %v820
    %v1337 = vpack.c.b16 %v825, %v821
    %v1338 = vpack.c.b16 %v826, %v822
    %v1339 = vpack.c.b16 %v827, %v823
    %v1340 = vpack.c.b16 %v832, %v828
    %v1341 = vpack.c.b16 %v833, %v829
    %v1342 = vpack.c.b16 %v834, %v830
    %v1343 = vpack.c.b16 %v835, %v831
    %v1344 = vpack.c.b16 %v840, %v836
    %v1345 = vpack.c.b16 %v841, %v837
    %v1346 = vpack.c.b16 %v842, %v838
    %v1347 = vpack.c.b16 %v843, %v839
    %v1348 = vpack.c.b16 %v848, %v844
    %v1349 = vpack.c.b16 %v849, %v845
    %v1350 = vpack.c.b16 %v850, %v846
    %v1351 = vpack.c.b16 %v851, %v847
    %v1352 = vpack.c.b16 %v856, %v852
    %v1353 = vpack.c.b16 %v857, %v853
    %v1354 = vpack.c.b16 %v858, %v854
    %v1355 = vpack.c.b16 %v859, %v855
    %v1356 = vpack.c.b16 %v864, %v860
    %v1357 = vpack.c.b16 %v865, %v861
    %v1358 = vpack.c.b16 %v866, %v862
    %v1359 = vpack.c.b16 %v867, %v863
    %v1360 = vpack.c.b16 %v872, %v868
    %v1361 = vpack.c.b16 %v873, %v869
    %v1362 = vpack.c.b16 %v874, %v870
    %v1363 = vpack.c.b16 %v875, %v871
    %v1364 = vpack.c.b16 %v880, %v876
    %v1365 = vpack.c.b16 %v881, %v877
    %v1366 = vpack.c.b16 %v882, %v878
    %v1367 = vpack.c.b16 %v883, %v879
    %v1368 = vpack.c.b16 %v888, %v884
    %v1369 = vpack.c.b16 %v889, %v885
    %v1370 = vpack.c.b16 %v890, %v886
    %v1371 = vpack.c.b16 %v891, %v887
    %v1372 = vpack.c.b16 %v896, %v892
    %v1373 = vpack.c.b16 %v897, %v893
    %v1374 = vpack.c.b16 %v898, %v894
    %v1375 = vpack.c.b16 %v899, %v895
    %v1376 = vpack.c.b16 %v904, %v900
    %v1377 = vpack.c.b16 %v905, %v901
    %v1378 = vpack.c.b16 %v906, %v902
    %v1379 = vpack.c.b16 %v907, %v903
    %v1380 = vpack.c.b16 %v912, %v908
    %v1381 = vpack.c.b16 %v913, %v909
    %v1382 = vpack.c.b16 %v914, %v910
    %v1383 = vpack.c.b16 %v915, %v911
    %v1384 = vpack.c.b16 %v920, %v916
    %v1385 = vpack.c.b16 %v921, %v917
    %v1386 = vpack.c.b16 %v922, %v918
    %v1387 = vpack.c.b16 %v923, %v919
    %v1388 = vpack.c.b16 %v928, %v924
    %v1389 = vpack.c.b16 %v929, %v925
    %v1390 = vpack.c.b16 %v930, %v926
    %v1391 = vpack.c.b16 %v931, %v927
    %v1392 = vpack.c.b16 %v936, %v932
    %v1393 = vpack.c.b16 %v937, %v933
    %v1394 = vpack.c.b16 %v938, %v934
    %v1395 = vpack.c.b16 %v939, %v935
    %v1396 = vpack.c.b16 %v944, %v940
    %v1397 = vpack.c.b16 %v945, %v941
    %v1398 = vpack.c.b16 %v946, %v942
    %v1399 = vpack.c.b16 %v947, %v943
    %v1400 = vpack.c.b16 %v952, %v948
    %v1401 = vpack.c.b16 %v953, %v949
    %v1402 = vpack.c.b16 %v954, %v950
    %v1403 = vpack.c.b16 %v955, %v951
    %v1404 = vpack.c.b16 %v960, %v956
    %v1405 = vpack.c.b16 %v961, %v957
    %v1406 = vpack.c.b16 %v962, %v958
    %v1407 = vpack.c.b16 %v963, %v959
    %v1408 = vpack.c.b16 %v968, %v964
    %v1409 = vpack.c.b16 %v969, %v965
    %v1410 = vpack.c.b16 %v970, %v966
    %v1411 = vpack.c.b16 %v971, %v967
    %v1412 = vpack.c.b16 %v976, %v972
    %v1413 = vpack.c.b16 %v977, %v973
    %v1414 = vpack.c.b16 %v978, %v974
    %v1415 = vpack.c.b16 %v979, %v975
    %v1416 = vpack.c.b16 %v984, %v980
    %v1417 = vpack.c.b16 %v985, %v981
    %v1418 = vpack.c.b16 %v986, %v982
    %v1419 = vpack.c.b16 %v987, %v983
    %v1420 = vpack.c.b16 %v992, %v988
    %v1421 = vpack.c.b16 %v993, %v989
    %v1422 = vpack.c.b16 %v994, %v990
    %v1423 = vpack.c.b16 %v995, %v991
    %v1424 = vpack.c.b16 %v1000, %v996
    %v1425 = vpack.c.b16 %v1001, %v997
    %v1426 = vpack.c.b16 %v1002, %v998
    %v1427 = vpack.c.b16 %v1003, %v999
    %v1428 = vpack.c.b16 %v1008, %v1004
    %v1429 = vpack.c.b16 %v1009, %v1005
    %v1430 = vpack.c.b16 %v1010, %v1006
    %v1431 = vpack.c.b16 %v1011, %v1007
    %v1432 = vpack.c.b16 %v1016, %v1012
    %v1433 = vpack.c.b16 %v1017, %v1013
    %v1434 = vpack.c.b16 %v1018, %v1014
    %v1435 = vpack.c.b16 %v1019, %v1015
    %v1436 = vpack.c.b16 %v1024, %v1020
    %v1437 = vpack.c.b16 %v1025, %v1021
    %v1438 = vpack.c.b16 %v1026, %v1022
    %v1439 = vpack.c.b16 %v1027, %v1023
    %v1440 = vpack.c.b16 %v1032, %v1028
    %v1441 = vpack.c.b16 %v1033, %v1029
    %v1442 = vpack.c.b16 %v1034, %v1030
    %v1443 = vpack.c.b16 %v1035, %v1031
    %v1444 = vpack.c.b16 %v1040, %v1036
    %v1445 = vpack.c.b16 %v1041, %v1037
    %v1446 = vpack.c.b16 %v1042, %v1038
    %v1447 = vpack.c.b16 %v1043, %v1039
    %v1448 = vpack.c.b16 %v1048, %v1044
    %v1449 = vpack.c.b16 %v1049, %v1045
    %v1450 = vpack.c.b16 %v1050, %v1046
    %v1451 = vpack.c.b16 %v1051, %v1047
    %v1452 = vpack.c.b16 %v1056, %v1052
    %v1453 = vpack.c.b16 %v1057, %v1053
    %v1454 = vpack.c.b16 %v1058, %v1054
    %v1455 = vpack.c.b16 %v1059, %v1055
    %v1456 = vpack.c.b16 %v1064, %v1060
    %v1457 = vpack.c.b16 %v1065, %v1061
    %v1458 = vpack.c.b16 %v1066, %v1062
    %v1459 = vpack.c.b16 %v1067, %v1063
    %v1460 = vpack.c.b16 %v1072, %v1068
    %v1461 = vpack.c.b16 %v1073, %v1069
    %v1462 = vpack.c.b16 %v1074, %v1070
    %v1463 = vpack.c.b16 %v1075, %v1071
    %v1464 = vpack.c.b16 %v1080, %v1076
    %v1465 = vpack.c.b16 %v1081, %v1077
    %v1466 = vpack.c.b16 %v1082, %v1078
    %v1467 = vpack.c.b16 %v1083, %v1079
    %v1468 = vpack.c.b16 %v1088, %v1084
    %v1469 = vpack.c.b16 %v1089, %v1085
    %v1470 = vpack.c.b16 %v1090, %v1086
    %v1471 = vpack.c.b16 %v1091, %v1087
    %v1472 = vpack.c.b16 %v1096, %v1092
    %v1473 = vpack.c.b16 %v1097, %v1093
    %v1474 = vpack.c.b16 %v1098, %v1094
    %v1475 = vpack.c.b16 %v1099, %v1095
    %v1476 = vpack.c.b16 %v1104, %v1100
    %v1477 = vpack.c.b16 %v1105, %v1101
    %v1478 = vpack.c.b16 %v1106, %v1102
    %v1479 = vpack.c.b16 %v1107, %v1103
    %v1480 = vpack.c.b16 %v1112, %v1108
    %v1481 = vpack.c.b16 %v1113, %v1109
    %v1482 = vpack.c.b16 %v1114, %v1110
    %v1483 = vpack.c.b16 %v1115, %v1111
    %v1484 = vpack.c.b16 %v1120, %v1116
    %v1485 = vpack.c.b16 %v1121, %v1117
    %v1486 = vpack.c.b16 %v1122, %v1118
    %v1487 = vpack.c.b16 %v1123, %v1119
    %v1488 = vpack.c.b16 %v1128, %v1124
    %v1489 = vpack.c.b16 %v1129, %v1125
    %v1490 = vpack.c.b16 %v1130, %v1126
    %v1491 = vpack.c.b16 %v1131, %v1127
    %v1492 = vpack.c.b16 %v1136, %v1132
    %v1493 = vpack.c.b16 %v1137, %v1133
    %v1494 = vpack.c.b16 %v1138, %v1134
    %v1495 = vpack.c.b16 %v1139, %v1135
    %v1496 = vpack.c.b16 %v1144, %v1140
    %v1497 = vpack.c.b16 %v1145, %v1141
    %v1498 = vpack.c.b16 %v1146, %v1142
    %v1499 = vpack.c.b16 %v1147, %v1143
    %v1500 = vpack.c.b16 %v1152, %v1148
    %v1501 = vpack.c.b16 %v1153, %v1149
    %v1502 = vpack.c.b16 %v1154, %v1150
    %v1503 = vpack.c.b16 %v1155, %v1151
    %v1504 = vpack.c.b16 %v1160, %v1156
    %v1505 = vpack.c.b16 %v1161, %v1157
    %v1506 = vpack.c.b16 %v1162, %v1158
    %v1507 = vpack.c.b16 %v1163, %v1159
    %v1508 = vpack.c.b16 %v1168, %v1164
    %v1509 = vpack.c.b16 %v1169, %v1165
    %v1510 = vpack.c.b16 %v1170, %v1166
    %v1511 = vpack.c.b16 %v1171, %v1167
    %v1512 = vpack.c.b16 %v1176, %v1172
    %v1513 = vpack.c.b16 %v1177, %v1173
    %v1514 = vpack.c.b16 %v1178, %v1174
    %v1515 = vpack.c.b16 %v1179, %v1175
    %v1516 = vpack.c.b16 %v1184, %v1180
    %v1517 = vpack.c.b16 %v1185, %v1181
    %v1518 = vpack.c.b16 %v1186, %v1182
    %v1519 = vpack.c.b16 %v1187, %v1183
    %v1520 = vpack.c.b16 %v1192, %v1188
    %v1521 = vpack.c.b16 %v1193, %v1189
    %v1522 = vpack.c.b16 %v1194, %v1190
    %v1523 = vpack.c.b16 %v1195, %v1191
    %v1524 = vpack.c.b16 %v1200, %v1196
    %v1525 = vpack.c.b16 %v1201, %v1197
    %v1526 = vpack.c.b16 %v1202, %v1198
    %v1527 = vpack.c.b16 %v1203, %v1199
    %v1528 = vpack.c.b16 %v1208, %v1204
    %v1529 = vpack.c.b16 %v1209, %v1205
    %v1530 = vpack.c.b16 %v1210, %v1206
    %v1531 = vpack.c.b16 %v1211, %v1207
    %v1532 = vpack.c.b16 %v1216, %v1212
    %v1533 = vpack.c.b16 %v1217, %v1213
    %v1534 = vpack.c.b16 %v1218, %v1214
    %v1535 = vpack.c.b16 %v1219, %v1215
    %v1536 = vpack.c.b16 %v1224, %v1220
    %v1537 = vpack.c.b16 %v1225, %v1221
    %v1538 = vpack.c.b16 %v1226, %v1222
    %v1539 = vpack.c.b16 %v1227, %v1223
    %v1540 = vpack.c.b16 %v1232, %v1228
    %v1541 = vpack.c.b16 %v1233, %v1229
    %v1542 = vpack.c.b16 %v1234, %v1230
    %v1543 = vpack.c.b16 %v1235, %v1231
    %v1544 = vpack.c.b16 %v1240, %v1236
    %v1545 = vpack.c.b16 %v1241, %v1237
    %v1546 = vpack.c.b16 %v1242, %v1238
    %v1547 = vpack.c.b16 %v1243, %v1239
    %v1548 = vpack.c.b16 %v1248, %v1244
    %v1549 = vpack.c.b16 %v1249, %v1245
    %v1550 = vpack.c.b16 %v1250, %v1246
    %v1551 = vpack.c.b16 %v1251, %v1247
    %v1552 = vpack.c.b16 %v1256, %v1252
    %v1553 = vpack.c.b16 %v1257, %v1253
    %v1554 = vpack.c.b16 %v1258, %v1254
    %v1555 = vpack.c.b16 %v1259, %v1255
    %v1556 = vpack.c.b16 %v1264, %v1260
    %v1557 = vpack.c.b16 %v1265, %v1261
    %v1558 = vpack.c.b16 %v1266, %v1262
    %v1559 = vpack.c.b16 %v1267, %v1263
    %v1560 = vpack.c.b16 %v1272, %v1268
    %v1561 = vpack.c.b16 %v1273, %v1269
    %v1562 = vpack.c.b16 %v1274, %v1270
    %v1563 = vpack.c.b16 %v1275, %v1271
    %1852 = vmatprep.subr.bf16.mxu0 0
    %1853 = vmatpush1.bf16.msra.mxu0 %v92
    %1854 = vmatprep.subr.bf16.mxu0 0
    %1855 = vmatpush1.bf16.msra.mxu0 %v93
    %1856 = vmatprep.subr.bf16.mxu0 0
    %1857 = vmatpush1.bf16.msra.mxu0 %v94
    %1858 = vmatprep.subr.bf16.mxu0 0
    %1859 = vmatpush1.bf16.msra.mxu0 %v95
    %1860 = vmatprep.subr.bf16.mxu0 0
    %1861 = vmatpush1.bf16.msra.mxu0 %v96
    %1862 = vmatprep.subr.bf16.mxu0 0
    %1863 = vmatpush1.bf16.msra.mxu0 %v97
    %1864 = vmatprep.subr.bf16.mxu0 0
    %1865 = vmatpush1.bf16.msra.mxu0 %v98
    %1866 = vmatprep.subr.bf16.mxu0 0
    %1867 = vmatpush1.bf16.msra.mxu0 %v99
    %1868 = vmatprep.subr.bf16.mxu0 0
    %1869 = vmatpush1.bf16.msra.mxu0 %v100
    %1870 = vmatprep.subr.bf16.mxu0 0
    %1871 = vmatpush1.bf16.msra.mxu0 %v101
    %1872 = vmatprep.subr.bf16.mxu0 0
    %1873 = vmatpush1.bf16.msra.mxu0 %v102
    %1874 = vmatprep.subr.bf16.mxu0 0
    %1875 = vmatpush1.bf16.msra.mxu0 %v103
    %1876 = vmatprep.subr.bf16.mxu0 0
    %1877 = vmatpush1.bf16.msra.mxu0 %v104
    %1878 = vmatprep.subr.bf16.mxu0 0
    %1879 = vmatpush1.bf16.msra.mxu0 %v105
    %1880 = vmatprep.subr.bf16.mxu0 0
    %1881 = vmatpush1.bf16.msra.mxu0 %v106
    %1882 = vmatprep.subr.bf16.mxu0 0
    %1883 = vmatpush1.bf16.msra.mxu0 %v107
    %1884 = vmatprep.mubr.bf16.mxu0 %v1277
    %1885 = vmatmul.mubr.bf16.gmra.mrb[0].mxu0 %v1276
    %v1886 = vpop.f32.mrb[0].mxu0
    %v1887 = vadd.f32 0.0, %v1886
    %v1888 = vpop.f32.mrb[0].mxu0
    %v1889 = vpop.f32.mrb[0].mxu0
    %v1890 = vadd.f32 0.0, %v1889
    %v1891 = vpop.f32.mrb[0].mxu0
    %1892 = vmatprep.mubr.bf16.mxu0 %v1281
    %1893 = vmatmul.mubr.bf16.gmra.mrb[0].mxu0 %v1280
    %v1894 = vpop.f32.mrb[0].mxu0
    %v1895 = vadd.f32 0.0, %v1894
    %v1896 = vpop.f32.mrb[0].mxu0
    %v1897 = vpop.f32.mrb[0].mxu0
    %v1898 = vadd.f32 0.0, %v1897
    %v1899 = vpop.f32.mrb[0].mxu0
    %1900 = vmatprep.mubr.bf16.mxu0 %v1285
    %1901 = vmatmul.mubr.bf16.gmra.mrb[0].mxu0 %v1284
    %v1902 = vpop.f32.mrb[0].mxu0
    %v1903 = vadd.f32 0.0, %v1902
    %v1904 = vpop.f32.mrb[0].mxu0
    %v1905 = vpop.f32.mrb[0].mxu0
    %v1906 = vadd.f32 0.0, %v1905
    %v1907 = vpop.f32.mrb[0].mxu0
    %1908 = vmatprep.mubr.bf16.mxu0 %v1289
    %1909 = vmatmul.mubr.bf16.gmra.mrb[0].mxu0 %v1288
    %v1910 = vpop.f32.mrb[0].mxu0
    %v1911 = vadd.f32 0.0, %v1910
    %v1912 = vpop.f32.mrb[0].mxu0
    %v1913 = vpop.f32.mrb[0].mxu0
    %v1914 = vadd.f32 0.0, %v1913
    %v1915 = vpop.f32.mrb[0].mxu0
    %1916 = vmatprep.mubr.bf16.mxu0 %v1293
    %1917 = vmatmul.mubr.bf16.gmra.mrb[0].mxu0 %v1292
    %v1918 = vpop.f32.mrb[0].mxu0
    %v1919 = vadd.f32 0.0, %v1918
    %v1920 = vpop.f32.mrb[0].mxu0
    %v1921 = vpop.f32.mrb[0].mxu0
    %v1922 = vadd.f32 0.0, %v1921
    %v1923 = vpop.f32.mrb[0].mxu0
    %1924 = vmatprep.mubr.bf16.mxu0 %v1297
    %1925 = vmatmul.mubr.bf16.gmra.mrb[0].mxu0 %v1296
    %v1926 = vpop.f32.mrb[0].mxu0
    %v1927 = vadd.f32 0.0, %v1926
    %v1928 = vpop.f32.mrb[0].mxu0
    %v1929 = vpop.f32.mrb[0].mxu0
    %v1930 = vadd.f32 0.0, %v1929
    %v1931 = vpop.f32.mrb[0].mxu0
    %1932 = vmatprep.mubr.bf16.mxu0 %v1301
    %1933 = vmatmul.mubr.bf16.gmra.mrb[0].mxu0 %v1300
    %v1934 = vpop.f32.mrb[0].mxu0
    %v1935 = vadd.f32 0.0, %v1934
    %v1936 = vpop.f32.mrb[0].mxu0
    %v1937 = vpop.f32.mrb[0].mxu0
    %v1938 = vadd.f32 0.0, %v1937
    %v1939 = vpop.f32.mrb[0].mxu0
    %1940 = vmatprep.mubr.bf16.mxu0 %v1305
    %1941 = vmatmul.mubr.bf16.gmra.mrb[0].mxu0 %v1304
    %v1942 = vpop.f32.mrb[0].mxu0
    %v1943 = vadd.f32 0.0, %v1942
    %v1944 = vpop.f32.mrb[0].mxu0
    %v1945 = vpop.f32.mrb[0].mxu0
    %v1946 = vadd.f32 0.0, %v1945
    %v1947 = vpop.f32.mrb[0].mxu0
    %1948 = vmatprep.mubr.bf16.mxu0 %v1309
    %1949 = vmatmul.mubr.bf16.gmra.mrb[0].mxu0 %v1308
    %v1950 = vpop.f32.mrb[0].mxu0
    %v1951 = vadd.f32 0.0, %v1950
    %v1952 = vpop.f32.mrb[0].mxu0
    %v1953 = vpop.f32.mrb[0].mxu0
    %v1954 = vadd.f32 0.0, %v1953
    %v1955 = vpop.f32.mrb[0].mxu0
    %1956 = vmatprep.mubr.bf16.mxu0 %v1313
    %1957 = vmatmul.mubr.bf16.gmra.mrb[0].mxu0 %v1312
    %v1958 = vpop.f32.mrb[0].mxu0
    %v1959 = vadd.f32 0.0, %v1958
    %v1960 = vpop.f32.mrb[0].mxu0
    %v1961 = vpop.f32.mrb[0].mxu0
    %v1962 = vadd.f32 0.0, %v1961
    %v1963 = vpop.f32.mrb[0].mxu0
    %1964 = vmatprep.mubr.bf16.mxu0 %v1317
    %1965 = vmatmul.mubr.bf16.gmra.mrb[0].mxu0 %v1316
    %v1966 = vpop.f32.mrb[0].mxu0
    %v1967 = vadd.f32 0.0, %v1966
    %v1968 = vpop.f32.mrb[0].mxu0
    %v1969 = vpop.f32.mrb[0].mxu0
    %v1970 = vadd.f32 0.0, %v1969
    %v1971 = vpop.f32.mrb[0].mxu0
    %1972 = vmatprep.mubr.bf16.mxu0 %v1321
    %1973 = vmatmul.mubr.bf16.gmra.mrb[0].mxu0 %v1320
    %v1974 = vpop.f32.mrb[0].mxu0
    %v1975 = vadd.f32 0.0, %v1974
    %v1976 = vpop.f32.mrb[0].mxu0
    %v1977 = vpop.f32.mrb[0].mxu0
    %v1978 = vadd.f32 0.0, %v1977
    %v1979 = vpop.f32.mrb[0].mxu0
    %1980 = vmatprep.mubr.bf16.mxu0 %v1325
    %1981 = vmatmul.mubr.bf16.gmra.mrb[0].mxu0 %v1324
    %v1982 = vpop.f32.mrb[0].mxu0
    %v1983 = vadd.f32 0.0, %v1982
    %v1984 = vpop.f32.mrb[0].mxu0
    %v1985 = vpop.f32.mrb[0].mxu0
    %v1986 = vadd.f32 0.0, %v1985
    %v1987 = vpop.f32.mrb[0].mxu0
    %1988 = vmatprep.mubr.bf16.mxu0 %v1329
    %1989 = vmatmul.mubr.bf16.gmra.mrb[0].mxu0 %v1328
    %v1990 = vpop.f32.mrb[0].mxu0
    %v1991 = vadd.f32 0.0, %v1990
    %v1992 = vpop.f32.mrb[0].mxu0
    %v1993 = vpop.f32.mrb[0].mxu0
    %v1994 = vadd.f32 0.0, %v1993
    %v1995 = vpop.f32.mrb[0].mxu0
    %1996 = vmatprep.mubr.bf16.mxu0 %v1333
    %1997 = vmatmul.mubr.bf16.gmra.mrb[0].mxu0 %v1332
    %v1998 = vpop.f32.mrb[0].mxu0
    %v1999 = vadd.f32 0.0, %v1998
    %v2000 = vpop.f32.mrb[0].mxu0
    %v2001 = vpop.f32.mrb[0].mxu0
    %v2002 = vadd.f32 0.0, %v2001
    %v2003 = vpop.f32.mrb[0].mxu0
    %2004 = vmatprep.mubr.bf16.mxu0 %v1337
    %2005 = vmatmul.mubr.bf16.gmra.mrb[0].mxu0 %v1336
    %v2006 = vpop.f32.mrb[0].mxu0
    %v2007 = vadd.f32 0.0, %v2006
    %v2008 = vpop.f32.mrb[0].mxu0
    %v2009 = vpop.f32.mrb[0].mxu0
    %v2010 = vadd.f32 0.0, %v2009
    %v2011 = vpop.f32.mrb[0].mxu0
    %2012 = vmatprep.mubr.bf16.mxu0 %v1341
    %2013 = vmatmul.mubr.bf16.gmra.mrb[0].mxu0 %v1340
    %v2014 = vpop.f32.mrb[0].mxu0
    %v2015 = vadd.f32 0.0, %v2014
    %v2016 = vpop.f32.mrb[0].mxu0
    %v2017 = vpop.f32.mrb[0].mxu0
    %v2018 = vadd.f32 0.0, %v2017
    %v2019 = vpop.f32.mrb[0].mxu0
    %2020 = vmatprep.mubr.bf16.mxu0 %v1345
    %2021 = vmatmul.mubr.bf16.gmra.mrb[0].mxu0 %v1344
    %v2022 = vpop.f32.mrb[0].mxu0
    %v2023 = vadd.f32 0.0, %v2022
    %v2024 = vpop.f32.mrb[0].mxu0
    %v2025 = vpop.f32.mrb[0].mxu0
    %v2026 = vadd.f32 0.0, %v2025
    %v2027 = vpop.f32.mrb[0].mxu0
    %2028 = vmatprep.mubr.bf16.mxu0 %v1349
    %2029 = vmatmul.mubr.bf16.gmra.mrb[0].mxu0 %v1348
    %v2030 = vpop.f32.mrb[0].mxu0
    %v2031 = vadd.f32 0.0, %v2030
    %v2032 = vpop.f32.mrb[0].mxu0
    %v2033 = vpop.f32.mrb[0].mxu0
    %v2034 = vadd.f32 0.0, %v2033
    %v2035 = vpop.f32.mrb[0].mxu0
    %2036 = vmatprep.mubr.bf16.mxu0 %v1353
    %2037 = vmatmul.mubr.bf16.gmra.mrb[0].mxu0 %v1352
    %v2038 = vpop.f32.mrb[0].mxu0
    %v2039 = vadd.f32 0.0, %v2038
    %v2040 = vpop.f32.mrb[0].mxu0
    %v2041 = vpop.f32.mrb[0].mxu0
    %v2042 = vadd.f32 0.0, %v2041
    %v2043 = vpop.f32.mrb[0].mxu0
    %2044 = vmatprep.mubr.bf16.mxu0 %v1357
    %2045 = vmatmul.mubr.bf16.gmra.mrb[0].mxu0 %v1356
    %v2046 = vpop.f32.mrb[0].mxu0
    %v2047 = vadd.f32 0.0, %v2046
    %v2048 = vpop.f32.mrb[0].mxu0
    %v2049 = vpop.f32.mrb[0].mxu0
    %v2050 = vadd.f32 0.0, %v2049
    %v2051 = vpop.f32.mrb[0].mxu0
    %2052 = vmatprep.mubr.bf16.mxu0 %v1361
    %2053 = vmatmul.mubr.bf16.gmra.mrb[0].mxu0 %v1360
    %v2054 = vpop.f32.mrb[0].mxu0
    %v2055 = vadd.f32 0.0, %v2054
    %v2056 = vpop.f32.mrb[0].mxu0
    %v2057 = vpop.f32.mrb[0].mxu0
    %v2058 = vadd.f32 0.0, %v2057
    %v2059 = vpop.f32.mrb[0].mxu0
    %2060 = vmatprep.mubr.bf16.mxu0 %v1365
    %2061 = vmatmul.mubr.bf16.gmra.mrb[0].mxu0 %v1364
    %v2062 = vpop.f32.mrb[0].mxu0
    %v2063 = vadd.f32 0.0, %v2062
    %v2064 = vpop.f32.mrb[0].mxu0
    %v2065 = vpop.f32.mrb[0].mxu0
    %v2066 = vadd.f32 0.0, %v2065
    %v2067 = vpop.f32.mrb[0].mxu0
    %2068 = vmatprep.mubr.bf16.mxu0 %v1369
    %2069 = vmatmul.mubr.bf16.gmra.mrb[0].mxu0 %v1368
    %v2070 = vpop.f32.mrb[0].mxu0
    %v2071 = vadd.f32 0.0, %v2070
    %v2072 = vpop.f32.mrb[0].mxu0
    %v2073 = vpop.f32.mrb[0].mxu0
    %v2074 = vadd.f32 0.0, %v2073
    %v2075 = vpop.f32.mrb[0].mxu0
    %2076 = vmatprep.mubr.bf16.mxu0 %v1373
    %2077 = vmatmul.mubr.bf16.gmra.mrb[0].mxu0 %v1372
    %v2078 = vpop.f32.mrb[0].mxu0
    %v2079 = vadd.f32 0.0, %v2078
    %v2080 = vpop.f32.mrb[0].mxu0
    %v2081 = vpop.f32.mrb[0].mxu0
    %v2082 = vadd.f32 0.0, %v2081
    %v2083 = vpop.f32.mrb[0].mxu0
    %2084 = vmatprep.mubr.bf16.mxu0 %v1377
    %2085 = vmatmul.mubr.bf16.gmra.mrb[0].mxu0 %v1376
    %v2086 = vpop.f32.mrb[0].mxu0
    %v2087 = vadd.f32 0.0, %v2086
    %v2088 = vpop.f32.mrb[0].mxu0
    %v2089 = vpop.f32.mrb[0].mxu0
    %v2090 = vadd.f32 0.0, %v2089
    %v2091 = vpop.f32.mrb[0].mxu0
    %2092 = vmatprep.mubr.bf16.mxu0 %v1381
    %2093 = vmatmul.mubr.bf16.gmra.mrb[0].mxu0 %v1380
    %v2094 = vpop.f32.mrb[0].mxu0
    %v2095 = vadd.f32 0.0, %v2094
    %v2096 = vpop.f32.mrb[0].mxu0
    %v2097 = vpop.f32.mrb[0].mxu0
    %v2098 = vadd.f32 0.0, %v2097
    %v2099 = vpop.f32.mrb[0].mxu0
    %2100 = vmatprep.mubr.bf16.mxu0 %v1385
    %2101 = vmatmul.mubr.bf16.gmra.mrb[0].mxu0 %v1384
    %v2102 = vpop.f32.mrb[0].mxu0
    %v2103 = vadd.f32 0.0, %v2102
    %v2104 = vpop.f32.mrb[0].mxu0
    %v2105 = vpop.f32.mrb[0].mxu0
    %v2106 = vadd.f32 0.0, %v2105
    %v2107 = vpop.f32.mrb[0].mxu0
    %2108 = vmatprep.mubr.bf16.mxu0 %v1389
    %2109 = vmatmul.mubr.bf16.gmra.mrb[0].mxu0 %v1388
    %v2110 = vpop.f32.mrb[0].mxu0
    %v2111 = vadd.f32 0.0, %v2110
    %v2112 = vpop.f32.mrb[0].mxu0
    %v2113 = vpop.f32.mrb[0].mxu0
    %v2114 = vadd.f32 0.0, %v2113
    %v2115 = vpop.f32.mrb[0].mxu0
    %2116 = vmatprep.mubr.bf16.mxu0 %v1393
    %2117 = vmatmul.mubr.bf16.gmra.mrb[0].mxu0 %v1392
    %v2118 = vpop.f32.mrb[0].mxu0
    %v2119 = vadd.f32 0.0, %v2118
    %v2120 = vpop.f32.mrb[0].mxu0
    %v2121 = vpop.f32.mrb[0].mxu0
    %v2122 = vadd.f32 0.0, %v2121
    %v2123 = vpop.f32.mrb[0].mxu0
    %2124 = vmatprep.mubr.bf16.mxu0 %v1397
    %2125 = vmatmul.mubr.bf16.gmra.mrb[0].mxu0 %v1396
    %v2126 = vpop.f32.mrb[0].mxu0
    %v2127 = vadd.f32 0.0, %v2126
    %v2128 = vpop.f32.mrb[0].mxu0
    %v2129 = vpop.f32.mrb[0].mxu0
    %v2130 = vadd.f32 0.0, %v2129
    %v2131 = vpop.f32.mrb[0].mxu0
    %2132 = vmatprep.mubr.bf16.mxu0 %v1401
    %2133 = vmatmul.mubr.bf16.gmra.mrb[0].mxu0 %v1400
    %v2134 = vpop.f32.mrb[0].mxu0
    %v2135 = vadd.f32 0.0, %v2134
    %v2136 = vpop.f32.mrb[0].mxu0
    %v2137 = vpop.f32.mrb[0].mxu0
    %v2138 = vadd.f32 0.0, %v2137
    %v2139 = vpop.f32.mrb[0].mxu0
    %2140 = vmatprep.mubr.bf16.mxu0 %v1405
    %2141 = vmatmul.mubr.bf16.gmra.mrb[0].mxu0 %v1404
    %v2142 = vpop.f32.mrb[0].mxu0
    %v2143 = vadd.f32 0.0, %v2142
    %v2144 = vpop.f32.mrb[0].mxu0
    %v2145 = vpop.f32.mrb[0].mxu0
    %v2146 = vadd.f32 0.0, %v2145
    %v2147 = vpop.f32.mrb[0].mxu0
    %2148 = vmatprep.mubr.bf16.mxu0 %v1409
    %2149 = vmatmul.mubr.bf16.gmra.mrb[0].mxu0 %v1408
    %v2150 = vpop.f32.mrb[0].mxu0
    %v2151 = vadd.f32 0.0, %v2150
    %v2152 = vpop.f32.mrb[0].mxu0
    %v2153 = vpop.f32.mrb[0].mxu0
    %v2154 = vadd.f32 0.0, %v2153
    %v2155 = vpop.f32.mrb[0].mxu0
    %2156 = vmatprep.mubr.bf16.mxu0 %v1413
    %2157 = vmatmul.mubr.bf16.gmra.mrb[0].mxu0 %v1412
    %v2158 = vpop.f32.mrb[0].mxu0
    %v2159 = vadd.f32 0.0, %v2158
    %v2160 = vpop.f32.mrb[0].mxu0
    %v2161 = vpop.f32.mrb[0].mxu0
    %v2162 = vadd.f32 0.0, %v2161
    %v2163 = vpop.f32.mrb[0].mxu0
    %2164 = vmatprep.mubr.bf16.mxu0 %v1417
    %2165 = vmatmul.mubr.bf16.gmra.mrb[0].mxu0 %v1416
    %v2166 = vpop.f32.mrb[0].mxu0
    %v2167 = vadd.f32 0.0, %v2166
    %v2168 = vpop.f32.mrb[0].mxu0
    %v2169 = vpop.f32.mrb[0].mxu0
    %v2170 = vadd.f32 0.0, %v2169
    %v2171 = vpop.f32.mrb[0].mxu0
    %2172 = vmatprep.mubr.bf16.mxu0 %v1421
    %2173 = vmatmul.mubr.bf16.gmra.mrb[0].mxu0 %v1420
    %v2174 = vpop.f32.mrb[0].mxu0
    %v2175 = vadd.f32 0.0, %v2174
    %v2176 = vpop.f32.mrb[0].mxu0
    %v2177 = vpop.f32.mrb[0].mxu0
    %v2178 = vadd.f32 0.0, %v2177
    %v2179 = vpop.f32.mrb[0].mxu0
    %2180 = vmatprep.mubr.bf16.mxu0 %v1425
    %2181 = vmatmul.mubr.bf16.gmra.mrb[0].mxu0 %v1424
    %v2182 = vpop.f32.mrb[0].mxu0
    %v2183 = vadd.f32 0.0, %v2182
    %v2184 = vpop.f32.mrb[0].mxu0
    %v2185 = vpop.f32.mrb[0].mxu0
    %v2186 = vadd.f32 0.0, %v2185
    %v2187 = vpop.f32.mrb[0].mxu0
    %2188 = vmatprep.mubr.bf16.mxu0 %v1429
    %2189 = vmatmul.mubr.bf16.gmra.mrb[0].mxu0 %v1428
    %v2190 = vpop.f32.mrb[0].mxu0
    %v2191 = vadd.f32 0.0, %v2190
    %v2192 = vpop.f32.mrb[0].mxu0
    %v2193 = vpop.f32.mrb[0].mxu0
    %v2194 = vadd.f32 0.0, %v2193
    %v2195 = vpop.f32.mrb[0].mxu0
    %2196 = vmatprep.mubr.bf16.mxu0 %v1433
    %2197 = vmatmul.mubr.bf16.gmra.mrb[0].mxu0 %v1432
    %v2198 = vpop.f32.mrb[0].mxu0
    %v2199 = vadd.f32 0.0, %v2198
    %v2200 = vpop.f32.mrb[0].mxu0
    %v2201 = vpop.f32.mrb[0].mxu0
    %v2202 = vadd.f32 0.0, %v2201
    %v2203 = vpop.f32.mrb[0].mxu0
    %2204 = vmatprep.mubr.bf16.mxu0 %v1437
    %2205 = vmatmul.mubr.bf16.gmra.mrb[0].mxu0 %v1436
    %v2206 = vpop.f32.mrb[0].mxu0
    %v2207 = vadd.f32 0.0, %v2206
    %v2208 = vpop.f32.mrb[0].mxu0
    %v2209 = vpop.f32.mrb[0].mxu0
    %v2210 = vadd.f32 0.0, %v2209
    %v2211 = vpop.f32.mrb[0].mxu0
    %2212 = vmatprep.mubr.bf16.mxu0 %v1441
    %2213 = vmatmul.mubr.bf16.gmra.mrb[0].mxu0 %v1440
    %v2214 = vpop.f32.mrb[0].mxu0
    %v2215 = vadd.f32 0.0, %v2214
    %v2216 = vpop.f32.mrb[0].mxu0
    %v2217 = vpop.f32.mrb[0].mxu0
    %v2218 = vadd.f32 0.0, %v2217
    %v2219 = vpop.f32.mrb[0].mxu0
    %2220 = vmatprep.mubr.bf16.mxu0 %v1445
    %2221 = vmatmul.mubr.bf16.gmra.mrb[0].mxu0 %v1444
    %v2222 = vpop.f32.mrb[0].mxu0
    %v2223 = vadd.f32 0.0, %v2222
    %v2224 = vpop.f32.mrb[0].mxu0
    %v2225 = vpop.f32.mrb[0].mxu0
    %v2226 = vadd.f32 0.0, %v2225
    %v2227 = vpop.f32.mrb[0].mxu0
    %2228 = vmatprep.mubr.bf16.mxu0 %v1449
    %2229 = vmatmul.mubr.bf16.gmra.mrb[0].mxu0 %v1448
    %v2230 = vpop.f32.mrb[0].mxu0
    %v2231 = vadd.f32 0.0, %v2230
    %v2232 = vpop.f32.mrb[0].mxu0
    %v2233 = vpop.f32.mrb[0].mxu0
    %v2234 = vadd.f32 0.0, %v2233
    %v2235 = vpop.f32.mrb[0].mxu0
    %2236 = vmatprep.mubr.bf16.mxu0 %v1453
    %2237 = vmatmul.mubr.bf16.gmra.mrb[0].mxu0 %v1452
    %v2238 = vpop.f32.mrb[0].mxu0
    %v2239 = vadd.f32 0.0, %v2238
    %v2240 = vpop.f32.mrb[0].mxu0
    %v2241 = vpop.f32.mrb[0].mxu0
    %v2242 = vadd.f32 0.0, %v2241
    %v2243 = vpop.f32.mrb[0].mxu0
    %2244 = vmatprep.mubr.bf16.mxu0 %v1457
    %2245 = vmatmul.mubr.bf16.gmra.mrb[0].mxu0 %v1456
    %v2246 = vpop.f32.mrb[0].mxu0
    %v2247 = vadd.f32 0.0, %v2246
    %v2248 = vpop.f32.mrb[0].mxu0
    %v2249 = vpop.f32.mrb[0].mxu0
    %v2250 = vadd.f32 0.0, %v2249
    %v2251 = vpop.f32.mrb[0].mxu0
    %2252 = vmatprep.mubr.bf16.mxu0 %v1461
    %2253 = vmatmul.mubr.bf16.gmra.mrb[0].mxu0 %v1460
    %v2254 = vpop.f32.mrb[0].mxu0
    %v2255 = vadd.f32 0.0, %v2254
    %v2256 = vpop.f32.mrb[0].mxu0
    %v2257 = vpop.f32.mrb[0].mxu0
    %v2258 = vadd.f32 0.0, %v2257
    %v2259 = vpop.f32.mrb[0].mxu0
    %2260 = vmatprep.mubr.bf16.mxu0 %v1465
    %2261 = vmatmul.mubr.bf16.gmra.mrb[0].mxu0 %v1464
    %v2262 = vpop.f32.mrb[0].mxu0
    %v2263 = vadd.f32 0.0, %v2262
    %v2264 = vpop.f32.mrb[0].mxu0
    %v2265 = vpop.f32.mrb[0].mxu0
    %v2266 = vadd.f32 0.0, %v2265
    %v2267 = vpop.f32.mrb[0].mxu0
    %2268 = vmatprep.mubr.bf16.mxu0 %v1469
    %2269 = vmatmul.mubr.bf16.gmra.mrb[0].mxu0 %v1468
    %v2270 = vpop.f32.mrb[0].mxu0
    %v2271 = vadd.f32 0.0, %v2270
    %v2272 = vpop.f32.mrb[0].mxu0
    %v2273 = vpop.f32.mrb[0].mxu0
    %v2274 = vadd.f32 0.0, %v2273
    %v2275 = vpop.f32.mrb[0].mxu0
    %2276 = vmatprep.mubr.bf16.mxu0 %v1473
    %2277 = vmatmul.mubr.bf16.gmra.mrb[0].mxu0 %v1472
    %v2278 = vpop.f32.mrb[0].mxu0
    %v2279 = vadd.f32 0.0, %v2278
    %v2280 = vpop.f32.mrb[0].mxu0
    %v2281 = vpop.f32.mrb[0].mxu0
    %v2282 = vadd.f32 0.0, %v2281
    %v2283 = vpop.f32.mrb[0].mxu0
    %2284 = vmatprep.mubr.bf16.mxu0 %v1477
    %2285 = vmatmul.mubr.bf16.gmra.mrb[0].mxu0 %v1476
    %v2286 = vpop.f32.mrb[0].mxu0
    %v2287 = vadd.f32 0.0, %v2286
    %v2288 = vpop.f32.mrb[0].mxu0
    %v2289 = vpop.f32.mrb[0].mxu0
    %v2290 = vadd.f32 0.0, %v2289
    %v2291 = vpop.f32.mrb[0].mxu0
    %2292 = vmatprep.mubr.bf16.mxu0 %v1481
    %2293 = vmatmul.mubr.bf16.gmra.mrb[0].mxu0 %v1480
    %v2294 = vpop.f32.mrb[0].mxu0
    %v2295 = vadd.f32 0.0, %v2294
    %v2296 = vpop.f32.mrb[0].mxu0
    %v2297 = vpop.f32.mrb[0].mxu0
    %v2298 = vadd.f32 0.0, %v2297
    %v2299 = vpop.f32.mrb[0].mxu0
    %2300 = vmatprep.mubr.bf16.mxu0 %v1485
    %2301 = vmatmul.mubr.bf16.gmra.mrb[0].mxu0 %v1484
    %v2302 = vpop.f32.mrb[0].mxu0
    %v2303 = vadd.f32 0.0, %v2302
    %v2304 = vpop.f32.mrb[0].mxu0
    %v2305 = vpop.f32.mrb[0].mxu0
    %v2306 = vadd.f32 0.0, %v2305
    %v2307 = vpop.f32.mrb[0].mxu0
    %2308 = vmatprep.mubr.bf16.mxu0 %v1489
    %2309 = vmatmul.mubr.bf16.gmra.mrb[0].mxu0 %v1488
    %v2310 = vpop.f32.mrb[0].mxu0
    %v2311 = vadd.f32 0.0, %v2310
    %v2312 = vpop.f32.mrb[0].mxu0
    %v2313 = vpop.f32.mrb[0].mxu0
    %v2314 = vadd.f32 0.0, %v2313
    %v2315 = vpop.f32.mrb[0].mxu0
    %2316 = vmatprep.mubr.bf16.mxu0 %v1493
    %2317 = vmatmul.mubr.bf16.gmra.mrb[0].mxu0 %v1492
    %v2318 = vpop.f32.mrb[0].mxu0
    %v2319 = vadd.f32 0.0, %v2318
    %v2320 = vpop.f32.mrb[0].mxu0
    %v2321 = vpop.f32.mrb[0].mxu0
    %v2322 = vadd.f32 0.0, %v2321
    %v2323 = vpop.f32.mrb[0].mxu0
    %2324 = vmatprep.mubr.bf16.mxu0 %v1497
    %2325 = vmatmul.mubr.bf16.gmra.mrb[0].mxu0 %v1496
    %v2326 = vpop.f32.mrb[0].mxu0
    %v2327 = vadd.f32 0.0, %v2326
    %v2328 = vpop.f32.mrb[0].mxu0
    %v2329 = vpop.f32.mrb[0].mxu0
    %v2330 = vadd.f32 0.0, %v2329
    %v2331 = vpop.f32.mrb[0].mxu0
    %2332 = vmatprep.mubr.bf16.mxu0 %v1501
    %2333 = vmatmul.mubr.bf16.gmra.mrb[0].mxu0 %v1500
    %v2334 = vpop.f32.mrb[0].mxu0
    %v2335 = vadd.f32 0.0, %v2334
    %v2336 = vpop.f32.mrb[0].mxu0
    %v2337 = vpop.f32.mrb[0].mxu0
    %v2338 = vadd.f32 0.0, %v2337
    %v2339 = vpop.f32.mrb[0].mxu0
    %2340 = vmatprep.mubr.bf16.mxu0 %v1505
    %2341 = vmatmul.mubr.bf16.gmra.mrb[0].mxu0 %v1504
    %v2342 = vpop.f32.mrb[0].mxu0
    %v2343 = vadd.f32 0.0, %v2342
    %v2344 = vpop.f32.mrb[0].mxu0
    %v2345 = vpop.f32.mrb[0].mxu0
    %v2346 = vadd.f32 0.0, %v2345
    %v2347 = vpop.f32.mrb[0].mxu0
    %2348 = vmatprep.mubr.bf16.mxu0 %v1509
    %2349 = vmatmul.mubr.bf16.gmra.mrb[0].mxu0 %v1508
    %v2350 = vpop.f32.mrb[0].mxu0
    %v2351 = vadd.f32 0.0, %v2350
    %v2352 = vpop.f32.mrb[0].mxu0
    %v2353 = vpop.f32.mrb[0].mxu0
    %v2354 = vadd.f32 0.0, %v2353
    %v2355 = vpop.f32.mrb[0].mxu0
    %2356 = vmatprep.mubr.bf16.mxu0 %v1513
    %2357 = vmatmul.mubr.bf16.gmra.mrb[0].mxu0 %v1512
    %v2358 = vpop.f32.mrb[0].mxu0
    %v2359 = vadd.f32 0.0, %v2358
    %v2360 = vpop.f32.mrb[0].mxu0
    %v2361 = vpop.f32.mrb[0].mxu0
    %v2362 = vadd.f32 0.0, %v2361
    %v2363 = vpop.f32.mrb[0].mxu0
    %2364 = vmatprep.mubr.bf16.mxu0 %v1517
    %2365 = vmatmul.mubr.bf16.gmra.mrb[0].mxu0 %v1516
    %v2366 = vpop.f32.mrb[0].mxu0
    %v2367 = vadd.f32 0.0, %v2366
    %v2368 = vpop.f32.mrb[0].mxu0
    %v2369 = vpop.f32.mrb[0].mxu0
    %v2370 = vadd.f32 0.0, %v2369
    %v2371 = vpop.f32.mrb[0].mxu0
    %2372 = vmatprep.mubr.bf16.mxu0 %v1521
    %2373 = vmatmul.mubr.bf16.gmra.mrb[0].mxu0 %v1520
    %v2374 = vpop.f32.mrb[0].mxu0
    %v2375 = vadd.f32 0.0, %v2374
    %v2376 = vpop.f32.mrb[0].mxu0
    %v2377 = vpop.f32.mrb[0].mxu0
    %v2378 = vadd.f32 0.0, %v2377
    %v2379 = vpop.f32.mrb[0].mxu0
    %2380 = vmatprep.mubr.bf16.mxu0 %v1525
    %2381 = vmatmul.mubr.bf16.gmra.mrb[0].mxu0 %v1524
    %v2382 = vpop.f32.mrb[0].mxu0
    %v2383 = vadd.f32 0.0, %v2382
    %v2384 = vpop.f32.mrb[0].mxu0
    %v2385 = vpop.f32.mrb[0].mxu0
    %v2386 = vadd.f32 0.0, %v2385
    %v2387 = vpop.f32.mrb[0].mxu0
    %2388 = vmatprep.mubr.bf16.mxu0 %v1529
    %2389 = vmatmul.mubr.bf16.gmra.mrb[0].mxu0 %v1528
    %v2390 = vpop.f32.mrb[0].mxu0
    %v2391 = vadd.f32 0.0, %v2390
    %v2392 = vpop.f32.mrb[0].mxu0
    %v2393 = vpop.f32.mrb[0].mxu0
    %v2394 = vadd.f32 0.0, %v2393
    %v2395 = vpop.f32.mrb[0].mxu0
    %2396 = vmatprep.mubr.bf16.mxu0 %v1533
    %2397 = vmatmul.mubr.bf16.gmra.mrb[0].mxu0 %v1532
    %v2398 = vpop.f32.mrb[0].mxu0
    %v2399 = vadd.f32 0.0, %v2398
    %v2400 = vpop.f32.mrb[0].mxu0
    %v2401 = vpop.f32.mrb[0].mxu0
    %v2402 = vadd.f32 0.0, %v2401
    %v2403 = vpop.f32.mrb[0].mxu0
    %2404 = vmatprep.mubr.bf16.mxu0 %v1537
    %2405 = vmatmul.mubr.bf16.gmra.mrb[0].mxu0 %v1536
    %v2406 = vpop.f32.mrb[0].mxu0
    %v2407 = vadd.f32 0.0, %v2406
    %v2408 = vpop.f32.mrb[0].mxu0
    %v2409 = vpop.f32.mrb[0].mxu0
    %v2410 = vadd.f32 0.0, %v2409
    %v2411 = vpop.f32.mrb[0].mxu0
    %2412 = vmatprep.mubr.bf16.mxu0 %v1541
    %2413 = vmatmul.mubr.bf16.gmra.mrb[0].mxu0 %v1540
    %v2414 = vpop.f32.mrb[0].mxu0
    %v2415 = vadd.f32 0.0, %v2414
    %v2416 = vpop.f32.mrb[0].mxu0
    %v2417 = vpop.f32.mrb[0].mxu0
    %v2418 = vadd.f32 0.0, %v2417
    %v2419 = vpop.f32.mrb[0].mxu0
    %2420 = vmatprep.mubr.bf16.mxu0 %v1545
    %2421 = vmatmul.mubr.bf16.gmra.mrb[0].mxu0 %v1544
    %v2422 = vpop.f32.mrb[0].mxu0
    %v2423 = vadd.f32 0.0, %v2422
    %v2424 = vpop.f32.mrb[0].mxu0
    %v2425 = vpop.f32.mrb[0].mxu0
    %v2426 = vadd.f32 0.0, %v2425
    %v2427 = vpop.f32.mrb[0].mxu0
    %2428 = vmatprep.mubr.bf16.mxu0 %v1549
    %2429 = vmatmul.mubr.bf16.gmra.mrb[0].mxu0 %v1548
    %v2430 = vpop.f32.mrb[0].mxu0
    %v2431 = vadd.f32 0.0, %v2430
    %v2432 = vpop.f32.mrb[0].mxu0
    %v2433 = vpop.f32.mrb[0].mxu0
    %v2434 = vadd.f32 0.0, %v2433
    %v2435 = vpop.f32.mrb[0].mxu0
    %2436 = vmatprep.mubr.bf16.mxu0 %v1553
    %2437 = vmatmul.mubr.bf16.gmra.mrb[0].mxu0 %v1552
    %v2438 = vpop.f32.mrb[0].mxu0
    %v2439 = vadd.f32 0.0, %v2438
    %v2440 = vpop.f32.mrb[0].mxu0
    %v2441 = vpop.f32.mrb[0].mxu0
    %v2442 = vadd.f32 0.0, %v2441
    %v2443 = vpop.f32.mrb[0].mxu0
    %2444 = vmatprep.mubr.bf16.mxu0 %v1557
    %2445 = vmatmul.mubr.bf16.gmra.mrb[0].mxu0 %v1556
    %v2446 = vpop.f32.mrb[0].mxu0
    %v2447 = vadd.f32 0.0, %v2446
    %v2448 = vpop.f32.mrb[0].mxu0
    %v2449 = vpop.f32.mrb[0].mxu0
    %v2450 = vadd.f32 0.0, %v2449
    %v2451 = vpop.f32.mrb[0].mxu0
    %2452 = vmatprep.mubr.bf16.mxu0 %v1561
    %2453 = vmatmul.mubr.bf16.gmra.mrb[0].mxu0 %v1560
    %v2454 = vpop.f32.mrb[0].mxu0
    %v2455 = vadd.f32 0.0, %v2454
    %v2456 = vpop.f32.mrb[0].mxu0
    %v2457 = vpop.f32.mrb[0].mxu0
    %v2458 = vadd.f32 0.0, %v2457
    %v2459 = vpop.f32.mrb[0].mxu0
    %2460 = vdwg.mxu0
    %2461 = vmatprep.subr.bf16.mxu0 0
    %2462 = vmatpush1.bf16.msra.mxu0 %v108
    %2463 = vmatprep.subr.bf16.mxu0 0
    %2464 = vmatpush1.bf16.msra.mxu0 %v109
    %2465 = vmatprep.subr.bf16.mxu0 0
    %2466 = vmatpush1.bf16.msra.mxu0 %v110
    %2467 = vmatprep.subr.bf16.mxu0 0
    %2468 = vmatpush1.bf16.msra.mxu0 %v111
    %2469 = vmatprep.subr.bf16.mxu0 0
    %2470 = vmatpush1.bf16.msra.mxu0 %v112
    %2471 = vmatprep.subr.bf16.mxu0 0
    %2472 = vmatpush1.bf16.msra.mxu0 %v113
    %2473 = vmatprep.subr.bf16.mxu0 0
    %2474 = vmatpush1.bf16.msra.mxu0 %v114
    %2475 = vmatprep.subr.bf16.mxu0 0
    %2476 = vmatpush1.bf16.msra.mxu0 %v115
    %2477 = vmatprep.subr.bf16.mxu0 0
    %2478 = vmatpush1.bf16.msra.mxu0 %v116
    %2479 = vmatprep.subr.bf16.mxu0 0
    %2480 = vmatpush1.bf16.msra.mxu0 %v117
    %2481 = vmatprep.subr.bf16.mxu0 0
    %2482 = vmatpush1.bf16.msra.mxu0 %v118
    %2483 = vmatprep.subr.bf16.mxu0 0
    %2484 = vmatpush1.bf16.msra.mxu0 %v119
    %2485 = vmatprep.subr.bf16.mxu0 0
    %2486 = vmatpush1.bf16.msra.mxu0 %v120
    %2487 = vmatprep.subr.bf16.mxu0 0
    %2488 = vmatpush1.bf16.msra.mxu0 %v121
    %2489 = vmatprep.subr.bf16.mxu0 0
    %2490 = vmatpush1.bf16.msra.mxu0 %v122
    %2491 = vmatprep.subr.bf16.mxu0 0
    %2492 = vmatpush1.bf16.msra.mxu0 %v123
    %2493 = vmatprep.mubr.bf16.mxu0 %v1279
    %2494 = vmatmul.mubr.bf16.gmra.mrb[0].mxu0 %v1278
    %v2495 = vpop.f32.mrb[0].mxu0
    %v2496 = vadd.f32 %v1887, %v2495
    %v2497 = vpop.f32.mrb[0].mxu0
    %v2498 = vpop.f32.mrb[0].mxu0
    %v2499 = vadd.f32 %v1890, %v2498
    %v2500 = vpop.f32.mrb[0].mxu0
    %2501 = vmatprep.mubr.bf16.mxu0 %v1283
    %2502 = vmatmul.mubr.bf16.gmra.mrb[0].mxu0 %v1282
    %v2503 = vpop.f32.mrb[0].mxu0
    %v2504 = vadd.f32 %v1895, %v2503
    %v2505 = vpop.f32.mrb[0].mxu0
    %v2506 = vpop.f32.mrb[0].mxu0
    %v2507 = vadd.f32 %v1898, %v2506
    %v2508 = vpop.f32.mrb[0].mxu0
    %2509 = vmatprep.mubr.bf16.mxu0 %v1287
    %2510 = vmatmul.mubr.bf16.gmra.mrb[0].mxu0 %v1286
    %v2511 = vpop.f32.mrb[0].mxu0
    %v2512 = vadd.f32 %v1903, %v2511
    %v2513 = vpop.f32.mrb[0].mxu0
    %v2514 = vpop.f32.mrb[0].mxu0
    %v2515 = vadd.f32 %v1906, %v2514
    %v2516 = vpop.f32.mrb[0].mxu0
    %2517 = vmatprep.mubr.bf16.mxu0 %v1291
    %2518 = vmatmul.mubr.bf16.gmra.mrb[0].mxu0 %v1290
    %v2519 = vpop.f32.mrb[0].mxu0
    %v2520 = vadd.f32 %v1911, %v2519
    %v2521 = vpop.f32.mrb[0].mxu0
    %v2522 = vpop.f32.mrb[0].mxu0
    %v2523 = vadd.f32 %v1914, %v2522
    %v2524 = vpop.f32.mrb[0].mxu0
    %2525 = vmatprep.mubr.bf16.mxu0 %v1295
    %2526 = vmatmul.mubr.bf16.gmra.mrb[0].mxu0 %v1294
    %v2527 = vpop.f32.mrb[0].mxu0
    %v2528 = vadd.f32 %v1919, %v2527
    %v2529 = vpop.f32.mrb[0].mxu0
    %v2530 = vpop.f32.mrb[0].mxu0
    %v2531 = vadd.f32 %v1922, %v2530
    %v2532 = vpop.f32.mrb[0].mxu0
    %2533 = vmatprep.mubr.bf16.mxu0 %v1299
    %2534 = vmatmul.mubr.bf16.gmra.mrb[0].mxu0 %v1298
    %v2535 = vpop.f32.mrb[0].mxu0
    %v2536 = vadd.f32 %v1927, %v2535
    %v2537 = vpop.f32.mrb[0].mxu0
    %v2538 = vpop.f32.mrb[0].mxu0
    %v2539 = vadd.f32 %v1930, %v2538
    %v2540 = vpop.f32.mrb[0].mxu0
    %2541 = vmatprep.mubr.bf16.mxu0 %v1303
    %2542 = vmatmul.mubr.bf16.gmra.mrb[0].mxu0 %v1302
    %v2543 = vpop.f32.mrb[0].mxu0
    %v2544 = vadd.f32 %v1935, %v2543
    %v2545 = vpop.f32.mrb[0].mxu0
    %v2546 = vpop.f32.mrb[0].mxu0
    %v2547 = vadd.f32 %v1938, %v2546
    %v2548 = vpop.f32.mrb[0].mxu0
    %2549 = vmatprep.mubr.bf16.mxu0 %v1307
    %2550 = vmatmul.mubr.bf16.gmra.mrb[0].mxu0 %v1306
    %v2551 = vpop.f32.mrb[0].mxu0
    %v2552 = vadd.f32 %v1943, %v2551
    %v2553 = vpop.f32.mrb[0].mxu0
    %v2554 = vpop.f32.mrb[0].mxu0
    %v2555 = vadd.f32 %v1946, %v2554
    %v2556 = vpop.f32.mrb[0].mxu0
    %2557 = vmatprep.mubr.bf16.mxu0 %v1311
    %2558 = vmatmul.mubr.bf16.gmra.mrb[0].mxu0 %v1310
    %v2559 = vpop.f32.mrb[0].mxu0
    %v2560 = vadd.f32 %v1951, %v2559
    %v2561 = vpop.f32.mrb[0].mxu0
    %v2562 = vpop.f32.mrb[0].mxu0
    %v2563 = vadd.f32 %v1954, %v2562
    %v2564 = vpop.f32.mrb[0].mxu0
    %2565 = vmatprep.mubr.bf16.mxu0 %v1315
    %2566 = vmatmul.mubr.bf16.gmra.mrb[0].mxu0 %v1314
    %v2567 = vpop.f32.mrb[0].mxu0
    %v2568 = vadd.f32 %v1959, %v2567
    %v2569 = vpop.f32.mrb[0].mxu0
    %v2570 = vpop.f32.mrb[0].mxu0
    %v2571 = vadd.f32 %v1962, %v2570
    %v2572 = vpop.f32.mrb[0].mxu0
    %2573 = vmatprep.mubr.bf16.mxu0 %v1319
    %2574 = vmatmul.mubr.bf16.gmra.mrb[0].mxu0 %v1318
    %v2575 = vpop.f32.mrb[0].mxu0
    %v2576 = vadd.f32 %v1967, %v2575
    %v2577 = vpop.f32.mrb[0].mxu0
    %v2578 = vpop.f32.mrb[0].mxu0
    %v2579 = vadd.f32 %v1970, %v2578
    %v2580 = vpop.f32.mrb[0].mxu0
    %2581 = vmatprep.mubr.bf16.mxu0 %v1323
    %2582 = vmatmul.mubr.bf16.gmra.mrb[0].mxu0 %v1322
    %v2583 = vpop.f32.mrb[0].mxu0
    %v2584 = vadd.f32 %v1975, %v2583
    %v2585 = vpop.f32.mrb[0].mxu0
    %v2586 = vpop.f32.mrb[0].mxu0
    %v2587 = vadd.f32 %v1978, %v2586
    %v2588 = vpop.f32.mrb[0].mxu0
    %2589 = vmatprep.mubr.bf16.mxu0 %v1327
    %2590 = vmatmul.mubr.bf16.gmra.mrb[0].mxu0 %v1326
    %v2591 = vpop.f32.mrb[0].mxu0
    %v2592 = vadd.f32 %v1983, %v2591
    %v2593 = vpop.f32.mrb[0].mxu0
    %v2594 = vpop.f32.mrb[0].mxu0
    %v2595 = vadd.f32 %v1986, %v2594
    %v2596 = vpop.f32.mrb[0].mxu0
    %2597 = vmatprep.mubr.bf16.mxu0 %v1331
    %2598 = vmatmul.mubr.bf16.gmra.mrb[0].mxu0 %v1330
    %v2599 = vpop.f32.mrb[0].mxu0
    %v2600 = vadd.f32 %v1991, %v2599
    %v2601 = vpop.f32.mrb[0].mxu0
    %v2602 = vpop.f32.mrb[0].mxu0
    %v2603 = vadd.f32 %v1994, %v2602
    %v2604 = vpop.f32.mrb[0].mxu0
    %2605 = vmatprep.mubr.bf16.mxu0 %v1335
    %2606 = vmatmul.mubr.bf16.gmra.mrb[0].mxu0 %v1334
    %v2607 = vpop.f32.mrb[0].mxu0
    %v2608 = vadd.f32 %v1999, %v2607
    %v2609 = vpop.f32.mrb[0].mxu0
    %v2610 = vpop.f32.mrb[0].mxu0
    %v2611 = vadd.f32 %v2002, %v2610
    %v2612 = vpop.f32.mrb[0].mxu0
    %2613 = vmatprep.mubr.bf16.mxu0 %v1339
    %2614 = vmatmul.mubr.bf16.gmra.mrb[0].mxu0 %v1338
    %v2615 = vpop.f32.mrb[0].mxu0
    %v2616 = vadd.f32 %v2007, %v2615
    %v2617 = vpop.f32.mrb[0].mxu0
    %v2618 = vpop.f32.mrb[0].mxu0
    %v2619 = vadd.f32 %v2010, %v2618
    %v2620 = vpop.f32.mrb[0].mxu0
    %2621 = vmatprep.mubr.bf16.mxu0 %v1343
    %2622 = vmatmul.mubr.bf16.gmra.mrb[0].mxu0 %v1342
    %v2623 = vpop.f32.mrb[0].mxu0
    %v2624 = vadd.f32 %v2015, %v2623
    %v2625 = vpop.f32.mrb[0].mxu0
    %v2626 = vpop.f32.mrb[0].mxu0
    %v2627 = vadd.f32 %v2018, %v2626
    %v2628 = vpop.f32.mrb[0].mxu0
    %2629 = vmatprep.mubr.bf16.mxu0 %v1347
    %2630 = vmatmul.mubr.bf16.gmra.mrb[0].mxu0 %v1346
    %v2631 = vpop.f32.mrb[0].mxu0
    %v2632 = vadd.f32 %v2023, %v2631
    %v2633 = vpop.f32.mrb[0].mxu0
    %v2634 = vpop.f32.mrb[0].mxu0
    %v2635 = vadd.f32 %v2026, %v2634
    %v2636 = vpop.f32.mrb[0].mxu0
    %2637 = vmatprep.mubr.bf16.mxu0 %v1351
    %2638 = vmatmul.mubr.bf16.gmra.mrb[0].mxu0 %v1350
    %v2639 = vpop.f32.mrb[0].mxu0
    %v2640 = vadd.f32 %v2031, %v2639
    %v2641 = vpop.f32.mrb[0].mxu0
    %v2642 = vpop.f32.mrb[0].mxu0
    %v2643 = vadd.f32 %v2034, %v2642
    %v2644 = vpop.f32.mrb[0].mxu0
    %2645 = vmatprep.mubr.bf16.mxu0 %v1355
    %2646 = vmatmul.mubr.bf16.gmra.mrb[0].mxu0 %v1354
    %v2647 = vpop.f32.mrb[0].mxu0
    %v2648 = vadd.f32 %v2039, %v2647
    %v2649 = vpop.f32.mrb[0].mxu0
    %v2650 = vpop.f32.mrb[0].mxu0
    %v2651 = vadd.f32 %v2042, %v2650
    %v2652 = vpop.f32.mrb[0].mxu0
    %2653 = vmatprep.mubr.bf16.mxu0 %v1359
    %2654 = vmatmul.mubr.bf16.gmra.mrb[0].mxu0 %v1358
    %v2655 = vpop.f32.mrb[0].mxu0
    %v2656 = vadd.f32 %v2047, %v2655
    %v2657 = vpop.f32.mrb[0].mxu0
    %v2658 = vpop.f32.mrb[0].mxu0
    %v2659 = vadd.f32 %v2050, %v2658
    %v2660 = vpop.f32.mrb[0].mxu0
    %2661 = vmatprep.mubr.bf16.mxu0 %v1363
    %2662 = vmatmul.mubr.bf16.gmra.mrb[0].mxu0 %v1362
    %v2663 = vpop.f32.mrb[0].mxu0
    %v2664 = vadd.f32 %v2055, %v2663
    %v2665 = vpop.f32.mrb[0].mxu0
    %v2666 = vpop.f32.mrb[0].mxu0
    %v2667 = vadd.f32 %v2058, %v2666
    %v2668 = vpop.f32.mrb[0].mxu0
    %2669 = vmatprep.mubr.bf16.mxu0 %v1367
    %2670 = vmatmul.mubr.bf16.gmra.mrb[0].mxu0 %v1366
    %v2671 = vpop.f32.mrb[0].mxu0
    %v2672 = vadd.f32 %v2063, %v2671
    %v2673 = vpop.f32.mrb[0].mxu0
    %v2674 = vpop.f32.mrb[0].mxu0
    %v2675 = vadd.f32 %v2066, %v2674
    %v2676 = vpop.f32.mrb[0].mxu0
    %2677 = vmatprep.mubr.bf16.mxu0 %v1371
    %2678 = vmatmul.mubr.bf16.gmra.mrb[0].mxu0 %v1370
    %v2679 = vpop.f32.mrb[0].mxu0
    %v2680 = vadd.f32 %v2071, %v2679
    %v2681 = vpop.f32.mrb[0].mxu0
    %v2682 = vpop.f32.mrb[0].mxu0
    %v2683 = vadd.f32 %v2074, %v2682
    %v2684 = vpop.f32.mrb[0].mxu0
    %2685 = vmatprep.mubr.bf16.mxu0 %v1375
    %2686 = vmatmul.mubr.bf16.gmra.mrb[0].mxu0 %v1374
    %v2687 = vpop.f32.mrb[0].mxu0
    %v2688 = vadd.f32 %v2079, %v2687
    %v2689 = vpop.f32.mrb[0].mxu0
    %v2690 = vpop.f32.mrb[0].mxu0
    %v2691 = vadd.f32 %v2082, %v2690
    %v2692 = vpop.f32.mrb[0].mxu0
    %2693 = vmatprep.mubr.bf16.mxu0 %v1379
    %2694 = vmatmul.mubr.bf16.gmra.mrb[0].mxu0 %v1378
    %v2695 = vpop.f32.mrb[0].mxu0
    %v2696 = vadd.f32 %v2087, %v2695
    %v2697 = vpop.f32.mrb[0].mxu0
    %v2698 = vpop.f32.mrb[0].mxu0
    %v2699 = vadd.f32 %v2090, %v2698
    %v2700 = vpop.f32.mrb[0].mxu0
    %2701 = vmatprep.mubr.bf16.mxu0 %v1383
    %2702 = vmatmul.mubr.bf16.gmra.mrb[0].mxu0 %v1382
    %v2703 = vpop.f32.mrb[0].mxu0
    %v2704 = vadd.f32 %v2095, %v2703
    %v2705 = vpop.f32.mrb[0].mxu0
    %v2706 = vpop.f32.mrb[0].mxu0
    %v2707 = vadd.f32 %v2098, %v2706
    %v2708 = vpop.f32.mrb[0].mxu0
    %2709 = vmatprep.mubr.bf16.mxu0 %v1387
    %2710 = vmatmul.mubr.bf16.gmra.mrb[0].mxu0 %v1386
    %v2711 = vpop.f32.mrb[0].mxu0
    %v2712 = vadd.f32 %v2103, %v2711
    %v2713 = vpop.f32.mrb[0].mxu0
    %v2714 = vpop.f32.mrb[0].mxu0
    %v2715 = vadd.f32 %v2106, %v2714
    %v2716 = vpop.f32.mrb[0].mxu0
    %2717 = vmatprep.mubr.bf16.mxu0 %v1391
    %2718 = vmatmul.mubr.bf16.gmra.mrb[0].mxu0 %v1390
    %v2719 = vpop.f32.mrb[0].mxu0
    %v2720 = vadd.f32 %v2111, %v2719
    %v2721 = vpop.f32.mrb[0].mxu0
    %v2722 = vpop.f32.mrb[0].mxu0
    %v2723 = vadd.f32 %v2114, %v2722
    %v2724 = vpop.f32.mrb[0].mxu0
    %2725 = vmatprep.mubr.bf16.mxu0 %v1395
    %2726 = vmatmul.mubr.bf16.gmra.mrb[0].mxu0 %v1394
    %v2727 = vpop.f32.mrb[0].mxu0
    %v2728 = vadd.f32 %v2119, %v2727
    %v2729 = vpop.f32.mrb[0].mxu0
    %v2730 = vpop.f32.mrb[0].mxu0
    %v2731 = vadd.f32 %v2122, %v2730
    %v2732 = vpop.f32.mrb[0].mxu0
    %2733 = vmatprep.mubr.bf16.mxu0 %v1399
    %2734 = vmatmul.mubr.bf16.gmra.mrb[0].mxu0 %v1398
    %v2735 = vpop.f32.mrb[0].mxu0
    %v2736 = vadd.f32 %v2127, %v2735
    %v2737 = vpop.f32.mrb[0].mxu0
    %v2738 = vpop.f32.mrb[0].mxu0
    %v2739 = vadd.f32 %v2130, %v2738
    %v2740 = vpop.f32.mrb[0].mxu0
    %2741 = vmatprep.mubr.bf16.mxu0 %v1403
    %2742 = vmatmul.mubr.bf16.gmra.mrb[0].mxu0 %v1402
    %v2743 = vpop.f32.mrb[0].mxu0
    %v2744 = vadd.f32 %v2135, %v2743
    %v2745 = vpop.f32.mrb[0].mxu0
    %v2746 = vpop.f32.mrb[0].mxu0
    %v2747 = vadd.f32 %v2138, %v2746
    %v2748 = vpop.f32.mrb[0].mxu0
    %2749 = vmatprep.mubr.bf16.mxu0 %v1407
    %2750 = vmatmul.mubr.bf16.gmra.mrb[0].mxu0 %v1406
    %v2751 = vpop.f32.mrb[0].mxu0
    %v2752 = vadd.f32 %v2143, %v2751
    %v2753 = vpop.f32.mrb[0].mxu0
    %v2754 = vpop.f32.mrb[0].mxu0
    %v2755 = vadd.f32 %v2146, %v2754
    %v2756 = vpop.f32.mrb[0].mxu0
    %2757 = vmatprep.mubr.bf16.mxu0 %v1411
    %2758 = vmatmul.mubr.bf16.gmra.mrb[0].mxu0 %v1410
    %v2759 = vpop.f32.mrb[0].mxu0
    %v2760 = vadd.f32 %v2151, %v2759
    %v2761 = vpop.f32.mrb[0].mxu0
    %v2762 = vpop.f32.mrb[0].mxu0
    %v2763 = vadd.f32 %v2154, %v2762
    %v2764 = vpop.f32.mrb[0].mxu0
    %2765 = vmatprep.mubr.bf16.mxu0 %v1415
    %2766 = vmatmul.mubr.bf16.gmra.mrb[0].mxu0 %v1414
    %v2767 = vpop.f32.mrb[0].mxu0
    %v2768 = vadd.f32 %v2159, %v2767
    %v2769 = vpop.f32.mrb[0].mxu0
    %v2770 = vpop.f32.mrb[0].mxu0
    %v2771 = vadd.f32 %v2162, %v2770
    %v2772 = vpop.f32.mrb[0].mxu0
    %2773 = vmatprep.mubr.bf16.mxu0 %v1419
    %2774 = vmatmul.mubr.bf16.gmra.mrb[0].mxu0 %v1418
    %v2775 = vpop.f32.mrb[0].mxu0
    %v2776 = vadd.f32 %v2167, %v2775
    %v2777 = vpop.f32.mrb[0].mxu0
    %v2778 = vpop.f32.mrb[0].mxu0
    %v2779 = vadd.f32 %v2170, %v2778
    %v2780 = vpop.f32.mrb[0].mxu0
    %2781 = vmatprep.mubr.bf16.mxu0 %v1423
    %2782 = vmatmul.mubr.bf16.gmra.mrb[0].mxu0 %v1422
    %v2783 = vpop.f32.mrb[0].mxu0
    %v2784 = vadd.f32 %v2175, %v2783
    %v2785 = vpop.f32.mrb[0].mxu0
    %v2786 = vpop.f32.mrb[0].mxu0
    %v2787 = vadd.f32 %v2178, %v2786
    %v2788 = vpop.f32.mrb[0].mxu0
    %2789 = vmatprep.mubr.bf16.mxu0 %v1427
    %2790 = vmatmul.mubr.bf16.gmra.mrb[0].mxu0 %v1426
    %v2791 = vpop.f32.mrb[0].mxu0
    %v2792 = vadd.f32 %v2183, %v2791
    %v2793 = vpop.f32.mrb[0].mxu0
    %v2794 = vpop.f32.mrb[0].mxu0
    %v2795 = vadd.f32 %v2186, %v2794
    %v2796 = vpop.f32.mrb[0].mxu0
    %2797 = vmatprep.mubr.bf16.mxu0 %v1431
    %2798 = vmatmul.mubr.bf16.gmra.mrb[0].mxu0 %v1430
    %v2799 = vpop.f32.mrb[0].mxu0
    %v2800 = vadd.f32 %v2191, %v2799
    %v2801 = vpop.f32.mrb[0].mxu0
    %v2802 = vpop.f32.mrb[0].mxu0
    %v2803 = vadd.f32 %v2194, %v2802
    %v2804 = vpop.f32.mrb[0].mxu0
    %2805 = vmatprep.mubr.bf16.mxu0 %v1435
    %2806 = vmatmul.mubr.bf16.gmra.mrb[0].mxu0 %v1434
    %v2807 = vpop.f32.mrb[0].mxu0
    %v2808 = vadd.f32 %v2199, %v2807
    %v2809 = vpop.f32.mrb[0].mxu0
    %v2810 = vpop.f32.mrb[0].mxu0
    %v2811 = vadd.f32 %v2202, %v2810
    %v2812 = vpop.f32.mrb[0].mxu0
    %2813 = vmatprep.mubr.bf16.mxu0 %v1439
    %2814 = vmatmul.mubr.bf16.gmra.mrb[0].mxu0 %v1438
    %v2815 = vpop.f32.mrb[0].mxu0
    %v2816 = vadd.f32 %v2207, %v2815
    %v2817 = vpop.f32.mrb[0].mxu0
    %v2818 = vpop.f32.mrb[0].mxu0
    %v2819 = vadd.f32 %v2210, %v2818
    %v2820 = vpop.f32.mrb[0].mxu0
    %2821 = vmatprep.mubr.bf16.mxu0 %v1443
    %2822 = vmatmul.mubr.bf16.gmra.mrb[0].mxu0 %v1442
    %v2823 = vpop.f32.mrb[0].mxu0
    %v2824 = vadd.f32 %v2215, %v2823
    %v2825 = vpop.f32.mrb[0].mxu0
    %v2826 = vpop.f32.mrb[0].mxu0
    %v2827 = vadd.f32 %v2218, %v2826
    %v2828 = vpop.f32.mrb[0].mxu0
    %2829 = vmatprep.mubr.bf16.mxu0 %v1447
    %2830 = vmatmul.mubr.bf16.gmra.mrb[0].mxu0 %v1446
    %v2831 = vpop.f32.mrb[0].mxu0
    %v2832 = vadd.f32 %v2223, %v2831
    %v2833 = vpop.f32.mrb[0].mxu0
    %v2834 = vpop.f32.mrb[0].mxu0
    %v2835 = vadd.f32 %v2226, %v2834
    %v2836 = vpop.f32.mrb[0].mxu0
    %2837 = vmatprep.mubr.bf16.mxu0 %v1451
    %2838 = vmatmul.mubr.bf16.gmra.mrb[0].mxu0 %v1450
    %v2839 = vpop.f32.mrb[0].mxu0
    %v2840 = vadd.f32 %v2231, %v2839
    %v2841 = vpop.f32.mrb[0].mxu0
    %v2842 = vpop.f32.mrb[0].mxu0
    %v2843 = vadd.f32 %v2234, %v2842
    %v2844 = vpop.f32.mrb[0].mxu0
    %2845 = vmatprep.mubr.bf16.mxu0 %v1455
    %2846 = vmatmul.mubr.bf16.gmra.mrb[0].mxu0 %v1454
    %v2847 = vpop.f32.mrb[0].mxu0
    %v2848 = vadd.f32 %v2239, %v2847
    %v2849 = vpop.f32.mrb[0].mxu0
    %v2850 = vpop.f32.mrb[0].mxu0
    %v2851 = vadd.f32 %v2242, %v2850
    %v2852 = vpop.f32.mrb[0].mxu0
    %2853 = vmatprep.mubr.bf16.mxu0 %v1459
    %2854 = vmatmul.mubr.bf16.gmra.mrb[0].mxu0 %v1458
    %v2855 = vpop.f32.mrb[0].mxu0
    %v2856 = vadd.f32 %v2247, %v2855
    %v2857 = vpop.f32.mrb[0].mxu0
    %v2858 = vpop.f32.mrb[0].mxu0
    %v2859 = vadd.f32 %v2250, %v2858
    %v2860 = vpop.f32.mrb[0].mxu0
    %2861 = vmatprep.mubr.bf16.mxu0 %v1463
    %2862 = vmatmul.mubr.bf16.gmra.mrb[0].mxu0 %v1462
    %v2863 = vpop.f32.mrb[0].mxu0
    %v2864 = vadd.f32 %v2255, %v2863
    %v2865 = vpop.f32.mrb[0].mxu0
    %v2866 = vpop.f32.mrb[0].mxu0
    %v2867 = vadd.f32 %v2258, %v2866
    %v2868 = vpop.f32.mrb[0].mxu0
    %2869 = vmatprep.mubr.bf16.mxu0 %v1467
    %2870 = vmatmul.mubr.bf16.gmra.mrb[0].mxu0 %v1466
    %v2871 = vpop.f32.mrb[0].mxu0
    %v2872 = vadd.f32 %v2263, %v2871
    %v2873 = vpop.f32.mrb[0].mxu0
    %v2874 = vpop.f32.mrb[0].mxu0
    %v2875 = vadd.f32 %v2266, %v2874
    %v2876 = vpop.f32.mrb[0].mxu0
    %2877 = vmatprep.mubr.bf16.mxu0 %v1471
    %2878 = vmatmul.mubr.bf16.gmra.mrb[0].mxu0 %v1470
    %v2879 = vpop.f32.mrb[0].mxu0
    %v2880 = vadd.f32 %v2271, %v2879
    %v2881 = vpop.f32.mrb[0].mxu0
    %v2882 = vpop.f32.mrb[0].mxu0
    %v2883 = vadd.f32 %v2274, %v2882
    %v2884 = vpop.f32.mrb[0].mxu0
    %2885 = vmatprep.mubr.bf16.mxu0 %v1475
    %2886 = vmatmul.mubr.bf16.gmra.mrb[0].mxu0 %v1474
    %v2887 = vpop.f32.mrb[0].mxu0
    %v2888 = vadd.f32 %v2279, %v2887
    %v2889 = vpop.f32.mrb[0].mxu0
    %v2890 = vpop.f32.mrb[0].mxu0
    %v2891 = vadd.f32 %v2282, %v2890
    %v2892 = vpop.f32.mrb[0].mxu0
    %2893 = vmatprep.mubr.bf16.mxu0 %v1479
    %2894 = vmatmul.mubr.bf16.gmra.mrb[0].mxu0 %v1478
    %v2895 = vpop.f32.mrb[0].mxu0
    %v2896 = vadd.f32 %v2287, %v2895
    %v2897 = vpop.f32.mrb[0].mxu0
    %v2898 = vpop.f32.mrb[0].mxu0
    %v2899 = vadd.f32 %v2290, %v2898
    %v2900 = vpop.f32.mrb[0].mxu0
    %2901 = vmatprep.mubr.bf16.mxu0 %v1483
    %2902 = vmatmul.mubr.bf16.gmra.mrb[0].mxu0 %v1482
    %v2903 = vpop.f32.mrb[0].mxu0
    %v2904 = vadd.f32 %v2295, %v2903
    %v2905 = vpop.f32.mrb[0].mxu0
    %v2906 = vpop.f32.mrb[0].mxu0
    %v2907 = vadd.f32 %v2298, %v2906
    %v2908 = vpop.f32.mrb[0].mxu0
    %2909 = vmatprep.mubr.bf16.mxu0 %v1487
    %2910 = vmatmul.mubr.bf16.gmra.mrb[0].mxu0 %v1486
    %v2911 = vpop.f32.mrb[0].mxu0
    %v2912 = vadd.f32 %v2303, %v2911
    %v2913 = vpop.f32.mrb[0].mxu0
    %v2914 = vpop.f32.mrb[0].mxu0
    %v2915 = vadd.f32 %v2306, %v2914
    %v2916 = vpop.f32.mrb[0].mxu0
    %2917 = vmatprep.mubr.bf16.mxu0 %v1491
    %2918 = vmatmul.mubr.bf16.gmra.mrb[0].mxu0 %v1490
    %v2919 = vpop.f32.mrb[0].mxu0
    %v2920 = vadd.f32 %v2311, %v2919
    %v2921 = vpop.f32.mrb[0].mxu0
    %v2922 = vpop.f32.mrb[0].mxu0
    %v2923 = vadd.f32 %v2314, %v2922
    %v2924 = vpop.f32.mrb[0].mxu0
    %2925 = vmatprep.mubr.bf16.mxu0 %v1495
    %2926 = vmatmul.mubr.bf16.gmra.mrb[0].mxu0 %v1494
    %v2927 = vpop.f32.mrb[0].mxu0
    %v2928 = vadd.f32 %v2319, %v2927
    %v2929 = vpop.f32.mrb[0].mxu0
    %v2930 = vpop.f32.mrb[0].mxu0
    %v2931 = vadd.f32 %v2322, %v2930
    %v2932 = vpop.f32.mrb[0].mxu0
    %2933 = vmatprep.mubr.bf16.mxu0 %v1499
    %2934 = vmatmul.mubr.bf16.gmra.mrb[0].mxu0 %v1498
    %v2935 = vpop.f32.mrb[0].mxu0
    %v2936 = vadd.f32 %v2327, %v2935
    %v2937 = vpop.f32.mrb[0].mxu0
    %v2938 = vpop.f32.mrb[0].mxu0
    %v2939 = vadd.f32 %v2330, %v2938
    %v2940 = vpop.f32.mrb[0].mxu0
    %2941 = vmatprep.mubr.bf16.mxu0 %v1503
    %2942 = vmatmul.mubr.bf16.gmra.mrb[0].mxu0 %v1502
    %v2943 = vpop.f32.mrb[0].mxu0
    %v2944 = vadd.f32 %v2335, %v2943
    %v2945 = vpop.f32.mrb[0].mxu0
    %v2946 = vpop.f32.mrb[0].mxu0
    %v2947 = vadd.f32 %v2338, %v2946
    %v2948 = vpop.f32.mrb[0].mxu0
    %2949 = vmatprep.mubr.bf16.mxu0 %v1507
    %2950 = vmatmul.mubr.bf16.gmra.mrb[0].mxu0 %v1506
    %v2951 = vpop.f32.mrb[0].mxu0
    %v2952 = vadd.f32 %v2343, %v2951
    %v2953 = vpop.f32.mrb[0].mxu0
    %v2954 = vpop.f32.mrb[0].mxu0
    %v2955 = vadd.f32 %v2346, %v2954
    %v2956 = vpop.f32.mrb[0].mxu0
    %2957 = vmatprep.mubr.bf16.mxu0 %v1511
    %2958 = vmatmul.mubr.bf16.gmra.mrb[0].mxu0 %v1510
    %v2959 = vpop.f32.mrb[0].mxu0
    %v2960 = vadd.f32 %v2351, %v2959
    %v2961 = vpop.f32.mrb[0].mxu0
    %v2962 = vpop.f32.mrb[0].mxu0
    %v2963 = vadd.f32 %v2354, %v2962
    %v2964 = vpop.f32.mrb[0].mxu0
    %2965 = vmatprep.mubr.bf16.mxu0 %v1515
    %2966 = vmatmul.mubr.bf16.gmra.mrb[0].mxu0 %v1514
    %v2967 = vpop.f32.mrb[0].mxu0
    %v2968 = vadd.f32 %v2359, %v2967
    %v2969 = vpop.f32.mrb[0].mxu0
    %v2970 = vpop.f32.mrb[0].mxu0
    %v2971 = vadd.f32 %v2362, %v2970
    %v2972 = vpop.f32.mrb[0].mxu0
    %2973 = vmatprep.mubr.bf16.mxu0 %v1519
    %2974 = vmatmul.mubr.bf16.gmra.mrb[0].mxu0 %v1518
    %v2975 = vpop.f32.mrb[0].mxu0
    %v2976 = vadd.f32 %v2367, %v2975
    %v2977 = vpop.f32.mrb[0].mxu0
    %v2978 = vpop.f32.mrb[0].mxu0
    %v2979 = vadd.f32 %v2370, %v2978
    %v2980 = vpop.f32.mrb[0].mxu0
    %2981 = vmatprep.mubr.bf16.mxu0 %v1523
    %2982 = vmatmul.mubr.bf16.gmra.mrb[0].mxu0 %v1522
    %v2983 = vpop.f32.mrb[0].mxu0
    %v2984 = vadd.f32 %v2375, %v2983
    %v2985 = vpop.f32.mrb[0].mxu0
    %v2986 = vpop.f32.mrb[0].mxu0
    %v2987 = vadd.f32 %v2378, %v2986
    %v2988 = vpop.f32.mrb[0].mxu0
    %2989 = vmatprep.mubr.bf16.mxu0 %v1527
    %2990 = vmatmul.mubr.bf16.gmra.mrb[0].mxu0 %v1526
    %v2991 = vpop.f32.mrb[0].mxu0
    %v2992 = vadd.f32 %v2383, %v2991
    %v2993 = vpop.f32.mrb[0].mxu0
    %v2994 = vpop.f32.mrb[0].mxu0
    %v2995 = vadd.f32 %v2386, %v2994
    %v2996 = vpop.f32.mrb[0].mxu0
    %2997 = vmatprep.mubr.bf16.mxu0 %v1531
    %2998 = vmatmul.mubr.bf16.gmra.mrb[0].mxu0 %v1530
    %v2999 = vpop.f32.mrb[0].mxu0
    %v3000 = vadd.f32 %v2391, %v2999
    %v3001 = vpop.f32.mrb[0].mxu0
    %v3002 = vpop.f32.mrb[0].mxu0
    %v3003 = vadd.f32 %v2394, %v3002
    %v3004 = vpop.f32.mrb[0].mxu0
    %3005 = vmatprep.mubr.bf16.mxu0 %v1535
    %3006 = vmatmul.mubr.bf16.gmra.mrb[0].mxu0 %v1534
    %v3007 = vpop.f32.mrb[0].mxu0
    %v3008 = vadd.f32 %v2399, %v3007
    %v3009 = vpop.f32.mrb[0].mxu0
    %v3010 = vpop.f32.mrb[0].mxu0
    %v3011 = vadd.f32 %v2402, %v3010
    %v3012 = vpop.f32.mrb[0].mxu0
    %3013 = vmatprep.mubr.bf16.mxu0 %v1539
    %3014 = vmatmul.mubr.bf16.gmra.mrb[0].mxu0 %v1538
    %v3015 = vpop.f32.mrb[0].mxu0
    %v3016 = vadd.f32 %v2407, %v3015
    %v3017 = vpop.f32.mrb[0].mxu0
    %v3018 = vpop.f32.mrb[0].mxu0
    %v3019 = vadd.f32 %v2410, %v3018
    %v3020 = vpop.f32.mrb[0].mxu0
    %3021 = vmatprep.mubr.bf16.mxu0 %v1543
    %3022 = vmatmul.mubr.bf16.gmra.mrb[0].mxu0 %v1542
    %v3023 = vpop.f32.mrb[0].mxu0
    %v3024 = vadd.f32 %v2415, %v3023
    %v3025 = vpop.f32.mrb[0].mxu0
    %v3026 = vpop.f32.mrb[0].mxu0
    %v3027 = vadd.f32 %v2418, %v3026
    %v3028 = vpop.f32.mrb[0].mxu0
    %3029 = vmatprep.mubr.bf16.mxu0 %v1547
    %3030 = vmatmul.mubr.bf16.gmra.mrb[0].mxu0 %v1546
    %v3031 = vpop.f32.mrb[0].mxu0
    %v3032 = vadd.f32 %v2423, %v3031
    %v3033 = vpop.f32.mrb[0].mxu0
    %v3034 = vpop.f32.mrb[0].mxu0
    %v3035 = vadd.f32 %v2426, %v3034
    %v3036 = vpop.f32.mrb[0].mxu0
    %3037 = vmatprep.mubr.bf16.mxu0 %v1551
    %3038 = vmatmul.mubr.bf16.gmra.mrb[0].mxu0 %v1550
    %v3039 = vpop.f32.mrb[0].mxu0
    %v3040 = vadd.f32 %v2431, %v3039
    %v3041 = vpop.f32.mrb[0].mxu0
    %v3042 = vpop.f32.mrb[0].mxu0
    %v3043 = vadd.f32 %v2434, %v3042
    %v3044 = vpop.f32.mrb[0].mxu0
    %3045 = vmatprep.mubr.bf16.mxu0 %v1555
    %3046 = vmatmul.mubr.bf16.gmra.mrb[0].mxu0 %v1554
    %v3047 = vpop.f32.mrb[0].mxu0
    %v3048 = vadd.f32 %v2439, %v3047
    %v3049 = vpop.f32.mrb[0].mxu0
    %v3050 = vpop.f32.mrb[0].mxu0
    %v3051 = vadd.f32 %v2442, %v3050
    %v3052 = vpop.f32.mrb[0].mxu0
    %3053 = vmatprep.mubr.bf16.mxu0 %v1559
    %3054 = vmatmul.mubr.bf16.gmra.mrb[0].mxu0 %v1558
    %v3055 = vpop.f32.mrb[0].mxu0
    %v3056 = vadd.f32 %v2447, %v3055
    %v3057 = vpop.f32.mrb[0].mxu0
    %v3058 = vpop.f32.mrb[0].mxu0
    %v3059 = vadd.f32 %v2450, %v3058
    %v3060 = vpop.f32.mrb[0].mxu0
    %3061 = vmatprep.mubr.bf16.mxu0 %v1563
    %3062 = vmatmul.mubr.bf16.gmra.mrb[0].mxu0 %v1562
    %v3063 = vpop.f32.mrb[0].mxu0
    %v3064 = vadd.f32 %v2455, %v3063
    %v3065 = vpop.f32.mrb[0].mxu0
    %v3066 = vpop.f32.mrb[0].mxu0
    %v3067 = vadd.f32 %v2458, %v3066
    %v3068 = vpop.f32.mrb[0].mxu0
    %3069 = vdwg.mxu0
    %v3070 = vpack.c.bf16 %v2499, %v2496
    %v3071 = vpack.c.bf16 %v2507, %v2504
    %v3072 = vpack.c.bf16 %v2515, %v2512
    %v3073 = vpack.c.bf16 %v2523, %v2520
    %v3074 = vpack.c.bf16 %v2531, %v2528
    %v3075 = vpack.c.bf16 %v2539, %v2536
    %v3076 = vpack.c.bf16 %v2547, %v2544
    %v3077 = vpack.c.bf16 %v2555, %v2552
    %v3078 = vpack.c.bf16 %v2563, %v2560
    %v3079 = vpack.c.bf16 %v2571, %v2568
    %v3080 = vpack.c.bf16 %v2579, %v2576
    %v3081 = vpack.c.bf16 %v2587, %v2584
    %v3082 = vpack.c.bf16 %v2595, %v2592
    %v3083 = vpack.c.bf16 %v2603, %v2600
    %v3084 = vpack.c.bf16 %v2611, %v2608
    %v3085 = vpack.c.bf16 %v2619, %v2616
    %v3086 = vpack.c.bf16 %v2627, %v2624
    %v3087 = vpack.c.bf16 %v2635, %v2632
    %v3088 = vpack.c.bf16 %v2643, %v2640
    %v3089 = vpack.c.bf16 %v2651, %v2648
    %v3090 = vpack.c.bf16 %v2659, %v2656
    %v3091 = vpack.c.bf16 %v2667, %v2664
    %v3092 = vpack.c.bf16 %v2675, %v2672
    %v3093 = vpack.c.bf16 %v2683, %v2680
    %v3094 = vpack.c.bf16 %v2691, %v2688
    %v3095 = vpack.c.bf16 %v2699, %v2696
    %v3096 = vpack.c.bf16 %v2707, %v2704
    %v3097 = vpack.c.bf16 %v2715, %v2712
    %v3098 = vpack.c.bf16 %v2723, %v2720
    %v3099 = vpack.c.bf16 %v2731, %v2728
    %v3100 = vpack.c.bf16 %v2739, %v2736
    %v3101 = vpack.c.bf16 %v2747, %v2744
    %v3102 = vpack.c.bf16 %v2755, %v2752
    %v3103 = vpack.c.bf16 %v2763, %v2760
    %v3104 = vpack.c.bf16 %v2771, %v2768
    %v3105 = vpack.c.bf16 %v2779, %v2776
    %v3106 = vpack.c.bf16 %v2787, %v2784
    %v3107 = vpack.c.bf16 %v2795, %v2792
    %v3108 = vpack.c.bf16 %v2803, %v2800
    %v3109 = vpack.c.bf16 %v2811, %v2808
    %v3110 = vpack.c.bf16 %v2819, %v2816
    %v3111 = vpack.c.bf16 %v2827, %v2824
    %v3112 = vpack.c.bf16 %v2835, %v2832
    %v3113 = vpack.c.bf16 %v2843, %v2840
    %v3114 = vpack.c.bf16 %v2851, %v2848
    %v3115 = vpack.c.bf16 %v2859, %v2856
    %v3116 = vpack.c.bf16 %v2867, %v2864
    %v3117 = vpack.c.bf16 %v2875, %v2872
    %v3118 = vpack.c.bf16 %v2883, %v2880
    %v3119 = vpack.c.bf16 %v2891, %v2888
    %v3120 = vpack.c.bf16 %v2899, %v2896
    %v3121 = vpack.c.bf16 %v2907, %v2904
    %v3122 = vpack.c.bf16 %v2915, %v2912
    %v3123 = vpack.c.bf16 %v2923, %v2920
    %v3124 = vpack.c.bf16 %v2931, %v2928
    %v3125 = vpack.c.bf16 %v2939, %v2936
    %v3126 = vpack.c.bf16 %v2947, %v2944
    %v3127 = vpack.c.bf16 %v2955, %v2952
    %v3128 = vpack.c.bf16 %v2963, %v2960
    %v3129 = vpack.c.bf16 %v2971, %v2968
    %v3130 = vpack.c.bf16 %v2979, %v2976
    %v3131 = vpack.c.bf16 %v2987, %v2984
    %v3132 = vpack.c.bf16 %v2995, %v2992
    %v3133 = vpack.c.bf16 %v3003, %v3000
    %v3134 = vpack.c.bf16 %v3011, %v3008
    %v3135 = vpack.c.bf16 %v3019, %v3016
    %v3136 = vpack.c.bf16 %v3027, %v3024
    %v3137 = vpack.c.bf16 %v3035, %v3032
    %v3138 = vpack.c.bf16 %v3043, %v3040
    %v3139 = vpack.c.bf16 %v3051, %v3048
    %v3140 = vpack.c.bf16 %v3059, %v3056
    %v3141 = vpack.c.bf16 %v3067, %v3064
    %v3142 = vld [vmem:[%s3] sm:$0x3]
    %v3143 = vld [vmem:[%s3 + $0x4] sm:$0x3]
    %vm3144 = vcmask 31744
    %v3146 = vsel %vm3144, %v3078, 0
    %v3149 = vsel %vm3144, %v3079, 0
    %v3152 = vsel %vm3144, %v3080, 0
    %v3155 = vsel %vm3144, %v3081, 0
    %v3158 = vsel %vm3144, %v3082, 0
    %v3161 = vsel %vm3144, %v3083, 0
    %v3164 = vsel %vm3144, %v3084, 0
    %v3167 = vsel %vm3144, %v3085, 0
    %vm3169 = vcmask 1041408
    %v3171 = vsel %vm3169, %v3143, 0
    %3173 = vmatprep.subr.bf16.mxu0 0
    %3174 = vmatpush1.bf16.msra.mxu0 %v3171
    %3175 = vmatprep.subr.bf16.mxu0 0
    %3176 = vmatpush1.bf16.msra.mxu0 0
    %3177 = vmatprep.subr.bf16.mxu0 0
    %3178 = vmatpush1.bf16.msra.mxu0 0
    %3179 = vmatprep.subr.bf16.mxu0 0
    %3180 = vmatpush1.bf16.msra.mxu0 0
    %3181 = vmatprep.subr.bf16.mxu0 0
    %3182 = vmatpush1.bf16.msra.mxu0 0
    %3183 = vmatprep.subr.bf16.mxu0 0
    %3184 = vmatpush1.bf16.msra.mxu0 0
    %3185 = vmatprep.subr.bf16.mxu0 0
    %3186 = vmatpush1.bf16.msra.mxu0 0
    %3187 = vmatprep.subr.bf16.mxu0 0
    %3188 = vmatpush1.bf16.msra.mxu0 0
    %3189 = vmatprep.subr.bf16.mxu0 0
    %3190 = vmatpush1.bf16.msra.mxu0 0
    %3191 = vmatprep.subr.bf16.mxu0 0
    %3192 = vmatpush1.bf16.msra.mxu0 0
    %3193 = vmatprep.subr.bf16.mxu0 0
    %3194 = vmatpush1.bf16.msra.mxu0 0
    %3195 = vmatprep.subr.bf16.mxu0 0
    %3196 = vmatpush1.bf16.msra.mxu0 0
    %3197 = vmatprep.subr.bf16.mxu0 0
    %3198 = vmatpush1.bf16.msra.mxu0 0
    %3199 = vmatprep.subr.bf16.mxu0 0
    %3200 = vmatpush1.bf16.msra.mxu0 0
    %3201 = vmatprep.subr.bf16.mxu0 0
    %3202 = vmatpush1.bf16.msra.mxu0 0
    %3203 = vmatprep.subr.bf16.mxu0 0
    %3204 = vmatpush1.bf16.msra.mxu0 0
    %3205 = vmatprep.mubr.bf16.mxu0 0
    %3206 = vmatmul.mubr.bf16.gmra.mrb[0].mxu0 %v3146
    %v3207 = vpop.f32.mrb[0].mxu0
    %v3208 = vadd.f32 0.0, %v3207
    %v3209 = vpop.f32.mrb[0].mxu0
    %v3210 = vpop.f32.mrb[0].mxu0
    %v3211 = vadd.f32 0.0, %v3210
    %v3212 = vpop.f32.mrb[0].mxu0
    %3213 = vmatprep.mubr.bf16.mxu0 0
    %3214 = vmatmul.mubr.bf16.gmra.mrb[0].mxu0 %v3149
    %v3215 = vpop.f32.mrb[0].mxu0
    %v3216 = vadd.f32 0.0, %v3215
    %v3217 = vpop.f32.mrb[0].mxu0
    %v3218 = vpop.f32.mrb[0].mxu0
    %v3219 = vadd.f32 0.0, %v3218
    %v3220 = vpop.f32.mrb[0].mxu0
    %3221 = vmatprep.mubr.bf16.mxu0 0
    %3222 = vmatmul.mubr.bf16.gmra.mrb[0].mxu0 %v3152
    %v3223 = vpop.f32.mrb[0].mxu0
    %v3224 = vadd.f32 0.0, %v3223
    %v3225 = vpop.f32.mrb[0].mxu0
    %v3226 = vpop.f32.mrb[0].mxu0
    %v3227 = vadd.f32 0.0, %v3226
    %v3228 = vpop.f32.mrb[0].mxu0
    %3229 = vmatprep.mubr.bf16.mxu0 0
    %3230 = vmatmul.mubr.bf16.gmra.mrb[0].mxu0 %v3155
    %v3231 = vpop.f32.mrb[0].mxu0
    %v3232 = vadd.f32 0.0, %v3231
    %v3233 = vpop.f32.mrb[0].mxu0
    %v3234 = vpop.f32.mrb[0].mxu0
    %v3235 = vadd.f32 0.0, %v3234
    %v3236 = vpop.f32.mrb[0].mxu0
    %3237 = vmatprep.mubr.bf16.mxu0 0
    %3238 = vmatmul.mubr.bf16.gmra.mrb[0].mxu0 %v3158
    %v3239 = vpop.f32.mrb[0].mxu0
    %v3240 = vadd.f32 0.0, %v3239
    %v3241 = vpop.f32.mrb[0].mxu0
    %v3242 = vpop.f32.mrb[0].mxu0
    %v3243 = vadd.f32 0.0, %v3242
    %v3244 = vpop.f32.mrb[0].mxu0
    %3245 = vmatprep.mubr.bf16.mxu0 0
    %3246 = vmatmul.mubr.bf16.gmra.mrb[0].mxu0 %v3161
    %v3247 = vpop.f32.mrb[0].mxu0
    %v3248 = vadd.f32 0.0, %v3247
    %v3249 = vpop.f32.mrb[0].mxu0
    %v3250 = vpop.f32.mrb[0].mxu0
    %v3251 = vadd.f32 0.0, %v3250
    %v3252 = vpop.f32.mrb[0].mxu0
    %3253 = vmatprep.mubr.bf16.mxu0 0
    %3254 = vmatmul.mubr.bf16.gmra.mrb[0].mxu0 %v3164
    %v3255 = vpop.f32.mrb[0].mxu0
    %v3256 = vadd.f32 0.0, %v3255
    %v3257 = vpop.f32.mrb[0].mxu0
    %v3258 = vpop.f32.mrb[0].mxu0
    %v3259 = vadd.f32 0.0, %v3258
    %v3260 = vpop.f32.mrb[0].mxu0
    %3261 = vmatprep.mubr.bf16.mxu0 0
    %3262 = vmatmul.mubr.bf16.gmra.mrb[0].mxu0 %v3167
    %v3263 = vpop.f32.mrb[0].mxu0
    %v3264 = vadd.f32 0.0, %v3263
    %v3265 = vpop.f32.mrb[0].mxu0
    %v3266 = vpop.f32.mrb[0].mxu0
    %v3267 = vadd.f32 0.0, %v3266
    %v3268 = vpop.f32.mrb[0].mxu0
    %3269 = vdwg.mxu0
    %v3271 = vsel %vm3144, %v3070, 0
    %v3274 = vsel %vm3144, %v3071, 0
    %v3277 = vsel %vm3144, %v3072, 0
    %v3280 = vsel %vm3144, %v3073, 0
    %v3283 = vsel %vm3144, %v3074, 0
    %v3286 = vsel %vm3144, %v3075, 0
    %v3289 = vsel %vm3144, %v3076, 0
    %v3292 = vsel %vm3144, %v3077, 0
    %v3295 = vsel %vm3169, %v3142, 0
    %3297 = vmatprep.subr.bf16.mxu0 0
    %3298 = vmatpush1.bf16.msra.mxu0 %v3295
    %3299 = vmatprep.subr.bf16.mxu0 0
    %3300 = vmatpush1.bf16.msra.mxu0 0
    %3301 = vmatprep.subr.bf16.mxu0 0
    %3302 = vmatpush1.bf16.msra.mxu0 0
    %3303 = vmatprep.subr.bf16.mxu0 0
    %3304 = vmatpush1.bf16.msra.mxu0 0
    %3305 = vmatprep.subr.bf16.mxu0 0
    %3306 = vmatpush1.bf16.msra.mxu0 0
    %3307 = vmatprep.subr.bf16.mxu0 0
    %3308 = vmatpush1.bf16.msra.mxu0 0
    %3309 = vmatprep.subr.bf16.mxu0 0
    %3310 = vmatpush1.bf16.msra.mxu0 0
    %3311 = vmatprep.subr.bf16.mxu0 0
    %3312 = vmatpush1.bf16.msra.mxu0 0
    %3313 = vmatprep.subr.bf16.mxu0 0
    %3314 = vmatpush1.bf16.msra.mxu0 0
    %3315 = vmatprep.subr.bf16.mxu0 0
    %3316 = vmatpush1.bf16.msra.mxu0 0
    %3317 = vmatprep.subr.bf16.mxu0 0
    %3318 = vmatpush1.bf16.msra.mxu0 0
    %3319 = vmatprep.subr.bf16.mxu0 0
    %3320 = vmatpush1.bf16.msra.mxu0 0
    %3321 = vmatprep.subr.bf16.mxu0 0
    %3322 = vmatpush1.bf16.msra.mxu0 0
    %3323 = vmatprep.subr.bf16.mxu0 0
    %3324 = vmatpush1.bf16.msra.mxu0 0
    %3325 = vmatprep.subr.bf16.mxu0 0
    %3326 = vmatpush1.bf16.msra.mxu0 0
    %3327 = vmatprep.subr.bf16.mxu0 0
    %3328 = vmatpush1.bf16.msra.mxu0 0
    %3329 = vmatprep.mubr.bf16.mxu0 0
    %3330 = vmatmul.mubr.bf16.gmra.mrb[0].mxu0 %v3271
    %v3331 = vpop.f32.mrb[0].mxu0
    %v3332 = vadd.f32 %v3208, %v3331
    %v3333 = vpop.f32.mrb[0].mxu0
    %v3334 = vpop.f32.mrb[0].mxu0
    %v3335 = vadd.f32 %v3211, %v3334
    %v3336 = vpop.f32.mrb[0].mxu0
    %3337 = vmatprep.mubr.bf16.mxu0 0
    %3338 = vmatmul.mubr.bf16.gmra.mrb[0].mxu0 %v3274
    %v3339 = vpop.f32.mrb[0].mxu0
    %v3340 = vadd.f32 %v3216, %v3339
    %v3341 = vpop.f32.mrb[0].mxu0
    %v3342 = vpop.f32.mrb[0].mxu0
    %v3343 = vadd.f32 %v3219, %v3342
    %v3344 = vpop.f32.mrb[0].mxu0
    %3345 = vmatprep.mubr.bf16.mxu0 0
    %3346 = vmatmul.mubr.bf16.gmra.mrb[0].mxu0 %v3277
    %v3347 = vpop.f32.mrb[0].mxu0
    %v3348 = vadd.f32 %v3224, %v3347
    %v3349 = vpop.f32.mrb[0].mxu0
    %v3350 = vpop.f32.mrb[0].mxu0
    %v3351 = vadd.f32 %v3227, %v3350
    %v3352 = vpop.f32.mrb[0].mxu0
    %3353 = vmatprep.mubr.bf16.mxu0 0
    %3354 = vmatmul.mubr.bf16.gmra.mrb[0].mxu0 %v3280
    %v3355 = vpop.f32.mrb[0].mxu0
    %v3356 = vadd.f32 %v3232, %v3355
    %v3357 = vpop.f32.mrb[0].mxu0
    %v3358 = vpop.f32.mrb[0].mxu0
    %v3359 = vadd.f32 %v3235, %v3358
    %v3360 = vpop.f32.mrb[0].mxu0
    %3361 = vmatprep.mubr.bf16.mxu0 0
    %3362 = vmatmul.mubr.bf16.gmra.mrb[0].mxu0 %v3283
    %v3363 = vpop.f32.mrb[0].mxu0
    %v3364 = vadd.f32 %v3240, %v3363
    %v3365 = vpop.f32.mrb[0].mxu0
    %v3366 = vpop.f32.mrb[0].mxu0
    %v3367 = vadd.f32 %v3243, %v3366
    %v3368 = vpop.f32.mrb[0].mxu0
    %3369 = vmatprep.mubr.bf16.mxu0 0
    %3370 = vmatmul.mubr.bf16.gmra.mrb[0].mxu0 %v3286
    %v3371 = vpop.f32.mrb[0].mxu0
    %v3372 = vadd.f32 %v3248, %v3371
    %v3373 = vpop.f32.mrb[0].mxu0
    %v3374 = vpop.f32.mrb[0].mxu0
    %v3375 = vadd.f32 %v3251, %v3374
    %v3376 = vpop.f32.mrb[0].mxu0
    %3377 = vmatprep.mubr.bf16.mxu0 0
    %3378 = vmatmul.mubr.bf16.gmra.mrb[0].mxu0 %v3289
    %v3379 = vpop.f32.mrb[0].mxu0
    %v3380 = vadd.f32 %v3256, %v3379
    %v3381 = vpop.f32.mrb[0].mxu0
    %v3382 = vpop.f32.mrb[0].mxu0
    %v3383 = vadd.f32 %v3259, %v3382
    %v3384 = vpop.f32.mrb[0].mxu0
    %3385 = vmatprep.mubr.bf16.mxu0 0
    %3386 = vmatmul.mubr.bf16.gmra.mrb[0].mxu0 %v3292
    %v3387 = vpop.f32.mrb[0].mxu0
    %v3388 = vadd.f32 %v3264, %v3387
    %v3389 = vpop.f32.mrb[0].mxu0
    %v3390 = vpop.f32.mrb[0].mxu0
    %v3391 = vadd.f32 %v3267, %v3390
    %v3392 = vpop.f32.mrb[0].mxu0
    %3393 = vdwg.mxu0
    %v3394 = vld [vmem:[%s3 + $0x8] sm:$0x3]
    %v3396 = vsel %vm3144, %v3086, 0
    %v3399 = vsel %vm3144, %v3087, 0
    %v3402 = vsel %vm3144, %v3088, 0
    %v3405 = vsel %vm3144, %v3089, 0
    %v3408 = vsel %vm3144, %v3090, 0
    %v3411 = vsel %vm3144, %v3091, 0
    %v3414 = vsel %vm3144, %v3092, 0
    %v3417 = vsel %vm3144, %v3093, 0
    %v3420 = vsel %vm3169, %v3394, 0
    %3422 = vmatprep.subr.bf16.mxu0 0
    %3423 = vmatpush1.bf16.msra.mxu0 %v3420
    %3424 = vmatprep.subr.bf16.mxu0 0
    %3425 = vmatpush1.bf16.msra.mxu0 0
    %3426 = vmatprep.subr.bf16.mxu0 0
    %3427 = vmatpush1.bf16.msra.mxu0 0
    %3428 = vmatprep.subr.bf16.mxu0 0
    %3429 = vmatpush1.bf16.msra.mxu0 0
    %3430 = vmatprep.subr.bf16.mxu0 0
    %3431 = vmatpush1.bf16.msra.mxu0 0
    %3432 = vmatprep.subr.bf16.mxu0 0
    %3433 = vmatpush1.bf16.msra.mxu0 0
    %3434 = vmatprep.subr.bf16.mxu0 0
    %3435 = vmatpush1.bf16.msra.mxu0 0
    %3436 = vmatprep.subr.bf16.mxu0 0
    %3437 = vmatpush1.bf16.msra.mxu0 0
    %3438 = vmatprep.subr.bf16.mxu0 0
    %3439 = vmatpush1.bf16.msra.mxu0 0
    %3440 = vmatprep.subr.bf16.mxu0 0
    %3441 = vmatpush1.bf16.msra.mxu0 0
    %3442 = vmatprep.subr.bf16.mxu0 0
    %3443 = vmatpush1.bf16.msra.mxu0 0
    %3444 = vmatprep.subr.bf16.mxu0 0
    %3445 = vmatpush1.bf16.msra.mxu0 0
    %3446 = vmatprep.subr.bf16.mxu0 0
    %3447 = vmatpush1.bf16.msra.mxu0 0
    %3448 = vmatprep.subr.bf16.mxu0 0
    %3449 = vmatpush1.bf16.msra.mxu0 0
    %3450 = vmatprep.subr.bf16.mxu0 0
    %3451 = vmatpush1.bf16.msra.mxu0 0
    %3452 = vmatprep.subr.bf16.mxu0 0
    %3453 = vmatpush1.bf16.msra.mxu0 0
    %3454 = vmatprep.mubr.bf16.mxu0 0
    %3455 = vmatmul.mubr.bf16.gmra.mrb[0].mxu0 %v3396
    %v3456 = vpop.f32.mrb[0].mxu0
    %v3457 = vadd.f32 0.0, %v3456
    %v3458 = vpop.f32.mrb[0].mxu0
    %v3459 = vpop.f32.mrb[0].mxu0
    %v3460 = vadd.f32 0.0, %v3459
    %v3461 = vpop.f32.mrb[0].mxu0
    %3462 = vmatprep.mubr.bf16.mxu0 0
    %3463 = vmatmul.mubr.bf16.gmra.mrb[0].mxu0 %v3399
    %v3464 = vpop.f32.mrb[0].mxu0
    %v3465 = vadd.f32 0.0, %v3464
    %v3466 = vpop.f32.mrb[0].mxu0
    %v3467 = vpop.f32.mrb[0].mxu0
    %v3468 = vadd.f32 0.0, %v3467
    %v3469 = vpop.f32.mrb[0].mxu0
    %3470 = vmatprep.mubr.bf16.mxu0 0
    %3471 = vmatmul.mubr.bf16.gmra.mrb[0].mxu0 %v3402
    %v3472 = vpop.f32.mrb[0].mxu0
    %v3473 = vadd.f32 0.0, %v3472
    %v3474 = vpop.f32.mrb[0].mxu0
    %v3475 = vpop.f32.mrb[0].mxu0
    %v3476 = vadd.f32 0.0, %v3475
    %v3477 = vpop.f32.mrb[0].mxu0
    %3478 = vmatprep.mubr.bf16.mxu0 0
    %3479 = vmatmul.mubr.bf16.gmra.mrb[0].mxu0 %v3405
    %v3480 = vpop.f32.mrb[0].mxu0
    %v3481 = vadd.f32 0.0, %v3480
    %v3482 = vpop.f32.mrb[0].mxu0
    %v3483 = vpop.f32.mrb[0].mxu0
    %v3484 = vadd.f32 0.0, %v3483
    %v3485 = vpop.f32.mrb[0].mxu0
    %3486 = vmatprep.mubr.bf16.mxu0 0
    %3487 = vmatmul.mubr.bf16.gmra.mrb[0].mxu0 %v3408
    %v3488 = vpop.f32.mrb[0].mxu0
    %v3489 = vadd.f32 0.0, %v3488
    %v3490 = vpop.f32.mrb[0].mxu0
    %v3491 = vpop.f32.mrb[0].mxu0
    %v3492 = vadd.f32 0.0, %v3491
    %v3493 = vpop.f32.mrb[0].mxu0
    %3494 = vmatprep.mubr.bf16.mxu0 0
    %3495 = vmatmul.mubr.bf16.gmra.mrb[0].mxu0 %v3411
    %v3496 = vpop.f32.mrb[0].mxu0
    %v3497 = vadd.f32 0.0, %v3496
    %v3498 = vpop.f32.mrb[0].mxu0
    %v3499 = vpop.f32.mrb[0].mxu0
    %v3500 = vadd.f32 0.0, %v3499
    %v3501 = vpop.f32.mrb[0].mxu0
    %3502 = vmatprep.mubr.bf16.mxu0 0
    %3503 = vmatmul.mubr.bf16.gmra.mrb[0].mxu0 %v3414
    %v3504 = vpop.f32.mrb[0].mxu0
    %v3505 = vadd.f32 0.0, %v3504
    %v3506 = vpop.f32.mrb[0].mxu0
    %v3507 = vpop.f32.mrb[0].mxu0
    %v3508 = vadd.f32 0.0, %v3507
    %v3509 = vpop.f32.mrb[0].mxu0
    %3510 = vmatprep.mubr.bf16.mxu0 0
    %3511 = vmatmul.mubr.bf16.gmra.mrb[0].mxu0 %v3417
    %v3512 = vpop.f32.mrb[0].mxu0
    %v3513 = vadd.f32 0.0, %v3512
    %v3514 = vpop.f32.mrb[0].mxu0
    %v3515 = vpop.f32.mrb[0].mxu0
    %v3516 = vadd.f32 0.0, %v3515
    %v3517 = vpop.f32.mrb[0].mxu0
    %3518 = vdwg.mxu0
    %v3519 = vadd.f32 %v3332, %v3457
    %v3520 = vadd.f32 %v3335, %v3460
    %v3521 = vadd.f32 %v3340, %v3465
    %v3522 = vadd.f32 %v3343, %v3468
    %v3523 = vadd.f32 %v3348, %v3473
    %v3524 = vadd.f32 %v3351, %v3476
    %v3525 = vadd.f32 %v3356, %v3481
    %v3526 = vadd.f32 %v3359, %v3484
    %v3527 = vadd.f32 %v3364, %v3489
    %v3528 = vadd.f32 %v3367, %v3492
    %v3529 = vadd.f32 %v3372, %v3497
    %v3530 = vadd.f32 %v3375, %v3500
    %v3531 = vadd.f32 %v3380, %v3505
    %v3532 = vadd.f32 %v3383, %v3508
    %v3533 = vadd.f32 %v3388, %v3513
    %v3534 = vadd.f32 %v3391, %v3516
    %v3535 = vld [vmem:[%s3 + $0xc] sm:$0x3]
    %v3537 = vsel %vm3144, %v3094, 0
    %v3540 = vsel %vm3144, %v3095, 0
    %v3543 = vsel %vm3144, %v3096, 0
    %v3546 = vsel %vm3144, %v3097, 0
    %v3549 = vsel %vm3144, %v3098, 0
    %v3552 = vsel %vm3144, %v3099, 0
    %v3555 = vsel %vm3144, %v3100, 0
    %v3558 = vsel %vm3144, %v3101, 0
    %v3561 = vsel %vm3169, %v3535, 0
    %3563 = vmatprep.subr.bf16.mxu0 0
    %3564 = vmatpush1.bf16.msra.mxu0 %v3561
    %3565 = vmatprep.subr.bf16.mxu0 0
    %3566 = vmatpush1.bf16.msra.mxu0 0
    %3567 = vmatprep.subr.bf16.mxu0 0
    %3568 = vmatpush1.bf16.msra.mxu0 0
    %3569 = vmatprep.subr.bf16.mxu0 0
    %3570 = vmatpush1.bf16.msra.mxu0 0
    %3571 = vmatprep.subr.bf16.mxu0 0
    %3572 = vmatpush1.bf16.msra.mxu0 0
    %3573 = vmatprep.subr.bf16.mxu0 0
    %3574 = vmatpush1.bf16.msra.mxu0 0
    %3575 = vmatprep.subr.bf16.mxu0 0
    %3576 = vmatpush1.bf16.msra.mxu0 0
    %3577 = vmatprep.subr.bf16.mxu0 0
    %3578 = vmatpush1.bf16.msra.mxu0 0
    %3579 = vmatprep.subr.bf16.mxu0 0
    %3580 = vmatpush1.bf16.msra.mxu0 0
    %3581 = vmatprep.subr.bf16.mxu0 0
    %3582 = vmatpush1.bf16.msra.mxu0 0
    %3583 = vmatprep.subr.bf16.mxu0 0
    %3584 = vmatpush1.bf16.msra.mxu0 0
    %3585 = vmatprep.subr.bf16.mxu0 0
    %3586 = vmatpush1.bf16.msra.mxu0 0
    %3587 = vmatprep.subr.bf16.mxu0 0
    %3588 = vmatpush1.bf16.msra.mxu0 0
    %3589 = vmatprep.subr.bf16.mxu0 0
    %3590 = vmatpush1.bf16.msra.mxu0 0
    %3591 = vmatprep.subr.bf16.mxu0 0
    %3592 = vmatpush1.bf16.msra.mxu0 0
    %3593 = vmatprep.subr.bf16.mxu0 0
    %3594 = vmatpush1.bf16.msra.mxu0 0
    %3595 = vmatprep.mubr.bf16.mxu0 0
    %3596 = vmatmul.mubr.bf16.gmra.mrb[0].mxu0 %v3537
    %v3597 = vpop.f32.mrb[0].mxu0
    %v3598 = vadd.f32 0.0, %v3597
    %v3599 = vpop.f32.mrb[0].mxu0
    %v3600 = vpop.f32.mrb[0].mxu0
    %v3601 = vadd.f32 0.0, %v3600
    %v3602 = vpop.f32.mrb[0].mxu0
    %3603 = vmatprep.mubr.bf16.mxu0 0
    %3604 = vmatmul.mubr.bf16.gmra.mrb[0].mxu0 %v3540
    %v3605 = vpop.f32.mrb[0].mxu0
    %v3606 = vadd.f32 0.0, %v3605
    %v3607 = vpop.f32.mrb[0].mxu0
    %v3608 = vpop.f32.mrb[0].mxu0
    %v3609 = vadd.f32 0.0, %v3608
    %v3610 = vpop.f32.mrb[0].mxu0
    %3611 = vmatprep.mubr.bf16.mxu0 0
    %3612 = vmatmul.mubr.bf16.gmra.mrb[0].mxu0 %v3543
    %v3613 = vpop.f32.mrb[0].mxu0
    %v3614 = vadd.f32 0.0, %v3613
    %v3615 = vpop.f32.mrb[0].mxu0
    %v3616 = vpop.f32.mrb[0].mxu0
    %v3617 = vadd.f32 0.0, %v3616
    %v3618 = vpop.f32.mrb[0].mxu0
    %3619 = vmatprep.mubr.bf16.mxu0 0
    %3620 = vmatmul.mubr.bf16.gmra.mrb[0].mxu0 %v3546
    %v3621 = vpop.f32.mrb[0].mxu0
    %v3622 = vadd.f32 0.0, %v3621
    %v3623 = vpop.f32.mrb[0].mxu0
    %v3624 = vpop.f32.mrb[0].mxu0
    %v3625 = vadd.f32 0.0, %v3624
    %v3626 = vpop.f32.mrb[0].mxu0
    %3627 = vmatprep.mubr.bf16.mxu0 0
    %3628 = vmatmul.mubr.bf16.gmra.mrb[0].mxu0 %v3549
    %v3629 = vpop.f32.mrb[0].mxu0
    %v3630 = vadd.f32 0.0, %v3629
    %v3631 = vpop.f32.mrb[0].mxu0
    %v3632 = vpop.f32.mrb[0].mxu0
    %v3633 = vadd.f32 0.0, %v3632
    %v3634 = vpop.f32.mrb[0].mxu0
    %3635 = vmatprep.mubr.bf16.mxu0 0
    %3636 = vmatmul.mubr.bf16.gmra.mrb[0].mxu0 %v3552
    %v3637 = vpop.f32.mrb[0].mxu0
    %v3638 = vadd.f32 0.0, %v3637
    %v3639 = vpop.f32.mrb[0].mxu0
    %v3640 = vpop.f32.mrb[0].mxu0
    %v3641 = vadd.f32 0.0, %v3640
    %v3642 = vpop.f32.mrb[0].mxu0
    %3643 = vmatprep.mubr.bf16.mxu0 0
    %3644 = vmatmul.mubr.bf16.gmra.mrb[0].mxu0 %v3555
    %v3645 = vpop.f32.mrb[0].mxu0
    %v3646 = vadd.f32 0.0, %v3645
    %v3647 = vpop.f32.mrb[0].mxu0
    %v3648 = vpop.f32.mrb[0].mxu0
    %v3649 = vadd.f32 0.0, %v3648
    %v3650 = vpop.f32.mrb[0].mxu0
    %3651 = vmatprep.mubr.bf16.mxu0 0
    %3652 = vmatmul.mubr.bf16.gmra.mrb[0].mxu0 %v3558
    %v3653 = vpop.f32.mrb[0].mxu0
    %v3654 = vadd.f32 0.0, %v3653
    %v3655 = vpop.f32.mrb[0].mxu0
    %v3656 = vpop.f32.mrb[0].mxu0
    %v3657 = vadd.f32 0.0, %v3656
    %v3658 = vpop.f32.mrb[0].mxu0
    %3659 = vdwg.mxu0
    %v3660 = vadd.f32 %v3519, %v3598
    %v3661 = vadd.f32 %v3520, %v3601
    %v3662 = vadd.f32 %v3521, %v3606
    %v3663 = vadd.f32 %v3522, %v3609
    %v3664 = vadd.f32 %v3523, %v3614
    %v3665 = vadd.f32 %v3524, %v3617
    %v3666 = vadd.f32 %v3525, %v3622
    %v3667 = vadd.f32 %v3526, %v3625
    %v3668 = vadd.f32 %v3527, %v3630
    %v3669 = vadd.f32 %v3528, %v3633
    %v3670 = vadd.f32 %v3529, %v3638
    %v3671 = vadd.f32 %v3530, %v3641
    %v3672 = vadd.f32 %v3531, %v3646
    %v3673 = vadd.f32 %v3532, %v3649
    %v3674 = vadd.f32 %v3533, %v3654
    %v3675 = vadd.f32 %v3534, %v3657
    %v3676 = vld [vmem:[%s3 + $0x10] sm:$0x3]
    %v3678 = vsel %vm3144, %v3102, 0
    %v3681 = vsel %vm3144, %v3103, 0
    %v3684 = vsel %vm3144, %v3104, 0
    %v3687 = vsel %vm3144, %v3105, 0
    %v3690 = vsel %vm3144, %v3106, 0
    %v3693 = vsel %vm3144, %v3107, 0
    %v3696 = vsel %vm3144, %v3108, 0
    %v3699 = vsel %vm3144, %v3109, 0
    %v3702 = vsel %vm3169, %v3676, 0
    %3704 = vmatprep.subr.bf16.mxu0 0
    %3705 = vmatpush1.bf16.msra.mxu0 %v3702
    %3706 = vmatprep.subr.bf16.mxu0 0
    %3707 = vmatpush1.bf16.msra.mxu0 0
    %3708 = vmatprep.subr.bf16.mxu0 0
    %3709 = vmatpush1.bf16.msra.mxu0 0
    %3710 = vmatprep.subr.bf16.mxu0 0
    %3711 = vmatpush1.bf16.msra.mxu0 0
    %3712 = vmatprep.subr.bf16.mxu0 0
    %3713 = vmatpush1.bf16.msra.mxu0 0
    %3714 = vmatprep.subr.bf16.mxu0 0
    %3715 = vmatpush1.bf16.msra.mxu0 0
    %3716 = vmatprep.subr.bf16.mxu0 0
    %3717 = vmatpush1.bf16.msra.mxu0 0
    %3718 = vmatprep.subr.bf16.mxu0 0
    %3719 = vmatpush1.bf16.msra.mxu0 0
    %3720 = vmatprep.subr.bf16.mxu0 0
    %3721 = vmatpush1.bf16.msra.mxu0 0
    %3722 = vmatprep.subr.bf16.mxu0 0
    %3723 = vmatpush1.bf16.msra.mxu0 0
    %3724 = vmatprep.subr.bf16.mxu0 0
    %3725 = vmatpush1.bf16.msra.mxu0 0
    %3726 = vmatprep.subr.bf16.mxu0 0
    %3727 = vmatpush1.bf16.msra.mxu0 0
    %3728 = vmatprep.subr.bf16.mxu0 0
    %3729 = vmatpush1.bf16.msra.mxu0 0
    %3730 = vmatprep.subr.bf16.mxu0 0
    %3731 = vmatpush1.bf16.msra.mxu0 0
    %3732 = vmatprep.subr.bf16.mxu0 0
    %3733 = vmatpush1.bf16.msra.mxu0 0
    %3734 = vmatprep.subr.bf16.mxu0 0
    %3735 = vmatpush1.bf16.msra.mxu0 0
    %3736 = vmatprep.mubr.bf16.mxu0 0
    %3737 = vmatmul.mubr.bf16.gmra.mrb[0].mxu0 %v3678
    %v3738 = vpop.f32.mrb[0].mxu0
    %v3739 = vadd.f32 0.0, %v3738
    %v3740 = vpop.f32.mrb[0].mxu0
    %v3741 = vpop.f32.mrb[0].mxu0
    %v3742 = vadd.f32 0.0, %v3741
    %v3743 = vpop.f32.mrb[0].mxu0
    %3744 = vmatprep.mubr.bf16.mxu0 0
    %3745 = vmatmul.mubr.bf16.gmra.mrb[0].mxu0 %v3681
    %v3746 = vpop.f32.mrb[0].mxu0
    %v3747 = vadd.f32 0.0, %v3746
    %v3748 = vpop.f32.mrb[0].mxu0
    %v3749 = vpop.f32.mrb[0].mxu0
    %v3750 = vadd.f32 0.0, %v3749
    %v3751 = vpop.f32.mrb[0].mxu0
    %3752 = vmatprep.mubr.bf16.mxu0 0
    %3753 = vmatmul.mubr.bf16.gmra.mrb[0].mxu0 %v3684
    %v3754 = vpop.f32.mrb[0].mxu0
    %v3755 = vadd.f32 0.0, %v3754
    %v3756 = vpop.f32.mrb[0].mxu0
    %v3757 = vpop.f32.mrb[0].mxu0
    %v3758 = vadd.f32 0.0, %v3757
    %v3759 = vpop.f32.mrb[0].mxu0
    %3760 = vmatprep.mubr.bf16.mxu0 0
    %3761 = vmatmul.mubr.bf16.gmra.mrb[0].mxu0 %v3687
    %v3762 = vpop.f32.mrb[0].mxu0
    %v3763 = vadd.f32 0.0, %v3762
    %v3764 = vpop.f32.mrb[0].mxu0
    %v3765 = vpop.f32.mrb[0].mxu0
    %v3766 = vadd.f32 0.0, %v3765
    %v3767 = vpop.f32.mrb[0].mxu0
    %3768 = vmatprep.mubr.bf16.mxu0 0
    %3769 = vmatmul.mubr.bf16.gmra.mrb[0].mxu0 %v3690
    %v3770 = vpop.f32.mrb[0].mxu0
    %v3771 = vadd.f32 0.0, %v3770
    %v3772 = vpop.f32.mrb[0].mxu0
    %v3773 = vpop.f32.mrb[0].mxu0
    %v3774 = vadd.f32 0.0, %v3773
    %v3775 = vpop.f32.mrb[0].mxu0
    %3776 = vmatprep.mubr.bf16.mxu0 0
    %3777 = vmatmul.mubr.bf16.gmra.mrb[0].mxu0 %v3693
    %v3778 = vpop.f32.mrb[0].mxu0
    %v3779 = vadd.f32 0.0, %v3778
    %v3780 = vpop.f32.mrb[0].mxu0
    %v3781 = vpop.f32.mrb[0].mxu0
    %v3782 = vadd.f32 0.0, %v3781
    %v3783 = vpop.f32.mrb[0].mxu0
    %3784 = vmatprep.mubr.bf16.mxu0 0
    %3785 = vmatmul.mubr.bf16.gmra.mrb[0].mxu0 %v3696
    %v3786 = vpop.f32.mrb[0].mxu0
    %v3787 = vadd.f32 0.0, %v3786
    %v3788 = vpop.f32.mrb[0].mxu0
    %v3789 = vpop.f32.mrb[0].mxu0
    %v3790 = vadd.f32 0.0, %v3789
    %v3791 = vpop.f32.mrb[0].mxu0
    %3792 = vmatprep.mubr.bf16.mxu0 0
    %3793 = vmatmul.mubr.bf16.gmra.mrb[0].mxu0 %v3699
    %v3794 = vpop.f32.mrb[0].mxu0
    %v3795 = vadd.f32 0.0, %v3794
    %v3796 = vpop.f32.mrb[0].mxu0
    %v3797 = vpop.f32.mrb[0].mxu0
    %v3798 = vadd.f32 0.0, %v3797
    %v3799 = vpop.f32.mrb[0].mxu0
    %3800 = vdwg.mxu0
    %v3801 = vadd.f32 %v3660, %v3739
    %v3802 = vadd.f32 %v3661, %v3742
    %v3803 = vadd.f32 %v3662, %v3747
    %v3804 = vadd.f32 %v3663, %v3750
    %v3805 = vadd.f32 %v3664, %v3755
    %v3806 = vadd.f32 %v3665, %v3758
    %v3807 = vadd.f32 %v3666, %v3763
    %v3808 = vadd.f32 %v3667, %v3766
    %v3809 = vadd.f32 %v3668, %v3771
    %v3810 = vadd.f32 %v3669, %v3774
    %v3811 = vadd.f32 %v3670, %v3779
    %v3812 = vadd.f32 %v3671, %v3782
    %v3813 = vadd.f32 %v3672, %v3787
    %v3814 = vadd.f32 %v3673, %v3790
    %v3815 = vadd.f32 %v3674, %v3795
    %v3816 = vadd.f32 %v3675, %v3798
    %v3817 = vld [vmem:[%s3 + $0x14] sm:$0x3]
    %v3819 = vsel %vm3144, %v3110, 0
    %v3822 = vsel %vm3144, %v3111, 0
    %v3825 = vsel %vm3144, %v3112, 0
    %v3828 = vsel %vm3144, %v3113, 0
    %v3831 = vsel %vm3144, %v3114, 0
    %v3834 = vsel %vm3144, %v3115, 0
    %v3837 = vsel %vm3144, %v3116, 0
    %v3840 = vsel %vm3144, %v3117, 0
    %v3843 = vsel %vm3169, %v3817, 0
    %3845 = vmatprep.subr.bf16.mxu0 0
    %3846 = vmatpush1.bf16.msra.mxu0 %v3843
    %3847 = vmatprep.subr.bf16.mxu0 0
    %3848 = vmatpush1.bf16.msra.mxu0 0
    %3849 = vmatprep.subr.bf16.mxu0 0
    %3850 = vmatpush1.bf16.msra.mxu0 0
    %3851 = vmatprep.subr.bf16.mxu0 0
    %3852 = vmatpush1.bf16.msra.mxu0 0
    %3853 = vmatprep.subr.bf16.mxu0 0
    %3854 = vmatpush1.bf16.msra.mxu0 0
    %3855 = vmatprep.subr.bf16.mxu0 0
    %3856 = vmatpush1.bf16.msra.mxu0 0
    %3857 = vmatprep.subr.bf16.mxu0 0
    %3858 = vmatpush1.bf16.msra.mxu0 0
    %3859 = vmatprep.subr.bf16.mxu0 0
    %3860 = vmatpush1.bf16.msra.mxu0 0
    %3861 = vmatprep.subr.bf16.mxu0 0
    %3862 = vmatpush1.bf16.msra.mxu0 0
    %3863 = vmatprep.subr.bf16.mxu0 0
    %3864 = vmatpush1.bf16.msra.mxu0 0
    %3865 = vmatprep.subr.bf16.mxu0 0
    %3866 = vmatpush1.bf16.msra.mxu0 0
    %3867 = vmatprep.subr.bf16.mxu0 0
    %3868 = vmatpush1.bf16.msra.mxu0 0
    %3869 = vmatprep.subr.bf16.mxu0 0
    %3870 = vmatpush1.bf16.msra.mxu0 0
    %3871 = vmatprep.subr.bf16.mxu0 0
    %3872 = vmatpush1.bf16.msra.mxu0 0
    %3873 = vmatprep.subr.bf16.mxu0 0
    %3874 = vmatpush1.bf16.msra.mxu0 0
    %3875 = vmatprep.subr.bf16.mxu0 0
    %3876 = vmatpush1.bf16.msra.mxu0 0
    %3877 = vmatprep.mubr.bf16.mxu0 0
    %3878 = vmatmul.mubr.bf16.gmra.mrb[0].mxu0 %v3819
    %v3879 = vpop.f32.mrb[0].mxu0
    %v3880 = vadd.f32 0.0, %v3879
    %v3881 = vpop.f32.mrb[0].mxu0
    %v3882 = vpop.f32.mrb[0].mxu0
    %v3883 = vadd.f32 0.0, %v3882
    %v3884 = vpop.f32.mrb[0].mxu0
    %3885 = vmatprep.mubr.bf16.mxu0 0
    %3886 = vmatmul.mubr.bf16.gmra.mrb[0].mxu0 %v3822
    %v3887 = vpop.f32.mrb[0].mxu0
    %v3888 = vadd.f32 0.0, %v3887
    %v3889 = vpop.f32.mrb[0].mxu0
    %v3890 = vpop.f32.mrb[0].mxu0
    %v3891 = vadd.f32 0.0, %v3890
    %v3892 = vpop.f32.mrb[0].mxu0
    %3893 = vmatprep.mubr.bf16.mxu0 0
    %3894 = vmatmul.mubr.bf16.gmra.mrb[0].mxu0 %v3825
    %v3895 = vpop.f32.mrb[0].mxu0
    %v3896 = vadd.f32 0.0, %v3895
    %v3897 = vpop.f32.mrb[0].mxu0
    %v3898 = vpop.f32.mrb[0].mxu0
    %v3899 = vadd.f32 0.0, %v3898
    %v3900 = vpop.f32.mrb[0].mxu0
    %3901 = vmatprep.mubr.bf16.mxu0 0
    %3902 = vmatmul.mubr.bf16.gmra.mrb[0].mxu0 %v3828
    %v3903 = vpop.f32.mrb[0].mxu0
    %v3904 = vadd.f32 0.0, %v3903
    %v3905 = vpop.f32.mrb[0].mxu0
    %v3906 = vpop.f32.mrb[0].mxu0
    %v3907 = vadd.f32 0.0, %v3906
    %v3908 = vpop.f32.mrb[0].mxu0
    %3909 = vmatprep.mubr.bf16.mxu0 0
    %3910 = vmatmul.mubr.bf16.gmra.mrb[0].mxu0 %v3831
    %v3911 = vpop.f32.mrb[0].mxu0
    %v3912 = vadd.f32 0.0, %v3911
    %v3913 = vpop.f32.mrb[0].mxu0
    %v3914 = vpop.f32.mrb[0].mxu0
    %v3915 = vadd.f32 0.0, %v3914
    %v3916 = vpop.f32.mrb[0].mxu0
    %3917 = vmatprep.mubr.bf16.mxu0 0
    %3918 = vmatmul.mubr.bf16.gmra.mrb[0].mxu0 %v3834
    %v3919 = vpop.f32.mrb[0].mxu0
    %v3920 = vadd.f32 0.0, %v3919
    %v3921 = vpop.f32.mrb[0].mxu0
    %v3922 = vpop.f32.mrb[0].mxu0
    %v3923 = vadd.f32 0.0, %v3922
    %v3924 = vpop.f32.mrb[0].mxu0
    %3925 = vmatprep.mubr.bf16.mxu0 0
    %3926 = vmatmul.mubr.bf16.gmra.mrb[0].mxu0 %v3837
    %v3927 = vpop.f32.mrb[0].mxu0
    %v3928 = vadd.f32 0.0, %v3927
    %v3929 = vpop.f32.mrb[0].mxu0
    %v3930 = vpop.f32.mrb[0].mxu0
    %v3931 = vadd.f32 0.0, %v3930
    %v3932 = vpop.f32.mrb[0].mxu0
    %3933 = vmatprep.mubr.bf16.mxu0 0
    %3934 = vmatmul.mubr.bf16.gmra.mrb[0].mxu0 %v3840
    %v3935 = vpop.f32.mrb[0].mxu0
    %v3936 = vadd.f32 0.0, %v3935
    %v3937 = vpop.f32.mrb[0].mxu0
    %v3938 = vpop.f32.mrb[0].mxu0
    %v3939 = vadd.f32 0.0, %v3938
    %v3940 = vpop.f32.mrb[0].mxu0
    %3941 = vdwg.mxu0
    %v3942 = vadd.f32 %v3801, %v3880
    %v3943 = vadd.f32 %v3802, %v3883
    %v3944 = vadd.f32 %v3803, %v3888
    %v3945 = vadd.f32 %v3804, %v3891
    %v3946 = vadd.f32 %v3805, %v3896
    %v3947 = vadd.f32 %v3806, %v3899
    %v3948 = vadd.f32 %v3807, %v3904
    %v3949 = vadd.f32 %v3808, %v3907
    %v3950 = vadd.f32 %v3809, %v3912
    %v3951 = vadd.f32 %v3810, %v3915
    %v3952 = vadd.f32 %v3811, %v3920
    %v3953 = vadd.f32 %v3812, %v3923
    %v3954 = vadd.f32 %v3813, %v3928
    %v3955 = vadd.f32 %v3814, %v3931
    %v3956 = vadd.f32 %v3815, %v3936
    %v3957 = vadd.f32 %v3816, %v3939
    %v3958 = vld [vmem:[%s3 + $0x18] sm:$0x3]
    %v3960 = vsel %vm3144, %v3118, 0
    %v3963 = vsel %vm3144, %v3119, 0
    %v3966 = vsel %vm3144, %v3120, 0
    %v3969 = vsel %vm3144, %v3121, 0
    %v3972 = vsel %vm3144, %v3122, 0
    %v3975 = vsel %vm3144, %v3123, 0
    %v3978 = vsel %vm3144, %v3124, 0
    %v3981 = vsel %vm3144, %v3125, 0
    %v3984 = vsel %vm3169, %v3958, 0
    %3986 = vmatprep.subr.bf16.mxu0 0
    %3987 = vmatpush1.bf16.msra.mxu0 %v3984
    %3988 = vmatprep.subr.bf16.mxu0 0
    %3989 = vmatpush1.bf16.msra.mxu0 0
    %3990 = vmatprep.subr.bf16.mxu0 0
    %3991 = vmatpush1.bf16.msra.mxu0 0
    %3992 = vmatprep.subr.bf16.mxu0 0
    %3993 = vmatpush1.bf16.msra.mxu0 0
    %3994 = vmatprep.subr.bf16.mxu0 0
    %3995 = vmatpush1.bf16.msra.mxu0 0
    %3996 = vmatprep.subr.bf16.mxu0 0
    %3997 = vmatpush1.bf16.msra.mxu0 0
    %3998 = vmatprep.subr.bf16.mxu0 0
    %3999 = vmatpush1.bf16.msra.mxu0 0
    %4000 = vmatprep.subr.bf16.mxu0 0
    %4001 = vmatpush1.bf16.msra.mxu0 0
    %4002 = vmatprep.subr.bf16.mxu0 0
    %4003 = vmatpush1.bf16.msra.mxu0 0
    %4004 = vmatprep.subr.bf16.mxu0 0
    %4005 = vmatpush1.bf16.msra.mxu0 0
    %4006 = vmatprep.subr.bf16.mxu0 0
    %4007 = vmatpush1.bf16.msra.mxu0 0
    %4008 = vmatprep.subr.bf16.mxu0 0
    %4009 = vmatpush1.bf16.msra.mxu0 0
    %4010 = vmatprep.subr.bf16.mxu0 0
    %4011 = vmatpush1.bf16.msra.mxu0 0
    %4012 = vmatprep.subr.bf16.mxu0 0
    %4013 = vmatpush1.bf16.msra.mxu0 0
    %4014 = vmatprep.subr.bf16.mxu0 0
    %4015 = vmatpush1.bf16.msra.mxu0 0
    %4016 = vmatprep.subr.bf16.mxu0 0
    %4017 = vmatpush1.bf16.msra.mxu0 0
    %4018 = vmatprep.mubr.bf16.mxu0 0
    %4019 = vmatmul.mubr.bf16.gmra.mrb[0].mxu0 %v3960
    %v4020 = vpop.f32.mrb[0].mxu0
    %v4021 = vadd.f32 0.0, %v4020
    %v4022 = vpop.f32.mrb[0].mxu0
    %v4023 = vpop.f32.mrb[0].mxu0
    %v4024 = vadd.f32 0.0, %v4023
    %v4025 = vpop.f32.mrb[0].mxu0
    %4026 = vmatprep.mubr.bf16.mxu0 0
    %4027 = vmatmul.mubr.bf16.gmra.mrb[0].mxu0 %v3963
    %v4028 = vpop.f32.mrb[0].mxu0
    %v4029 = vadd.f32 0.0, %v4028
    %v4030 = vpop.f32.mrb[0].mxu0
    %v4031 = vpop.f32.mrb[0].mxu0
    %v4032 = vadd.f32 0.0, %v4031
    %v4033 = vpop.f32.mrb[0].mxu0
    %4034 = vmatprep.mubr.bf16.mxu0 0
    %4035 = vmatmul.mubr.bf16.gmra.mrb[0].mxu0 %v3966
    %v4036 = vpop.f32.mrb[0].mxu0
    %v4037 = vadd.f32 0.0, %v4036
    %v4038 = vpop.f32.mrb[0].mxu0
    %v4039 = vpop.f32.mrb[0].mxu0
    %v4040 = vadd.f32 0.0, %v4039
    %v4041 = vpop.f32.mrb[0].mxu0
    %4042 = vmatprep.mubr.bf16.mxu0 0
    %4043 = vmatmul.mubr.bf16.gmra.mrb[0].mxu0 %v3969
    %v4044 = vpop.f32.mrb[0].mxu0
    %v4045 = vadd.f32 0.0, %v4044
    %v4046 = vpop.f32.mrb[0].mxu0
    %v4047 = vpop.f32.mrb[0].mxu0
    %v4048 = vadd.f32 0.0, %v4047
    %v4049 = vpop.f32.mrb[0].mxu0
    %4050 = vmatprep.mubr.bf16.mxu0 0
    %4051 = vmatmul.mubr.bf16.gmra.mrb[0].mxu0 %v3972
    %v4052 = vpop.f32.mrb[0].mxu0
    %v4053 = vadd.f32 0.0, %v4052
    %v4054 = vpop.f32.mrb[0].mxu0
    %v4055 = vpop.f32.mrb[0].mxu0
    %v4056 = vadd.f32 0.0, %v4055
    %v4057 = vpop.f32.mrb[0].mxu0
    %4058 = vmatprep.mubr.bf16.mxu0 0
    %4059 = vmatmul.mubr.bf16.gmra.mrb[0].mxu0 %v3975
    %v4060 = vpop.f32.mrb[0].mxu0
    %v4061 = vadd.f32 0.0, %v4060
    %v4062 = vpop.f32.mrb[0].mxu0
    %v4063 = vpop.f32.mrb[0].mxu0
    %v4064 = vadd.f32 0.0, %v4063
    %v4065 = vpop.f32.mrb[0].mxu0
    %4066 = vmatprep.mubr.bf16.mxu0 0
    %4067 = vmatmul.mubr.bf16.gmra.mrb[0].mxu0 %v3978
    %v4068 = vpop.f32.mrb[0].mxu0
    %v4069 = vadd.f32 0.0, %v4068
    %v4070 = vpop.f32.mrb[0].mxu0
    %v4071 = vpop.f32.mrb[0].mxu0
    %v4072 = vadd.f32 0.0, %v4071
    %v4073 = vpop.f32.mrb[0].mxu0
    %4074 = vmatprep.mubr.bf16.mxu0 0
    %4075 = vmatmul.mubr.bf16.gmra.mrb[0].mxu0 %v3981
    %v4076 = vpop.f32.mrb[0].mxu0
    %v4077 = vadd.f32 0.0, %v4076
    %v4078 = vpop.f32.mrb[0].mxu0
    %v4079 = vpop.f32.mrb[0].mxu0
    %v4080 = vadd.f32 0.0, %v4079
    %v4081 = vpop.f32.mrb[0].mxu0
    %4082 = vdwg.mxu0
    %v4083 = vadd.f32 %v3942, %v4021
    %v4084 = vadd.f32 %v3943, %v4024
    %v4085 = vadd.f32 %v3944, %v4029
    %v4086 = vadd.f32 %v3945, %v4032
    %v4087 = vadd.f32 %v3946, %v4037
    %v4088 = vadd.f32 %v3947, %v4040
    %v4089 = vadd.f32 %v3948, %v4045
    %v4090 = vadd.f32 %v3949, %v4048
    %v4091 = vadd.f32 %v3950, %v4053
    %v4092 = vadd.f32 %v3951, %v4056
    %v4093 = vadd.f32 %v3952, %v4061
    %v4094 = vadd.f32 %v3953, %v4064
    %v4095 = vadd.f32 %v3954, %v4069
    %v4096 = vadd.f32 %v3955, %v4072
    %v4097 = vadd.f32 %v3956, %v4077
    %v4098 = vadd.f32 %v3957, %v4080
    %v4099 = vld [vmem:[%s3 + $0x1c] sm:$0x3]
    %v4101 = vsel %vm3144, %v3126, 0
    %v4104 = vsel %vm3144, %v3127, 0
    %v4107 = vsel %vm3144, %v3128, 0
    %v4110 = vsel %vm3144, %v3129, 0
    %v4113 = vsel %vm3144, %v3130, 0
    %v4116 = vsel %vm3144, %v3131, 0
    %v4119 = vsel %vm3144, %v3132, 0
    %v4122 = vsel %vm3144, %v3133, 0
    %v4125 = vsel %vm3169, %v4099, 0
    %4127 = vmatprep.subr.bf16.mxu0 0
    %4128 = vmatpush1.bf16.msra.mxu0 %v4125
    %4129 = vmatprep.subr.bf16.mxu0 0
    %4130 = vmatpush1.bf16.msra.mxu0 0
    %4131 = vmatprep.subr.bf16.mxu0 0
    %4132 = vmatpush1.bf16.msra.mxu0 0
    %4133 = vmatprep.subr.bf16.mxu0 0
    %4134 = vmatpush1.bf16.msra.mxu0 0
    %4135 = vmatprep.subr.bf16.mxu0 0
    %4136 = vmatpush1.bf16.msra.mxu0 0
    %4137 = vmatprep.subr.bf16.mxu0 0
    %4138 = vmatpush1.bf16.msra.mxu0 0
    %4139 = vmatprep.subr.bf16.mxu0 0
    %4140 = vmatpush1.bf16.msra.mxu0 0
    %4141 = vmatprep.subr.bf16.mxu0 0
    %4142 = vmatpush1.bf16.msra.mxu0 0
    %4143 = vmatprep.subr.bf16.mxu0 0
    %4144 = vmatpush1.bf16.msra.mxu0 0
    %4145 = vmatprep.subr.bf16.mxu0 0
    %4146 = vmatpush1.bf16.msra.mxu0 0
    %4147 = vmatprep.subr.bf16.mxu0 0
    %4148 = vmatpush1.bf16.msra.mxu0 0
    %4149 = vmatprep.subr.bf16.mxu0 0
    %4150 = vmatpush1.bf16.msra.mxu0 0
    %4151 = vmatprep.subr.bf16.mxu0 0
    %4152 = vmatpush1.bf16.msra.mxu0 0
    %4153 = vmatprep.subr.bf16.mxu0 0
    %4154 = vmatpush1.bf16.msra.mxu0 0
    %4155 = vmatprep.subr.bf16.mxu0 0
    %4156 = vmatpush1.bf16.msra.mxu0 0
    %4157 = vmatprep.subr.bf16.mxu0 0
    %4158 = vmatpush1.bf16.msra.mxu0 0
    %4159 = vmatprep.mubr.bf16.mxu0 0
    %4160 = vmatmul.mubr.bf16.gmra.mrb[0].mxu0 %v4101
    %v4161 = vpop.f32.mrb[0].mxu0
    %v4162 = vadd.f32 0.0, %v4161
    %v4163 = vpop.f32.mrb[0].mxu0
    %v4164 = vpop.f32.mrb[0].mxu0
    %v4165 = vadd.f32 0.0, %v4164
    %v4166 = vpop.f32.mrb[0].mxu0
    %4167 = vmatprep.mubr.bf16.mxu0 0
    %4168 = vmatmul.mubr.bf16.gmra.mrb[0].mxu0 %v4104
    %v4169 = vpop.f32.mrb[0].mxu0
    %v4170 = vadd.f32 0.0, %v4169
    %v4171 = vpop.f32.mrb[0].mxu0
    %v4172 = vpop.f32.mrb[0].mxu0
    %v4173 = vadd.f32 0.0, %v4172
    %v4174 = vpop.f32.mrb[0].mxu0
    %4175 = vmatprep.mubr.bf16.mxu0 0
    %4176 = vmatmul.mubr.bf16.gmra.mrb[0].mxu0 %v4107
    %v4177 = vpop.f32.mrb[0].mxu0
    %v4178 = vadd.f32 0.0, %v4177
    %v4179 = vpop.f32.mrb[0].mxu0
    %v4180 = vpop.f32.mrb[0].mxu0
    %v4181 = vadd.f32 0.0, %v4180
    %v4182 = vpop.f32.mrb[0].mxu0
    %4183 = vmatprep.mubr.bf16.mxu0 0
    %4184 = vmatmul.mubr.bf16.gmra.mrb[0].mxu0 %v4110
    %v4185 = vpop.f32.mrb[0].mxu0
    %v4186 = vadd.f32 0.0, %v4185
    %v4187 = vpop.f32.mrb[0].mxu0
    %v4188 = vpop.f32.mrb[0].mxu0
    %v4189 = vadd.f32 0.0, %v4188
    %v4190 = vpop.f32.mrb[0].mxu0
    %4191 = vmatprep.mubr.bf16.mxu0 0
    %4192 = vmatmul.mubr.bf16.gmra.mrb[0].mxu0 %v4113
    %v4193 = vpop.f32.mrb[0].mxu0
    %v4194 = vadd.f32 0.0, %v4193
    %v4195 = vpop.f32.mrb[0].mxu0
    %v4196 = vpop.f32.mrb[0].mxu0
    %v4197 = vadd.f32 0.0, %v4196
    %v4198 = vpop.f32.mrb[0].mxu0
    %4199 = vmatprep.mubr.bf16.mxu0 0
    %4200 = vmatmul.mubr.bf16.gmra.mrb[0].mxu0 %v4116
    %v4201 = vpop.f32.mrb[0].mxu0
    %v4202 = vadd.f32 0.0, %v4201
    %v4203 = vpop.f32.mrb[0].mxu0
    %v4204 = vpop.f32.mrb[0].mxu0
    %v4205 = vadd.f32 0.0, %v4204
    %v4206 = vpop.f32.mrb[0].mxu0
    %4207 = vmatprep.mubr.bf16.mxu0 0
    %4208 = vmatmul.mubr.bf16.gmra.mrb[0].mxu0 %v4119
    %v4209 = vpop.f32.mrb[0].mxu0
    %v4210 = vadd.f32 0.0, %v4209
    %v4211 = vpop.f32.mrb[0].mxu0
    %v4212 = vpop.f32.mrb[0].mxu0
    %v4213 = vadd.f32 0.0, %v4212
    %v4214 = vpop.f32.mrb[0].mxu0
    %4215 = vmatprep.mubr.bf16.mxu0 0
    %4216 = vmatmul.mubr.bf16.gmra.mrb[0].mxu0 %v4122
    %v4217 = vpop.f32.mrb[0].mxu0
    %v4218 = vadd.f32 0.0, %v4217
    %v4219 = vpop.f32.mrb[0].mxu0
    %v4220 = vpop.f32.mrb[0].mxu0
    %v4221 = vadd.f32 0.0, %v4220
    %v4222 = vpop.f32.mrb[0].mxu0
    %4223 = vdwg.mxu0
    %v4224 = vadd.f32 %v4083, %v4162
    %v4225 = vadd.f32 %v4084, %v4165
    %v4226 = vadd.f32 %v4085, %v4170
    %v4227 = vadd.f32 %v4086, %v4173
    %v4228 = vadd.f32 %v4087, %v4178
    %v4229 = vadd.f32 %v4088, %v4181
    %v4230 = vadd.f32 %v4089, %v4186
    %v4231 = vadd.f32 %v4090, %v4189
    %v4232 = vadd.f32 %v4091, %v4194
    %v4233 = vadd.f32 %v4092, %v4197
    %v4234 = vadd.f32 %v4093, %v4202
    %v4235 = vadd.f32 %v4094, %v4205
    %v4236 = vadd.f32 %v4095, %v4210
    %v4237 = vadd.f32 %v4096, %v4213
    %v4238 = vadd.f32 %v4097, %v4218
    %v4239 = vadd.f32 %v4098, %v4221
    %v4240 = vld [vmem:[%s3 + $0x20] sm:$0x3]
    %v4242 = vsel %vm3144, %v3134, 0
    %v4245 = vsel %vm3144, %v3135, 0
    %v4248 = vsel %vm3144, %v3136, 0
    %v4251 = vsel %vm3144, %v3137, 0
    %v4254 = vsel %vm3144, %v3138, 0
    %v4257 = vsel %vm3144, %v3139, 0
    %v4260 = vsel %vm3144, %v3140, 0
    %v4263 = vsel %vm3144, %v3141, 0
    %v4266 = vsel %vm3169, %v4240, 0
    %4268 = vmatprep.subr.bf16.mxu0 0
    %4269 = vmatpush1.bf16.msra.mxu0 %v4266
    %4270 = vmatprep.subr.bf16.mxu0 0
    %4271 = vmatpush1.bf16.msra.mxu0 0
    %4272 = vmatprep.subr.bf16.mxu0 0
    %4273 = vmatpush1.bf16.msra.mxu0 0
    %4274 = vmatprep.subr.bf16.mxu0 0
    %4275 = vmatpush1.bf16.msra.mxu0 0
    %4276 = vmatprep.subr.bf16.mxu0 0
    %4277 = vmatpush1.bf16.msra.mxu0 0
    %4278 = vmatprep.subr.bf16.mxu0 0
    %4279 = vmatpush1.bf16.msra.mxu0 0
    %4280 = vmatprep.subr.bf16.mxu0 0
    %4281 = vmatpush1.bf16.msra.mxu0 0
    %4282 = vmatprep.subr.bf16.mxu0 0
    %4283 = vmatpush1.bf16.msra.mxu0 0
    %4284 = vmatprep.subr.bf16.mxu0 0
    %4285 = vmatpush1.bf16.msra.mxu0 0
    %4286 = vmatprep.subr.bf16.mxu0 0
    %4287 = vmatpush1.bf16.msra.mxu0 0
    %4288 = vmatprep.subr.bf16.mxu0 0
    %4289 = vmatpush1.bf16.msra.mxu0 0
    %4290 = vmatprep.subr.bf16.mxu0 0
    %4291 = vmatpush1.bf16.msra.mxu0 0
    %4292 = vmatprep.subr.bf16.mxu0 0
    %4293 = vmatpush1.bf16.msra.mxu0 0
    %4294 = vmatprep.subr.bf16.mxu0 0
    %4295 = vmatpush1.bf16.msra.mxu0 0
    %4296 = vmatprep.subr.bf16.mxu0 0
    %4297 = vmatpush1.bf16.msra.mxu0 0
    %4298 = vmatprep.subr.bf16.mxu0 0
    %4299 = vmatpush1.bf16.msra.mxu0 0
    %4300 = vmatprep.mubr.bf16.mxu0 0
    %4301 = vmatmul.mubr.bf16.gmra.mrb[0].mxu0 %v4242
    %v4302 = vpop.f32.mrb[0].mxu0
    %v4303 = vadd.f32 0.0, %v4302
    %v4304 = vpop.f32.mrb[0].mxu0
    %v4305 = vpop.f32.mrb[0].mxu0
    %v4306 = vadd.f32 0.0, %v4305
    %v4307 = vpop.f32.mrb[0].mxu0
    %4308 = vmatprep.mubr.bf16.mxu0 0
    %4309 = vmatmul.mubr.bf16.gmra.mrb[0].mxu0 %v4245
    %v4310 = vpop.f32.mrb[0].mxu0
    %v4311 = vadd.f32 0.0, %v4310
    %v4312 = vpop.f32.mrb[0].mxu0
    %v4313 = vpop.f32.mrb[0].mxu0
    %v4314 = vadd.f32 0.0, %v4313
    %v4315 = vpop.f32.mrb[0].mxu0
    %4316 = vmatprep.mubr.bf16.mxu0 0
    %4317 = vmatmul.mubr.bf16.gmra.mrb[0].mxu0 %v4248
    %v4318 = vpop.f32.mrb[0].mxu0
    %v4319 = vadd.f32 0.0, %v4318
    %v4320 = vpop.f32.mrb[0].mxu0
    %v4321 = vpop.f32.mrb[0].mxu0
    %v4322 = vadd.f32 0.0, %v4321
    %v4323 = vpop.f32.mrb[0].mxu0
    %4324 = vmatprep.mubr.bf16.mxu0 0
    %4325 = vmatmul.mubr.bf16.gmra.mrb[0].mxu0 %v4251
    %v4326 = vpop.f32.mrb[0].mxu0
    %v4327 = vadd.f32 0.0, %v4326
    %v4328 = vpop.f32.mrb[0].mxu0
    %v4329 = vpop.f32.mrb[0].mxu0
    %v4330 = vadd.f32 0.0, %v4329
    %v4331 = vpop.f32.mrb[0].mxu0
    %4332 = vmatprep.mubr.bf16.mxu0 0
    %4333 = vmatmul.mubr.bf16.gmra.mrb[0].mxu0 %v4254
    %v4334 = vpop.f32.mrb[0].mxu0
    %v4335 = vadd.f32 0.0, %v4334
    %v4336 = vpop.f32.mrb[0].mxu0
    %v4337 = vpop.f32.mrb[0].mxu0
    %v4338 = vadd.f32 0.0, %v4337
    %v4339 = vpop.f32.mrb[0].mxu0
    %4340 = vmatprep.mubr.bf16.mxu0 0
    %4341 = vmatmul.mubr.bf16.gmra.mrb[0].mxu0 %v4257
    %v4342 = vpop.f32.mrb[0].mxu0
    %v4343 = vadd.f32 0.0, %v4342
    %v4344 = vpop.f32.mrb[0].mxu0
    %v4345 = vpop.f32.mrb[0].mxu0
    %v4346 = vadd.f32 0.0, %v4345
    %v4347 = vpop.f32.mrb[0].mxu0
    %4348 = vmatprep.mubr.bf16.mxu0 0
    %4349 = vmatmul.mubr.bf16.gmra.mrb[0].mxu0 %v4260
    %v4350 = vpop.f32.mrb[0].mxu0
    %v4351 = vadd.f32 0.0, %v4350
    %v4352 = vpop.f32.mrb[0].mxu0
    %v4353 = vpop.f32.mrb[0].mxu0
    %v4354 = vadd.f32 0.0, %v4353
    %v4355 = vpop.f32.mrb[0].mxu0
    %4356 = vmatprep.mubr.bf16.mxu0 0
    %4357 = vmatmul.mubr.bf16.gmra.mrb[0].mxu0 %v4263
    %v4358 = vpop.f32.mrb[0].mxu0
    %v4359 = vadd.f32 0.0, %v4358
    %v4360 = vpop.f32.mrb[0].mxu0
    %v4361 = vpop.f32.mrb[0].mxu0
    %v4362 = vadd.f32 0.0, %v4361
    %v4363 = vpop.f32.mrb[0].mxu0
    %4364 = vdwg.mxu0
    %v4365 = vadd.f32 %v4224, %v4303
    %v4366 = vadd.f32 %v4225, %v4306
    %v4367 = vadd.f32 %v4226, %v4311
    %v4368 = vadd.f32 %v4227, %v4314
    %v4369 = vadd.f32 %v4228, %v4319
    %v4370 = vadd.f32 %v4229, %v4322
    %v4371 = vadd.f32 %v4230, %v4327
    %v4372 = vadd.f32 %v4231, %v4330
    %v4373 = vadd.f32 %v4232, %v4335
    %v4374 = vadd.f32 %v4233, %v4338
    %v4375 = vadd.f32 %v4234, %v4343
    %v4376 = vadd.f32 %v4235, %v4346
    %v4377 = vadd.f32 %v4236, %v4351
    %v4378 = vadd.f32 %v4237, %v4354
    %v4379 = vadd.f32 %v4238, %v4359
    %v4380 = vadd.f32 %v4239, %v4362
    %v4381 = vld [vmem:[%s4] sm:$0x1]
    %v4382 = vlaneseq
    %v4383 = vshrl.u32 %v4382, 7
    %v4384 = vsub.s32 0, %v4383
    %v4385 = vrot.slane %v4381, %v4384
    %v4386 = vadd.f32 %v4365, %v4385
    %v4387 = vadd.f32 %v4366, %v4385
    %v4388 = vadd.f32 %v4367, %v4385
    %v4389 = vadd.f32 %v4368, %v4385
    %v4390 = vadd.f32 %v4369, %v4385
    %v4391 = vadd.f32 %v4370, %v4385
    %v4392 = vadd.f32 %v4371, %v4385
    %v4393 = vadd.f32 %v4372, %v4385
    %v4394 = vadd.f32 %v4373, %v4385
    %v4395 = vadd.f32 %v4374, %v4385
    %v4396 = vadd.f32 %v4375, %v4385
    %v4397 = vadd.f32 %v4376, %v4385
    %v4398 = vadd.f32 %v4377, %v4385
    %v4399 = vadd.f32 %v4378, %v4385
    %v4400 = vadd.f32 %v4379, %v4385
    %v4401 = vadd.f32 %v4380, %v4385
    %v4402 = vmax.f32 %v4386, 0.0
    %v4403 = vmax.f32 %v4387, 0.0
    %v4404 = vmax.f32 %v4388, 0.0
    %v4405 = vmax.f32 %v4389, 0.0
    %v4406 = vmax.f32 %v4390, 0.0
    %v4407 = vmax.f32 %v4391, 0.0
    %v4408 = vmax.f32 %v4392, 0.0
    %v4409 = vmax.f32 %v4393, 0.0
    %v4410 = vmax.f32 %v4394, 0.0
    %v4411 = vmax.f32 %v4395, 0.0
    %v4412 = vmax.f32 %v4396, 0.0
    %v4413 = vmax.f32 %v4397, 0.0
    %v4414 = vmax.f32 %v4398, 0.0
    %v4415 = vmax.f32 %v4399, 0.0
    %v4416 = vmax.f32 %v4400, 0.0
    %v4417 = vmax.f32 %v4401, 0.0
    %v4418 = vmin.f32 %v4402, 6.0
    %v4419 = vmin.f32 %v4403, 6.0
    %v4420 = vmin.f32 %v4404, 6.0
    %v4421 = vmin.f32 %v4405, 6.0
    %v4422 = vmin.f32 %v4406, 6.0
    %v4423 = vmin.f32 %v4407, 6.0
    %v4424 = vmin.f32 %v4408, 6.0
    %v4425 = vmin.f32 %v4409, 6.0
    %v4426 = vmin.f32 %v4410, 6.0
    %v4427 = vmin.f32 %v4411, 6.0
    %v4428 = vmin.f32 %v4412, 6.0
    %v4429 = vmin.f32 %v4413, 6.0
    %v4430 = vmin.f32 %v4414, 6.0
    %v4431 = vmin.f32 %v4415, 6.0
    %v4432 = vmin.f32 %v4416, 6.0
    %v4433 = vmin.f32 %v4417, 6.0
    %v4434 = vld [vmem:[%s3 + $0x24] sm:$0xf]
    %v4435 = vpack.c.bf16 %v4419, %v4418
    %v4436 = vpack.c.bf16 %v4421, %v4420
    %v4437 = vpack.c.bf16 %v4423, %v4422
    %v4438 = vpack.c.bf16 %v4425, %v4424
    %v4439 = vpack.c.bf16 %v4427, %v4426
    %v4440 = vpack.c.bf16 %v4429, %v4428
    %v4441 = vpack.c.bf16 %v4431, %v4430
    %v4442 = vpack.c.bf16 %v4433, %v4432
    %v4443 = vld [vmem:[%s4 + $0x8] sm:$0x1]
    %v4444 = vlaneseq
    %v4445 = vshrl.u32 %v4444, 7
    %v4446 = vsub.s32 0, %v4445
    %v4447 = vrot.slane %v4443, %v4446
    %vm4448 = vcmask 64512
    %v4450 = vsel %vm4448, %v4435, 0
    %v4453 = vsel %vm4448, %v4436, 0
    %v4456 = vsel %vm4448, %v4437, 0
    %v4459 = vsel %vm4448, %v4438, 0
    %v4462 = vsel %vm4448, %v4439, 0
    %v4465 = vsel %vm4448, %v4440, 0
    %v4468 = vsel %vm4448, %v4441, 0
    %v4471 = vsel %vm4448, %v4442, 0
    %vm4473 = vcmask 1043456
    %v4475 = vsel %vm4473, %v4434, 0
    %4477 = vmatprep.subr.bf16.mxu0 0
    %4478 = vmatpush1.bf16.msra.mxu0 %v4475
    %4479 = vmatprep.subr.bf16.mxu0 0
    %4480 = vmatpush1.bf16.msra.mxu0 0
    %4481 = vmatprep.subr.bf16.mxu0 0
    %4482 = vmatpush1.bf16.msra.mxu0 0
    %4483 = vmatprep.subr.bf16.mxu0 0
    %4484 = vmatpush1.bf16.msra.mxu0 0
    %4485 = vmatprep.subr.bf16.mxu0 0
    %4486 = vmatpush1.bf16.msra.mxu0 0
    %4487 = vmatprep.subr.bf16.mxu0 0
    %4488 = vmatpush1.bf16.msra.mxu0 0
    %4489 = vmatprep.subr.bf16.mxu0 0
    %4490 = vmatpush1.bf16.msra.mxu0 0
    %4491 = vmatprep.subr.bf16.mxu0 0
    %4492 = vmatpush1.bf16.msra.mxu0 0
    %4493 = vmatprep.subr.bf16.mxu0 0
    %4494 = vmatpush1.bf16.msra.mxu0 0
    %4495 = vmatprep.subr.bf16.mxu0 0
    %4496 = vmatpush1.bf16.msra.mxu0 0
    %4497 = vmatprep.subr.bf16.mxu0 0
    %4498 = vmatpush1.bf16.msra.mxu0 0
    %4499 = vmatprep.subr.bf16.mxu0 0
    %4500 = vmatpush1.bf16.msra.mxu0 0
    %4501 = vmatprep.subr.bf16.mxu0 0
    %4502 = vmatpush1.bf16.msra.mxu0 0
    %4503 = vmatprep.subr.bf16.mxu0 0
    %4504 = vmatpush1.bf16.msra.mxu0 0
    %4505 = vmatprep.subr.bf16.mxu0 0
    %4506 = vmatpush1.bf16.msra.mxu0 0
    %4507 = vmatprep.subr.bf16.mxu0 0
    %4508 = vmatpush1.bf16.msra.mxu0 0
    %4509 = vmatprep.mubr.bf16.mxu0 0
    %4510 = vmatmul.mubr.bf16.gmra.mrb[0].mxu0 %v4450
    %v4511 = vpop.f32.mrb[0].mxu0
    %v4512 = vadd.f32 %v4447, %v4511
    %v4513 = vpop.f32.mrb[0].mxu0
    %v4514 = vpop.f32.mrb[0].mxu0
    %v4515 = vadd.f32 %v4447, %v4514
    %v4516 = vpop.f32.mrb[0].mxu0
    %4517 = vmatprep.mubr.bf16.mxu0 0
    %4518 = vmatmul.mubr.bf16.gmra.mrb[0].mxu0 %v4453
    %v4519 = vpop.f32.mrb[0].mxu0
    %v4520 = vadd.f32 %v4447, %v4519
    %v4521 = vpop.f32.mrb[0].mxu0
    %v4522 = vpop.f32.mrb[0].mxu0
    %v4523 = vadd.f32 %v4447, %v4522
    %v4524 = vpop.f32.mrb[0].mxu0
    %4525 = vmatprep.mubr.bf16.mxu0 0
    %4526 = vmatmul.mubr.bf16.gmra.mrb[0].mxu0 %v4456
    %v4527 = vpop.f32.mrb[0].mxu0
    %v4528 = vadd.f32 %v4447, %v4527
    %v4529 = vpop.f32.mrb[0].mxu0
    %v4530 = vpop.f32.mrb[0].mxu0
    %v4531 = vadd.f32 %v4447, %v4530
    %v4532 = vpop.f32.mrb[0].mxu0
    %4533 = vmatprep.mubr.bf16.mxu0 0
    %4534 = vmatmul.mubr.bf16.gmra.mrb[0].mxu0 %v4459
    %v4535 = vpop.f32.mrb[0].mxu0
    %v4536 = vadd.f32 %v4447, %v4535
    %v4537 = vpop.f32.mrb[0].mxu0
    %v4538 = vpop.f32.mrb[0].mxu0
    %v4539 = vadd.f32 %v4447, %v4538
    %v4540 = vpop.f32.mrb[0].mxu0
    %4541 = vmatprep.mubr.bf16.mxu0 0
    %4542 = vmatmul.mubr.bf16.gmra.mrb[0].mxu0 %v4462
    %v4543 = vpop.f32.mrb[0].mxu0
    %v4544 = vadd.f32 %v4447, %v4543
    %v4545 = vpop.f32.mrb[0].mxu0
    %v4546 = vpop.f32.mrb[0].mxu0
    %v4547 = vadd.f32 %v4447, %v4546
    %v4548 = vpop.f32.mrb[0].mxu0
    %4549 = vmatprep.mubr.bf16.mxu0 0
    %4550 = vmatmul.mubr.bf16.gmra.mrb[0].mxu0 %v4465
    %v4551 = vpop.f32.mrb[0].mxu0
    %v4552 = vadd.f32 %v4447, %v4551
    %v4553 = vpop.f32.mrb[0].mxu0
    %v4554 = vpop.f32.mrb[0].mxu0
    %v4555 = vadd.f32 %v4447, %v4554
    %v4556 = vpop.f32.mrb[0].mxu0
    %4557 = vmatprep.mubr.bf16.mxu0 0
    %4558 = vmatmul.mubr.bf16.gmra.mrb[0].mxu0 %v4468
    %v4559 = vpop.f32.mrb[0].mxu0
    %v4560 = vadd.f32 %v4447, %v4559
    %v4561 = vpop.f32.mrb[0].mxu0
    %v4562 = vpop.f32.mrb[0].mxu0
    %v4563 = vadd.f32 %v4447, %v4562
    %v4564 = vpop.f32.mrb[0].mxu0
    %4565 = vmatprep.mubr.bf16.mxu0 0
    %4566 = vmatmul.mubr.bf16.gmra.mrb[0].mxu0 %v4471
    %v4567 = vpop.f32.mrb[0].mxu0
    %v4568 = vadd.f32 %v4447, %v4567
    %v4569 = vpop.f32.mrb[0].mxu0
    %v4570 = vpop.f32.mrb[0].mxu0
    %v4571 = vadd.f32 %v4447, %v4570
    %v4572 = vpop.f32.mrb[0].mxu0
    %4573 = vdwg.mxu0
    %v4574 = vmax.f32 %v4512, 0.0
    %v4575 = vmax.f32 %v4515, 0.0
    %v4576 = vmax.f32 %v4520, 0.0
    %v4577 = vmax.f32 %v4523, 0.0
    %v4578 = vmax.f32 %v4528, 0.0
    %v4579 = vmax.f32 %v4531, 0.0
    %v4580 = vmax.f32 %v4536, 0.0
    %v4581 = vmax.f32 %v4539, 0.0
    %v4582 = vmax.f32 %v4544, 0.0
    %v4583 = vmax.f32 %v4547, 0.0
    %v4584 = vmax.f32 %v4552, 0.0
    %v4585 = vmax.f32 %v4555, 0.0
    %v4586 = vmax.f32 %v4560, 0.0
    %v4587 = vmax.f32 %v4563, 0.0
    %v4588 = vmax.f32 %v4568, 0.0
    %v4589 = vmax.f32 %v4571, 0.0
    %v4590 = vmin.f32 %v4574, 6.0
    %v4591 = vmin.f32 %v4575, 6.0
    %v4592 = vmin.f32 %v4576, 6.0
    %v4593 = vmin.f32 %v4577, 6.0
    %v4594 = vmin.f32 %v4578, 6.0
    %v4595 = vmin.f32 %v4579, 6.0
    %v4596 = vmin.f32 %v4580, 6.0
    %v4597 = vmin.f32 %v4581, 6.0
    %v4598 = vmin.f32 %v4582, 6.0
    %v4599 = vmin.f32 %v4583, 6.0
    %v4600 = vmin.f32 %v4584, 6.0
    %v4601 = vmin.f32 %v4585, 6.0
    %v4602 = vmin.f32 %v4586, 6.0
    %v4603 = vmin.f32 %v4587, 6.0
    %v4604 = vmin.f32 %v4588, 6.0
    %v4605 = vmin.f32 %v4589, 6.0
    %v4606 = vld [vmem:[%s2] sm:$0xf]
    %v4607 = vld [vmem:[%s2 + $0x4] sm:$0xf]
    %v4608 = vld [vmem:[%s2 + $0x8] sm:$0xf]
    %v4609 = vld [vmem:[%s2 + $0xc] sm:$0xf]
    %v4610 = vld [vmem:[%s2 + $0x10] sm:$0xf]
    %v4611 = vld [vmem:[%s2 + $0x14] sm:$0xf]
    %v4612 = vld [vmem:[%s2 + $0x18] sm:$0xf]
    %v4613 = vld [vmem:[%s2 + $0x1c] sm:$0xf]
    %v4614 = vld [vmem:[%s2 + $0x20] sm:$0xf]
    %v4615 = vld [vmem:[%s2 + $0x24] sm:$0xf]
    %v4616 = vld [vmem:[%s2 + $0x28] sm:$0xf]
    %v4617 = vld [vmem:[%s2 + $0x2c] sm:$0xf]
    %v4618 = vld [vmem:[%s2 + $0x30] sm:$0xf]
    %v4619 = vld [vmem:[%s2 + $0x34] sm:$0xf]
    %v4620 = vld [vmem:[%s2 + $0x38] sm:$0xf]
    %v4621 = vld [vmem:[%s2 + $0x3c] sm:$0xf]
    %v4622 = vld [vmem:[%s2 + $0x40] sm:$0xf]
    %v4623 = vld [vmem:[%s2 + $0x44] sm:$0xf]
    %v4624 = vld [vmem:[%s2 + $0x48] sm:$0xf]
    %v4625 = vld [vmem:[%s2 + $0x4c] sm:$0xf]
    %v4626 = vld [vmem:[%s2 + $0x50] sm:$0xf]
    %v4627 = vld [vmem:[%s2 + $0x54] sm:$0xf]
    %v4628 = vld [vmem:[%s2 + $0x58] sm:$0xf]
    %v4629 = vld [vmem:[%s2 + $0x5c] sm:$0xf]
    %v4630 = vld [vmem:[%s2 + $0x60] sm:$0xf]
    %v4631 = vld [vmem:[%s2 + $0x64] sm:$0xf]
    %v4632 = vld [vmem:[%s2 + $0x68] sm:$0xf]
    %v4633 = vld [vmem:[%s2 + $0x6c] sm:$0xf]
    %v4634 = vld [vmem:[%s2 + $0x70] sm:$0xf]
    %v4635 = vld [vmem:[%s2 + $0x74] sm:$0xf]
    %v4636 = vld [vmem:[%s2 + $0x78] sm:$0xf]
    %v4637 = vld [vmem:[%s2 + $0x7c] sm:$0xf]
    %v4638 = vld [vmem:[%s2 + $0x80] sm:$0xf]
    %v4639 = vld [vmem:[%s2 + $0x84] sm:$0xf]
    %v4640 = vld [vmem:[%s2 + $0x88] sm:$0xf]
    %v4641 = vld [vmem:[%s2 + $0x8c] sm:$0xf]
    %v4642 = vld [vmem:[%s2 + $0x90] sm:$0xf]
    %v4643 = vld [vmem:[%s2 + $0x94] sm:$0xf]
    %v4644 = vld [vmem:[%s2 + $0x98] sm:$0xf]
    %v4645 = vld [vmem:[%s2 + $0x9c] sm:$0xf]
    %v4646 = vld [vmem:[%s2 + $0xa0] sm:$0xf]
    %v4647 = vld [vmem:[%s2 + $0xa4] sm:$0xf]
    %v4648 = vld [vmem:[%s2 + $0xa8] sm:$0xf]
    %v4649 = vld [vmem:[%s2 + $0xac] sm:$0xf]
    %v4650 = vld [vmem:[%s2 + $0xb0] sm:$0xf]
    %v4651 = vld [vmem:[%s2 + $0xb4] sm:$0xf]
    %v4652 = vld [vmem:[%s2 + $0xb8] sm:$0xf]
    %v4653 = vld [vmem:[%s2 + $0xbc] sm:$0xf]
    %v4654 = vld [vmem:[%s2 + $0xc0] sm:$0xf]
    %v4655 = vld [vmem:[%s2 + $0xc4] sm:$0xf]
    %v4656 = vld [vmem:[%s2 + $0xc8] sm:$0xf]
    %v4657 = vld [vmem:[%s2 + $0xcc] sm:$0xf]
    %v4658 = vld [vmem:[%s2 + $0xd0] sm:$0xf]
    %v4659 = vld [vmem:[%s2 + $0xd4] sm:$0xf]
    %v4660 = vld [vmem:[%s2 + $0xd8] sm:$0xf]
    %v4661 = vld [vmem:[%s2 + $0xdc] sm:$0xf]
    %v4662 = vld [vmem:[%s2 + $0xe0] sm:$0xf]
    %v4663 = vld [vmem:[%s2 + $0xe4] sm:$0xf]
    %v4664 = vld [vmem:[%s2 + $0xe8] sm:$0xf]
    %v4665 = vld [vmem:[%s2 + $0xec] sm:$0xf]
    %v4666 = vld [vmem:[%s2 + $0xf0] sm:$0xf]
    %v4667 = vld [vmem:[%s2 + $0xf4] sm:$0xf]
    %v4668 = vld [vmem:[%s2 + $0xf8] sm:$0xf]
    %v4669 = vld [vmem:[%s2 + $0xfc] sm:$0xf]
    %v4670 = vld [vmem:[%s2 + $0x100] sm:$0xf]
    %v4671 = vld [vmem:[%s2 + $0x104] sm:$0xf]
    %v4672 = vld [vmem:[%s2 + $0x108] sm:$0xf]
    %v4673 = vld [vmem:[%s2 + $0x10c] sm:$0xf]
    %v4674 = vld [vmem:[%s2 + $0x110] sm:$0xf]
    %v4675 = vld [vmem:[%s2 + $0x114] sm:$0xf]
    %v4676 = vld [vmem:[%s2 + $0x118] sm:$0xf]
    %v4677 = vld [vmem:[%s2 + $0x11c] sm:$0xf]
    %v4678 = vld [vmem:[%s2 + $0x120] sm:$0xf]
    %v4679 = vld [vmem:[%s2 + $0x124] sm:$0xf]
    %v4680 = vld [vmem:[%s2 + $0x128] sm:$0xf]
    %v4681 = vld [vmem:[%s2 + $0x12c] sm:$0xf]
    %v4682 = vld [vmem:[%s2 + $0x130] sm:$0xf]
    %v4683 = vld [vmem:[%s2 + $0x134] sm:$0xf]
    %v4684 = vld [vmem:[%s2 + $0x138] sm:$0xf]
    %v4685 = vld [vmem:[%s2 + $0x13c] sm:$0xf]
    %v4686 = vld [vmem:[%s2 + $0x140] sm:$0xf]
    %v4687 = vld [vmem:[%s2 + $0x144] sm:$0xf]
    %v4688 = vld [vmem:[%s2 + $0x148] sm:$0xf]
    %v4689 = vld [vmem:[%s2 + $0x14c] sm:$0xf]
    %v4690 = vld [vmem:[%s2 + $0x150] sm:$0xf]
    %v4691 = vld [vmem:[%s2 + $0x154] sm:$0xf]
    %v4692 = vld [vmem:[%s2 + $0x158] sm:$0xf]
    %v4693 = vld [vmem:[%s2 + $0x15c] sm:$0xf]
    %v4694 = vld [vmem:[%s2 + $0x160] sm:$0xf]
    %v4695 = vld [vmem:[%s2 + $0x164] sm:$0xf]
    %v4696 = vld [vmem:[%s2 + $0x168] sm:$0xf]
    %v4697 = vld [vmem:[%s2 + $0x16c] sm:$0xf]
    %v4698 = vld [vmem:[%s2 + $0x170] sm:$0xf]
    %v4699 = vld [vmem:[%s2 + $0x174] sm:$0xf]
    %v4700 = vld [vmem:[%s2 + $0x178] sm:$0xf]
    %v4701 = vld [vmem:[%s2 + $0x17c] sm:$0xf]
    %v4702 = vld [vmem:[%s2 + $0x180] sm:$0xf]
    %v4703 = vld [vmem:[%s2 + $0x184] sm:$0xf]
    %v4704 = vld [vmem:[%s2 + $0x188] sm:$0xf]
    %v4705 = vld [vmem:[%s2 + $0x18c] sm:$0xf]
    %v4706 = vld [vmem:[%s2 + $0x190] sm:$0xf]
    %v4707 = vld [vmem:[%s2 + $0x194] sm:$0xf]
    %v4708 = vld [vmem:[%s2 + $0x198] sm:$0xf]
    %v4709 = vld [vmem:[%s2 + $0x19c] sm:$0xf]
    %v4710 = vld [vmem:[%s2 + $0x1a0] sm:$0xf]
    %v4711 = vld [vmem:[%s2 + $0x1a4] sm:$0xf]
    %v4712 = vld [vmem:[%s2 + $0x1a8] sm:$0xf]
    %v4713 = vld [vmem:[%s2 + $0x1ac] sm:$0xf]
    %v4714 = vld [vmem:[%s2 + $0x1b0] sm:$0xf]
    %v4715 = vld [vmem:[%s2 + $0x1b4] sm:$0xf]
    %v4716 = vld [vmem:[%s2 + $0x1b8] sm:$0xf]
    %v4717 = vld [vmem:[%s2 + $0x1bc] sm:$0xf]
    %v4718 = vld [vmem:[%s2 + $0x1c0] sm:$0xf]
    %v4719 = vld [vmem:[%s2 + $0x1c4] sm:$0xf]
    %v4720 = vld [vmem:[%s2 + $0x1c8] sm:$0xf]
    %v4721 = vld [vmem:[%s2 + $0x1cc] sm:$0xf]
    %v4722 = vld [vmem:[%s2 + $0x1d0] sm:$0xf]
    %v4723 = vld [vmem:[%s2 + $0x1d4] sm:$0xf]
    %v4724 = vld [vmem:[%s2 + $0x1d8] sm:$0xf]
    %v4725 = vld [vmem:[%s2 + $0x1dc] sm:$0xf]
    %v4726 = vld [vmem:[%s2 + $0x1e0] sm:$0xf]
    %v4727 = vld [vmem:[%s2 + $0x1e4] sm:$0xf]
    %v4728 = vld [vmem:[%s2 + $0x1e8] sm:$0xf]
    %v4729 = vld [vmem:[%s2 + $0x1ec] sm:$0xf]
    %v4730 = vld [vmem:[%s2 + $0x1f0] sm:$0xf]
    %v4731 = vld [vmem:[%s2 + $0x1f4] sm:$0xf]
    %v4732 = vld [vmem:[%s2 + $0x1f8] sm:$0xf]
    %v4733 = vld [vmem:[%s2 + $0x1fc] sm:$0xf]
    %v4734 = vld [vmem:[%s2 + $0x200] sm:$0xf]
    %v4735 = vld [vmem:[%s2 + $0x204] sm:$0xf]
    %v4736 = vld [vmem:[%s2 + $0x208] sm:$0xf]
    %v4737 = vld [vmem:[%s2 + $0x20c] sm:$0xf]
    %v4738 = vld [vmem:[%s2 + $0x210] sm:$0xf]
    %v4739 = vld [vmem:[%s2 + $0x214] sm:$0xf]
    %v4740 = vld [vmem:[%s2 + $0x218] sm:$0xf]
    %v4741 = vld [vmem:[%s2 + $0x21c] sm:$0xf]
    %v4742 = vld [vmem:[%s2 + $0x220] sm:$0xf]
    %v4743 = vld [vmem:[%s2 + $0x224] sm:$0xf]
    %v4744 = vld [vmem:[%s2 + $0x228] sm:$0xf]
    %v4745 = vld [vmem:[%s2 + $0x22c] sm:$0xf]
    %v4746 = vld [vmem:[%s2 + $0x230] sm:$0xf]
    %v4747 = vld [vmem:[%s2 + $0x234] sm:$0xf]
    %v4748 = vld [vmem:[%s2 + $0x238] sm:$0xf]
    %v4749 = vld [vmem:[%s2 + $0x23c] sm:$0xf]
    %v4750 = vpack.c.bf16 %v4591, %v4590
    %v4751 = vpack.c.bf16 %v4593, %v4592
    %v4752 = vpack.c.bf16 %v4595, %v4594
    %v4753 = vpack.c.bf16 %v4597, %v4596
    %v4754 = vpack.c.bf16 %v4599, %v4598
    %v4755 = vpack.c.bf16 %v4601, %v4600
    %v4756 = vpack.c.bf16 %v4603, %v4602
    %v4757 = vpack.c.bf16 %v4605, %v4604
    %v4902 = vunpack.c.l.b16 %v4606
    %v4903 = vunpack.c.l.b16 %v4607
    %v4904 = vunpack.c.l.b16 %v4608
    %v4905 = vunpack.c.l.b16 %v4609
    %v4906 = vunpack.c.l.b16 %v4610
    %v4907 = vunpack.c.l.b16 %v4611
    %v4908 = vunpack.c.l.b16 %v4612
    %v4909 = vunpack.c.l.b16 %v4613
    %v4910 = vunpack.c.l.b16 %v4614
    %v4911 = vunpack.c.l.b16 %v4615
    %v4912 = vunpack.c.l.b16 %v4616
    %v4913 = vunpack.c.l.b16 %v4617
    %v4914 = vunpack.c.l.b16 %v4618
    %v4915 = vunpack.c.l.b16 %v4619
    %v4916 = vunpack.c.l.b16 %v4620
    %v4917 = vunpack.c.l.b16 %v4621
    %v4918 = vunpack.c.l.b16 %v4622
    %v4919 = vunpack.c.l.b16 %v4623
    %v4920 = vunpack.c.l.b16 %v4624
    %v4921 = vunpack.c.l.b16 %v4625
    %v4922 = vunpack.c.l.b16 %v4626
    %v4923 = vunpack.c.l.b16 %v4627
    %v4924 = vunpack.c.l.b16 %v4628
    %v4925 = vunpack.c.l.b16 %v4629
    %v4926 = vunpack.c.l.b16 %v4630
    %v4927 = vunpack.c.l.b16 %v4631
    %v4928 = vunpack.c.l.b16 %v4632
    %v4929 = vunpack.c.l.b16 %v4633
    %v4930 = vunpack.c.l.b16 %v4634
    %v4931 = vunpack.c.l.b16 %v4635
    %v4932 = vunpack.c.l.b16 %v4636
    %v4933 = vunpack.c.l.b16 %v4637
    %v4934 = vunpack.c.l.b16 %v4638
    %v4935 = vunpack.c.l.b16 %v4639
    %v4936 = vunpack.c.l.b16 %v4640
    %v4937 = vunpack.c.l.b16 %v4641
    %v4938 = vunpack.c.l.b16 %v4642
    %v4939 = vunpack.c.l.b16 %v4643
    %v4940 = vunpack.c.l.b16 %v4644
    %v4941 = vunpack.c.l.b16 %v4645
    %v4942 = vunpack.c.l.b16 %v4646
    %v4943 = vunpack.c.l.b16 %v4647
    %v4944 = vunpack.c.l.b16 %v4648
    %v4945 = vunpack.c.l.b16 %v4649
    %v4946 = vunpack.c.l.b16 %v4650
    %v4947 = vunpack.c.l.b16 %v4651
    %v4948 = vunpack.c.l.b16 %v4652
    %v4949 = vunpack.c.l.b16 %v4653
    %v4950 = vunpack.c.l.b16 %v4654
    %v4951 = vunpack.c.l.b16 %v4655
    %v4952 = vunpack.c.l.b16 %v4656
    %v4953 = vunpack.c.l.b16 %v4657
    %v4954 = vunpack.c.l.b16 %v4658
    %v4955 = vunpack.c.l.b16 %v4659
    %v4956 = vunpack.c.l.b16 %v4660
    %v4957 = vunpack.c.l.b16 %v4661
    %v4958 = vunpack.c.l.b16 %v4662
    %v4959 = vunpack.c.l.b16 %v4663
    %v4960 = vunpack.c.l.b16 %v4664
    %v4961 = vunpack.c.l.b16 %v4665
    %v4962 = vunpack.c.l.b16 %v4666
    %v4963 = vunpack.c.l.b16 %v4667
    %v4964 = vunpack.c.l.b16 %v4668
    %v4965 = vunpack.c.l.b16 %v4669
    %v4966 = vunpack.c.l.b16 %v4670
    %v4967 = vunpack.c.l.b16 %v4671
    %v4968 = vunpack.c.l.b16 %v4672
    %v4969 = vunpack.c.l.b16 %v4673
    %v4970 = vunpack.c.l.b16 %v4674
    %v4971 = vunpack.c.l.b16 %v4675
    %v4972 = vunpack.c.l.b16 %v4676
    %v4973 = vunpack.c.l.b16 %v4677
    %v4974 = vunpack.c.l.b16 %v4678
    %v4975 = vunpack.c.l.b16 %v4679
    %v4976 = vunpack.c.l.b16 %v4680
    %v4977 = vunpack.c.l.b16 %v4681
    %v4978 = vunpack.c.l.b16 %v4682
    %v4979 = vunpack.c.l.b16 %v4683
    %v4980 = vunpack.c.l.b16 %v4684
    %v4981 = vunpack.c.l.b16 %v4685
    %v4982 = vunpack.c.l.b16 %v4686
    %v4983 = vunpack.c.l.b16 %v4687
    %v4984 = vunpack.c.l.b16 %v4688
    %v4985 = vunpack.c.l.b16 %v4689
    %v4986 = vunpack.c.l.b16 %v4690
    %v4987 = vunpack.c.l.b16 %v4691
    %v4988 = vunpack.c.l.b16 %v4692
    %v4989 = vunpack.c.l.b16 %v4693
    %v4990 = vunpack.c.l.b16 %v4694
    %v4991 = vunpack.c.l.b16 %v4695
    %v4992 = vunpack.c.l.b16 %v4696
    %v4993 = vunpack.c.l.b16 %v4697
    %v4994 = vunpack.c.l.b16 %v4698
    %v4995 = vunpack.c.l.b16 %v4699
    %v4996 = vunpack.c.l.b16 %v4700
    %v4997 = vunpack.c.l.b16 %v4701
    %v4998 = vunpack.c.l.b16 %v4702
    %v4999 = vunpack.c.l.b16 %v4703
    %v5000 = vunpack.c.l.b16 %v4704
    %v5001 = vunpack.c.l.b16 %v4705
    %v5002 = vunpack.c.l.b16 %v4706
    %v5003 = vunpack.c.l.b16 %v4707
    %v5004 = vunpack.c.l.b16 %v4708
    %v5005 = vunpack.c.l.b16 %v4709
    %v5006 = vunpack.c.l.b16 %v4710
    %v5007 = vunpack.c.l.b16 %v4711
    %v5008 = vunpack.c.l.b16 %v4712
    %v5009 = vunpack.c.l.b16 %v4713
    %v5010 = vunpack.c.l.b16 %v4714
    %v5011 = vunpack.c.l.b16 %v4715
    %v5012 = vunpack.c.l.b16 %v4716
    %v5013 = vunpack.c.l.b16 %v4717
    %v5014 = vunpack.c.l.b16 %v4718
    %v5015 = vunpack.c.l.b16 %v4719
    %v5016 = vunpack.c.l.b16 %v4720
    %v5017 = vunpack.c.l.b16 %v4721
    %v5018 = vunpack.c.l.b16 %v4722
    %v5019 = vunpack.c.l.b16 %v4723
    %v5020 = vunpack.c.l.b16 %v4724
    %v5021 = vunpack.c.l.b16 %v4725
    %v5022 = vunpack.c.l.b16 %v4726
    %v5023 = vunpack.c.l.b16 %v4727
    %v5024 = vunpack.c.l.b16 %v4728
    %v5025 = vunpack.c.l.b16 %v4729
    %v5026 = vunpack.c.l.b16 %v4730
    %v5027 = vunpack.c.l.b16 %v4731
    %v5028 = vunpack.c.l.b16 %v4732
    %v5029 = vunpack.c.l.b16 %v4733
    %v5030 = vunpack.c.l.b16 %v4734
    %v5031 = vunpack.c.l.b16 %v4735
    %v5032 = vunpack.c.l.b16 %v4736
    %v5033 = vunpack.c.l.b16 %v4737
    %v5034 = vunpack.c.l.b16 %v4738
    %v5035 = vunpack.c.l.b16 %v4739
    %v5036 = vunpack.c.l.b16 %v4740
    %v5037 = vunpack.c.l.b16 %v4741
    %v5038 = vunpack.c.l.b16 %v4742
    %v5039 = vunpack.c.l.b16 %v4743
    %v5040 = vunpack.c.l.b16 %v4744
    %v5041 = vunpack.c.l.b16 %v4745
    %v5042 = vunpack.c.l.b16 %v4746
    %v5043 = vunpack.c.l.b16 %v4747
    %v5044 = vunpack.c.l.b16 %v4748
    %v5045 = vunpack.c.l.b16 %v4749
    %v5046 = vpack.c.b16 %v4903, %v4902
    %v5047 = vpack.c.b16 %v4905, %v4904
    %v5048 = vpack.c.b16 %v4907, %v4906
    %v5049 = vpack.c.b16 %v4909, %v4908
    %v5050 = vpack.c.b16 %v4911, %v4910
    %v5051 = vpack.c.b16 %v4913, %v4912
    %v5052 = vpack.c.b16 %v4915, %v4914
    %v5053 = vpack.c.b16 %v4917, %v4916
    %v5054 = vpack.c.b16 %v4919, %v4918
    %v5055 = vpack.c.b16 %v4921, %v4920
    %v5056 = vpack.c.b16 %v4923, %v4922
    %v5057 = vpack.c.b16 %v4925, %v4924
    %v5058 = vpack.c.b16 %v4927, %v4926
    %v5059 = vpack.c.b16 %v4929, %v4928
    %v5060 = vpack.c.b16 %v4931, %v4930
    %v5061 = vpack.c.b16 %v4933, %v4932
    %v5062 = vpack.c.b16 %v4935, %v4934
    %v5063 = vpack.c.b16 %v4937, %v4936
    %v5064 = vpack.c.b16 %v4939, %v4938
    %v5065 = vpack.c.b16 %v4941, %v4940
    %v5066 = vpack.c.b16 %v4943, %v4942
    %v5067 = vpack.c.b16 %v4945, %v4944
    %v5068 = vpack.c.b16 %v4947, %v4946
    %v5069 = vpack.c.b16 %v4949, %v4948
    %v5070 = vpack.c.b16 %v4951, %v4950
    %v5071 = vpack.c.b16 %v4953, %v4952
    %v5072 = vpack.c.b16 %v4955, %v4954
    %v5073 = vpack.c.b16 %v4957, %v4956
    %v5074 = vpack.c.b16 %v4959, %v4958
    %v5075 = vpack.c.b16 %v4961, %v4960
    %v5076 = vpack.c.b16 %v4963, %v4962
    %v5077 = vpack.c.b16 %v4965, %v4964
    %v5078 = vpack.c.b16 %v4967, %v4966
    %v5079 = vpack.c.b16 %v4969, %v4968
    %v5080 = vpack.c.b16 %v4971, %v4970
    %v5081 = vpack.c.b16 %v4973, %v4972
    %v5082 = vpack.c.b16 %v4975, %v4974
    %v5083 = vpack.c.b16 %v4977, %v4976
    %v5084 = vpack.c.b16 %v4979, %v4978
    %v5085 = vpack.c.b16 %v4981, %v4980
    %v5086 = vpack.c.b16 %v4983, %v4982
    %v5087 = vpack.c.b16 %v4985, %v4984
    %v5088 = vpack.c.b16 %v4987, %v4986
    %v5089 = vpack.c.b16 %v4989, %v4988
    %v5090 = vpack.c.b16 %v4991, %v4990
    %v5091 = vpack.c.b16 %v4993, %v4992
    %v5092 = vpack.c.b16 %v4995, %v4994
    %v5093 = vpack.c.b16 %v4997, %v4996
    %v5094 = vpack.c.b16 %v4999, %v4998
    %v5095 = vpack.c.b16 %v5001, %v5000
    %v5096 = vpack.c.b16 %v5003, %v5002
    %v5097 = vpack.c.b16 %v5005, %v5004
    %v5098 = vpack.c.b16 %v5007, %v5006
    %v5099 = vpack.c.b16 %v5009, %v5008
    %v5100 = vpack.c.b16 %v5011, %v5010
    %v5101 = vpack.c.b16 %v5013, %v5012
    %v5102 = vpack.c.b16 %v5015, %v5014
    %v5103 = vpack.c.b16 %v5017, %v5016
    %v5104 = vpack.c.b16 %v5019, %v5018
    %v5105 = vpack.c.b16 %v5021, %v5020
    %v5106 = vpack.c.b16 %v5023, %v5022
    %v5107 = vpack.c.b16 %v5025, %v5024
    %v5108 = vpack.c.b16 %v5027, %v5026
    %v5109 = vpack.c.b16 %v5029, %v5028
    %v5110 = vpack.c.b16 %v5031, %v5030
    %v5111 = vpack.c.b16 %v5033, %v5032
    %v5112 = vpack.c.b16 %v5035, %v5034
    %v5113 = vpack.c.b16 %v5037, %v5036
    %v5114 = vpack.c.b16 %v5039, %v5038
    %v5115 = vpack.c.b16 %v5041, %v5040
    %v5116 = vpack.c.b16 %v5043, %v5042
    %v5117 = vpack.c.b16 %v5045, %v5044
    %5190 = vmatprep.subr.bf16.mxu0 0
    %5191 = vmatpush1.bf16.msra.mxu0 %v4750
    %5192 = vmatprep.subr.bf16.mxu0 0
    %5193 = vmatpush1.bf16.msra.mxu0 %v4751
    %5194 = vmatprep.subr.bf16.mxu0 0
    %5195 = vmatpush1.bf16.msra.mxu0 %v4752
    %5196 = vmatprep.subr.bf16.mxu0 0
    %5197 = vmatpush1.bf16.msra.mxu0 %v4753
    %5198 = vmatprep.subr.bf16.mxu0 0
    %5199 = vmatpush1.bf16.msra.mxu0 %v4754
    %5200 = vmatprep.subr.bf16.mxu0 0
    %5201 = vmatpush1.bf16.msra.mxu0 %v4755
    %5202 = vmatprep.subr.bf16.mxu0 0
    %5203 = vmatpush1.bf16.msra.mxu0 %v4756
    %5204 = vmatprep.subr.bf16.mxu0 0
    %5205 = vmatpush1.bf16.msra.mxu0 %v4757
    %5206 = vmatprep.subr.bf16.mxu0 0
    %5207 = vmatpush1.bf16.msra.mxu0 0
    %5208 = vmatprep.subr.bf16.mxu0 0
    %5209 = vmatpush1.bf16.msra.mxu0 0
    %5210 = vmatprep.subr.bf16.mxu0 0
    %5211 = vmatpush1.bf16.msra.mxu0 0
    %5212 = vmatprep.subr.bf16.mxu0 0
    %5213 = vmatpush1.bf16.msra.mxu0 0
    %5214 = vmatprep.subr.bf16.mxu0 0
    %5215 = vmatpush1.bf16.msra.mxu0 0
    %5216 = vmatprep.subr.bf16.mxu0 0
    %5217 = vmatpush1.bf16.msra.mxu0 0
    %5218 = vmatprep.subr.bf16.mxu0 0
    %5219 = vmatpush1.bf16.msra.mxu0 0
    %5220 = vmatprep.subr.bf16.mxu0 0
    %5221 = vmatpush1.bf16.msra.mxu0 0
    %5222 = vmatprep.mubr.bf16.mxu0 0
    %5223 = vmatmul.mubr.bf16.gmra.mrb[0].mxu0 %v5046
    %v5224 = vpop.f32.mrb[0].mxu0
    %v5225 = vadd.f32 0.0, %v5224
    %v5226 = vpop.f32.mrb[0].mxu0
    %v5227 = vpop.f32.mrb[0].mxu0
    %v5228 = vadd.f32 0.0, %v5227
    %v5229 = vpop.f32.mrb[0].mxu0
    %5230 = vmatprep.mubr.bf16.mxu0 0
    %5231 = vmatmul.mubr.bf16.gmra.mrb[0].mxu0 %v5047
    %v5232 = vpop.f32.mrb[0].mxu0
    %v5233 = vadd.f32 0.0, %v5232
    %v5234 = vpop.f32.mrb[0].mxu0
    %v5235 = vpop.f32.mrb[0].mxu0
    %v5236 = vadd.f32 0.0, %v5235
    %v5237 = vpop.f32.mrb[0].mxu0
    %5238 = vmatprep.mubr.bf16.mxu0 0
    %5239 = vmatmul.mubr.bf16.gmra.mrb[0].mxu0 %v5048
    %v5240 = vpop.f32.mrb[0].mxu0
    %v5241 = vadd.f32 0.0, %v5240
    %v5242 = vpop.f32.mrb[0].mxu0
    %v5243 = vpop.f32.mrb[0].mxu0
    %v5244 = vadd.f32 0.0, %v5243
    %v5245 = vpop.f32.mrb[0].mxu0
    %5246 = vmatprep.mubr.bf16.mxu0 0
    %5247 = vmatmul.mubr.bf16.gmra.mrb[0].mxu0 %v5049
    %v5248 = vpop.f32.mrb[0].mxu0
    %v5249 = vadd.f32 0.0, %v5248
    %v5250 = vpop.f32.mrb[0].mxu0
    %v5251 = vpop.f32.mrb[0].mxu0
    %v5252 = vadd.f32 0.0, %v5251
    %v5253 = vpop.f32.mrb[0].mxu0
    %5254 = vmatprep.mubr.bf16.mxu0 0
    %5255 = vmatmul.mubr.bf16.gmra.mrb[0].mxu0 %v5050
    %v5256 = vpop.f32.mrb[0].mxu0
    %v5257 = vadd.f32 0.0, %v5256
    %v5258 = vpop.f32.mrb[0].mxu0
    %v5259 = vpop.f32.mrb[0].mxu0
    %v5260 = vadd.f32 0.0, %v5259
    %v5261 = vpop.f32.mrb[0].mxu0
    %5262 = vmatprep.mubr.bf16.mxu0 0
    %5263 = vmatmul.mubr.bf16.gmra.mrb[0].mxu0 %v5051
    %v5264 = vpop.f32.mrb[0].mxu0
    %v5265 = vadd.f32 0.0, %v5264
    %v5266 = vpop.f32.mrb[0].mxu0
    %v5267 = vpop.f32.mrb[0].mxu0
    %v5268 = vadd.f32 0.0, %v5267
    %v5269 = vpop.f32.mrb[0].mxu0
    %5270 = vmatprep.mubr.bf16.mxu0 0
    %5271 = vmatmul.mubr.bf16.gmra.mrb[0].mxu0 %v5052
    %v5272 = vpop.f32.mrb[0].mxu0
    %v5273 = vadd.f32 0.0, %v5272
    %v5274 = vpop.f32.mrb[0].mxu0
    %v5275 = vpop.f32.mrb[0].mxu0
    %v5276 = vadd.f32 0.0, %v5275
    %v5277 = vpop.f32.mrb[0].mxu0
    %5278 = vmatprep.mubr.bf16.mxu0 0
    %5279 = vmatmul.mubr.bf16.gmra.mrb[0].mxu0 %v5053
    %v5280 = vpop.f32.mrb[0].mxu0
    %v5281 = vadd.f32 0.0, %v5280
    %v5282 = vpop.f32.mrb[0].mxu0
    %v5283 = vpop.f32.mrb[0].mxu0
    %v5284 = vadd.f32 0.0, %v5283
    %v5285 = vpop.f32.mrb[0].mxu0
    %5286 = vmatprep.mubr.bf16.mxu0 0
    %5287 = vmatmul.mubr.bf16.gmra.mrb[0].mxu0 %v5054
    %v5288 = vpop.f32.mrb[0].mxu0
    %v5289 = vadd.f32 0.0, %v5288
    %v5290 = vpop.f32.mrb[0].mxu0
    %v5291 = vpop.f32.mrb[0].mxu0
    %v5292 = vadd.f32 0.0, %v5291
    %v5293 = vpop.f32.mrb[0].mxu0
    %5294 = vmatprep.mubr.bf16.mxu0 0
    %5295 = vmatmul.mubr.bf16.gmra.mrb[0].mxu0 %v5055
    %v5296 = vpop.f32.mrb[0].mxu0
    %v5297 = vadd.f32 0.0, %v5296
    %v5298 = vpop.f32.mrb[0].mxu0
    %v5299 = vpop.f32.mrb[0].mxu0
    %v5300 = vadd.f32 0.0, %v5299
    %v5301 = vpop.f32.mrb[0].mxu0
    %5302 = vmatprep.mubr.bf16.mxu0 0
    %5303 = vmatmul.mubr.bf16.gmra.mrb[0].mxu0 %v5056
    %v5304 = vpop.f32.mrb[0].mxu0
    %v5305 = vadd.f32 0.0, %v5304
    %v5306 = vpop.f32.mrb[0].mxu0
    %v5307 = vpop.f32.mrb[0].mxu0
    %v5308 = vadd.f32 0.0, %v5307
    %v5309 = vpop.f32.mrb[0].mxu0
    %5310 = vmatprep.mubr.bf16.mxu0 0
    %5311 = vmatmul.mubr.bf16.gmra.mrb[0].mxu0 %v5057
    %v5312 = vpop.f32.mrb[0].mxu0
    %v5313 = vadd.f32 0.0, %v5312
    %v5314 = vpop.f32.mrb[0].mxu0
    %v5315 = vpop.f32.mrb[0].mxu0
    %v5316 = vadd.f32 0.0, %v5315
    %v5317 = vpop.f32.mrb[0].mxu0
    %5318 = vmatprep.mubr.bf16.mxu0 0
    %5319 = vmatmul.mubr.bf16.gmra.mrb[0].mxu0 %v5058
    %v5320 = vpop.f32.mrb[0].mxu0
    %v5321 = vadd.f32 0.0, %v5320
    %v5322 = vpop.f32.mrb[0].mxu0
    %v5323 = vpop.f32.mrb[0].mxu0
    %v5324 = vadd.f32 0.0, %v5323
    %v5325 = vpop.f32.mrb[0].mxu0
    %5326 = vmatprep.mubr.bf16.mxu0 0
    %5327 = vmatmul.mubr.bf16.gmra.mrb[0].mxu0 %v5059
    %v5328 = vpop.f32.mrb[0].mxu0
    %v5329 = vadd.f32 0.0, %v5328
    %v5330 = vpop.f32.mrb[0].mxu0
    %v5331 = vpop.f32.mrb[0].mxu0
    %v5332 = vadd.f32 0.0, %v5331
    %v5333 = vpop.f32.mrb[0].mxu0
    %5334 = vmatprep.mubr.bf16.mxu0 0
    %5335 = vmatmul.mubr.bf16.gmra.mrb[0].mxu0 %v5060
    %v5336 = vpop.f32.mrb[0].mxu0
    %v5337 = vadd.f32 0.0, %v5336
    %v5338 = vpop.f32.mrb[0].mxu0
    %v5339 = vpop.f32.mrb[0].mxu0
    %v5340 = vadd.f32 0.0, %v5339
    %v5341 = vpop.f32.mrb[0].mxu0
    %5342 = vmatprep.mubr.bf16.mxu0 0
    %5343 = vmatmul.mubr.bf16.gmra.mrb[0].mxu0 %v5061
    %v5344 = vpop.f32.mrb[0].mxu0
    %v5345 = vadd.f32 0.0, %v5344
    %v5346 = vpop.f32.mrb[0].mxu0
    %v5347 = vpop.f32.mrb[0].mxu0
    %v5348 = vadd.f32 0.0, %v5347
    %v5349 = vpop.f32.mrb[0].mxu0
    %5350 = vmatprep.mubr.bf16.mxu0 0
    %5351 = vmatmul.mubr.bf16.gmra.mrb[0].mxu0 %v5062
    %v5352 = vpop.f32.mrb[0].mxu0
    %v5353 = vadd.f32 0.0, %v5352
    %v5354 = vpop.f32.mrb[0].mxu0
    %v5355 = vpop.f32.mrb[0].mxu0
    %v5356 = vadd.f32 0.0, %v5355
    %v5357 = vpop.f32.mrb[0].mxu0
    %5358 = vmatprep.mubr.bf16.mxu0 0
    %5359 = vmatmul.mubr.bf16.gmra.mrb[0].mxu0 %v5063
    %v5360 = vpop.f32.mrb[0].mxu0
    %v5361 = vadd.f32 0.0, %v5360
    %v5362 = vpop.f32.mrb[0].mxu0
    %v5363 = vpop.f32.mrb[0].mxu0
    %v5364 = vadd.f32 0.0, %v5363
    %v5365 = vpop.f32.mrb[0].mxu0
    %5366 = vmatprep.mubr.bf16.mxu0 0
    %5367 = vmatmul.mubr.bf16.gmra.mrb[0].mxu0 %v5064
    %v5368 = vpop.f32.mrb[0].mxu0
    %v5369 = vadd.f32 0.0, %v5368
    %v5370 = vpop.f32.mrb[0].mxu0
    %v5371 = vpop.f32.mrb[0].mxu0
    %v5372 = vadd.f32 0.0, %v5371
    %v5373 = vpop.f32.mrb[0].mxu0
    %5374 = vmatprep.mubr.bf16.mxu0 0
    %5375 = vmatmul.mubr.bf16.gmra.mrb[0].mxu0 %v5065
    %v5376 = vpop.f32.mrb[0].mxu0
    %v5377 = vadd.f32 0.0, %v5376
    %v5378 = vpop.f32.mrb[0].mxu0
    %v5379 = vpop.f32.mrb[0].mxu0
    %v5380 = vadd.f32 0.0, %v5379
    %v5381 = vpop.f32.mrb[0].mxu0
    %5382 = vmatprep.mubr.bf16.mxu0 0
    %5383 = vmatmul.mubr.bf16.gmra.mrb[0].mxu0 %v5066
    %v5384 = vpop.f32.mrb[0].mxu0
    %v5385 = vadd.f32 0.0, %v5384
    %v5386 = vpop.f32.mrb[0].mxu0
    %v5387 = vpop.f32.mrb[0].mxu0
    %v5388 = vadd.f32 0.0, %v5387
    %v5389 = vpop.f32.mrb[0].mxu0
    %5390 = vmatprep.mubr.bf16.mxu0 0
    %5391 = vmatmul.mubr.bf16.gmra.mrb[0].mxu0 %v5067
    %v5392 = vpop.f32.mrb[0].mxu0
    %v5393 = vadd.f32 0.0, %v5392
    %v5394 = vpop.f32.mrb[0].mxu0
    %v5395 = vpop.f32.mrb[0].mxu0
    %v5396 = vadd.f32 0.0, %v5395
    %v5397 = vpop.f32.mrb[0].mxu0
    %5398 = vmatprep.mubr.bf16.mxu0 0
    %5399 = vmatmul.mubr.bf16.gmra.mrb[0].mxu0 %v5068
    %v5400 = vpop.f32.mrb[0].mxu0
    %v5401 = vadd.f32 0.0, %v5400
    %v5402 = vpop.f32.mrb[0].mxu0
    %v5403 = vpop.f32.mrb[0].mxu0
    %v5404 = vadd.f32 0.0, %v5403
    %v5405 = vpop.f32.mrb[0].mxu0
    %5406 = vmatprep.mubr.bf16.mxu0 0
    %5407 = vmatmul.mubr.bf16.gmra.mrb[0].mxu0 %v5069
    %v5408 = vpop.f32.mrb[0].mxu0
    %v5409 = vadd.f32 0.0, %v5408
    %v5410 = vpop.f32.mrb[0].mxu0
    %v5411 = vpop.f32.mrb[0].mxu0
    %v5412 = vadd.f32 0.0, %v5411
    %v5413 = vpop.f32.mrb[0].mxu0
    %5414 = vmatprep.mubr.bf16.mxu0 0
    %5415 = vmatmul.mubr.bf16.gmra.mrb[0].mxu0 %v5070
    %v5416 = vpop.f32.mrb[0].mxu0
    %v5417 = vadd.f32 0.0, %v5416
    %v5418 = vpop.f32.mrb[0].mxu0
    %v5419 = vpop.f32.mrb[0].mxu0
    %v5420 = vadd.f32 0.0, %v5419
    %v5421 = vpop.f32.mrb[0].mxu0
    %5422 = vmatprep.mubr.bf16.mxu0 0
    %5423 = vmatmul.mubr.bf16.gmra.mrb[0].mxu0 %v5071
    %v5424 = vpop.f32.mrb[0].mxu0
    %v5425 = vadd.f32 0.0, %v5424
    %v5426 = vpop.f32.mrb[0].mxu0
    %v5427 = vpop.f32.mrb[0].mxu0
    %v5428 = vadd.f32 0.0, %v5427
    %v5429 = vpop.f32.mrb[0].mxu0
    %5430 = vmatprep.mubr.bf16.mxu0 0
    %5431 = vmatmul.mubr.bf16.gmra.mrb[0].mxu0 %v5072
    %v5432 = vpop.f32.mrb[0].mxu0
    %v5433 = vadd.f32 0.0, %v5432
    %v5434 = vpop.f32.mrb[0].mxu0
    %v5435 = vpop.f32.mrb[0].mxu0
    %v5436 = vadd.f32 0.0, %v5435
    %v5437 = vpop.f32.mrb[0].mxu0
    %5438 = vmatprep.mubr.bf16.mxu0 0
    %5439 = vmatmul.mubr.bf16.gmra.mrb[0].mxu0 %v5073
    %v5440 = vpop.f32.mrb[0].mxu0
    %v5441 = vadd.f32 0.0, %v5440
    %v5442 = vpop.f32.mrb[0].mxu0
    %v5443 = vpop.f32.mrb[0].mxu0
    %v5444 = vadd.f32 0.0, %v5443
    %v5445 = vpop.f32.mrb[0].mxu0
    %5446 = vmatprep.mubr.bf16.mxu0 0
    %5447 = vmatmul.mubr.bf16.gmra.mrb[0].mxu0 %v5074
    %v5448 = vpop.f32.mrb[0].mxu0
    %v5449 = vadd.f32 0.0, %v5448
    %v5450 = vpop.f32.mrb[0].mxu0
    %v5451 = vpop.f32.mrb[0].mxu0
    %v5452 = vadd.f32 0.0, %v5451
    %v5453 = vpop.f32.mrb[0].mxu0
    %5454 = vmatprep.mubr.bf16.mxu0 0
    %5455 = vmatmul.mubr.bf16.gmra.mrb[0].mxu0 %v5075
    %v5456 = vpop.f32.mrb[0].mxu0
    %v5457 = vadd.f32 0.0, %v5456
    %v5458 = vpop.f32.mrb[0].mxu0
    %v5459 = vpop.f32.mrb[0].mxu0
    %v5460 = vadd.f32 0.0, %v5459
    %v5461 = vpop.f32.mrb[0].mxu0
    %5462 = vmatprep.mubr.bf16.mxu0 0
    %5463 = vmatmul.mubr.bf16.gmra.mrb[0].mxu0 %v5076
    %v5464 = vpop.f32.mrb[0].mxu0
    %v5465 = vadd.f32 0.0, %v5464
    %v5466 = vpop.f32.mrb[0].mxu0
    %v5467 = vpop.f32.mrb[0].mxu0
    %v5468 = vadd.f32 0.0, %v5467
    %v5469 = vpop.f32.mrb[0].mxu0
    %5470 = vmatprep.mubr.bf16.mxu0 0
    %5471 = vmatmul.mubr.bf16.gmra.mrb[0].mxu0 %v5077
    %v5472 = vpop.f32.mrb[0].mxu0
    %v5473 = vadd.f32 0.0, %v5472
    %v5474 = vpop.f32.mrb[0].mxu0
    %v5475 = vpop.f32.mrb[0].mxu0
    %v5476 = vadd.f32 0.0, %v5475
    %v5477 = vpop.f32.mrb[0].mxu0
    %5478 = vmatprep.mubr.bf16.mxu0 0
    %5479 = vmatmul.mubr.bf16.gmra.mrb[0].mxu0 %v5078
    %v5480 = vpop.f32.mrb[0].mxu0
    %v5481 = vadd.f32 0.0, %v5480
    %v5482 = vpop.f32.mrb[0].mxu0
    %v5483 = vpop.f32.mrb[0].mxu0
    %v5484 = vadd.f32 0.0, %v5483
    %v5485 = vpop.f32.mrb[0].mxu0
    %5486 = vmatprep.mubr.bf16.mxu0 0
    %5487 = vmatmul.mubr.bf16.gmra.mrb[0].mxu0 %v5079
    %v5488 = vpop.f32.mrb[0].mxu0
    %v5489 = vadd.f32 0.0, %v5488
    %v5490 = vpop.f32.mrb[0].mxu0
    %v5491 = vpop.f32.mrb[0].mxu0
    %v5492 = vadd.f32 0.0, %v5491
    %v5493 = vpop.f32.mrb[0].mxu0
    %5494 = vmatprep.mubr.bf16.mxu0 0
    %5495 = vmatmul.mubr.bf16.gmra.mrb[0].mxu0 %v5080
    %v5496 = vpop.f32.mrb[0].mxu0
    %v5497 = vadd.f32 0.0, %v5496
    %v5498 = vpop.f32.mrb[0].mxu0
    %v5499 = vpop.f32.mrb[0].mxu0
    %v5500 = vadd.f32 0.0, %v5499
    %v5501 = vpop.f32.mrb[0].mxu0
    %5502 = vmatprep.mubr.bf16.mxu0 0
    %5503 = vmatmul.mubr.bf16.gmra.mrb[0].mxu0 %v5081
    %v5504 = vpop.f32.mrb[0].mxu0
    %v5505 = vadd.f32 0.0, %v5504
    %v5506 = vpop.f32.mrb[0].mxu0
    %v5507 = vpop.f32.mrb[0].mxu0
    %v5508 = vadd.f32 0.0, %v5507
    %v5509 = vpop.f32.mrb[0].mxu0
    %5510 = vmatprep.mubr.bf16.mxu0 0
    %5511 = vmatmul.mubr.bf16.gmra.mrb[0].mxu0 %v5082
    %v5512 = vpop.f32.mrb[0].mxu0
    %v5513 = vadd.f32 0.0, %v5512
    %v5514 = vpop.f32.mrb[0].mxu0
    %v5515 = vpop.f32.mrb[0].mxu0
    %v5516 = vadd.f32 0.0, %v5515
    %v5517 = vpop.f32.mrb[0].mxu0
    %5518 = vmatprep.mubr.bf16.mxu0 0
    %5519 = vmatmul.mubr.bf16.gmra.mrb[0].mxu0 %v5083
    %v5520 = vpop.f32.mrb[0].mxu0
    %v5521 = vadd.f32 0.0, %v5520
    %v5522 = vpop.f32.mrb[0].mxu0
    %v5523 = vpop.f32.mrb[0].mxu0
    %v5524 = vadd.f32 0.0, %v5523
    %v5525 = vpop.f32.mrb[0].mxu0
    %5526 = vmatprep.mubr.bf16.mxu0 0
    %5527 = vmatmul.mubr.bf16.gmra.mrb[0].mxu0 %v5084
    %v5528 = vpop.f32.mrb[0].mxu0
    %v5529 = vadd.f32 0.0, %v5528
    %v5530 = vpop.f32.mrb[0].mxu0
    %v5531 = vpop.f32.mrb[0].mxu0
    %v5532 = vadd.f32 0.0, %v5531
    %v5533 = vpop.f32.mrb[0].mxu0
    %5534 = vmatprep.mubr.bf16.mxu0 0
    %5535 = vmatmul.mubr.bf16.gmra.mrb[0].mxu0 %v5085
    %v5536 = vpop.f32.mrb[0].mxu0
    %v5537 = vadd.f32 0.0, %v5536
    %v5538 = vpop.f32.mrb[0].mxu0
    %v5539 = vpop.f32.mrb[0].mxu0
    %v5540 = vadd.f32 0.0, %v5539
    %v5541 = vpop.f32.mrb[0].mxu0
    %5542 = vmatprep.mubr.bf16.mxu0 0
    %5543 = vmatmul.mubr.bf16.gmra.mrb[0].mxu0 %v5086
    %v5544 = vpop.f32.mrb[0].mxu0
    %v5545 = vadd.f32 0.0, %v5544
    %v5546 = vpop.f32.mrb[0].mxu0
    %v5547 = vpop.f32.mrb[0].mxu0
    %v5548 = vadd.f32 0.0, %v5547
    %v5549 = vpop.f32.mrb[0].mxu0
    %5550 = vmatprep.mubr.bf16.mxu0 0
    %5551 = vmatmul.mubr.bf16.gmra.mrb[0].mxu0 %v5087
    %v5552 = vpop.f32.mrb[0].mxu0
    %v5553 = vadd.f32 0.0, %v5552
    %v5554 = vpop.f32.mrb[0].mxu0
    %v5555 = vpop.f32.mrb[0].mxu0
    %v5556 = vadd.f32 0.0, %v5555
    %v5557 = vpop.f32.mrb[0].mxu0
    %5558 = vmatprep.mubr.bf16.mxu0 0
    %5559 = vmatmul.mubr.bf16.gmra.mrb[0].mxu0 %v5088
    %v5560 = vpop.f32.mrb[0].mxu0
    %v5561 = vadd.f32 0.0, %v5560
    %v5562 = vpop.f32.mrb[0].mxu0
    %v5563 = vpop.f32.mrb[0].mxu0
    %v5564 = vadd.f32 0.0, %v5563
    %v5565 = vpop.f32.mrb[0].mxu0
    %5566 = vmatprep.mubr.bf16.mxu0 0
    %5567 = vmatmul.mubr.bf16.gmra.mrb[0].mxu0 %v5089
    %v5568 = vpop.f32.mrb[0].mxu0
    %v5569 = vadd.f32 0.0, %v5568
    %v5570 = vpop.f32.mrb[0].mxu0
    %v5571 = vpop.f32.mrb[0].mxu0
    %v5572 = vadd.f32 0.0, %v5571
    %v5573 = vpop.f32.mrb[0].mxu0
    %5574 = vmatprep.mubr.bf16.mxu0 0
    %5575 = vmatmul.mubr.bf16.gmra.mrb[0].mxu0 %v5090
    %v5576 = vpop.f32.mrb[0].mxu0
    %v5577 = vadd.f32 0.0, %v5576
    %v5578 = vpop.f32.mrb[0].mxu0
    %v5579 = vpop.f32.mrb[0].mxu0
    %v5580 = vadd.f32 0.0, %v5579
    %v5581 = vpop.f32.mrb[0].mxu0
    %5582 = vmatprep.mubr.bf16.mxu0 0
    %5583 = vmatmul.mubr.bf16.gmra.mrb[0].mxu0 %v5091
    %v5584 = vpop.f32.mrb[0].mxu0
    %v5585 = vadd.f32 0.0, %v5584
    %v5586 = vpop.f32.mrb[0].mxu0
    %v5587 = vpop.f32.mrb[0].mxu0
    %v5588 = vadd.f32 0.0, %v5587
    %v5589 = vpop.f32.mrb[0].mxu0
    %5590 = vmatprep.mubr.bf16.mxu0 0
    %5591 = vmatmul.mubr.bf16.gmra.mrb[0].mxu0 %v5092
    %v5592 = vpop.f32.mrb[0].mxu0
    %v5593 = vadd.f32 0.0, %v5592
    %v5594 = vpop.f32.mrb[0].mxu0
    %v5595 = vpop.f32.mrb[0].mxu0
    %v5596 = vadd.f32 0.0, %v5595
    %v5597 = vpop.f32.mrb[0].mxu0
    %5598 = vmatprep.mubr.bf16.mxu0 0
    %5599 = vmatmul.mubr.bf16.gmra.mrb[0].mxu0 %v5093
    %v5600 = vpop.f32.mrb[0].mxu0
    %v5601 = vadd.f32 0.0, %v5600
    %v5602 = vpop.f32.mrb[0].mxu0
    %v5603 = vpop.f32.mrb[0].mxu0
    %v5604 = vadd.f32 0.0, %v5603
    %v5605 = vpop.f32.mrb[0].mxu0
    %5606 = vmatprep.mubr.bf16.mxu0 0
    %5607 = vmatmul.mubr.bf16.gmra.mrb[0].mxu0 %v5094
    %v5608 = vpop.f32.mrb[0].mxu0
    %v5609 = vadd.f32 0.0, %v5608
    %v5610 = vpop.f32.mrb[0].mxu0
    %v5611 = vpop.f32.mrb[0].mxu0
    %v5612 = vadd.f32 0.0, %v5611
    %v5613 = vpop.f32.mrb[0].mxu0
    %5614 = vmatprep.mubr.bf16.mxu0 0
    %5615 = vmatmul.mubr.bf16.gmra.mrb[0].mxu0 %v5095
    %v5616 = vpop.f32.mrb[0].mxu0
    %v5617 = vadd.f32 0.0, %v5616
    %v5618 = vpop.f32.mrb[0].mxu0
    %v5619 = vpop.f32.mrb[0].mxu0
    %v5620 = vadd.f32 0.0, %v5619
    %v5621 = vpop.f32.mrb[0].mxu0
    %5622 = vmatprep.mubr.bf16.mxu0 0
    %5623 = vmatmul.mubr.bf16.gmra.mrb[0].mxu0 %v5096
    %v5624 = vpop.f32.mrb[0].mxu0
    %v5625 = vadd.f32 0.0, %v5624
    %v5626 = vpop.f32.mrb[0].mxu0
    %v5627 = vpop.f32.mrb[0].mxu0
    %v5628 = vadd.f32 0.0, %v5627
    %v5629 = vpop.f32.mrb[0].mxu0
    %5630 = vmatprep.mubr.bf16.mxu0 0
    %5631 = vmatmul.mubr.bf16.gmra.mrb[0].mxu0 %v5097
    %v5632 = vpop.f32.mrb[0].mxu0
    %v5633 = vadd.f32 0.0, %v5632
    %v5634 = vpop.f32.mrb[0].mxu0
    %v5635 = vpop.f32.mrb[0].mxu0
    %v5636 = vadd.f32 0.0, %v5635
    %v5637 = vpop.f32.mrb[0].mxu0
    %5638 = vmatprep.mubr.bf16.mxu0 0
    %5639 = vmatmul.mubr.bf16.gmra.mrb[0].mxu0 %v5098
    %v5640 = vpop.f32.mrb[0].mxu0
    %v5641 = vadd.f32 0.0, %v5640
    %v5642 = vpop.f32.mrb[0].mxu0
    %v5643 = vpop.f32.mrb[0].mxu0
    %v5644 = vadd.f32 0.0, %v5643
    %v5645 = vpop.f32.mrb[0].mxu0
    %5646 = vmatprep.mubr.bf16.mxu0 0
    %5647 = vmatmul.mubr.bf16.gmra.mrb[0].mxu0 %v5099
    %v5648 = vpop.f32.mrb[0].mxu0
    %v5649 = vadd.f32 0.0, %v5648
    %v5650 = vpop.f32.mrb[0].mxu0
    %v5651 = vpop.f32.mrb[0].mxu0
    %v5652 = vadd.f32 0.0, %v5651
    %v5653 = vpop.f32.mrb[0].mxu0
    %5654 = vmatprep.mubr.bf16.mxu0 0
    %5655 = vmatmul.mubr.bf16.gmra.mrb[0].mxu0 %v5100
    %v5656 = vpop.f32.mrb[0].mxu0
    %v5657 = vadd.f32 0.0, %v5656
    %v5658 = vpop.f32.mrb[0].mxu0
    %v5659 = vpop.f32.mrb[0].mxu0
    %v5660 = vadd.f32 0.0, %v5659
    %v5661 = vpop.f32.mrb[0].mxu0
    %5662 = vmatprep.mubr.bf16.mxu0 0
    %5663 = vmatmul.mubr.bf16.gmra.mrb[0].mxu0 %v5101
    %v5664 = vpop.f32.mrb[0].mxu0
    %v5665 = vadd.f32 0.0, %v5664
    %v5666 = vpop.f32.mrb[0].mxu0
    %v5667 = vpop.f32.mrb[0].mxu0
    %v5668 = vadd.f32 0.0, %v5667
    %v5669 = vpop.f32.mrb[0].mxu0
    %5670 = vmatprep.mubr.bf16.mxu0 0
    %5671 = vmatmul.mubr.bf16.gmra.mrb[0].mxu0 %v5102
    %v5672 = vpop.f32.mrb[0].mxu0
    %v5673 = vadd.f32 0.0, %v5672
    %v5674 = vpop.f32.mrb[0].mxu0
    %v5675 = vpop.f32.mrb[0].mxu0
    %v5676 = vadd.f32 0.0, %v5675
    %v5677 = vpop.f32.mrb[0].mxu0
    %5678 = vmatprep.mubr.bf16.mxu0 0
    %5679 = vmatmul.mubr.bf16.gmra.mrb[0].mxu0 %v5103
    %v5680 = vpop.f32.mrb[0].mxu0
    %v5681 = vadd.f32 0.0, %v5680
    %v5682 = vpop.f32.mrb[0].mxu0
    %v5683 = vpop.f32.mrb[0].mxu0
    %v5684 = vadd.f32 0.0, %v5683
    %v5685 = vpop.f32.mrb[0].mxu0
    %5686 = vmatprep.mubr.bf16.mxu0 0
    %5687 = vmatmul.mubr.bf16.gmra.mrb[0].mxu0 %v5104
    %v5688 = vpop.f32.mrb[0].mxu0
    %v5689 = vadd.f32 0.0, %v5688
    %v5690 = vpop.f32.mrb[0].mxu0
    %v5691 = vpop.f32.mrb[0].mxu0
    %v5692 = vadd.f32 0.0, %v5691
    %v5693 = vpop.f32.mrb[0].mxu0
    %5694 = vmatprep.mubr.bf16.mxu0 0
    %5695 = vmatmul.mubr.bf16.gmra.mrb[0].mxu0 %v5105
    %v5696 = vpop.f32.mrb[0].mxu0
    %v5697 = vadd.f32 0.0, %v5696
    %v5698 = vpop.f32.mrb[0].mxu0
    %v5699 = vpop.f32.mrb[0].mxu0
    %v5700 = vadd.f32 0.0, %v5699
    %v5701 = vpop.f32.mrb[0].mxu0
    %5702 = vmatprep.mubr.bf16.mxu0 0
    %5703 = vmatmul.mubr.bf16.gmra.mrb[0].mxu0 %v5106
    %v5704 = vpop.f32.mrb[0].mxu0
    %v5705 = vadd.f32 0.0, %v5704
    %v5706 = vpop.f32.mrb[0].mxu0
    %v5707 = vpop.f32.mrb[0].mxu0
    %v5708 = vadd.f32 0.0, %v5707
    %v5709 = vpop.f32.mrb[0].mxu0
    %5710 = vmatprep.mubr.bf16.mxu0 0
    %5711 = vmatmul.mubr.bf16.gmra.mrb[0].mxu0 %v5107
    %v5712 = vpop.f32.mrb[0].mxu0
    %v5713 = vadd.f32 0.0, %v5712
    %v5714 = vpop.f32.mrb[0].mxu0
    %v5715 = vpop.f32.mrb[0].mxu0
    %v5716 = vadd.f32 0.0, %v5715
    %v5717 = vpop.f32.mrb[0].mxu0
    %5718 = vmatprep.mubr.bf16.mxu0 0
    %5719 = vmatmul.mubr.bf16.gmra.mrb[0].mxu0 %v5108
    %v5720 = vpop.f32.mrb[0].mxu0
    %v5721 = vadd.f32 0.0, %v5720
    %v5722 = vpop.f32.mrb[0].mxu0
    %v5723 = vpop.f32.mrb[0].mxu0
    %v5724 = vadd.f32 0.0, %v5723
    %v5725 = vpop.f32.mrb[0].mxu0
    %5726 = vmatprep.mubr.bf16.mxu0 0
    %5727 = vmatmul.mubr.bf16.gmra.mrb[0].mxu0 %v5109
    %v5728 = vpop.f32.mrb[0].mxu0
    %v5729 = vadd.f32 0.0, %v5728
    %v5730 = vpop.f32.mrb[0].mxu0
    %v5731 = vpop.f32.mrb[0].mxu0
    %v5732 = vadd.f32 0.0, %v5731
    %v5733 = vpop.f32.mrb[0].mxu0
    %5734 = vmatprep.mubr.bf16.mxu0 0
    %5735 = vmatmul.mubr.bf16.gmra.mrb[0].mxu0 %v5110
    %v5736 = vpop.f32.mrb[0].mxu0
    %v5737 = vadd.f32 0.0, %v5736
    %v5738 = vpop.f32.mrb[0].mxu0
    %v5739 = vpop.f32.mrb[0].mxu0
    %v5740 = vadd.f32 0.0, %v5739
    %v5741 = vpop.f32.mrb[0].mxu0
    %5742 = vmatprep.mubr.bf16.mxu0 0
    %5743 = vmatmul.mubr.bf16.gmra.mrb[0].mxu0 %v5111
    %v5744 = vpop.f32.mrb[0].mxu0
    %v5745 = vadd.f32 0.0, %v5744
    %v5746 = vpop.f32.mrb[0].mxu0
    %v5747 = vpop.f32.mrb[0].mxu0
    %v5748 = vadd.f32 0.0, %v5747
    %v5749 = vpop.f32.mrb[0].mxu0
    %5750 = vmatprep.mubr.bf16.mxu0 0
    %5751 = vmatmul.mubr.bf16.gmra.mrb[0].mxu0 %v5112
    %v5752 = vpop.f32.mrb[0].mxu0
    %v5753 = vadd.f32 0.0, %v5752
    %v5754 = vpop.f32.mrb[0].mxu0
    %v5755 = vpop.f32.mrb[0].mxu0
    %v5756 = vadd.f32 0.0, %v5755
    %v5757 = vpop.f32.mrb[0].mxu0
    %5758 = vmatprep.mubr.bf16.mxu0 0
    %5759 = vmatmul.mubr.bf16.gmra.mrb[0].mxu0 %v5113
    %v5760 = vpop.f32.mrb[0].mxu0
    %v5761 = vadd.f32 0.0, %v5760
    %v5762 = vpop.f32.mrb[0].mxu0
    %v5763 = vpop.f32.mrb[0].mxu0
    %v5764 = vadd.f32 0.0, %v5763
    %v5765 = vpop.f32.mrb[0].mxu0
    %5766 = vmatprep.mubr.bf16.mxu0 0
    %5767 = vmatmul.mubr.bf16.gmra.mrb[0].mxu0 %v5114
    %v5768 = vpop.f32.mrb[0].mxu0
    %v5769 = vadd.f32 0.0, %v5768
    %v5770 = vpop.f32.mrb[0].mxu0
    %v5771 = vpop.f32.mrb[0].mxu0
    %v5772 = vadd.f32 0.0, %v5771
    %v5773 = vpop.f32.mrb[0].mxu0
    %5774 = vmatprep.mubr.bf16.mxu0 0
    %5775 = vmatmul.mubr.bf16.gmra.mrb[0].mxu0 %v5115
    %v5776 = vpop.f32.mrb[0].mxu0
    %v5777 = vadd.f32 0.0, %v5776
    %v5778 = vpop.f32.mrb[0].mxu0
    %v5779 = vpop.f32.mrb[0].mxu0
    %v5780 = vadd.f32 0.0, %v5779
    %v5781 = vpop.f32.mrb[0].mxu0
    %5782 = vmatprep.mubr.bf16.mxu0 0
    %5783 = vmatmul.mubr.bf16.gmra.mrb[0].mxu0 %v5116
    %v5784 = vpop.f32.mrb[0].mxu0
    %v5785 = vadd.f32 0.0, %v5784
    %v5786 = vpop.f32.mrb[0].mxu0
    %v5787 = vpop.f32.mrb[0].mxu0
    %v5788 = vadd.f32 0.0, %v5787
    %v5789 = vpop.f32.mrb[0].mxu0
    %5790 = vmatprep.mubr.bf16.mxu0 0
    %5791 = vmatmul.mubr.bf16.gmra.mrb[0].mxu0 %v5117
    %v5792 = vpop.f32.mrb[0].mxu0
    %v5793 = vadd.f32 0.0, %v5792
    %v5794 = vpop.f32.mrb[0].mxu0
    %v5795 = vpop.f32.mrb[0].mxu0
    %v5796 = vadd.f32 0.0, %v5795
    %v5797 = vpop.f32.mrb[0].mxu0
    %5798 = vdwg.mxu0
    %v5799 = vld [vmem:[%s3 + $0x28] sm:$0xf]
    %v5800 = vld [vmem:[%s3 + $0x2c] sm:$0xf]
    %v5801 = vld [vmem:[%s3 + $0x30] sm:$0xf]
    %v5802 = vld [vmem:[%s3 + $0x34] sm:$0xf]
    %v5803 = vld [vmem:[%s3 + $0x38] sm:$0xf]
    %v5804 = vld [vmem:[%s3 + $0x3c] sm:$0xf]
    %v5805 = vld [vmem:[%s3 + $0x40] sm:$0xf]
    %v5806 = vld [vmem:[%s3 + $0x44] sm:$0xf]
    %v5807 = vld [vmem:[%s3 + $0x48] sm:$0xf]
    %v5808 = vld [vmem:[%s3 + $0x4c] sm:$0xf]
    %v5809 = vld [vmem:[%s3 + $0x50] sm:$0xf]
    %v5810 = vld [vmem:[%s3 + $0x54] sm:$0xf]
    %v5811 = vld [vmem:[%s3 + $0x58] sm:$0xf]
    %v5812 = vld [vmem:[%s3 + $0x5c] sm:$0xf]
    %v5813 = vld [vmem:[%s3 + $0x60] sm:$0xf]
    %v5814 = vld [vmem:[%s3 + $0x64] sm:$0xf]
    %v5815 = vld [vmem:[%s3 + $0x68] sm:$0xf]
    %v5816 = vld [vmem:[%s3 + $0x6c] sm:$0xf]
    %v5817 = vld [vmem:[%s3 + $0x70] sm:$0xf]
    %v5818 = vld [vmem:[%s3 + $0x74] sm:$0xf]
    %v5819 = vld [vmem:[%s3 + $0x78] sm:$0xf]
    %v5820 = vld [vmem:[%s3 + $0x7c] sm:$0xf]
    %v5821 = vld [vmem:[%s3 + $0x80] sm:$0xf]
    %v5822 = vld [vmem:[%s3 + $0x84] sm:$0xf]
    %v5823 = vld [vmem:[%s3 + $0x88] sm:$0xf]
    %v5824 = vld [vmem:[%s3 + $0x8c] sm:$0xf]
    %v5825 = vld [vmem:[%s3 + $0x90] sm:$0xf]
    %v5826 = vld [vmem:[%s3 + $0x94] sm:$0xf]
    %v5827 = vld [vmem:[%s3 + $0x98] sm:$0xf]
    %v5828 = vld [vmem:[%s3 + $0x9c] sm:$0xf]
    %v5829 = vld [vmem:[%s3 + $0xa0] sm:$0xf]
    %v5830 = vld [vmem:[%s3 + $0xa4] sm:$0xf]
    %v5831 = vld [vmem:[%s3 + $0xa8] sm:$0xf]
    %v5832 = vld [vmem:[%s3 + $0xac] sm:$0xf]
    %v5833 = vld [vmem:[%s3 + $0xb0] sm:$0xf]
    %v5834 = vld [vmem:[%s3 + $0xb4] sm:$0xf]
    %v5835 = vld [vmem:[%s3 + $0xb8] sm:$0xf]
    %v5836 = vld [vmem:[%s3 + $0xbc] sm:$0xf]
    %v5837 = vld [vmem:[%s3 + $0xc0] sm:$0xf]
    %v5838 = vld [vmem:[%s3 + $0xc4] sm:$0xf]
    %v5839 = vld [vmem:[%s3 + $0xc8] sm:$0xf]
    %v5840 = vld [vmem:[%s3 + $0xcc] sm:$0xf]
    %v5841 = vld [vmem:[%s3 + $0xd0] sm:$0xf]
    %v5842 = vld [vmem:[%s3 + $0xd4] sm:$0xf]
    %v5843 = vld [vmem:[%s3 + $0xd8] sm:$0xf]
    %v5844 = vld [vmem:[%s3 + $0xdc] sm:$0xf]
    %v5845 = vld [vmem:[%s3 + $0xe0] sm:$0xf]
    %v5846 = vld [vmem:[%s3 + $0xe4] sm:$0xf]
    %v5847 = vld [vmem:[%s3 + $0xe8] sm:$0xf]
    %v5848 = vld [vmem:[%s3 + $0xec] sm:$0xf]
    %v5849 = vld [vmem:[%s3 + $0xf0] sm:$0xf]
    %v5850 = vld [vmem:[%s3 + $0xf4] sm:$0xf]
    %v5851 = vld [vmem:[%s3 + $0xf8] sm:$0xf]
    %v5852 = vld [vmem:[%s3 + $0xfc] sm:$0xf]
    %v5853 = vld [vmem:[%s3 + $0x100] sm:$0xf]
    %v5854 = vld [vmem:[%s3 + $0x104] sm:$0xf]
    %v5855 = vld [vmem:[%s3 + $0x108] sm:$0xf]
    %v5856 = vld [vmem:[%s3 + $0x10c] sm:$0xf]
    %v5857 = vld [vmem:[%s3 + $0x110] sm:$0xf]
    %v5858 = vld [vmem:[%s3 + $0x114] sm:$0xf]
    %v5859 = vld [vmem:[%s3 + $0x118] sm:$0xf]
    %v5860 = vld [vmem:[%s3 + $0x11c] sm:$0xf]
    %v5861 = vld [vmem:[%s3 + $0x120] sm:$0xf]
    %v5862 = vld [vmem:[%s3 + $0x124] sm:$0xf]
    %v5863 = vld [vmem:[%s3 + $0x128] sm:$0xf]
    %v5864 = vld [vmem:[%s3 + $0x12c] sm:$0xf]
    %v5865 = vld [vmem:[%s3 + $0x130] sm:$0xf]
    %v5866 = vld [vmem:[%s3 + $0x134] sm:$0xf]
    %v5867 = vld [vmem:[%s3 + $0x138] sm:$0xf]
    %v5868 = vld [vmem:[%s3 + $0x13c] sm:$0xf]
    %v5869 = vld [vmem:[%s3 + $0x140] sm:$0xf]
    %v5870 = vld [vmem:[%s3 + $0x144] sm:$0xf]
    %v5871 = vld [vmem:[%s3 + $0x148] sm:$0xf]
    %v5872 = vld [vmem:[%s3 + $0x14c] sm:$0xf]
    %v5873 = vld [vmem:[%s3 + $0x150] sm:$0xf]
    %v5874 = vld [vmem:[%s3 + $0x154] sm:$0xf]
    %v5875 = vld [vmem:[%s3 + $0x158] sm:$0xf]
    %v5876 = vld [vmem:[%s3 + $0x15c] sm:$0xf]
    %v5877 = vld [vmem:[%s3 + $0x160] sm:$0xf]
    %v5878 = vld [vmem:[%s3 + $0x164] sm:$0xf]
    %v5879 = vld [vmem:[%s3 + $0x168] sm:$0xf]
    %v5880 = vld [vmem:[%s3 + $0x16c] sm:$0xf]
    %v5881 = vld [vmem:[%s3 + $0x170] sm:$0xf]
    %v5882 = vld [vmem:[%s3 + $0x174] sm:$0xf]
    %v5883 = vld [vmem:[%s3 + $0x178] sm:$0xf]
    %v5884 = vld [vmem:[%s3 + $0x17c] sm:$0xf]
    %v5885 = vld [vmem:[%s3 + $0x180] sm:$0xf]
    %v5886 = vld [vmem:[%s3 + $0x184] sm:$0xf]
    %v5887 = vld [vmem:[%s3 + $0x188] sm:$0xf]
    %v5888 = vld [vmem:[%s3 + $0x18c] sm:$0xf]
    %v5889 = vld [vmem:[%s3 + $0x190] sm:$0xf]
    %v5890 = vld [vmem:[%s3 + $0x194] sm:$0xf]
    %v5891 = vld [vmem:[%s3 + $0x198] sm:$0xf]
    %v5892 = vld [vmem:[%s3 + $0x19c] sm:$0xf]
    %v5893 = vld [vmem:[%s3 + $0x1a0] sm:$0xf]
    %v5894 = vld [vmem:[%s3 + $0x1a4] sm:$0xf]
    %v5895 = vld [vmem:[%s3 + $0x1a8] sm:$0xf]
    %v5896 = vld [vmem:[%s3 + $0x1ac] sm:$0xf]
    %v5897 = vld [vmem:[%s3 + $0x1b0] sm:$0xf]
    %v5898 = vld [vmem:[%s3 + $0x1b4] sm:$0xf]
    %v5899 = vld [vmem:[%s3 + $0x1b8] sm:$0xf]
    %v5900 = vld [vmem:[%s3 + $0x1bc] sm:$0xf]
    %v5901 = vld [vmem:[%s3 + $0x1c0] sm:$0xf]
    %v5902 = vld [vmem:[%s3 + $0x1c4] sm:$0xf]
    %v5903 = vld [vmem:[%s3 + $0x1c8] sm:$0xf]
    %v5904 = vld [vmem:[%s3 + $0x1cc] sm:$0xf]
    %v5905 = vld [vmem:[%s3 + $0x1d0] sm:$0xf]
    %v5906 = vld [vmem:[%s3 + $0x1d4] sm:$0xf]
    %v5907 = vld [vmem:[%s3 + $0x1d8] sm:$0xf]
    %v5908 = vld [vmem:[%s3 + $0x1dc] sm:$0xf]
    %v5909 = vld [vmem:[%s3 + $0x1e0] sm:$0xf]
    %v5910 = vld [vmem:[%s3 + $0x1e4] sm:$0xf]
    %v5911 = vld [vmem:[%s3 + $0x1e8] sm:$0xf]
    %v5912 = vld [vmem:[%s3 + $0x1ec] sm:$0xf]
    %v5913 = vld [vmem:[%s3 + $0x1f0] sm:$0xf]
    %v5914 = vld [vmem:[%s3 + $0x1f4] sm:$0xf]
    %v5915 = vld [vmem:[%s3 + $0x1f8] sm:$0xf]
    %v5916 = vld [vmem:[%s3 + $0x1fc] sm:$0xf]
    %v5917 = vld [vmem:[%s3 + $0x200] sm:$0xf]
    %v5918 = vld [vmem:[%s3 + $0x204] sm:$0xf]
    %v5919 = vld [vmem:[%s3 + $0x208] sm:$0xf]
    %v5920 = vld [vmem:[%s3 + $0x20c] sm:$0xf]
    %v5921 = vld [vmem:[%s3 + $0x210] sm:$0xf]
    %v5922 = vld [vmem:[%s3 + $0x214] sm:$0xf]
    %v5923 = vld [vmem:[%s3 + $0x218] sm:$0xf]
    %v5924 = vld [vmem:[%s3 + $0x21c] sm:$0xf]
    %v5925 = vld [vmem:[%s3 + $0x220] sm:$0xf]
    %v5926 = vld [vmem:[%s3 + $0x224] sm:$0xf]
    %v5927 = vld [vmem:[%s3 + $0x228] sm:$0xf]
    %v5928 = vld [vmem:[%s3 + $0x22c] sm:$0xf]
    %v5929 = vld [vmem:[%s3 + $0x230] sm:$0xf]
    %v5930 = vld [vmem:[%s3 + $0x234] sm:$0xf]
    %v5931 = vld [vmem:[%s3 + $0x238] sm:$0xf]
    %v5932 = vld [vmem:[%s3 + $0x23c] sm:$0xf]
    %v5933 = vld [vmem:[%s3 + $0x240] sm:$0xf]
    %v5934 = vld [vmem:[%s3 + $0x244] sm:$0xf]
    %v5935 = vld [vmem:[%s3 + $0x248] sm:$0xf]
    %v5936 = vld [vmem:[%s3 + $0x24c] sm:$0xf]
    %v5937 = vld [vmem:[%s3 + $0x250] sm:$0xf]
    %v5938 = vld [vmem:[%s3 + $0x254] sm:$0xf]
    %v5939 = vld [vmem:[%s3 + $0x258] sm:$0xf]
    %v5940 = vld [vmem:[%s3 + $0x25c] sm:$0xf]
    %v5941 = vld [vmem:[%s3 + $0x260] sm:$0xf]
    %v5942 = vld [vmem:[%s3 + $0x264] sm:$0xf]
    %v5943 = vunpack.c.l.bf16 %v5799
    %v5944 = vunpack.c.l.bf16 %v5800
    %v5945 = vunpack.c.l.bf16 %v5801
    %v5946 = vunpack.c.l.bf16 %v5802
    %v5947 = vunpack.c.l.bf16 %v5803
    %v5948 = vunpack.c.l.bf16 %v5804
    %v5949 = vunpack.c.l.bf16 %v5805
    %v5950 = vunpack.c.l.bf16 %v5806
    %v5951 = vunpack.c.l.bf16 %v5807
    %v5952 = vunpack.c.l.bf16 %v5808
    %v5953 = vunpack.c.l.bf16 %v5809
    %v5954 = vunpack.c.l.bf16 %v5810
    %v5955 = vunpack.c.l.bf16 %v5811
    %v5956 = vunpack.c.l.bf16 %v5812
    %v5957 = vunpack.c.l.bf16 %v5813
    %v5958 = vunpack.c.l.bf16 %v5814
    %v5959 = vunpack.c.l.bf16 %v5815
    %v5960 = vunpack.c.l.bf16 %v5816
    %v5961 = vunpack.c.l.bf16 %v5817
    %v5962 = vunpack.c.l.bf16 %v5818
    %v5963 = vunpack.c.l.bf16 %v5819
    %v5964 = vunpack.c.l.bf16 %v5820
    %v5965 = vunpack.c.l.bf16 %v5821
    %v5966 = vunpack.c.l.bf16 %v5822
    %v5967 = vunpack.c.l.bf16 %v5823
    %v5968 = vunpack.c.l.bf16 %v5824
    %v5969 = vunpack.c.l.bf16 %v5825
    %v5970 = vunpack.c.l.bf16 %v5826
    %v5971 = vunpack.c.l.bf16 %v5827
    %v5972 = vunpack.c.l.bf16 %v5828
    %v5973 = vunpack.c.l.bf16 %v5829
    %v5974 = vunpack.c.l.bf16 %v5830
    %v5975 = vunpack.c.l.bf16 %v5831
    %v5976 = vunpack.c.l.bf16 %v5832
    %v5977 = vunpack.c.l.bf16 %v5833
    %v5978 = vunpack.c.l.bf16 %v5834
    %v5979 = vunpack.c.l.bf16 %v5835
    %v5980 = vunpack.c.l.bf16 %v5836
    %v5981 = vunpack.c.l.bf16 %v5837
    %v5982 = vunpack.c.l.bf16 %v5838
    %v5983 = vunpack.c.l.bf16 %v5839
    %v5984 = vunpack.c.l.bf16 %v5840
    %v5985 = vunpack.c.l.bf16 %v5841
    %v5986 = vunpack.c.l.bf16 %v5842
    %v5987 = vunpack.c.l.bf16 %v5843
    %v5988 = vunpack.c.l.bf16 %v5844
    %v5989 = vunpack.c.l.bf16 %v5845
    %v5990 = vunpack.c.l.bf16 %v5846
    %v5991 = vunpack.c.l.bf16 %v5847
    %v5992 = vunpack.c.l.bf16 %v5848
    %v5993 = vunpack.c.l.bf16 %v5849
    %v5994 = vunpack.c.l.bf16 %v5850
    %v5995 = vunpack.c.l.bf16 %v5851
    %v5996 = vunpack.c.l.bf16 %v5852
    %v5997 = vunpack.c.l.bf16 %v5853
    %v5998 = vunpack.c.l.bf16 %v5854
    %v5999 = vunpack.c.l.bf16 %v5855
    %v6000 = vunpack.c.l.bf16 %v5856
    %v6001 = vunpack.c.l.bf16 %v5857
    %v6002 = vunpack.c.l.bf16 %v5858
    %v6003 = vunpack.c.l.bf16 %v5859
    %v6004 = vunpack.c.l.bf16 %v5860
    %v6005 = vunpack.c.l.bf16 %v5861
    %v6006 = vunpack.c.l.bf16 %v5862
    %v6007 = vunpack.c.l.bf16 %v5863
    %v6008 = vunpack.c.l.bf16 %v5864
    %v6009 = vunpack.c.l.bf16 %v5865
    %v6010 = vunpack.c.l.bf16 %v5866
    %v6011 = vunpack.c.l.bf16 %v5867
    %v6012 = vunpack.c.l.bf16 %v5868
    %v6013 = vunpack.c.l.bf16 %v5869
    %v6014 = vunpack.c.l.bf16 %v5870
    %v6015 = vunpack.c.l.bf16 %v5871
    %v6016 = vunpack.c.l.bf16 %v5872
    %v6017 = vunpack.c.l.bf16 %v5873
    %v6018 = vunpack.c.l.bf16 %v5874
    %v6019 = vunpack.c.l.bf16 %v5875
    %v6020 = vunpack.c.l.bf16 %v5876
    %v6021 = vunpack.c.l.bf16 %v5877
    %v6022 = vunpack.c.l.bf16 %v5878
    %v6023 = vunpack.c.l.bf16 %v5879
    %v6024 = vunpack.c.l.bf16 %v5880
    %v6025 = vunpack.c.l.bf16 %v5881
    %v6026 = vunpack.c.l.bf16 %v5882
    %v6027 = vunpack.c.l.bf16 %v5883
    %v6028 = vunpack.c.l.bf16 %v5884
    %v6029 = vunpack.c.l.bf16 %v5885
    %v6030 = vunpack.c.l.bf16 %v5886
    %v6031 = vunpack.c.l.bf16 %v5887
    %v6032 = vunpack.c.l.bf16 %v5888
    %v6033 = vunpack.c.l.bf16 %v5889
    %v6034 = vunpack.c.l.bf16 %v5890
    %v6035 = vunpack.c.l.bf16 %v5891
    %v6036 = vunpack.c.l.bf16 %v5892
    %v6037 = vunpack.c.l.bf16 %v5893
    %v6038 = vunpack.c.l.bf16 %v5894
    %v6039 = vunpack.c.l.bf16 %v5895
    %v6040 = vunpack.c.l.bf16 %v5896
    %v6041 = vunpack.c.l.bf16 %v5897
    %v6042 = vunpack.c.l.bf16 %v5898
    %v6043 = vunpack.c.l.bf16 %v5899
    %v6044 = vunpack.c.l.bf16 %v5900
    %v6045 = vunpack.c.l.bf16 %v5901
    %v6046 = vunpack.c.l.bf16 %v5902
    %v6047 = vunpack.c.l.bf16 %v5903
    %v6048 = vunpack.c.l.bf16 %v5904
    %v6049 = vunpack.c.l.bf16 %v5905
    %v6050 = vunpack.c.l.bf16 %v5906
    %v6051 = vunpack.c.l.bf16 %v5907
    %v6052 = vunpack.c.l.bf16 %v5908
    %v6053 = vunpack.c.l.bf16 %v5909
    %v6054 = vunpack.c.l.bf16 %v5910
    %v6055 = vunpack.c.l.bf16 %v5911
    %v6056 = vunpack.c.l.bf16 %v5912
    %v6057 = vunpack.c.l.bf16 %v5913
    %v6058 = vunpack.c.l.bf16 %v5914
    %v6059 = vunpack.c.l.bf16 %v5915
    %v6060 = vunpack.c.l.bf16 %v5916
    %v6061 = vunpack.c.l.bf16 %v5917
    %v6062 = vunpack.c.l.bf16 %v5918
    %v6063 = vunpack.c.l.bf16 %v5919
    %v6064 = vunpack.c.l.bf16 %v5920
    %v6065 = vunpack.c.l.bf16 %v5921
    %v6066 = vunpack.c.l.bf16 %v5922
    %v6067 = vunpack.c.l.bf16 %v5923
    %v6068 = vunpack.c.l.bf16 %v5924
    %v6069 = vunpack.c.l.bf16 %v5925
    %v6070 = vunpack.c.l.bf16 %v5926
    %v6071 = vunpack.c.l.bf16 %v5927
    %v6072 = vunpack.c.l.bf16 %v5928
    %v6073 = vunpack.c.l.bf16 %v5929
    %v6074 = vunpack.c.l.bf16 %v5930
    %v6075 = vunpack.c.l.bf16 %v5931
    %v6076 = vunpack.c.l.bf16 %v5932
    %v6077 = vunpack.c.l.bf16 %v5933
    %v6078 = vunpack.c.l.bf16 %v5934
    %v6079 = vunpack.c.l.bf16 %v5935
    %v6080 = vunpack.c.l.bf16 %v5936
    %v6081 = vunpack.c.l.bf16 %v5937
    %v6082 = vunpack.c.l.bf16 %v5938
    %v6083 = vunpack.c.l.bf16 %v5939
    %v6084 = vunpack.c.l.bf16 %v5940
    %v6085 = vunpack.c.l.bf16 %v5941
    %v6086 = vunpack.c.l.bf16 %v5942
    %v6087 = vmul.f32 %v5225, %v5943
    %v6088 = vmul.f32 %v5228, %v5944
    %v6089 = vmul.f32 %v5233, %v5945
    %v6090 = vmul.f32 %v5236, %v5946
    %v6091 = vmul.f32 %v5241, %v5947
    %v6092 = vmul.f32 %v5244, %v5948
    %v6093 = vmul.f32 %v5249, %v5949
    %v6094 = vmul.f32 %v5252, %v5950
    %v6095 = vmul.f32 %v5257, %v5951
    %v6096 = vmul.f32 %v5260, %v5952
    %v6097 = vmul.f32 %v5265, %v5953
    %v6098 = vmul.f32 %v5268, %v5954
    %v6099 = vmul.f32 %v5273, %v5955
    %v6100 = vmul.f32 %v5276, %v5956
    %v6101 = vmul.f32 %v5281, %v5957
    %v6102 = vmul.f32 %v5284, %v5958
    %v6103 = vmul.f32 %v5289, %v5959
    %v6104 = vmul.f32 %v5292, %v5960
    %v6105 = vmul.f32 %v5297, %v5961
    %v6106 = vmul.f32 %v5300, %v5962
    %v6107 = vmul.f32 %v5305, %v5963
    %v6108 = vmul.f32 %v5308, %v5964
    %v6109 = vmul.f32 %v5313, %v5965
    %v6110 = vmul.f32 %v5316, %v5966
    %v6111 = vmul.f32 %v5321, %v5967
    %v6112 = vmul.f32 %v5324, %v5968
    %v6113 = vmul.f32 %v5329, %v5969
    %v6114 = vmul.f32 %v5332, %v5970
    %v6115 = vmul.f32 %v5337, %v5971
    %v6116 = vmul.f32 %v5340, %v5972
    %v6117 = vmul.f32 %v5345, %v5973
    %v6118 = vmul.f32 %v5348, %v5974
    %v6119 = vmul.f32 %v5353, %v5975
    %v6120 = vmul.f32 %v5356, %v5976
    %v6121 = vmul.f32 %v5361, %v5977
    %v6122 = vmul.f32 %v5364, %v5978
    %v6123 = vmul.f32 %v5369, %v5979
    %v6124 = vmul.f32 %v5372, %v5980
    %v6125 = vmul.f32 %v5377, %v5981
    %v6126 = vmul.f32 %v5380, %v5982
    %v6127 = vmul.f32 %v5385, %v5983
    %v6128 = vmul.f32 %v5388, %v5984
    %v6129 = vmul.f32 %v5393, %v5985
    %v6130 = vmul.f32 %v5396, %v5986
    %v6131 = vmul.f32 %v5401, %v5987
    %v6132 = vmul.f32 %v5404, %v5988
    %v6133 = vmul.f32 %v5409, %v5989
    %v6134 = vmul.f32 %v5412, %v5990
    %v6135 = vmul.f32 %v5417, %v5991
    %v6136 = vmul.f32 %v5420, %v5992
    %v6137 = vmul.f32 %v5425, %v5993
    %v6138 = vmul.f32 %v5428, %v5994
    %v6139 = vmul.f32 %v5433, %v5995
    %v6140 = vmul.f32 %v5436, %v5996
    %v6141 = vmul.f32 %v5441, %v5997
    %v6142 = vmul.f32 %v5444, %v5998
    %v6143 = vmul.f32 %v5449, %v5999
    %v6144 = vmul.f32 %v5452, %v6000
    %v6145 = vmul.f32 %v5457, %v6001
    %v6146 = vmul.f32 %v5460, %v6002
    %v6147 = vmul.f32 %v5465, %v6003
    %v6148 = vmul.f32 %v5468, %v6004
    %v6149 = vmul.f32 %v5473, %v6005
    %v6150 = vmul.f32 %v5476, %v6006
    %v6151 = vmul.f32 %v5481, %v6007
    %v6152 = vmul.f32 %v5484, %v6008
    %v6153 = vmul.f32 %v5489, %v6009
    %v6154 = vmul.f32 %v5492, %v6010
    %v6155 = vmul.f32 %v5497, %v6011
    %v6156 = vmul.f32 %v5500, %v6012
    %v6157 = vmul.f32 %v5505, %v6013
    %v6158 = vmul.f32 %v5508, %v6014
    %v6159 = vmul.f32 %v5513, %v6015
    %v6160 = vmul.f32 %v5516, %v6016
    %v6161 = vmul.f32 %v5521, %v6017
    %v6162 = vmul.f32 %v5524, %v6018
    %v6163 = vmul.f32 %v5529, %v6019
    %v6164 = vmul.f32 %v5532, %v6020
    %v6165 = vmul.f32 %v5537, %v6021
    %v6166 = vmul.f32 %v5540, %v6022
    %v6167 = vmul.f32 %v5545, %v6023
    %v6168 = vmul.f32 %v5548, %v6024
    %v6169 = vmul.f32 %v5553, %v6025
    %v6170 = vmul.f32 %v5556, %v6026
    %v6171 = vmul.f32 %v5561, %v6027
    %v6172 = vmul.f32 %v5564, %v6028
    %v6173 = vmul.f32 %v5569, %v6029
    %v6174 = vmul.f32 %v5572, %v6030
    %v6175 = vmul.f32 %v5577, %v6031
    %v6176 = vmul.f32 %v5580, %v6032
    %v6177 = vmul.f32 %v5585, %v6033
    %v6178 = vmul.f32 %v5588, %v6034
    %v6179 = vmul.f32 %v5593, %v6035
    %v6180 = vmul.f32 %v5596, %v6036
    %v6181 = vmul.f32 %v5601, %v6037
    %v6182 = vmul.f32 %v5604, %v6038
    %v6183 = vmul.f32 %v5609, %v6039
    %v6184 = vmul.f32 %v5612, %v6040
    %v6185 = vmul.f32 %v5617, %v6041
    %v6186 = vmul.f32 %v5620, %v6042
    %v6187 = vmul.f32 %v5625, %v6043
    %v6188 = vmul.f32 %v5628, %v6044
    %v6189 = vmul.f32 %v5633, %v6045
    %v6190 = vmul.f32 %v5636, %v6046
    %v6191 = vmul.f32 %v5641, %v6047
    %v6192 = vmul.f32 %v5644, %v6048
    %v6193 = vmul.f32 %v5649, %v6049
    %v6194 = vmul.f32 %v5652, %v6050
    %v6195 = vmul.f32 %v5657, %v6051
    %v6196 = vmul.f32 %v5660, %v6052
    %v6197 = vmul.f32 %v5665, %v6053
    %v6198 = vmul.f32 %v5668, %v6054
    %v6199 = vmul.f32 %v5673, %v6055
    %v6200 = vmul.f32 %v5676, %v6056
    %v6201 = vmul.f32 %v5681, %v6057
    %v6202 = vmul.f32 %v5684, %v6058
    %v6203 = vmul.f32 %v5689, %v6059
    %v6204 = vmul.f32 %v5692, %v6060
    %v6205 = vmul.f32 %v5697, %v6061
    %v6206 = vmul.f32 %v5700, %v6062
    %v6207 = vmul.f32 %v5705, %v6063
    %v6208 = vmul.f32 %v5708, %v6064
    %v6209 = vmul.f32 %v5713, %v6065
    %v6210 = vmul.f32 %v5716, %v6066
    %v6211 = vmul.f32 %v5721, %v6067
    %v6212 = vmul.f32 %v5724, %v6068
    %v6213 = vmul.f32 %v5729, %v6069
    %v6214 = vmul.f32 %v5732, %v6070
    %v6215 = vmul.f32 %v5737, %v6071
    %v6216 = vmul.f32 %v5740, %v6072
    %v6217 = vmul.f32 %v5745, %v6073
    %v6218 = vmul.f32 %v5748, %v6074
    %v6219 = vmul.f32 %v5753, %v6075
    %v6220 = vmul.f32 %v5756, %v6076
    %v6221 = vmul.f32 %v5761, %v6077
    %v6222 = vmul.f32 %v5764, %v6078
    %v6223 = vmul.f32 %v5769, %v6079
    %v6224 = vmul.f32 %v5772, %v6080
    %v6225 = vmul.f32 %v5777, %v6081
    %v6226 = vmul.f32 %v5780, %v6082
    %v6227 = vmul.f32 %v5785, %v6083
    %v6228 = vmul.f32 %v5788, %v6084
    %v6229 = vmul.f32 %v5793, %v6085
    %v6230 = vmul.f32 %v5796, %v6086
    %v6231 = vadd.f32 %v6087, %v6103
    %v6232 = vadd.f32 %v6088, %v6104
    %v6233 = vadd.f32 %v6089, %v6105
    %v6234 = vadd.f32 %v6090, %v6106
    %v6235 = vadd.f32 %v6091, %v6107
    %v6236 = vadd.f32 %v6092, %v6108
    %v6237 = vadd.f32 %v6093, %v6109
    %v6238 = vadd.f32 %v6094, %v6110
    %v6239 = vadd.f32 %v6095, %v6111
    %v6240 = vadd.f32 %v6096, %v6112
    %v6241 = vadd.f32 %v6097, %v6113
    %v6242 = vadd.f32 %v6098, %v6114
    %v6243 = vadd.f32 %v6099, %v6115
    %v6244 = vadd.f32 %v6100, %v6116
    %v6245 = vadd.f32 %v6101, %v6117
    %v6246 = vadd.f32 %v6102, %v6118
    %v6247 = vadd.f32 %v6231, %v6119
    %v6248 = vadd.f32 %v6232, %v6120
    %v6249 = vadd.f32 %v6233, %v6121
    %v6250 = vadd.f32 %v6234, %v6122
    %v6251 = vadd.f32 %v6235, %v6123
    %v6252 = vadd.f32 %v6236, %v6124
    %v6253 = vadd.f32 %v6237, %v6125
    %v6254 = vadd.f32 %v6238, %v6126
    %v6255 = vadd.f32 %v6239, %v6127
    %v6256 = vadd.f32 %v6240, %v6128
    %v6257 = vadd.f32 %v6241, %v6129
    %v6258 = vadd.f32 %v6242, %v6130
    %v6259 = vadd.f32 %v6243, %v6131
    %v6260 = vadd.f32 %v6244, %v6132
    %v6261 = vadd.f32 %v6245, %v6133
    %v6262 = vadd.f32 %v6246, %v6134
    %v6263 = vadd.f32 %v6247, %v6135
    %v6264 = vadd.f32 %v6248, %v6136
    %v6265 = vadd.f32 %v6249, %v6137
    %v6266 = vadd.f32 %v6250, %v6138
    %v6267 = vadd.f32 %v6251, %v6139
    %v6268 = vadd.f32 %v6252, %v6140
    %v6269 = vadd.f32 %v6253, %v6141
    %v6270 = vadd.f32 %v6254, %v6142
    %v6271 = vadd.f32 %v6255, %v6143
    %v6272 = vadd.f32 %v6256, %v6144
    %v6273 = vadd.f32 %v6257, %v6145
    %v6274 = vadd.f32 %v6258, %v6146
    %v6275 = vadd.f32 %v6259, %v6147
    %v6276 = vadd.f32 %v6260, %v6148
    %v6277 = vadd.f32 %v6261, %v6149
    %v6278 = vadd.f32 %v6262, %v6150
    %v6279 = vadd.f32 %v6263, %v6151
    %v6280 = vadd.f32 %v6264, %v6152
    %v6281 = vadd.f32 %v6265, %v6153
    %v6282 = vadd.f32 %v6266, %v6154
    %v6283 = vadd.f32 %v6267, %v6155
    %v6284 = vadd.f32 %v6268, %v6156
    %v6285 = vadd.f32 %v6269, %v6157
    %v6286 = vadd.f32 %v6270, %v6158
    %v6287 = vadd.f32 %v6271, %v6159
    %v6288 = vadd.f32 %v6272, %v6160
    %v6289 = vadd.f32 %v6273, %v6161
    %v6290 = vadd.f32 %v6274, %v6162
    %v6291 = vadd.f32 %v6275, %v6163
    %v6292 = vadd.f32 %v6276, %v6164
    %v6293 = vadd.f32 %v6277, %v6165
    %v6294 = vadd.f32 %v6278, %v6166
    %v6295 = vadd.f32 %v6279, %v6167
    %v6296 = vadd.f32 %v6280, %v6168
    %v6297 = vadd.f32 %v6281, %v6169
    %v6298 = vadd.f32 %v6282, %v6170
    %v6299 = vadd.f32 %v6283, %v6171
    %v6300 = vadd.f32 %v6284, %v6172
    %v6301 = vadd.f32 %v6285, %v6173
    %v6302 = vadd.f32 %v6286, %v6174
    %v6303 = vadd.f32 %v6287, %v6175
    %v6304 = vadd.f32 %v6288, %v6176
    %v6305 = vadd.f32 %v6289, %v6177
    %v6306 = vadd.f32 %v6290, %v6178
    %v6307 = vadd.f32 %v6291, %v6179
    %v6308 = vadd.f32 %v6292, %v6180
    %v6309 = vadd.f32 %v6293, %v6181
    %v6310 = vadd.f32 %v6294, %v6182
    %v6311 = vadd.f32 %v6295, %v6183
    %v6312 = vadd.f32 %v6296, %v6184
    %v6313 = vadd.f32 %v6297, %v6185
    %v6314 = vadd.f32 %v6298, %v6186
    %v6315 = vadd.f32 %v6299, %v6187
    %v6316 = vadd.f32 %v6300, %v6188
    %v6317 = vadd.f32 %v6301, %v6189
    %v6318 = vadd.f32 %v6302, %v6190
    %v6319 = vadd.f32 %v6303, %v6191
    %v6320 = vadd.f32 %v6304, %v6192
    %v6321 = vadd.f32 %v6305, %v6193
    %v6322 = vadd.f32 %v6306, %v6194
    %v6323 = vadd.f32 %v6307, %v6195
    %v6324 = vadd.f32 %v6308, %v6196
    %v6325 = vadd.f32 %v6309, %v6197
    %v6326 = vadd.f32 %v6310, %v6198
    %v6327 = vadd.f32 %v6311, %v6199
    %v6328 = vadd.f32 %v6312, %v6200
    %v6329 = vadd.f32 %v6313, %v6201
    %v6330 = vadd.f32 %v6314, %v6202
    %v6331 = vadd.f32 %v6315, %v6203
    %v6332 = vadd.f32 %v6316, %v6204
    %v6333 = vadd.f32 %v6317, %v6205
    %v6334 = vadd.f32 %v6318, %v6206
    %v6335 = vadd.f32 %v6319, %v6207
    %v6336 = vadd.f32 %v6320, %v6208
    %v6337 = vadd.f32 %v6321, %v6209
    %v6338 = vadd.f32 %v6322, %v6210
    %v6339 = vadd.f32 %v6323, %v6211
    %v6340 = vadd.f32 %v6324, %v6212
    %v6341 = vadd.f32 %v6325, %v6213
    %v6342 = vadd.f32 %v6326, %v6214
    %v6343 = vadd.f32 %v6327, %v6215
    %v6344 = vadd.f32 %v6328, %v6216
    %v6345 = vadd.f32 %v6329, %v6217
    %v6346 = vadd.f32 %v6330, %v6218
    %v6347 = vadd.f32 %v6331, %v6219
    %v6348 = vadd.f32 %v6332, %v6220
    %v6349 = vadd.f32 %v6333, %v6221
    %v6350 = vadd.f32 %v6334, %v6222
    %v6351 = vadd.f32 %v6335, %v6223
    %v6352 = vadd.f32 %v6336, %v6224
    %v6353 = vadd.f32 %v6337, %v6225
    %v6354 = vadd.f32 %v6338, %v6226
    %v6355 = vadd.f32 %v6339, %v6227
    %v6356 = vadd.f32 %v6340, %v6228
    %v6357 = vadd.f32 %v6341, %v6229
    %v6358 = vadd.f32 %v6342, %v6230
    %v6359 = vld [vmem:[%s4 + $0x10] sm:$0x1]
    %v6360 = vlaneseq
    %v6361 = vshrl.u32 %v6360, 7
    %v6362 = vsub.s32 0, %v6361
    %v6363 = vrot.slane %v6359, %v6362
    %v6364 = vadd.f32 %v6343, %v6363
    %v6365 = vadd.f32 %v6344, %v6363
    %v6366 = vadd.f32 %v6345, %v6363
    %v6367 = vadd.f32 %v6346, %v6363
    %v6368 = vadd.f32 %v6347, %v6363
    %v6369 = vadd.f32 %v6348, %v6363
    %v6370 = vadd.f32 %v6349, %v6363
    %v6371 = vadd.f32 %v6350, %v6363
    %v6372 = vadd.f32 %v6351, %v6363
    %v6373 = vadd.f32 %v6352, %v6363
    %v6374 = vadd.f32 %v6353, %v6363
    %v6375 = vadd.f32 %v6354, %v6363
    %v6376 = vadd.f32 %v6355, %v6363
    %v6377 = vadd.f32 %v6356, %v6363
    %v6378 = vadd.f32 %v6357, %v6363
    %v6379 = vadd.f32 %v6358, %v6363
    %v6380 = vmax.f32 %v6364, 0.0
    %v6381 = vmax.f32 %v6365, 0.0
    %v6382 = vmax.f32 %v6366, 0.0
    %v6383 = vmax.f32 %v6367, 0.0
    %v6384 = vmax.f32 %v6368, 0.0
    %v6385 = vmax.f32 %v6369, 0.0
    %v6386 = vmax.f32 %v6370, 0.0
    %v6387 = vmax.f32 %v6371, 0.0
    %v6388 = vmax.f32 %v6372, 0.0
    %v6389 = vmax.f32 %v6373, 0.0
    %v6390 = vmax.f32 %v6374, 0.0
    %v6391 = vmax.f32 %v6375, 0.0
    %v6392 = vmax.f32 %v6376, 0.0
    %v6393 = vmax.f32 %v6377, 0.0
    %v6394 = vmax.f32 %v6378, 0.0
    %v6395 = vmax.f32 %v6379, 0.0
    %v6396 = vmin.f32 %v6380, 6.0
    %v6397 = vmin.f32 %v6381, 6.0
    %v6398 = vmin.f32 %v6382, 6.0
    %v6399 = vmin.f32 %v6383, 6.0
    %v6400 = vmin.f32 %v6384, 6.0
    %v6401 = vmin.f32 %v6385, 6.0
    %v6402 = vmin.f32 %v6386, 6.0
    %v6403 = vmin.f32 %v6387, 6.0
    %v6404 = vmin.f32 %v6388, 6.0
    %v6405 = vmin.f32 %v6389, 6.0
    %v6406 = vmin.f32 %v6390, 6.0
    %v6407 = vmin.f32 %v6391, 6.0
    %v6408 = vmin.f32 %v6392, 6.0
    %v6409 = vmin.f32 %v6393, 6.0
    %v6410 = vmin.f32 %v6394, 6.0
    %v6411 = vmin.f32 %v6395, 6.0
    %v6412 = vld [vmem:[%s3 + $0x268] sm:$0xf]
    %v6413 = vld [vmem:[%s3 + $0x26c] sm:$0xf]
    %v6414 = vpack.c.bf16 %v6397, %v6396
    %v6415 = vpack.c.bf16 %v6399, %v6398
    %v6416 = vpack.c.bf16 %v6401, %v6400
    %v6417 = vpack.c.bf16 %v6403, %v6402
    %v6418 = vpack.c.bf16 %v6405, %v6404
    %v6419 = vpack.c.bf16 %v6407, %v6406
    %v6420 = vpack.c.bf16 %v6409, %v6408
    %v6421 = vpack.c.bf16 %v6411, %v6410
    %v6422 = vld [vmem:[%s4 + $0x18] sm:$0x1]
    %v6423 = vlaneseq
    %v6424 = vshrl.u32 %v6423, 7
    %v6425 = vsub.s32 0, %v6424
    %v6426 = vrot.slane %v6422, %v6425
    %v6429 = vunpack.c.l.b16 %v6412
    %v6430 = vunpack.c.l.b16 %v6413
    %v6431 = vpack.c.b16 %v6430, %v6429
    %vm6433 = vcmask 130048
    %v6435 = vsel %vm6433, %v6414, 0
    %v6438 = vsel %vm6433, %v6415, 0
    %v6441 = vsel %vm6433, %v6416, 0
    %v6444 = vsel %vm6433, %v6417, 0
    %v6447 = vsel %vm6433, %v6418, 0
    %v6450 = vsel %vm6433, %v6419, 0
    %v6453 = vsel %vm6433, %v6420, 0
    %v6456 = vsel %vm6433, %v6421, 0
    %6458 = vmatprep.subr.bf16.mxu0 0
    %6459 = vmatpush1.bf16.msra.mxu0 %v6431
    %6460 = vmatprep.subr.bf16.mxu0 0
    %6461 = vmatpush1.bf16.msra.mxu0 0
    %6462 = vmatprep.subr.bf16.mxu0 0
    %6463 = vmatpush1.bf16.msra.mxu0 0
    %6464 = vmatprep.subr.bf16.mxu0 0
    %6465 = vmatpush1.bf16.msra.mxu0 0
    %6466 = vmatprep.subr.bf16.mxu0 0
    %6467 = vmatpush1.bf16.msra.mxu0 0
    %6468 = vmatprep.subr.bf16.mxu0 0
    %6469 = vmatpush1.bf16.msra.mxu0 0
    %6470 = vmatprep.subr.bf16.mxu0 0
    %6471 = vmatpush1.bf16.msra.mxu0 0
    %6472 = vmatprep.subr.bf16.mxu0 0
    %6473 = vmatpush1.bf16.msra.mxu0 0
    %6474 = vmatprep.subr.bf16.mxu0 0
    %6475 = vmatpush1.bf16.msra.mxu0 0
    %6476 = vmatprep.subr.bf16.mxu0 0
    %6477 = vmatpush1.bf16.msra.mxu0 0
    %6478 = vmatprep.subr.bf16.mxu0 0
    %6479 = vmatpush1.bf16.msra.mxu0 0
    %6480 = vmatprep.subr.bf16.mxu0 0
    %6481 = vmatpush1.bf16.msra.mxu0 0
    %6482 = vmatprep.subr.bf16.mxu0 0
    %6483 = vmatpush1.bf16.msra.mxu0 0
    %6484 = vmatprep.subr.bf16.mxu0 0
    %6485 = vmatpush1.bf16.msra.mxu0 0
    %6486 = vmatprep.subr.bf16.mxu0 0
    %6487 = vmatpush1.bf16.msra.mxu0 0
    %6488 = vmatprep.subr.bf16.mxu0 0
    %6489 = vmatpush1.bf16.msra.mxu0 0
    %6490 = vmatprep.mubr.bf16.mxu0 0
    %6491 = vmatmul.mubr.bf16.gmra.mrb[0].mxu0 %v6435
    %v6492 = vpop.f32.mrb[0].mxu0
    %v6493 = vadd.f32 %v6426, %v6492
    %v6494 = vpop.f32.mrb[0].mxu0
    %v6495 = vpop.f32.mrb[0].mxu0
    %v6496 = vadd.f32 %v6426, %v6495
    %v6497 = vpop.f32.mrb[0].mxu0
    %6498 = vmatprep.mubr.bf16.mxu0 0
    %6499 = vmatmul.mubr.bf16.gmra.mrb[0].mxu0 %v6438
    %v6500 = vpop.f32.mrb[0].mxu0
    %v6501 = vadd.f32 %v6426, %v6500
    %v6502 = vpop.f32.mrb[0].mxu0
    %v6503 = vpop.f32.mrb[0].mxu0
    %v6504 = vadd.f32 %v6426, %v6503
    %v6505 = vpop.f32.mrb[0].mxu0
    %6506 = vmatprep.mubr.bf16.mxu0 0
    %6507 = vmatmul.mubr.bf16.gmra.mrb[0].mxu0 %v6441
    %v6508 = vpop.f32.mrb[0].mxu0
    %v6509 = vadd.f32 %v6426, %v6508
    %v6510 = vpop.f32.mrb[0].mxu0
    %v6511 = vpop.f32.mrb[0].mxu0
    %v6512 = vadd.f32 %v6426, %v6511
    %v6513 = vpop.f32.mrb[0].mxu0
    %6514 = vmatprep.mubr.bf16.mxu0 0
    %6515 = vmatmul.mubr.bf16.gmra.mrb[0].mxu0 %v6444
    %v6516 = vpop.f32.mrb[0].mxu0
    %v6517 = vadd.f32 %v6426, %v6516
    %v6518 = vpop.f32.mrb[0].mxu0
    %v6519 = vpop.f32.mrb[0].mxu0
    %v6520 = vadd.f32 %v6426, %v6519
    %v6521 = vpop.f32.mrb[0].mxu0
    %6522 = vmatprep.mubr.bf16.mxu0 0
    %6523 = vmatmul.mubr.bf16.gmra.mrb[0].mxu0 %v6447
    %v6524 = vpop.f32.mrb[0].mxu0
    %v6525 = vadd.f32 %v6426, %v6524
    %v6526 = vpop.f32.mrb[0].mxu0
    %v6527 = vpop.f32.mrb[0].mxu0
    %v6528 = vadd.f32 %v6426, %v6527
    %v6529 = vpop.f32.mrb[0].mxu0
    %6530 = vmatprep.mubr.bf16.mxu0 0
    %6531 = vmatmul.mubr.bf16.gmra.mrb[0].mxu0 %v6450
    %v6532 = vpop.f32.mrb[0].mxu0
    %v6533 = vadd.f32 %v6426, %v6532
    %v6534 = vpop.f32.mrb[0].mxu0
    %v6535 = vpop.f32.mrb[0].mxu0
    %v6536 = vadd.f32 %v6426, %v6535
    %v6537 = vpop.f32.mrb[0].mxu0
    %6538 = vmatprep.mubr.bf16.mxu0 0
    %6539 = vmatmul.mubr.bf16.gmra.mrb[0].mxu0 %v6453
    %v6540 = vpop.f32.mrb[0].mxu0
    %v6541 = vadd.f32 %v6426, %v6540
    %v6542 = vpop.f32.mrb[0].mxu0
    %v6543 = vpop.f32.mrb[0].mxu0
    %v6544 = vadd.f32 %v6426, %v6543
    %v6545 = vpop.f32.mrb[0].mxu0
    %6546 = vmatprep.mubr.bf16.mxu0 0
    %6547 = vmatmul.mubr.bf16.gmra.mrb[0].mxu0 %v6456
    %v6548 = vpop.f32.mrb[0].mxu0
    %v6549 = vadd.f32 %v6426, %v6548
    %v6550 = vpop.f32.mrb[0].mxu0
    %v6551 = vpop.f32.mrb[0].mxu0
    %v6552 = vadd.f32 %v6426, %v6551
    %v6553 = vpop.f32.mrb[0].mxu0
    %6554 = vdwg.mxu0
    %v6555 = vadd.f32 %v6493, %v4418
    %v6556 = vadd.f32 %v6496, %v4419
    %v6557 = vadd.f32 %v6501, %v4420
    %v6558 = vadd.f32 %v6504, %v4421
    %v6559 = vadd.f32 %v6509, %v4422
    %v6560 = vadd.f32 %v6512, %v4423
    %v6561 = vadd.f32 %v6517, %v4424
    %v6562 = vadd.f32 %v6520, %v4425
    %v6563 = vadd.f32 %v6525, %v4426
    %v6564 = vadd.f32 %v6528, %v4427
    %v6565 = vadd.f32 %v6533, %v4428
    %v6566 = vadd.f32 %v6536, %v4429
    %v6567 = vadd.f32 %v6541, %v4430
    %v6568 = vadd.f32 %v6544, %v4431
    %v6569 = vadd.f32 %v6549, %v4432
    %v6570 = vadd.f32 %v6552, %v4433
    %v6571 = vld [vmem:[%s3 + $0x270] sm:$0xf]
    %v6572 = vpack.c.bf16 %v6556, %v6555
    %v6573 = vpack.c.bf16 %v6558, %v6557
    %v6574 = vpack.c.bf16 %v6560, %v6559
    %v6575 = vpack.c.bf16 %v6562, %v6561
    %v6576 = vpack.c.bf16 %v6564, %v6563
    %v6577 = vpack.c.bf16 %v6566, %v6565
    %v6578 = vpack.c.bf16 %v6568, %v6567
    %v6579 = vpack.c.bf16 %v6570, %v6569
    %v6580 = vld [vmem:[%s4 + $0x20] sm:$0x1]
    %v6581 = vlaneseq
    %v6582 = vshrl.u32 %v6581, 7
    %v6583 = vsub.s32 0, %v6582
    %v6584 = vrot.slane %v6580, %v6583
    %v6586 = vsel %vm4448, %v6572, 0
    %v6589 = vsel %vm4448, %v6573, 0
    %v6592 = vsel %vm4448, %v6574, 0
    %v6595 = vsel %vm4448, %v6575, 0
    %v6598 = vsel %vm4448, %v6576, 0
    %v6601 = vsel %vm4448, %v6577, 0
    %v6604 = vsel %vm4448, %v6578, 0
    %v6607 = vsel %vm4448, %v6579, 0
    %v6610 = vsel %vm4473, %v6571, 0
    %6612 = vmatprep.subr.bf16.mxu0 0
    %6613 = vmatpush1.bf16.msra.mxu0 %v6610
    %6614 = vmatprep.subr.bf16.mxu0 0
    %6615 = vmatpush1.bf16.msra.mxu0 0
    %6616 = vmatprep.subr.bf16.mxu0 0
    %6617 = vmatpush1.bf16.msra.mxu0 0
    %6618 = vmatprep.subr.bf16.mxu0 0
    %6619 = vmatpush1.bf16.msra.mxu0 0
    %6620 = vmatprep.subr.bf16.mxu0 0
    %6621 = vmatpush1.bf16.msra.mxu0 0
    %6622 = vmatprep.subr.bf16.mxu0 0
    %6623 = vmatpush1.bf16.msra.mxu0 0
    %6624 = vmatprep.subr.bf16.mxu0 0
    %6625 = vmatpush1.bf16.msra.mxu0 0
    %6626 = vmatprep.subr.bf16.mxu0 0
    %6627 = vmatpush1.bf16.msra.mxu0 0
    %6628 = vmatprep.subr.bf16.mxu0 0
    %6629 = vmatpush1.bf16.msra.mxu0 0
    %6630 = vmatprep.subr.bf16.mxu0 0
    %6631 = vmatpush1.bf16.msra.mxu0 0
    %6632 = vmatprep.subr.bf16.mxu0 0
    %6633 = vmatpush1.bf16.msra.mxu0 0
    %6634 = vmatprep.subr.bf16.mxu0 0
    %6635 = vmatpush1.bf16.msra.mxu0 0
    %6636 = vmatprep.subr.bf16.mxu0 0
    %6637 = vmatpush1.bf16.msra.mxu0 0
    %6638 = vmatprep.subr.bf16.mxu0 0
    %6639 = vmatpush1.bf16.msra.mxu0 0
    %6640 = vmatprep.subr.bf16.mxu0 0
    %6641 = vmatpush1.bf16.msra.mxu0 0
    %6642 = vmatprep.subr.bf16.mxu0 0
    %6643 = vmatpush1.bf16.msra.mxu0 0
    %6644 = vmatprep.mubr.bf16.mxu0 0
    %6645 = vmatmul.mubr.bf16.gmra.mrb[0].mxu0 %v6586
    %v6646 = vpop.f32.mrb[0].mxu0
    %v6647 = vadd.f32 %v6584, %v6646
    %v6648 = vpop.f32.mrb[0].mxu0
    %v6649 = vpop.f32.mrb[0].mxu0
    %v6650 = vadd.f32 %v6584, %v6649
    %v6651 = vpop.f32.mrb[0].mxu0
    %6652 = vmatprep.mubr.bf16.mxu0 0
    %6653 = vmatmul.mubr.bf16.gmra.mrb[0].mxu0 %v6589
    %v6654 = vpop.f32.mrb[0].mxu0
    %v6655 = vadd.f32 %v6584, %v6654
    %v6656 = vpop.f32.mrb[0].mxu0
    %v6657 = vpop.f32.mrb[0].mxu0
    %v6658 = vadd.f32 %v6584, %v6657
    %v6659 = vpop.f32.mrb[0].mxu0
    %6660 = vmatprep.mubr.bf16.mxu0 0
    %6661 = vmatmul.mubr.bf16.gmra.mrb[0].mxu0 %v6592
    %v6662 = vpop.f32.mrb[0].mxu0
    %v6663 = vadd.f32 %v6584, %v6662
    %v6664 = vpop.f32.mrb[0].mxu0
    %v6665 = vpop.f32.mrb[0].mxu0
    %v6666 = vadd.f32 %v6584, %v6665
    %v6667 = vpop.f32.mrb[0].mxu0
    %6668 = vmatprep.mubr.bf16.mxu0 0
    %6669 = vmatmul.mubr.bf16.gmra.mrb[0].mxu0 %v6595
    %v6670 = vpop.f32.mrb[0].mxu0
    %v6671 = vadd.f32 %v6584, %v6670
    %v6672 = vpop.f32.mrb[0].mxu0
    %v6673 = vpop.f32.mrb[0].mxu0
    %v6674 = vadd.f32 %v6584, %v6673
    %v6675 = vpop.f32.mrb[0].mxu0
    %6676 = vmatprep.mubr.bf16.mxu0 0
    %6677 = vmatmul.mubr.bf16.gmra.mrb[0].mxu0 %v6598
    %v6678 = vpop.f32.mrb[0].mxu0
    %v6679 = vadd.f32 %v6584, %v6678
    %v6680 = vpop.f32.mrb[0].mxu0
    %v6681 = vpop.f32.mrb[0].mxu0
    %v6682 = vadd.f32 %v6584, %v6681
    %v6683 = vpop.f32.mrb[0].mxu0
    %6684 = vmatprep.mubr.bf16.mxu0 0
    %6685 = vmatmul.mubr.bf16.gmra.mrb[0].mxu0 %v6601
    %v6686 = vpop.f32.mrb[0].mxu0
    %v6687 = vadd.f32 %v6584, %v6686
    %v6688 = vpop.f32.mrb[0].mxu0
    %v6689 = vpop.f32.mrb[0].mxu0
    %v6690 = vadd.f32 %v6584, %v6689
    %v6691 = vpop.f32.mrb[0].mxu0
    %6692 = vmatprep.mubr.bf16.mxu0 0
    %6693 = vmatmul.mubr.bf16.gmra.mrb[0].mxu0 %v6604
    %v6694 = vpop.f32.mrb[0].mxu0
    %v6695 = vadd.f32 %v6584, %v6694
    %v6696 = vpop.f32.mrb[0].mxu0
    %v6697 = vpop.f32.mrb[0].mxu0
    %v6698 = vadd.f32 %v6584, %v6697
    %v6699 = vpop.f32.mrb[0].mxu0
    %6700 = vmatprep.mubr.bf16.mxu0 0
    %6701 = vmatmul.mubr.bf16.gmra.mrb[0].mxu0 %v6607
    %v6702 = vpop.f32.mrb[0].mxu0
    %v6703 = vadd.f32 %v6584, %v6702
    %v6704 = vpop.f32.mrb[0].mxu0
    %v6705 = vpop.f32.mrb[0].mxu0
    %v6706 = vadd.f32 %v6584, %v6705
    %v6707 = vpop.f32.mrb[0].mxu0
    %6708 = vdwg.mxu0
    %v6709 = vmax.f32 %v6647, 0.0
    %v6710 = vmax.f32 %v6650, 0.0
    %v6711 = vmax.f32 %v6655, 0.0
    %v6712 = vmax.f32 %v6658, 0.0
    %v6713 = vmax.f32 %v6663, 0.0
    %v6714 = vmax.f32 %v6666, 0.0
    %v6715 = vmax.f32 %v6671, 0.0
    %v6716 = vmax.f32 %v6674, 0.0
    %v6717 = vmax.f32 %v6679, 0.0
    %v6718 = vmax.f32 %v6682, 0.0
    %v6719 = vmax.f32 %v6687, 0.0
    %v6720 = vmax.f32 %v6690, 0.0
    %v6721 = vmax.f32 %v6695, 0.0
    %v6722 = vmax.f32 %v6698, 0.0
    %v6723 = vmax.f32 %v6703, 0.0
    %v6724 = vmax.f32 %v6706, 0.0
    %v6725 = vmin.f32 %v6709, 6.0
    %v6726 = vmin.f32 %v6710, 6.0
    %v6727 = vmin.f32 %v6711, 6.0
    %v6728 = vmin.f32 %v6712, 6.0
    %v6729 = vmin.f32 %v6713, 6.0
    %v6730 = vmin.f32 %v6714, 6.0
    %v6731 = vmin.f32 %v6715, 6.0
    %v6732 = vmin.f32 %v6716, 6.0
    %v6733 = vmin.f32 %v6717, 6.0
    %v6734 = vmin.f32 %v6718, 6.0
    %v6735 = vmin.f32 %v6719, 6.0
    %v6736 = vmin.f32 %v6720, 6.0
    %v6737 = vmin.f32 %v6721, 6.0
    %v6738 = vmin.f32 %v6722, 6.0
    %v6739 = vmin.f32 %v6723, 6.0
    %v6740 = vmin.f32 %v6724, 6.0
    %v6741 = vld [vmem:[%s2 + $0x240] sm:$0xf]
    %v6742 = vld [vmem:[%s2 + $0x244] sm:$0xf]
    %v6743 = vld [vmem:[%s2 + $0x248] sm:$0xf]
    %v6744 = vld [vmem:[%s2 + $0x24c] sm:$0xf]
    %v6745 = vld [vmem:[%s2 + $0x250] sm:$0xf]
    %v6746 = vld [vmem:[%s2 + $0x254] sm:$0xf]
    %v6747 = vld [vmem:[%s2 + $0x258] sm:$0xf]
    %v6748 = vld [vmem:[%s2 + $0x25c] sm:$0xf]
    %v6749 = vld [vmem:[%s2 + $0x260] sm:$0xf]
    %v6750 = vld [vmem:[%s2 + $0x264] sm:$0xf]
    %v6751 = vld [vmem:[%s2 + $0x268] sm:$0xf]
    %v6752 = vld [vmem:[%s2 + $0x26c] sm:$0xf]
    %v6753 = vld [vmem:[%s2 + $0x270] sm:$0xf]
    %v6754 = vld [vmem:[%s2 + $0x274] sm:$0xf]
    %v6755 = vld [vmem:[%s2 + $0x278] sm:$0xf]
    %v6756 = vld [vmem:[%s2 + $0x27c] sm:$0xf]
    %v6757 = vld [vmem:[%s2 + $0x280] sm:$0xf]
    %v6758 = vld [vmem:[%s2 + $0x284] sm:$0xf]
    %v6759 = vld [vmem:[%s2 + $0x288] sm:$0xf]
    %v6760 = vld [vmem:[%s2 + $0x28c] sm:$0xf]
    %v6761 = vld [vmem:[%s2 + $0x290] sm:$0xf]
    %v6762 = vld [vmem:[%s2 + $0x294] sm:$0xf]
    %v6763 = vld [vmem:[%s2 + $0x298] sm:$0xf]
    %v6764 = vld [vmem:[%s2 + $0x29c] sm:$0xf]
    %v6765 = vld [vmem:[%s2 + $0x2a0] sm:$0xf]
    %v6766 = vld [vmem:[%s2 + $0x2a4] sm:$0xf]
    %v6767 = vld [vmem:[%s2 + $0x2a8] sm:$0xf]
    %v6768 = vld [vmem:[%s2 + $0x2ac] sm:$0xf]
    %v6769 = vld [vmem:[%s2 + $0x2b0] sm:$0xf]
    %v6770 = vld [vmem:[%s2 + $0x2b4] sm:$0xf]
    %v6771 = vld [vmem:[%s2 + $0x2b8] sm:$0xf]
    %v6772 = vld [vmem:[%s2 + $0x2bc] sm:$0xf]
    %v6773 = vld [vmem:[%s2 + $0x2c0] sm:$0xf]
    %v6774 = vld [vmem:[%s2 + $0x2c4] sm:$0xf]
    %v6775 = vld [vmem:[%s2 + $0x2c8] sm:$0xf]
    %v6776 = vld [vmem:[%s2 + $0x2cc] sm:$0xf]
    %v6777 = vpack.c.bf16 %v6726, %v6725
    %v6778 = vpack.c.bf16 %v6728, %v6727
    %v6779 = vpack.c.bf16 %v6730, %v6729
    %v6780 = vpack.c.bf16 %v6732, %v6731
    %v6781 = vpack.c.bf16 %v6734, %v6733
    %v6782 = vpack.c.bf16 %v6736, %v6735
    %v6783 = vpack.c.bf16 %v6738, %v6737
    %v6784 = vpack.c.bf16 %v6740, %v6739
    %v6821 = vunpack.c.l.b16 %v6741
    %v6822 = vunpack.c.l.b16 %v6742
    %v6823 = vunpack.c.l.b16 %v6743
    %v6824 = vunpack.c.l.b16 %v6744
    %v6825 = vunpack.c.l.b16 %v6745
    %v6826 = vunpack.c.l.b16 %v6746
    %v6827 = vunpack.c.l.b16 %v6747
    %v6828 = vunpack.c.l.b16 %v6748
    %v6829 = vunpack.c.l.b16 %v6749
    %v6830 = vunpack.c.l.b16 %v6750
    %v6831 = vunpack.c.l.b16 %v6751
    %v6832 = vunpack.c.l.b16 %v6752
    %v6833 = vunpack.c.l.b16 %v6753
    %v6834 = vunpack.c.l.b16 %v6754
    %v6835 = vunpack.c.l.b16 %v6755
    %v6836 = vunpack.c.l.b16 %v6756
    %v6837 = vunpack.c.l.b16 %v6757
    %v6838 = vunpack.c.l.b16 %v6758
    %v6839 = vunpack.c.l.b16 %v6759
    %v6840 = vunpack.c.l.b16 %v6760
    %v6841 = vunpack.c.l.b16 %v6761
    %v6842 = vunpack.c.l.b16 %v6762
    %v6843 = vunpack.c.l.b16 %v6763
    %v6844 = vunpack.c.l.b16 %v6764
    %v6845 = vunpack.c.l.b16 %v6765
    %v6846 = vunpack.c.l.b16 %v6766
    %v6847 = vunpack.c.l.b16 %v6767
    %v6848 = vunpack.c.l.b16 %v6768
    %v6849 = vunpack.c.l.b16 %v6769
    %v6850 = vunpack.c.l.b16 %v6770
    %v6851 = vunpack.c.l.b16 %v6771
    %v6852 = vunpack.c.l.b16 %v6772
    %v6853 = vunpack.c.l.b16 %v6773
    %v6854 = vunpack.c.l.b16 %v6774
    %v6855 = vunpack.c.l.b16 %v6775
    %v6856 = vunpack.c.l.b16 %v6776
    %v6857 = vpack.c.b16 %v6822, %v6821
    %v6858 = vpack.c.b16 %v6824, %v6823
    %v6859 = vpack.c.b16 %v6826, %v6825
    %v6860 = vpack.c.b16 %v6828, %v6827
    %v6861 = vpack.c.b16 %v6830, %v6829
    %v6862 = vpack.c.b16 %v6832, %v6831
    %v6863 = vpack.c.b16 %v6834, %v6833
    %v6864 = vpack.c.b16 %v6836, %v6835
    %v6865 = vpack.c.b16 %v6838, %v6837
    %v6866 = vpack.c.b16 %v6840, %v6839
    %v6867 = vpack.c.b16 %v6842, %v6841
    %v6868 = vpack.c.b16 %v6844, %v6843
    %v6869 = vpack.c.b16 %v6846, %v6845
    %v6870 = vpack.c.b16 %v6848, %v6847
    %v6871 = vpack.c.b16 %v6850, %v6849
    %v6872 = vpack.c.b16 %v6852, %v6851
    %v6873 = vpack.c.b16 %v6854, %v6853
    %v6874 = vpack.c.b16 %v6856, %v6855
    %6893 = vmatprep.subr.bf16.mxu0 0
    %6894 = vmatpush1.bf16.msra.mxu0 %v6777
    %6895 = vmatprep.subr.bf16.mxu0 0
    %6896 = vmatpush1.bf16.msra.mxu0 %v6778
    %6897 = vmatprep.subr.bf16.mxu0 0
    %6898 = vmatpush1.bf16.msra.mxu0 %v6779
    %6899 = vmatprep.subr.bf16.mxu0 0
    %6900 = vmatpush1.bf16.msra.mxu0 %v6780
    %6901 = vmatprep.subr.bf16.mxu0 0
    %6902 = vmatpush1.bf16.msra.mxu0 %v6781
    %6903 = vmatprep.subr.bf16.mxu0 0
    %6904 = vmatpush1.bf16.msra.mxu0 %v6782
    %6905 = vmatprep.subr.bf16.mxu0 0
    %6906 = vmatpush1.bf16.msra.mxu0 %v6783
    %6907 = vmatprep.subr.bf16.mxu0 0
    %6908 = vmatpush1.bf16.msra.mxu0 %v6784
    %6909 = vmatprep.subr.bf16.mxu0 0
    %6910 = vmatpush1.bf16.msra.mxu0 0
    %6911 = vmatprep.subr.bf16.mxu0 0
    %6912 = vmatpush1.bf16.msra.mxu0 0
    %6913 = vmatprep.subr.bf16.mxu0 0
    %6914 = vmatpush1.bf16.msra.mxu0 0
    %6915 = vmatprep.subr.bf16.mxu0 0
    %6916 = vmatpush1.bf16.msra.mxu0 0
    %6917 = vmatprep.subr.bf16.mxu0 0
    %6918 = vmatpush1.bf16.msra.mxu0 0
    %6919 = vmatprep.subr.bf16.mxu0 0
    %6920 = vmatpush1.bf16.msra.mxu0 0
    %6921 = vmatprep.subr.bf16.mxu0 0
    %6922 = vmatpush1.bf16.msra.mxu0 0
    %6923 = vmatprep.subr.bf16.mxu0 0
    %6924 = vmatpush1.bf16.msra.mxu0 0
    %6925 = vmatprep.mubr.bf16.mxu0 0
    %6926 = vmatmul.mubr.bf16.gmra.mrb[0].mxu0 %v6857
    %v6927 = vpop.f32.mrb[0].mxu0
    %v6928 = vadd.f32 0.0, %v6927
    %v6929 = vpop.f32.mrb[0].mxu0
    %v6930 = vpop.f32.mrb[0].mxu0
    %v6931 = vadd.f32 0.0, %v6930
    %v6932 = vpop.f32.mrb[0].mxu0
    %6933 = vmatprep.mubr.bf16.mxu0 0
    %6934 = vmatmul.mubr.bf16.gmra.mrb[0].mxu0 %v6858
    %v6935 = vpop.f32.mrb[0].mxu0
    %v6936 = vadd.f32 0.0, %v6935
    %v6937 = vpop.f32.mrb[0].mxu0
    %v6938 = vpop.f32.mrb[0].mxu0
    %v6939 = vadd.f32 0.0, %v6938
    %v6940 = vpop.f32.mrb[0].mxu0
    %6941 = vmatprep.mubr.bf16.mxu0 0
    %6942 = vmatmul.mubr.bf16.gmra.mrb[0].mxu0 %v6859
    %v6943 = vpop.f32.mrb[0].mxu0
    %v6944 = vadd.f32 0.0, %v6943
    %v6945 = vpop.f32.mrb[0].mxu0
    %v6946 = vpop.f32.mrb[0].mxu0
    %v6947 = vadd.f32 0.0, %v6946
    %v6948 = vpop.f32.mrb[0].mxu0
    %6949 = vmatprep.mubr.bf16.mxu0 0
    %6950 = vmatmul.mubr.bf16.gmra.mrb[0].mxu0 %v6860
    %v6951 = vpop.f32.mrb[0].mxu0
    %v6952 = vadd.f32 0.0, %v6951
    %v6953 = vpop.f32.mrb[0].mxu0
    %v6954 = vpop.f32.mrb[0].mxu0
    %v6955 = vadd.f32 0.0, %v6954
    %v6956 = vpop.f32.mrb[0].mxu0
    %6957 = vmatprep.mubr.bf16.mxu0 0
    %6958 = vmatmul.mubr.bf16.gmra.mrb[0].mxu0 %v6861
    %v6959 = vpop.f32.mrb[0].mxu0
    %v6960 = vadd.f32 0.0, %v6959
    %v6961 = vpop.f32.mrb[0].mxu0
    %v6962 = vpop.f32.mrb[0].mxu0
    %v6963 = vadd.f32 0.0, %v6962
    %v6964 = vpop.f32.mrb[0].mxu0
    %6965 = vmatprep.mubr.bf16.mxu0 0
    %6966 = vmatmul.mubr.bf16.gmra.mrb[0].mxu0 %v6862
    %v6967 = vpop.f32.mrb[0].mxu0
    %v6968 = vadd.f32 0.0, %v6967
    %v6969 = vpop.f32.mrb[0].mxu0
    %v6970 = vpop.f32.mrb[0].mxu0
    %v6971 = vadd.f32 0.0, %v6970
    %v6972 = vpop.f32.mrb[0].mxu0
    %6973 = vmatprep.mubr.bf16.mxu0 0
    %6974 = vmatmul.mubr.bf16.gmra.mrb[0].mxu0 %v6863
    %v6975 = vpop.f32.mrb[0].mxu0
    %v6976 = vadd.f32 0.0, %v6975
    %v6977 = vpop.f32.mrb[0].mxu0
    %v6978 = vpop.f32.mrb[0].mxu0
    %v6979 = vadd.f32 0.0, %v6978
    %v6980 = vpop.f32.mrb[0].mxu0
    %6981 = vmatprep.mubr.bf16.mxu0 0
    %6982 = vmatmul.mubr.bf16.gmra.mrb[0].mxu0 %v6864
    %v6983 = vpop.f32.mrb[0].mxu0
    %v6984 = vadd.f32 0.0, %v6983
    %v6985 = vpop.f32.mrb[0].mxu0
    %v6986 = vpop.f32.mrb[0].mxu0
    %v6987 = vadd.f32 0.0, %v6986
    %v6988 = vpop.f32.mrb[0].mxu0
    %6989 = vmatprep.mubr.bf16.mxu0 0
    %6990 = vmatmul.mubr.bf16.gmra.mrb[0].mxu0 %v6865
    %v6991 = vpop.f32.mrb[0].mxu0
    %v6992 = vadd.f32 0.0, %v6991
    %v6993 = vpop.f32.mrb[0].mxu0
    %v6994 = vpop.f32.mrb[0].mxu0
    %v6995 = vadd.f32 0.0, %v6994
    %v6996 = vpop.f32.mrb[0].mxu0
    %6997 = vmatprep.mubr.bf16.mxu0 0
    %6998 = vmatmul.mubr.bf16.gmra.mrb[0].mxu0 %v6866
    %v6999 = vpop.f32.mrb[0].mxu0
    %v7000 = vadd.f32 0.0, %v6999
    %v7001 = vpop.f32.mrb[0].mxu0
    %v7002 = vpop.f32.mrb[0].mxu0
    %v7003 = vadd.f32 0.0, %v7002
    %v7004 = vpop.f32.mrb[0].mxu0
    %7005 = vmatprep.mubr.bf16.mxu0 0
    %7006 = vmatmul.mubr.bf16.gmra.mrb[0].mxu0 %v6867
    %v7007 = vpop.f32.mrb[0].mxu0
    %v7008 = vadd.f32 0.0, %v7007
    %v7009 = vpop.f32.mrb[0].mxu0
    %v7010 = vpop.f32.mrb[0].mxu0
    %v7011 = vadd.f32 0.0, %v7010
    %v7012 = vpop.f32.mrb[0].mxu0
    %7013 = vmatprep.mubr.bf16.mxu0 0
    %7014 = vmatmul.mubr.bf16.gmra.mrb[0].mxu0 %v6868
    %v7015 = vpop.f32.mrb[0].mxu0
    %v7016 = vadd.f32 0.0, %v7015
    %v7017 = vpop.f32.mrb[0].mxu0
    %v7018 = vpop.f32.mrb[0].mxu0
    %v7019 = vadd.f32 0.0, %v7018
    %v7020 = vpop.f32.mrb[0].mxu0
    %7021 = vmatprep.mubr.bf16.mxu0 0
    %7022 = vmatmul.mubr.bf16.gmra.mrb[0].mxu0 %v6869
    %v7023 = vpop.f32.mrb[0].mxu0
    %v7024 = vadd.f32 0.0, %v7023
    %v7025 = vpop.f32.mrb[0].mxu0
    %v7026 = vpop.f32.mrb[0].mxu0
    %v7027 = vadd.f32 0.0, %v7026
    %v7028 = vpop.f32.mrb[0].mxu0
    %7029 = vmatprep.mubr.bf16.mxu0 0
    %7030 = vmatmul.mubr.bf16.gmra.mrb[0].mxu0 %v6870
    %v7031 = vpop.f32.mrb[0].mxu0
    %v7032 = vadd.f32 0.0, %v7031
    %v7033 = vpop.f32.mrb[0].mxu0
    %v7034 = vpop.f32.mrb[0].mxu0
    %v7035 = vadd.f32 0.0, %v7034
    %v7036 = vpop.f32.mrb[0].mxu0
    %7037 = vmatprep.mubr.bf16.mxu0 0
    %7038 = vmatmul.mubr.bf16.gmra.mrb[0].mxu0 %v6871
    %v7039 = vpop.f32.mrb[0].mxu0
    %v7040 = vadd.f32 0.0, %v7039
    %v7041 = vpop.f32.mrb[0].mxu0
    %v7042 = vpop.f32.mrb[0].mxu0
    %v7043 = vadd.f32 0.0, %v7042
    %v7044 = vpop.f32.mrb[0].mxu0
    %7045 = vmatprep.mubr.bf16.mxu0 0
    %7046 = vmatmul.mubr.bf16.gmra.mrb[0].mxu0 %v6872
    %v7047 = vpop.f32.mrb[0].mxu0
    %v7048 = vadd.f32 0.0, %v7047
    %v7049 = vpop.f32.mrb[0].mxu0
    %v7050 = vpop.f32.mrb[0].mxu0
    %v7051 = vadd.f32 0.0, %v7050
    %v7052 = vpop.f32.mrb[0].mxu0
    %7053 = vmatprep.mubr.bf16.mxu0 0
    %7054 = vmatmul.mubr.bf16.gmra.mrb[0].mxu0 %v6873
    %v7055 = vpop.f32.mrb[0].mxu0
    %v7056 = vadd.f32 0.0, %v7055
    %v7057 = vpop.f32.mrb[0].mxu0
    %v7058 = vpop.f32.mrb[0].mxu0
    %v7059 = vadd.f32 0.0, %v7058
    %v7060 = vpop.f32.mrb[0].mxu0
    %7061 = vmatprep.mubr.bf16.mxu0 0
    %7062 = vmatmul.mubr.bf16.gmra.mrb[0].mxu0 %v6874
    %v7063 = vpop.f32.mrb[0].mxu0
    %v7064 = vadd.f32 0.0, %v7063
    %v7065 = vpop.f32.mrb[0].mxu0
    %v7066 = vpop.f32.mrb[0].mxu0
    %v7067 = vadd.f32 0.0, %v7066
    %v7068 = vpop.f32.mrb[0].mxu0
    %7069 = vdwg.mxu0
    %v7070 = vld [vmem:[%s3 + $0x274] sm:$0xf]
    %v7071 = vld [vmem:[%s3 + $0x278] sm:$0xf]
    %v7072 = vld [vmem:[%s3 + $0x27c] sm:$0xf]
    %v7073 = vld [vmem:[%s3 + $0x280] sm:$0xf]
    %v7074 = vld [vmem:[%s3 + $0x284] sm:$0xf]
    %v7075 = vld [vmem:[%s3 + $0x288] sm:$0xf]
    %v7076 = vld [vmem:[%s3 + $0x28c] sm:$0xf]
    %v7077 = vld [vmem:[%s3 + $0x290] sm:$0xf]
    %v7078 = vld [vmem:[%s3 + $0x294] sm:$0xf]
    %v7079 = vld [vmem:[%s3 + $0x298] sm:$0xf]
    %v7080 = vld [vmem:[%s3 + $0x29c] sm:$0xf]
    %v7081 = vld [vmem:[%s3 + $0x2a0] sm:$0xf]
    %v7082 = vld [vmem:[%s3 + $0x2a4] sm:$0xf]
    %v7083 = vld [vmem:[%s3 + $0x2a8] sm:$0xf]
    %v7084 = vld [vmem:[%s3 + $0x2ac] sm:$0xf]
    %v7085 = vld [vmem:[%s3 + $0x2b0] sm:$0xf]
    %v7086 = vld [vmem:[%s3 + $0x2b4] sm:$0xf]
    %v7087 = vld [vmem:[%s3 + $0x2b8] sm:$0xf]
    %v7088 = vld [vmem:[%s3 + $0x2bc] sm:$0xf]
    %v7089 = vld [vmem:[%s3 + $0x2c0] sm:$0xf]
    %v7090 = vld [vmem:[%s3 + $0x2c4] sm:$0xf]
    %v7091 = vld [vmem:[%s3 + $0x2c8] sm:$0xf]
    %v7092 = vld [vmem:[%s3 + $0x2cc] sm:$0xf]
    %v7093 = vld [vmem:[%s3 + $0x2d0] sm:$0xf]
    %v7094 = vld [vmem:[%s3 + $0x2d4] sm:$0xf]
    %v7095 = vld [vmem:[%s3 + $0x2d8] sm:$0xf]
    %v7096 = vld [vmem:[%s3 + $0x2dc] sm:$0xf]
    %v7097 = vld [vmem:[%s3 + $0x2e0] sm:$0xf]
    %v7098 = vld [vmem:[%s3 + $0x2e4] sm:$0xf]
    %v7099 = vld [vmem:[%s3 + $0x2e8] sm:$0xf]
    %v7100 = vld [vmem:[%s3 + $0x2ec] sm:$0xf]
    %v7101 = vld [vmem:[%s3 + $0x2f0] sm:$0xf]
    %v7102 = vld [vmem:[%s3 + $0x2f4] sm:$0xf]
    %v7103 = vld [vmem:[%s3 + $0x2f8] sm:$0xf]
    %v7104 = vld [vmem:[%s3 + $0x2fc] sm:$0xf]
    %v7105 = vld [vmem:[%s3 + $0x300] sm:$0xf]
    %v7106 = vunpack.c.l.bf16 %v7070
    %v7107 = vunpack.c.l.bf16 %v7071
    %v7108 = vunpack.c.l.bf16 %v7072
    %v7109 = vunpack.c.l.bf16 %v7073
    %v7110 = vunpack.c.l.bf16 %v7074
    %v7111 = vunpack.c.l.bf16 %v7075
    %v7112 = vunpack.c.l.bf16 %v7076
    %v7113 = vunpack.c.l.bf16 %v7077
    %v7114 = vunpack.c.l.bf16 %v7078
    %v7115 = vunpack.c.l.bf16 %v7079
    %v7116 = vunpack.c.l.bf16 %v7080
    %v7117 = vunpack.c.l.bf16 %v7081
    %v7118 = vunpack.c.l.bf16 %v7082
    %v7119 = vunpack.c.l.bf16 %v7083
    %v7120 = vunpack.c.l.bf16 %v7084
    %v7121 = vunpack.c.l.bf16 %v7085
    %v7122 = vunpack.c.l.bf16 %v7086
    %v7123 = vunpack.c.l.bf16 %v7087
    %v7124 = vunpack.c.l.bf16 %v7088
    %v7125 = vunpack.c.l.bf16 %v7089
    %v7126 = vunpack.c.l.bf16 %v7090
    %v7127 = vunpack.c.l.bf16 %v7091
    %v7128 = vunpack.c.l.bf16 %v7092
    %v7129 = vunpack.c.l.bf16 %v7093
    %v7130 = vunpack.c.l.bf16 %v7094
    %v7131 = vunpack.c.l.bf16 %v7095
    %v7132 = vunpack.c.l.bf16 %v7096
    %v7133 = vunpack.c.l.bf16 %v7097
    %v7134 = vunpack.c.l.bf16 %v7098
    %v7135 = vunpack.c.l.bf16 %v7099
    %v7136 = vunpack.c.l.bf16 %v7100
    %v7137 = vunpack.c.l.bf16 %v7101
    %v7138 = vunpack.c.l.bf16 %v7102
    %v7139 = vunpack.c.l.bf16 %v7103
    %v7140 = vunpack.c.l.bf16 %v7104
    %v7141 = vunpack.c.l.bf16 %v7105
    %v7142 = vmul.f32 %v6928, %v7106
    %v7143 = vmul.f32 %v6931, %v7107
    %v7144 = vmul.f32 %v6936, %v7108
    %v7145 = vmul.f32 %v6939, %v7109
    %v7146 = vmul.f32 %v6944, %v7110
    %v7147 = vmul.f32 %v6947, %v7111
    %v7148 = vmul.f32 %v6952, %v7112
    %v7149 = vmul.f32 %v6955, %v7113
    %v7150 = vmul.f32 %v6960, %v7114
    %v7151 = vmul.f32 %v6963, %v7115
    %v7152 = vmul.f32 %v6968, %v7116
    %v7153 = vmul.f32 %v6971, %v7117
    %v7154 = vmul.f32 %v6976, %v7118
    %v7155 = vmul.f32 %v6979, %v7119
    %v7156 = vmul.f32 %v6984, %v7120
    %v7157 = vmul.f32 %v6987, %v7121
    %v7158 = vmul.f32 %v6992, %v7122
    %v7159 = vmul.f32 %v6995, %v7123
    %v7160 = vmul.f32 %v7000, %v7124
    %v7161 = vmul.f32 %v7003, %v7125
    %v7162 = vmul.f32 %v7008, %v7126
    %v7163 = vmul.f32 %v7011, %v7127
    %v7164 = vmul.f32 %v7016, %v7128
    %v7165 = vmul.f32 %v7019, %v7129
    %v7166 = vmul.f32 %v7024, %v7130
    %v7167 = vmul.f32 %v7027, %v7131
    %v7168 = vmul.f32 %v7032, %v7132
    %v7169 = vmul.f32 %v7035, %v7133
    %v7170 = vmul.f32 %v7040, %v7134
    %v7171 = vmul.f32 %v7043, %v7135
    %v7172 = vmul.f32 %v7048, %v7136
    %v7173 = vmul.f32 %v7051, %v7137
    %v7174 = vmul.f32 %v7056, %v7138
    %v7175 = vmul.f32 %v7059, %v7139
    %v7176 = vmul.f32 %v7064, %v7140
    %v7177 = vmul.f32 %v7067, %v7141
    %v7178 = vadd.f32 %v7142, %v7146
    %v7179 = vadd.f32 %v7143, %v7147
    %v7180 = vadd.f32 %v7144, %v7148
    %v7181 = vadd.f32 %v7145, %v7149
    %v7182 = vadd.f32 %v7178, %v7150
    %v7183 = vadd.f32 %v7179, %v7151
    %v7184 = vadd.f32 %v7180, %v7152
    %v7185 = vadd.f32 %v7181, %v7153
    %v7186 = vadd.f32 %v7182, %v7154
    %v7187 = vadd.f32 %v7183, %v7155
    %v7188 = vadd.f32 %v7184, %v7156
    %v7189 = vadd.f32 %v7185, %v7157
    %v7190 = vadd.f32 %v7186, %v7158
    %v7191 = vadd.f32 %v7187, %v7159
    %v7192 = vadd.f32 %v7188, %v7160
    %v7193 = vadd.f32 %v7189, %v7161
    %v7194 = vadd.f32 %v7190, %v7162
    %v7195 = vadd.f32 %v7191, %v7163
    %v7196 = vadd.f32 %v7192, %v7164
    %v7197 = vadd.f32 %v7193, %v7165
    %v7198 = vadd.f32 %v7194, %v7166
    %v7199 = vadd.f32 %v7195, %v7167
    %v7200 = vadd.f32 %v7196, %v7168
    %v7201 = vadd.f32 %v7197, %v7169
    %v7202 = vadd.f32 %v7198, %v7170
    %v7203 = vadd.f32 %v7199, %v7171
    %v7204 = vadd.f32 %v7200, %v7172
    %v7205 = vadd.f32 %v7201, %v7173
    %v7206 = vadd.f32 %v7202, %v7174
    %v7207 = vadd.f32 %v7203, %v7175
    %v7208 = vadd.f32 %v7204, %v7176
    %v7209 = vadd.f32 %v7205, %v7177
    %v7210 = vld [vmem:[%s4 + $0x28] sm:$0x1]
    %v7211 = vlaneseq
    %v7212 = vshrl.u32 %v7211, 7
    %v7213 = vsub.s32 0, %v7212
    %v7214 = vrot.slane %v7210, %v7213
    %v7215 = vadd.f32 %v7206, %v7214
    %v7216 = vadd.f32 %v7207, %v7214
    %v7217 = vadd.f32 %v7208, %v7214
    %v7218 = vadd.f32 %v7209, %v7214
    %v7219 = vmax.f32 %v7215, 0.0
    %v7220 = vmax.f32 %v7216, 0.0
    %v7221 = vmax.f32 %v7217, 0.0
    %v7222 = vmax.f32 %v7218, 0.0
    %v7223 = vmin.f32 %v7219, 6.0
    %v7224 = vmin.f32 %v7220, 6.0
    %v7225 = vmin.f32 %v7221, 6.0
    %v7226 = vmin.f32 %v7222, 6.0
    %v7227 = vld [vmem:[%s3 + $0x304] sm:$0xf]
    %v7228 = vld [vmem:[%s3 + $0x308] sm:$0xf]
    %v7229 = vpack.c.bf16 %v7224, %v7223
    %v7230 = vpack.c.bf16 %v7226, %v7225
    %v7231 = vld [vmem:[%s4 + $0x30] sm:$0x1]
    %v7232 = vlaneseq
    %v7233 = vshrl.u32 %v7232, 7
    %v7234 = vsub.s32 0, %v7233
    %v7235 = vrot.slane %v7231, %v7234
    %v7238 = vunpack.c.l.b16 %v7227
    %v7239 = vunpack.c.l.b16 %v7228
    %v7240 = vpack.c.b16 %v7239, %v7238
    %v7243 = vsel %vm6433, %v7229, 0
    %v7246 = vsel %vm6433, %v7230, 0
    %7248 = vmatprep.subr.bf16.mxu0 0
    %7249 = vmatpush1.bf16.msra.mxu0 %v7240
    %7250 = vmatprep.subr.bf16.mxu0 0
    %7251 = vmatpush1.bf16.msra.mxu0 0
    %7252 = vmatprep.subr.bf16.mxu0 0
    %7253 = vmatpush1.bf16.msra.mxu0 0
    %7254 = vmatprep.subr.bf16.mxu0 0
    %7255 = vmatpush1.bf16.msra.mxu0 0
    %7256 = vmatprep.subr.bf16.mxu0 0
    %7257 = vmatpush1.bf16.msra.mxu0 0
    %7258 = vmatprep.subr.bf16.mxu0 0
    %7259 = vmatpush1.bf16.msra.mxu0 0
    %7260 = vmatprep.subr.bf16.mxu0 0
    %7261 = vmatpush1.bf16.msra.mxu0 0
    %7262 = vmatprep.subr.bf16.mxu0 0
    %7263 = vmatpush1.bf16.msra.mxu0 0
    %7264 = vmatprep.subr.bf16.mxu0 0
    %7265 = vmatpush1.bf16.msra.mxu0 0
    %7266 = vmatprep.subr.bf16.mxu0 0
    %7267 = vmatpush1.bf16.msra.mxu0 0
    %7268 = vmatprep.subr.bf16.mxu0 0
    %7269 = vmatpush1.bf16.msra.mxu0 0
    %7270 = vmatprep.subr.bf16.mxu0 0
    %7271 = vmatpush1.bf16.msra.mxu0 0
    %7272 = vmatprep.subr.bf16.mxu0 0
    %7273 = vmatpush1.bf16.msra.mxu0 0
    %7274 = vmatprep.subr.bf16.mxu0 0
    %7275 = vmatpush1.bf16.msra.mxu0 0
    %7276 = vmatprep.subr.bf16.mxu0 0
    %7277 = vmatpush1.bf16.msra.mxu0 0
    %7278 = vmatprep.subr.bf16.mxu0 0
    %7279 = vmatpush1.bf16.msra.mxu0 0
    %7280 = vmatprep.mubr.bf16.mxu0 0
    %7281 = vmatmul.mubr.bf16.gmra.mrb[0].mxu0 %v7243
    %v7282 = vpop.f32.mrb[0].mxu0
    %v7283 = vadd.f32 %v7235, %v7282
    %v7284 = vpop.f32.mrb[0].mxu0
    %v7285 = vpop.f32.mrb[0].mxu0
    %v7286 = vadd.f32 %v7235, %v7285
    %v7287 = vpop.f32.mrb[0].mxu0
    %7288 = vmatprep.mubr.bf16.mxu0 0
    %7289 = vmatmul.mubr.bf16.gmra.mrb[0].mxu0 %v7246
    %v7290 = vpop.f32.mrb[0].mxu0
    %v7291 = vadd.f32 %v7235, %v7290
    %v7292 = vpop.f32.mrb[0].mxu0
    %v7293 = vpop.f32.mrb[0].mxu0
    %v7294 = vadd.f32 %v7235, %v7293
    %v7295 = vpop.f32.mrb[0].mxu0
    %7296 = vdwg.mxu0
    %v7297 = vld [vmem:[%s3 + $0x39c] sm:$0xf]
    %v7298 = vld [vmem:[%s3 + $0x3a0] sm:$0xf]
    %v7299 = vpack.c.bf16 %v7286, %v7283
    %v7300 = vpack.c.bf16 %v7294, %v7291
    %v7301 = vld [vmem:[%s4 + $0x38] sm:$0x1]
    %v7302 = vlaneseq
    %v7303 = vshrl.u32 %v7302, 7
    %v7304 = vsub.s32 0, %v7303
    %v7305 = vrot.slane %v7301, %v7304
    %v7308 = vunpack.c.l.b16 %v7297
    %v7309 = vunpack.c.l.b16 %v7298
    %v7310 = vpack.c.b16 %v7309, %v7308
    %v7313 = vsel %vm6433, %v7299, 0
    %v7316 = vsel %vm6433, %v7300, 0
    %7318 = vmatprep.subr.bf16.mxu0 0
    %7319 = vmatpush1.bf16.msra.mxu0 %v7310
    %7320 = vmatprep.subr.bf16.mxu0 0
    %7321 = vmatpush1.bf16.msra.mxu0 0
    %7322 = vmatprep.subr.bf16.mxu0 0
    %7323 = vmatpush1.bf16.msra.mxu0 0
    %7324 = vmatprep.subr.bf16.mxu0 0
    %7325 = vmatpush1.bf16.msra.mxu0 0
    %7326 = vmatprep.subr.bf16.mxu0 0
    %7327 = vmatpush1.bf16.msra.mxu0 0
    %7328 = vmatprep.subr.bf16.mxu0 0
    %7329 = vmatpush1.bf16.msra.mxu0 0
    %7330 = vmatprep.subr.bf16.mxu0 0
    %7331 = vmatpush1.bf16.msra.mxu0 0
    %7332 = vmatprep.subr.bf16.mxu0 0
    %7333 = vmatpush1.bf16.msra.mxu0 0
    %7334 = vmatprep.subr.bf16.mxu0 0
    %7335 = vmatpush1.bf16.msra.mxu0 0
    %7336 = vmatprep.subr.bf16.mxu0 0
    %7337 = vmatpush1.bf16.msra.mxu0 0
    %7338 = vmatprep.subr.bf16.mxu0 0
    %7339 = vmatpush1.bf16.msra.mxu0 0
    %7340 = vmatprep.subr.bf16.mxu0 0
    %7341 = vmatpush1.bf16.msra.mxu0 0
    %7342 = vmatprep.subr.bf16.mxu0 0
    %7343 = vmatpush1.bf16.msra.mxu0 0
    %7344 = vmatprep.subr.bf16.mxu0 0
    %7345 = vmatpush1.bf16.msra.mxu0 0
    %7346 = vmatprep.subr.bf16.mxu0 0
    %7347 = vmatpush1.bf16.msra.mxu0 0
    %7348 = vmatprep.subr.bf16.mxu0 0
    %7349 = vmatpush1.bf16.msra.mxu0 0
    %7350 = vmatprep.mubr.bf16.mxu0 0
    %7351 = vmatmul.mubr.bf16.gmra.mrb[0].mxu0 %v7313
    %v7352 = vpop.f32.mrb[0].mxu0
    %v7353 = vadd.f32 %v7305, %v7352
    %v7354 = vpop.f32.mrb[0].mxu0
    %v7355 = vpop.f32.mrb[0].mxu0
    %v7356 = vadd.f32 %v7305, %v7355
    %v7357 = vpop.f32.mrb[0].mxu0
    %7358 = vmatprep.mubr.bf16.mxu0 0
    %7359 = vmatmul.mubr.bf16.gmra.mrb[0].mxu0 %v7316
    %v7360 = vpop.f32.mrb[0].mxu0
    %v7361 = vadd.f32 %v7305, %v7360
    %v7362 = vpop.f32.mrb[0].mxu0
    %v7363 = vpop.f32.mrb[0].mxu0
    %v7364 = vadd.f32 %v7305, %v7363
    %v7365 = vpop.f32.mrb[0].mxu0
    %7366 = vdwg.mxu0
    %v7367 = vmax.f32 %v7353, 0.0
    %v7368 = vmax.f32 %v7356, 0.0
    %v7369 = vmax.f32 %v7361, 0.0
    %v7370 = vmax.f32 %v7364, 0.0
    %v7371 = vmin.f32 %v7367, 6.0
    %v7372 = vmin.f32 %v7368, 6.0
    %v7373 = vmin.f32 %v7369, 6.0
    %v7374 = vmin.f32 %v7370, 6.0
    %v7375 = vld [vmem:[%s3 + $0x30c] sm:$0xf]
    %v7376 = vld [vmem:[%s3 + $0x310] sm:$0xf]
    %v7377 = vld [vmem:[%s3 + $0x314] sm:$0xf]
    %v7378 = vld [vmem:[%s3 + $0x318] sm:$0xf]
    %v7379 = vld [vmem:[%s3 + $0x31c] sm:$0xf]
    %v7380 = vld [vmem:[%s3 + $0x320] sm:$0xf]
    %v7381 = vld [vmem:[%s3 + $0x324] sm:$0xf]
    %v7382 = vld [vmem:[%s3 + $0x328] sm:$0xf]
    %v7383 = vld [vmem:[%s3 + $0x32c] sm:$0xf]
    %v7384 = vld [vmem:[%s3 + $0x330] sm:$0xf]
    %v7385 = vld [vmem:[%s3 + $0x334] sm:$0xf]
    %v7386 = vld [vmem:[%s3 + $0x338] sm:$0xf]
    %v7387 = vld [vmem:[%s3 + $0x33c] sm:$0xf]
    %v7388 = vld [vmem:[%s3 + $0x340] sm:$0xf]
    %v7389 = vld [vmem:[%s3 + $0x344] sm:$0xf]
    %v7390 = vld [vmem:[%s3 + $0x348] sm:$0xf]
    %v7391 = vld [vmem:[%s3 + $0x34c] sm:$0xf]
    %v7392 = vld [vmem:[%s3 + $0x350] sm:$0xf]
    %v7393 = vld [vmem:[%s3 + $0x354] sm:$0xf]
    %v7394 = vld [vmem:[%s3 + $0x358] sm:$0xf]
    %v7395 = vld [vmem:[%s3 + $0x35c] sm:$0xf]
    %v7396 = vld [vmem:[%s3 + $0x360] sm:$0xf]
    %v7397 = vld [vmem:[%s3 + $0x364] sm:$0xf]
    %v7398 = vld [vmem:[%s3 + $0x368] sm:$0xf]
    %v7399 = vld [vmem:[%s3 + $0x36c] sm:$0xf]
    %v7400 = vld [vmem:[%s3 + $0x370] sm:$0xf]
    %v7401 = vld [vmem:[%s3 + $0x374] sm:$0xf]
    %v7402 = vld [vmem:[%s3 + $0x378] sm:$0xf]
    %v7403 = vld [vmem:[%s3 + $0x37c] sm:$0xf]
    %v7404 = vld [vmem:[%s3 + $0x380] sm:$0xf]
    %v7405 = vld [vmem:[%s3 + $0x384] sm:$0xf]
    %v7406 = vld [vmem:[%s3 + $0x388] sm:$0xf]
    %v7407 = vld [vmem:[%s3 + $0x38c] sm:$0xf]
    %v7408 = vld [vmem:[%s3 + $0x390] sm:$0xf]
    %v7409 = vld [vmem:[%s3 + $0x394] sm:$0xf]
    %v7410 = vld [vmem:[%s3 + $0x398] sm:$0xf]
    %v7411 = vpack.c.bf16 %v7372, %v7371
    %v7412 = vpack.c.bf16 %v7374, %v7373
    %v7449 = vunpack.c.l.b16 %v7375
    %v7450 = vunpack.c.l.b16 %v7376
    %v7451 = vunpack.c.l.b16 %v7377
    %v7452 = vunpack.c.l.b16 %v7378
    %v7453 = vunpack.c.l.b16 %v7379
    %v7454 = vunpack.c.l.b16 %v7380
    %v7455 = vunpack.c.l.b16 %v7381
    %v7456 = vunpack.c.l.b16 %v7382
    %v7457 = vunpack.c.l.b16 %v7383
    %v7458 = vunpack.c.l.b16 %v7384
    %v7459 = vunpack.c.l.b16 %v7385
    %v7460 = vunpack.c.l.b16 %v7386
    %v7461 = vunpack.c.l.b16 %v7387
    %v7462 = vunpack.c.l.b16 %v7388
    %v7463 = vunpack.c.l.b16 %v7389
    %v7464 = vunpack.c.l.b16 %v7390
    %v7465 = vunpack.c.l.b16 %v7391
    %v7466 = vunpack.c.l.b16 %v7392
    %v7467 = vunpack.c.l.b16 %v7393
    %v7468 = vunpack.c.l.b16 %v7394
    %v7469 = vunpack.c.l.b16 %v7395
    %v7470 = vunpack.c.l.b16 %v7396
    %v7471 = vunpack.c.l.b16 %v7397
    %v7472 = vunpack.c.l.b16 %v7398
    %v7473 = vunpack.c.l.b16 %v7399
    %v7474 = vunpack.c.l.b16 %v7400
    %v7475 = vunpack.c.l.b16 %v7401
    %v7476 = vunpack.c.l.b16 %v7402
    %v7477 = vunpack.c.l.b16 %v7403
    %v7478 = vunpack.c.l.b16 %v7404
    %v7479 = vunpack.c.l.b16 %v7405
    %v7480 = vunpack.c.l.b16 %v7406
    %v7481 = vunpack.c.l.b16 %v7407
    %v7482 = vunpack.c.l.b16 %v7408
    %v7483 = vunpack.c.l.b16 %v7409
    %v7484 = vunpack.c.l.b16 %v7410
    %v7485 = vpack.c.b16 %v7450, %v7449
    %v7486 = vpack.c.b16 %v7452, %v7451
    %v7487 = vpack.c.b16 %v7454, %v7453
    %v7488 = vpack.c.b16 %v7456, %v7455
    %v7489 = vpack.c.b16 %v7458, %v7457
    %v7490 = vpack.c.b16 %v7460, %v7459
    %v7491 = vpack.c.b16 %v7462, %v7461
    %v7492 = vpack.c.b16 %v7464, %v7463
    %v7493 = vpack.c.b16 %v7466, %v7465
    %v7494 = vpack.c.b16 %v7468, %v7467
    %v7495 = vpack.c.b16 %v7470, %v7469
    %v7496 = vpack.c.b16 %v7472, %v7471
    %v7497 = vpack.c.b16 %v7474, %v7473
    %v7498 = vpack.c.b16 %v7476, %v7475
    %v7499 = vpack.c.b16 %v7478, %v7477
    %v7500 = vpack.c.b16 %v7480, %v7479
    %v7501 = vpack.c.b16 %v7482, %v7481
    %v7502 = vpack.c.b16 %v7484, %v7483
    %vm7503 = vcmask 261120
    %v7505 = vsel %vm7503, %v7485, 0
    %v7508 = vsel %vm7503, %v7486, 0
    %v7511 = vsel %vm7503, %v7487, 0
    %v7514 = vsel %vm7503, %v7488, 0
    %v7517 = vsel %vm7503, %v7489, 0
    %v7520 = vsel %vm7503, %v7490, 0
    %v7523 = vsel %vm7503, %v7491, 0
    %v7526 = vsel %vm7503, %v7492, 0
    %v7529 = vsel %vm7503, %v7493, 0
    %v7532 = vsel %vm7503, %v7494, 0
    %v7535 = vsel %vm7503, %v7495, 0
    %v7538 = vsel %vm7503, %v7496, 0
    %v7541 = vsel %vm7503, %v7497, 0
    %v7544 = vsel %vm7503, %v7498, 0
    %v7547 = vsel %vm7503, %v7499, 0
    %v7550 = vsel %vm7503, %v7500, 0
    %v7553 = vsel %vm7503, %v7501, 0
    %v7556 = vsel %vm7503, %v7502, 0
    %7558 = vmatprep.subr.bf16.mxu0 0
    %7559 = vmatpush1.bf16.msra.mxu0 %v7411
    %7560 = vmatprep.subr.bf16.mxu0 0
    %7561 = vmatpush1.bf16.msra.mxu0 %v7412
    %7562 = vmatprep.subr.bf16.mxu0 0
    %7563 = vmatpush1.bf16.msra.mxu0 0
    %7564 = vmatprep.subr.bf16.mxu0 0
    %7565 = vmatpush1.bf16.msra.mxu0 0
    %7566 = vmatprep.subr.bf16.mxu0 0
    %7567 = vmatpush1.bf16.msra.mxu0 0
    %7568 = vmatprep.subr.bf16.mxu0 0
    %7569 = vmatpush1.bf16.msra.mxu0 0
    %7570 = vmatprep.subr.bf16.mxu0 0
    %7571 = vmatpush1.bf16.msra.mxu0 0
    %7572 = vmatprep.subr.bf16.mxu0 0
    %7573 = vmatpush1.bf16.msra.mxu0 0
    %7574 = vmatprep.subr.bf16.mxu0 0
    %7575 = vmatpush1.bf16.msra.mxu0 0
    %7576 = vmatprep.subr.bf16.mxu0 0
    %7577 = vmatpush1.bf16.msra.mxu0 0
    %7578 = vmatprep.subr.bf16.mxu0 0
    %7579 = vmatpush1.bf16.msra.mxu0 0
    %7580 = vmatprep.subr.bf16.mxu0 0
    %7581 = vmatpush1.bf16.msra.mxu0 0
    %7582 = vmatprep.subr.bf16.mxu0 0
    %7583 = vmatpush1.bf16.msra.mxu0 0
    %7584 = vmatprep.subr.bf16.mxu0 0
    %7585 = vmatpush1.bf16.msra.mxu0 0
    %7586 = vmatprep.subr.bf16.mxu0 0
    %7587 = vmatpush1.bf16.msra.mxu0 0
    %7588 = vmatprep.subr.bf16.mxu0 0
    %7589 = vmatpush1.bf16.msra.mxu0 0
    %7590 = vmatprep.mubr.bf16.mxu0 0
    %7591 = vmatmul.mubr.bf16.gmra.mrb[0].mxu0 %v7505
    %v7592 = vpop.f32.mrb[0].mxu0
    %v7593 = vadd.f32 0.0, %v7592
    %v7594 = vpop.f32.mrb[0].mxu0
    %v7595 = vpop.f32.mrb[0].mxu0
    %v7596 = vadd.f32 0.0, %v7595
    %v7597 = vpop.f32.mrb[0].mxu0
    %7598 = vmatprep.mubr.bf16.mxu0 0
    %7599 = vmatmul.mubr.bf16.gmra.mrb[0].mxu0 %v7508
    %v7600 = vpop.f32.mrb[0].mxu0
    %v7601 = vadd.f32 0.0, %v7600
    %v7602 = vpop.f32.mrb[0].mxu0
    %v7603 = vpop.f32.mrb[0].mxu0
    %v7604 = vadd.f32 0.0, %v7603
    %v7605 = vpop.f32.mrb[0].mxu0
    %7606 = vmatprep.mubr.bf16.mxu0 0
    %7607 = vmatmul.mubr.bf16.gmra.mrb[0].mxu0 %v7511
    %v7608 = vpop.f32.mrb[0].mxu0
    %v7609 = vadd.f32 0.0, %v7608
    %v7610 = vpop.f32.mrb[0].mxu0
    %v7611 = vpop.f32.mrb[0].mxu0
    %v7612 = vadd.f32 0.0, %v7611
    %v7613 = vpop.f32.mrb[0].mxu0
    %7614 = vmatprep.mubr.bf16.mxu0 0
    %7615 = vmatmul.mubr.bf16.gmra.mrb[0].mxu0 %v7514
    %v7616 = vpop.f32.mrb[0].mxu0
    %v7617 = vadd.f32 0.0, %v7616
    %v7618 = vpop.f32.mrb[0].mxu0
    %v7619 = vpop.f32.mrb[0].mxu0
    %v7620 = vadd.f32 0.0, %v7619
    %v7621 = vpop.f32.mrb[0].mxu0
    %7622 = vmatprep.mubr.bf16.mxu0 0
    %7623 = vmatmul.mubr.bf16.gmra.mrb[0].mxu0 %v7517
    %v7624 = vpop.f32.mrb[0].mxu0
    %v7625 = vadd.f32 0.0, %v7624
    %v7626 = vpop.f32.mrb[0].mxu0
    %v7627 = vpop.f32.mrb[0].mxu0
    %v7628 = vadd.f32 0.0, %v7627
    %v7629 = vpop.f32.mrb[0].mxu0
    %7630 = vmatprep.mubr.bf16.mxu0 0
    %7631 = vmatmul.mubr.bf16.gmra.mrb[0].mxu0 %v7520
    %v7632 = vpop.f32.mrb[0].mxu0
    %v7633 = vadd.f32 0.0, %v7632
    %v7634 = vpop.f32.mrb[0].mxu0
    %v7635 = vpop.f32.mrb[0].mxu0
    %v7636 = vadd.f32 0.0, %v7635
    %v7637 = vpop.f32.mrb[0].mxu0
    %7638 = vmatprep.mubr.bf16.mxu0 0
    %7639 = vmatmul.mubr.bf16.gmra.mrb[0].mxu0 %v7523
    %v7640 = vpop.f32.mrb[0].mxu0
    %v7641 = vadd.f32 0.0, %v7640
    %v7642 = vpop.f32.mrb[0].mxu0
    %v7643 = vpop.f32.mrb[0].mxu0
    %v7644 = vadd.f32 0.0, %v7643
    %v7645 = vpop.f32.mrb[0].mxu0
    %7646 = vmatprep.mubr.bf16.mxu0 0
    %7647 = vmatmul.mubr.bf16.gmra.mrb[0].mxu0 %v7526
    %v7648 = vpop.f32.mrb[0].mxu0
    %v7649 = vadd.f32 0.0, %v7648
    %v7650 = vpop.f32.mrb[0].mxu0
    %v7651 = vpop.f32.mrb[0].mxu0
    %v7652 = vadd.f32 0.0, %v7651
    %v7653 = vpop.f32.mrb[0].mxu0
    %7654 = vmatprep.mubr.bf16.mxu0 0
    %7655 = vmatmul.mubr.bf16.gmra.mrb[0].mxu0 %v7529
    %v7656 = vpop.f32.mrb[0].mxu0
    %v7657 = vadd.f32 0.0, %v7656
    %v7658 = vpop.f32.mrb[0].mxu0
    %v7659 = vpop.f32.mrb[0].mxu0
    %v7660 = vadd.f32 0.0, %v7659
    %v7661 = vpop.f32.mrb[0].mxu0
    %7662 = vmatprep.mubr.bf16.mxu0 0
    %7663 = vmatmul.mubr.bf16.gmra.mrb[0].mxu0 %v7532
    %v7664 = vpop.f32.mrb[0].mxu0
    %v7665 = vadd.f32 0.0, %v7664
    %v7666 = vpop.f32.mrb[0].mxu0
    %v7667 = vpop.f32.mrb[0].mxu0
    %v7668 = vadd.f32 0.0, %v7667
    %v7669 = vpop.f32.mrb[0].mxu0
    %7670 = vmatprep.mubr.bf16.mxu0 0
    %7671 = vmatmul.mubr.bf16.gmra.mrb[0].mxu0 %v7535
    %v7672 = vpop.f32.mrb[0].mxu0
    %v7673 = vadd.f32 0.0, %v7672
    %v7674 = vpop.f32.mrb[0].mxu0
    %v7675 = vpop.f32.mrb[0].mxu0
    %v7676 = vadd.f32 0.0, %v7675
    %v7677 = vpop.f32.mrb[0].mxu0
    %7678 = vmatprep.mubr.bf16.mxu0 0
    %7679 = vmatmul.mubr.bf16.gmra.mrb[0].mxu0 %v7538
    %v7680 = vpop.f32.mrb[0].mxu0
    %v7681 = vadd.f32 0.0, %v7680
    %v7682 = vpop.f32.mrb[0].mxu0
    %v7683 = vpop.f32.mrb[0].mxu0
    %v7684 = vadd.f32 0.0, %v7683
    %v7685 = vpop.f32.mrb[0].mxu0
    %7686 = vmatprep.mubr.bf16.mxu0 0
    %7687 = vmatmul.mubr.bf16.gmra.mrb[0].mxu0 %v7541
    %v7688 = vpop.f32.mrb[0].mxu0
    %v7689 = vadd.f32 0.0, %v7688
    %v7690 = vpop.f32.mrb[0].mxu0
    %v7691 = vpop.f32.mrb[0].mxu0
    %v7692 = vadd.f32 0.0, %v7691
    %v7693 = vpop.f32.mrb[0].mxu0
    %7694 = vmatprep.mubr.bf16.mxu0 0
    %7695 = vmatmul.mubr.bf16.gmra.mrb[0].mxu0 %v7544
    %v7696 = vpop.f32.mrb[0].mxu0
    %v7697 = vadd.f32 0.0, %v7696
    %v7698 = vpop.f32.mrb[0].mxu0
    %v7699 = vpop.f32.mrb[0].mxu0
    %v7700 = vadd.f32 0.0, %v7699
    %v7701 = vpop.f32.mrb[0].mxu0
    %7702 = vmatprep.mubr.bf16.mxu0 0
    %7703 = vmatmul.mubr.bf16.gmra.mrb[0].mxu0 %v7547
    %v7704 = vpop.f32.mrb[0].mxu0
    %v7705 = vadd.f32 0.0, %v7704
    %v7706 = vpop.f32.mrb[0].mxu0
    %v7707 = vpop.f32.mrb[0].mxu0
    %v7708 = vadd.f32 0.0, %v7707
    %v7709 = vpop.f32.mrb[0].mxu0
    %7710 = vmatprep.mubr.bf16.mxu0 0
    %7711 = vmatmul.mubr.bf16.gmra.mrb[0].mxu0 %v7550
    %v7712 = vpop.f32.mrb[0].mxu0
    %v7713 = vadd.f32 0.0, %v7712
    %v7714 = vpop.f32.mrb[0].mxu0
    %v7715 = vpop.f32.mrb[0].mxu0
    %v7716 = vadd.f32 0.0, %v7715
    %v7717 = vpop.f32.mrb[0].mxu0
    %7718 = vmatprep.mubr.bf16.mxu0 0
    %7719 = vmatmul.mubr.bf16.gmra.mrb[0].mxu0 %v7553
    %v7720 = vpop.f32.mrb[0].mxu0
    %v7721 = vadd.f32 0.0, %v7720
    %v7722 = vpop.f32.mrb[0].mxu0
    %v7723 = vpop.f32.mrb[0].mxu0
    %v7724 = vadd.f32 0.0, %v7723
    %v7725 = vpop.f32.mrb[0].mxu0
    %7726 = vmatprep.mubr.bf16.mxu0 0
    %7727 = vmatmul.mubr.bf16.gmra.mrb[0].mxu0 %v7556
    %v7728 = vpop.f32.mrb[0].mxu0
    %v7729 = vadd.f32 0.0, %v7728
    %v7730 = vpop.f32.mrb[0].mxu0
    %v7731 = vpop.f32.mrb[0].mxu0
    %v7732 = vadd.f32 0.0, %v7731
    %v7733 = vpop.f32.mrb[0].mxu0
    %7734 = vdwg.mxu0
    %v7735 = vld [vmem:[%s3 + $0x3a4] sm:$0xf]
    %v7736 = vld [vmem:[%s3 + $0x3a8] sm:$0xf]
    %v7737 = vld [vmem:[%s3 + $0x3ac] sm:$0xf]
    %v7738 = vld [vmem:[%s3 + $0x3b0] sm:$0xf]
    %v7739 = vld [vmem:[%s3 + $0x3b4] sm:$0xf]
    %v7740 = vld [vmem:[%s3 + $0x3b8] sm:$0xf]
    %v7741 = vld [vmem:[%s3 + $0x3bc] sm:$0xf]
    %v7742 = vld [vmem:[%s3 + $0x3c0] sm:$0xf]
    %v7743 = vld [vmem:[%s3 + $0x3c4] sm:$0xf]
    %v7744 = vld [vmem:[%s3 + $0x3c8] sm:$0xf]
    %v7745 = vld [vmem:[%s3 + $0x3cc] sm:$0xf]
    %v7746 = vld [vmem:[%s3 + $0x3d0] sm:$0xf]
    %v7747 = vld [vmem:[%s3 + $0x3d4] sm:$0xf]
    %v7748 = vld [vmem:[%s3 + $0x3d8] sm:$0xf]
    %v7749 = vld [vmem:[%s3 + $0x3dc] sm:$0xf]
    %v7750 = vld [vmem:[%s3 + $0x3e0] sm:$0xf]
    %v7751 = vld [vmem:[%s3 + $0x3e4] sm:$0xf]
    %v7752 = vld [vmem:[%s3 + $0x3e8] sm:$0xf]
    %v7753 = vld [vmem:[%s3 + $0x3ec] sm:$0xf]
    %v7754 = vld [vmem:[%s3 + $0x3f0] sm:$0xf]
    %v7755 = vld [vmem:[%s3 + $0x3f4] sm:$0xf]
    %v7756 = vld [vmem:[%s3 + $0x3f8] sm:$0xf]
    %v7757 = vld [vmem:[%s3 + $0x3fc] sm:$0xf]
    %v7758 = vld [vmem:[%s3 + $0x400] sm:$0xf]
    %v7759 = vld [vmem:[%s3 + $0x404] sm:$0xf]
    %v7760 = vld [vmem:[%s3 + $0x408] sm:$0xf]
    %v7761 = vld [vmem:[%s3 + $0x40c] sm:$0xf]
    %v7762 = vld [vmem:[%s3 + $0x410] sm:$0xf]
    %v7763 = vld [vmem:[%s3 + $0x414] sm:$0xf]
    %v7764 = vld [vmem:[%s3 + $0x418] sm:$0xf]
    %v7765 = vld [vmem:[%s3 + $0x41c] sm:$0xf]
    %v7766 = vld [vmem:[%s3 + $0x420] sm:$0xf]
    %v7767 = vld [vmem:[%s3 + $0x424] sm:$0xf]
    %v7768 = vld [vmem:[%s3 + $0x428] sm:$0xf]
    %v7769 = vld [vmem:[%s3 + $0x42c] sm:$0xf]
    %v7770 = vld [vmem:[%s3 + $0x430] sm:$0xf]
    %v7771 = vunpack.c.l.bf16 %v7735
    %v7772 = vunpack.c.l.bf16 %v7736
    %v7773 = vunpack.c.l.bf16 %v7737
    %v7774 = vunpack.c.l.bf16 %v7738
    %v7775 = vunpack.c.l.bf16 %v7739
    %v7776 = vunpack.c.l.bf16 %v7740
    %v7777 = vunpack.c.l.bf16 %v7741
    %v7778 = vunpack.c.l.bf16 %v7742
    %v7779 = vunpack.c.l.bf16 %v7743
    %v7780 = vunpack.c.l.bf16 %v7744
    %v7781 = vunpack.c.l.bf16 %v7745
    %v7782 = vunpack.c.l.bf16 %v7746
    %v7783 = vunpack.c.l.bf16 %v7747
    %v7784 = vunpack.c.l.bf16 %v7748
    %v7785 = vunpack.c.l.bf16 %v7749
    %v7786 = vunpack.c.l.bf16 %v7750
    %v7787 = vunpack.c.l.bf16 %v7751
    %v7788 = vunpack.c.l.bf16 %v7752
    %v7789 = vunpack.c.l.bf16 %v7753
    %v7790 = vunpack.c.l.bf16 %v7754
    %v7791 = vunpack.c.l.bf16 %v7755
    %v7792 = vunpack.c.l.bf16 %v7756
    %v7793 = vunpack.c.l.bf16 %v7757
    %v7794 = vunpack.c.l.bf16 %v7758
    %v7795 = vunpack.c.l.bf16 %v7759
    %v7796 = vunpack.c.l.bf16 %v7760
    %v7797 = vunpack.c.l.bf16 %v7761
    %v7798 = vunpack.c.l.bf16 %v7762
    %v7799 = vunpack.c.l.bf16 %v7763
    %v7800 = vunpack.c.l.bf16 %v7764
    %v7801 = vunpack.c.l.bf16 %v7765
    %v7802 = vunpack.c.l.bf16 %v7766
    %v7803 = vunpack.c.l.bf16 %v7767
    %v7804 = vunpack.c.l.bf16 %v7768
    %v7805 = vunpack.c.l.bf16 %v7769
    %v7806 = vunpack.c.l.bf16 %v7770
    %v7807 = vmul.f32 %v7593, %v7771
    %v7808 = vmul.f32 %v7596, %v7772
    %v7809 = vmul.f32 %v7601, %v7773
    %v7810 = vmul.f32 %v7604, %v7774
    %v7811 = vmul.f32 %v7609, %v7775
    %v7812 = vmul.f32 %v7612, %v7776
    %v7813 = vmul.f32 %v7617, %v7777
    %v7814 = vmul.f32 %v7620, %v7778
    %v7815 = vmul.f32 %v7625, %v7779
    %v7816 = vmul.f32 %v7628, %v7780
    %v7817 = vmul.f32 %v7633, %v7781
    %v7818 = vmul.f32 %v7636, %v7782
    %v7819 = vmul.f32 %v7641, %v7783
    %v7820 = vmul.f32 %v7644, %v7784
    %v7821 = vmul.f32 %v7649, %v7785
    %v7822 = vmul.f32 %v7652, %v7786
    %v7823 = vmul.f32 %v7657, %v7787
    %v7824 = vmul.f32 %v7660, %v7788
    %v7825 = vmul.f32 %v7665, %v7789
    %v7826 = vmul.f32 %v7668, %v7790
    %v7827 = vmul.f32 %v7673, %v7791
    %v7828 = vmul.f32 %v7676, %v7792
    %v7829 = vmul.f32 %v7681, %v7793
    %v7830 = vmul.f32 %v7684, %v7794
    %v7831 = vmul.f32 %v7689, %v7795
    %v7832 = vmul.f32 %v7692, %v7796
    %v7833 = vmul.f32 %v7697, %v7797
    %v7834 = vmul.f32 %v7700, %v7798
    %v7835 = vmul.f32 %v7705, %v7799
    %v7836 = vmul.f32 %v7708, %v7800
    %v7837 = vmul.f32 %v7713, %v7801
    %v7838 = vmul.f32 %v7716, %v7802
    %v7839 = vmul.f32 %v7721, %v7803
    %v7840 = vmul.f32 %v7724, %v7804
    %v7841 = vmul.f32 %v7729, %v7805
    %v7842 = vmul.f32 %v7732, %v7806
    %v7843 = vadd.f32 %v7807, %v7811
    %v7844 = vadd.f32 %v7808, %v7812
    %v7845 = vadd.f32 %v7809, %v7813
    %v7846 = vadd.f32 %v7810, %v7814
    %v7847 = vadd.f32 %v7843, %v7815
    %v7848 = vadd.f32 %v7844, %v7816
    %v7849 = vadd.f32 %v7845, %v7817
    %v7850 = vadd.f32 %v7846, %v7818
    %v7851 = vadd.f32 %v7847, %v7819
    %v7852 = vadd.f32 %v7848, %v7820
    %v7853 = vadd.f32 %v7849, %v7821
    %v7854 = vadd.f32 %v7850, %v7822
    %v7855 = vadd.f32 %v7851, %v7823
    %v7856 = vadd.f32 %v7852, %v7824
    %v7857 = vadd.f32 %v7853, %v7825
    %v7858 = vadd.f32 %v7854, %v7826
    %v7859 = vadd.f32 %v7855, %v7827
    %v7860 = vadd.f32 %v7856, %v7828
    %v7861 = vadd.f32 %v7857, %v7829
    %v7862 = vadd.f32 %v7858, %v7830
    %v7863 = vadd.f32 %v7859, %v7831
    %v7864 = vadd.f32 %v7860, %v7832
    %v7865 = vadd.f32 %v7861, %v7833
    %v7866 = vadd.f32 %v7862, %v7834
    %v7867 = vadd.f32 %v7863, %v7835
    %v7868 = vadd.f32 %v7864, %v7836
    %v7869 = vadd.f32 %v7865, %v7837
    %v7870 = vadd.f32 %v7866, %v7838
    %v7871 = vadd.f32 %v7867, %v7839
    %v7872 = vadd.f32 %v7868, %v7840
    %v7873 = vadd.f32 %v7869, %v7841
    %v7874 = vadd.f32 %v7870, %v7842
    %v7875 = vld [vmem:[%s4 + $0x40] sm:$0x1]
    %v7876 = vlaneseq
    %v7877 = vshrl.u32 %v7876, 7
    %v7878 = vsub.s32 0, %v7877
    %v7879 = vrot.slane %v7875, %v7878
    %v7880 = vadd.f32 %v7871, %v7879
    %v7881 = vadd.f32 %v7872, %v7879
    %v7882 = vadd.f32 %v7873, %v7879
    %v7883 = vadd.f32 %v7874, %v7879
    %v7884 = vmax.f32 %v7880, 0.0
    %v7885 = vmax.f32 %v7881, 0.0
    %v7886 = vmax.f32 %v7882, 0.0
    %v7887 = vmax.f32 %v7883, 0.0
    %v7888 = vmin.f32 %v7884, 6.0
    %v7889 = vmin.f32 %v7885, 6.0
    %v7890 = vmin.f32 %v7886, 6.0
    %v7891 = vmin.f32 %v7887, 6.0
    %v7892 = vld [vmem:[%s3 + $0x434] sm:$0xf]
    %v7893 = vld [vmem:[%s3 + $0x438] sm:$0xf]
    %v7894 = vld [vmem:[%s3 + $0x43c] sm:$0xf]
    %v7895 = vld [vmem:[%s3 + $0x440] sm:$0xf]
    %v7896 = vpack.c.bf16 %v7889, %v7888
    %v7897 = vpack.c.bf16 %v7891, %v7890
    %v7898 = vld [vmem:[%s4 + $0x48] sm:$0x1]
    %v7899 = vlaneseq
    %v7900 = vshrl.u32 %v7899, 7
    %v7901 = vsub.s32 0, %v7900
    %v7902 = vrot.slane %v7898, %v7901
    %v7907 = vunpack.c.l.b16 %v7892
    %v7908 = vunpack.c.l.b16 %v7893
    %v7909 = vunpack.c.l.b16 %v7894
    %v7910 = vunpack.c.l.b16 %v7895
    %v7911 = vpack.c.b16 %v7908, %v7907
    %v7912 = vpack.c.b16 %v7910, %v7909
    %v7916 = vsel %vm7503, %v7896, 0
    %v7919 = vsel %vm7503, %v7897, 0
    %7921 = vmatprep.subr.bf16.mxu0 0
    %7922 = vmatpush1.bf16.msra.mxu0 %v7911
    %7923 = vmatprep.subr.bf16.mxu0 0
    %7924 = vmatpush1.bf16.msra.mxu0 %v7912
    %7925 = vmatprep.subr.bf16.mxu0 0
    %7926 = vmatpush1.bf16.msra.mxu0 0
    %7927 = vmatprep.subr.bf16.mxu0 0
    %7928 = vmatpush1.bf16.msra.mxu0 0
    %7929 = vmatprep.subr.bf16.mxu0 0
    %7930 = vmatpush1.bf16.msra.mxu0 0
    %7931 = vmatprep.subr.bf16.mxu0 0
    %7932 = vmatpush1.bf16.msra.mxu0 0
    %7933 = vmatprep.subr.bf16.mxu0 0
    %7934 = vmatpush1.bf16.msra.mxu0 0
    %7935 = vmatprep.subr.bf16.mxu0 0
    %7936 = vmatpush1.bf16.msra.mxu0 0
    %7937 = vmatprep.subr.bf16.mxu0 0
    %7938 = vmatpush1.bf16.msra.mxu0 0
    %7939 = vmatprep.subr.bf16.mxu0 0
    %7940 = vmatpush1.bf16.msra.mxu0 0
    %7941 = vmatprep.subr.bf16.mxu0 0
    %7942 = vmatpush1.bf16.msra.mxu0 0
    %7943 = vmatprep.subr.bf16.mxu0 0
    %7944 = vmatpush1.bf16.msra.mxu0 0
    %7945 = vmatprep.subr.bf16.mxu0 0
    %7946 = vmatpush1.bf16.msra.mxu0 0
    %7947 = vmatprep.subr.bf16.mxu0 0
    %7948 = vmatpush1.bf16.msra.mxu0 0
    %7949 = vmatprep.subr.bf16.mxu0 0
    %7950 = vmatpush1.bf16.msra.mxu0 0
    %7951 = vmatprep.subr.bf16.mxu0 0
    %7952 = vmatpush1.bf16.msra.mxu0 0
    %7953 = vmatprep.mubr.bf16.mxu0 0
    %7954 = vmatmul.mubr.bf16.gmra.mrb[0].mxu0 %v7916
    %v7955 = vpop.f32.mrb[0].mxu0
    %v7956 = vadd.f32 %v7902, %v7955
    %v7957 = vpop.f32.mrb[0].mxu0
    %v7958 = vpop.f32.mrb[0].mxu0
    %v7959 = vadd.f32 %v7902, %v7958
    %v7960 = vpop.f32.mrb[0].mxu0
    %7961 = vmatprep.mubr.bf16.mxu0 0
    %7962 = vmatmul.mubr.bf16.gmra.mrb[0].mxu0 %v7919
    %v7963 = vpop.f32.mrb[0].mxu0
    %v7964 = vadd.f32 %v7902, %v7963
    %v7965 = vpop.f32.mrb[0].mxu0
    %v7966 = vpop.f32.mrb[0].mxu0
    %v7967 = vadd.f32 %v7902, %v7966
    %v7968 = vpop.f32.mrb[0].mxu0
    %7969 = vdwg.mxu0
    %v7970 = vadd.f32 %v7956, %v7283
    %v7971 = vadd.f32 %v7959, %v7286
    %v7972 = vadd.f32 %v7964, %v7291
    %v7973 = vadd.f32 %v7967, %v7294
    %v7974 = vld [vmem:[%s3 + $0x444] sm:$0xf]
    %v7975 = vld [vmem:[%s3 + $0x448] sm:$0xf]
    %v7976 = vpack.c.bf16 %v7971, %v7970
    %v7977 = vpack.c.bf16 %v7973, %v7972
    %v7978 = vld [vmem:[%s4 + $0x50] sm:$0x1]
    %v7979 = vlaneseq
    %v7980 = vshrl.u32 %v7979, 7
    %v7981 = vsub.s32 0, %v7980
    %v7982 = vrot.slane %v7978, %v7981
    %v7985 = vunpack.c.l.b16 %v7974
    %v7986 = vunpack.c.l.b16 %v7975
    %v7987 = vpack.c.b16 %v7986, %v7985
    %v7990 = vsel %vm6433, %v7976, 0
    %v7993 = vsel %vm6433, %v7977, 0
    %7995 = vmatprep.subr.bf16.mxu0 0
    %7996 = vmatpush1.bf16.msra.mxu0 %v7987
    %7997 = vmatprep.subr.bf16.mxu0 0
    %7998 = vmatpush1.bf16.msra.mxu0 0
    %7999 = vmatprep.subr.bf16.mxu0 0
    %8000 = vmatpush1.bf16.msra.mxu0 0
    %8001 = vmatprep.subr.bf16.mxu0 0
    %8002 = vmatpush1.bf16.msra.mxu0 0
    %8003 = vmatprep.subr.bf16.mxu0 0
    %8004 = vmatpush1.bf16.msra.mxu0 0
    %8005 = vmatprep.subr.bf16.mxu0 0
    %8006 = vmatpush1.bf16.msra.mxu0 0
    %8007 = vmatprep.subr.bf16.mxu0 0
    %8008 = vmatpush1.bf16.msra.mxu0 0
    %8009 = vmatprep.subr.bf16.mxu0 0
    %8010 = vmatpush1.bf16.msra.mxu0 0
    %8011 = vmatprep.subr.bf16.mxu0 0
    %8012 = vmatpush1.bf16.msra.mxu0 0
    %8013 = vmatprep.subr.bf16.mxu0 0
    %8014 = vmatpush1.bf16.msra.mxu0 0
    %8015 = vmatprep.subr.bf16.mxu0 0
    %8016 = vmatpush1.bf16.msra.mxu0 0
    %8017 = vmatprep.subr.bf16.mxu0 0
    %8018 = vmatpush1.bf16.msra.mxu0 0
    %8019 = vmatprep.subr.bf16.mxu0 0
    %8020 = vmatpush1.bf16.msra.mxu0 0
    %8021 = vmatprep.subr.bf16.mxu0 0
    %8022 = vmatpush1.bf16.msra.mxu0 0
    %8023 = vmatprep.subr.bf16.mxu0 0
    %8024 = vmatpush1.bf16.msra.mxu0 0
    %8025 = vmatprep.subr.bf16.mxu0 0
    %8026 = vmatpush1.bf16.msra.mxu0 0
    %8027 = vmatprep.mubr.bf16.mxu0 0
    %8028 = vmatmul.mubr.bf16.gmra.mrb[0].mxu0 %v7990
    %v8029 = vpop.f32.mrb[0].mxu0
    %v8030 = vadd.f32 %v7982, %v8029
    %v8031 = vpop.f32.mrb[0].mxu0
    %v8032 = vpop.f32.mrb[0].mxu0
    %v8033 = vadd.f32 %v7982, %v8032
    %v8034 = vpop.f32.mrb[0].mxu0
    %8035 = vmatprep.mubr.bf16.mxu0 0
    %8036 = vmatmul.mubr.bf16.gmra.mrb[0].mxu0 %v7993
    %v8037 = vpop.f32.mrb[0].mxu0
    %v8038 = vadd.f32 %v7982, %v8037
    %v8039 = vpop.f32.mrb[0].mxu0
    %v8040 = vpop.f32.mrb[0].mxu0
    %v8041 = vadd.f32 %v7982, %v8040
    %v8042 = vpop.f32.mrb[0].mxu0
    %8043 = vdwg.mxu0
    %v8044 = vmax.f32 %v8030, 0.0
    %v8045 = vmax.f32 %v8033, 0.0
    %v8046 = vmax.f32 %v8038, 0.0
    %v8047 = vmax.f32 %v8041, 0.0
    %v8048 = vmin.f32 %v8044, 6.0
    %v8049 = vmin.f32 %v8045, 6.0
    %v8050 = vmin.f32 %v8046, 6.0
    %v8051 = vmin.f32 %v8047, 6.0
    %v8052 = vpack.c.bf16 %v8049, %v8048
    %v8053 = vpack.c.bf16 %v8051, %v8050
    %8054 = vmatprep.subr.bf16.mxu0 0
    %8055 = vmatpush1.bf16.msra.mxu0 %v8052
    %8056 = vmatprep.subr.bf16.mxu0 0
    %8057 = vmatpush1.bf16.msra.mxu0 %v8053
    %8058 = vmatprep.subr.bf16.mxu0 0
    %8059 = vmatpush1.bf16.msra.mxu0 0
    %8060 = vmatprep.subr.bf16.mxu0 0
    %8061 = vmatpush1.bf16.msra.mxu0 0
    %8062 = vmatprep.subr.bf16.mxu0 0
    %8063 = vmatpush1.bf16.msra.mxu0 0
    %8064 = vmatprep.subr.bf16.mxu0 0
    %8065 = vmatpush1.bf16.msra.mxu0 0
    %8066 = vmatprep.subr.bf16.mxu0 0
    %8067 = vmatpush1.bf16.msra.mxu0 0
    %8068 = vmatprep.subr.bf16.mxu0 0
    %8069 = vmatpush1.bf16.msra.mxu0 0
    %8070 = vmatprep.subr.bf16.mxu0 0
    %8071 = vmatpush1.bf16.msra.mxu0 0
    %8072 = vmatprep.subr.bf16.mxu0 0
    %8073 = vmatpush1.bf16.msra.mxu0 0
    %8074 = vmatprep.subr.bf16.mxu0 0
    %8075 = vmatpush1.bf16.msra.mxu0 0
    %8076 = vmatprep.subr.bf16.mxu0 0
    %8077 = vmatpush1.bf16.msra.mxu0 0
    %8078 = vmatprep.subr.bf16.mxu0 0
    %8079 = vmatpush1.bf16.msra.mxu0 0
    %8080 = vmatprep.subr.bf16.mxu0 0
    %8081 = vmatpush1.bf16.msra.mxu0 0
    %8082 = vmatprep.subr.bf16.mxu0 0
    %8083 = vmatpush1.bf16.msra.mxu0 0
    %8084 = vmatprep.subr.bf16.mxu0 0
    %8085 = vmatpush1.bf16.msra.mxu0 0
    %8086 = vmatprep.mubr.bf16.mxu0 0
    %8087 = vmatmul.mubr.bf16.gmra.mrb[0].mxu0 %v7505
    %v8088 = vpop.f32.mrb[0].mxu0
    %v8089 = vadd.f32 0.0, %v8088
    %v8090 = vpop.f32.mrb[0].mxu0
    %v8091 = vpop.f32.mrb[0].mxu0
    %v8092 = vadd.f32 0.0, %v8091
    %v8093 = vpop.f32.mrb[0].mxu0
    %8094 = vmatprep.mubr.bf16.mxu0 0
    %8095 = vmatmul.mubr.bf16.gmra.mrb[0].mxu0 %v7508
    %v8096 = vpop.f32.mrb[0].mxu0
    %v8097 = vadd.f32 0.0, %v8096
    %v8098 = vpop.f32.mrb[0].mxu0
    %v8099 = vpop.f32.mrb[0].mxu0
    %v8100 = vadd.f32 0.0, %v8099
    %v8101 = vpop.f32.mrb[0].mxu0
    %8102 = vmatprep.mubr.bf16.mxu0 0
    %8103 = vmatmul.mubr.bf16.gmra.mrb[0].mxu0 %v7511
    %v8104 = vpop.f32.mrb[0].mxu0
    %v8105 = vadd.f32 0.0, %v8104
    %v8106 = vpop.f32.mrb[0].mxu0
    %v8107 = vpop.f32.mrb[0].mxu0
    %v8108 = vadd.f32 0.0, %v8107
    %v8109 = vpop.f32.mrb[0].mxu0
    %8110 = vmatprep.mubr.bf16.mxu0 0
    %8111 = vmatmul.mubr.bf16.gmra.mrb[0].mxu0 %v7514
    %v8112 = vpop.f32.mrb[0].mxu0
    %v8113 = vadd.f32 0.0, %v8112
    %v8114 = vpop.f32.mrb[0].mxu0
    %v8115 = vpop.f32.mrb[0].mxu0
    %v8116 = vadd.f32 0.0, %v8115
    %v8117 = vpop.f32.mrb[0].mxu0
    %8118 = vmatprep.mubr.bf16.mxu0 0
    %8119 = vmatmul.mubr.bf16.gmra.mrb[0].mxu0 %v7517
    %v8120 = vpop.f32.mrb[0].mxu0
    %v8121 = vadd.f32 0.0, %v8120
    %v8122 = vpop.f32.mrb[0].mxu0
    %v8123 = vpop.f32.mrb[0].mxu0
    %v8124 = vadd.f32 0.0, %v8123
    %v8125 = vpop.f32.mrb[0].mxu0
    %8126 = vmatprep.mubr.bf16.mxu0 0
    %8127 = vmatmul.mubr.bf16.gmra.mrb[0].mxu0 %v7520
    %v8128 = vpop.f32.mrb[0].mxu0
    %v8129 = vadd.f32 0.0, %v8128
    %v8130 = vpop.f32.mrb[0].mxu0
    %v8131 = vpop.f32.mrb[0].mxu0
    %v8132 = vadd.f32 0.0, %v8131
    %v8133 = vpop.f32.mrb[0].mxu0
    %8134 = vmatprep.mubr.bf16.mxu0 0
    %8135 = vmatmul.mubr.bf16.gmra.mrb[0].mxu0 %v7523
    %v8136 = vpop.f32.mrb[0].mxu0
    %v8137 = vadd.f32 0.0, %v8136
    %v8138 = vpop.f32.mrb[0].mxu0
    %v8139 = vpop.f32.mrb[0].mxu0
    %v8140 = vadd.f32 0.0, %v8139
    %v8141 = vpop.f32.mrb[0].mxu0
    %8142 = vmatprep.mubr.bf16.mxu0 0
    %8143 = vmatmul.mubr.bf16.gmra.mrb[0].mxu0 %v7526
    %v8144 = vpop.f32.mrb[0].mxu0
    %v8145 = vadd.f32 0.0, %v8144
    %v8146 = vpop.f32.mrb[0].mxu0
    %v8147 = vpop.f32.mrb[0].mxu0
    %v8148 = vadd.f32 0.0, %v8147
    %v8149 = vpop.f32.mrb[0].mxu0
    %8150 = vmatprep.mubr.bf16.mxu0 0
    %8151 = vmatmul.mubr.bf16.gmra.mrb[0].mxu0 %v7529
    %v8152 = vpop.f32.mrb[0].mxu0
    %v8153 = vadd.f32 0.0, %v8152
    %v8154 = vpop.f32.mrb[0].mxu0
    %v8155 = vpop.f32.mrb[0].mxu0
    %v8156 = vadd.f32 0.0, %v8155
    %v8157 = vpop.f32.mrb[0].mxu0
    %8158 = vmatprep.mubr.bf16.mxu0 0
    %8159 = vmatmul.mubr.bf16.gmra.mrb[0].mxu0 %v7532
    %v8160 = vpop.f32.mrb[0].mxu0
    %v8161 = vadd.f32 0.0, %v8160
    %v8162 = vpop.f32.mrb[0].mxu0
    %v8163 = vpop.f32.mrb[0].mxu0
    %v8164 = vadd.f32 0.0, %v8163
    %v8165 = vpop.f32.mrb[0].mxu0
    %8166 = vmatprep.mubr.bf16.mxu0 0
    %8167 = vmatmul.mubr.bf16.gmra.mrb[0].mxu0 %v7535
    %v8168 = vpop.f32.mrb[0].mxu0
    %v8169 = vadd.f32 0.0, %v8168
    %v8170 = vpop.f32.mrb[0].mxu0
    %v8171 = vpop.f32.mrb[0].mxu0
    %v8172 = vadd.f32 0.0, %v8171
    %v8173 = vpop.f32.mrb[0].mxu0
    %8174 = vmatprep.mubr.bf16.mxu0 0
    %8175 = vmatmul.mubr.bf16.gmra.mrb[0].mxu0 %v7538
    %v8176 = vpop.f32.mrb[0].mxu0
    %v8177 = vadd.f32 0.0, %v8176
    %v8178 = vpop.f32.mrb[0].mxu0
    %v8179 = vpop.f32.mrb[0].mxu0
    %v8180 = vadd.f32 0.0, %v8179
    %v8181 = vpop.f32.mrb[0].mxu0
    %8182 = vmatprep.mubr.bf16.mxu0 0
    %8183 = vmatmul.mubr.bf16.gmra.mrb[0].mxu0 %v7541
    %v8184 = vpop.f32.mrb[0].mxu0
    %v8185 = vadd.f32 0.0, %v8184
    %v8186 = vpop.f32.mrb[0].mxu0
    %v8187 = vpop.f32.mrb[0].mxu0
    %v8188 = vadd.f32 0.0, %v8187
    %v8189 = vpop.f32.mrb[0].mxu0
    %8190 = vmatprep.mubr.bf16.mxu0 0
    %8191 = vmatmul.mubr.bf16.gmra.mrb[0].mxu0 %v7544
    %v8192 = vpop.f32.mrb[0].mxu0
    %v8193 = vadd.f32 0.0, %v8192
    %v8194 = vpop.f32.mrb[0].mxu0
    %v8195 = vpop.f32.mrb[0].mxu0
    %v8196 = vadd.f32 0.0, %v8195
    %v8197 = vpop.f32.mrb[0].mxu0
    %8198 = vmatprep.mubr.bf16.mxu0 0
    %8199 = vmatmul.mubr.bf16.gmra.mrb[0].mxu0 %v7547
    %v8200 = vpop.f32.mrb[0].mxu0
    %v8201 = vadd.f32 0.0, %v8200
    %v8202 = vpop.f32.mrb[0].mxu0
    %v8203 = vpop.f32.mrb[0].mxu0
    %v8204 = vadd.f32 0.0, %v8203
    %v8205 = vpop.f32.mrb[0].mxu0
    %8206 = vmatprep.mubr.bf16.mxu0 0
    %8207 = vmatmul.mubr.bf16.gmra.mrb[0].mxu0 %v7550
    %v8208 = vpop.f32.mrb[0].mxu0
    %v8209 = vadd.f32 0.0, %v8208
    %v8210 = vpop.f32.mrb[0].mxu0
    %v8211 = vpop.f32.mrb[0].mxu0
    %v8212 = vadd.f32 0.0, %v8211
    %v8213 = vpop.f32.mrb[0].mxu0
    %8214 = vmatprep.mubr.bf16.mxu0 0
    %8215 = vmatmul.mubr.bf16.gmra.mrb[0].mxu0 %v7553
    %v8216 = vpop.f32.mrb[0].mxu0
    %v8217 = vadd.f32 0.0, %v8216
    %v8218 = vpop.f32.mrb[0].mxu0
    %v8219 = vpop.f32.mrb[0].mxu0
    %v8220 = vadd.f32 0.0, %v8219
    %v8221 = vpop.f32.mrb[0].mxu0
    %8222 = vmatprep.mubr.bf16.mxu0 0
    %8223 = vmatmul.mubr.bf16.gmra.mrb[0].mxu0 %v7556
    %v8224 = vpop.f32.mrb[0].mxu0
    %v8225 = vadd.f32 0.0, %v8224
    %v8226 = vpop.f32.mrb[0].mxu0
    %v8227 = vpop.f32.mrb[0].mxu0
    %v8228 = vadd.f32 0.0, %v8227
    %v8229 = vpop.f32.mrb[0].mxu0
    %8230 = vdwg.mxu0
    %v8231 = vld [vmem:[%s3 + $0x44c] sm:$0xf]
    %v8232 = vld [vmem:[%s3 + $0x450] sm:$0xf]
    %v8233 = vld [vmem:[%s3 + $0x454] sm:$0xf]
    %v8234 = vld [vmem:[%s3 + $0x458] sm:$0xf]
    %v8235 = vld [vmem:[%s3 + $0x45c] sm:$0xf]
    %v8236 = vld [vmem:[%s3 + $0x460] sm:$0xf]
    %v8237 = vld [vmem:[%s3 + $0x464] sm:$0xf]
    %v8238 = vld [vmem:[%s3 + $0x468] sm:$0xf]
    %v8239 = vld [vmem:[%s3 + $0x46c] sm:$0xf]
    %v8240 = vld [vmem:[%s3 + $0x470] sm:$0xf]
    %v8241 = vld [vmem:[%s3 + $0x474] sm:$0xf]
    %v8242 = vld [vmem:[%s3 + $0x478] sm:$0xf]
    %v8243 = vld [vmem:[%s3 + $0x47c] sm:$0xf]
    %v8244 = vld [vmem:[%s3 + $0x480] sm:$0xf]
    %v8245 = vld [vmem:[%s3 + $0x484] sm:$0xf]
    %v8246 = vld [vmem:[%s3 + $0x488] sm:$0xf]
    %v8247 = vld [vmem:[%s3 + $0x48c] sm:$0xf]
    %v8248 = vld [vmem:[%s3 + $0x490] sm:$0xf]
    %v8249 = vld [vmem:[%s3 + $0x494] sm:$0xf]
    %v8250 = vld [vmem:[%s3 + $0x498] sm:$0xf]
    %v8251 = vld [vmem:[%s3 + $0x49c] sm:$0xf]
    %v8252 = vld [vmem:[%s3 + $0x4a0] sm:$0xf]
    %v8253 = vld [vmem:[%s3 + $0x4a4] sm:$0xf]
    %v8254 = vld [vmem:[%s3 + $0x4a8] sm:$0xf]
    %v8255 = vld [vmem:[%s3 + $0x4ac] sm:$0xf]
    %v8256 = vld [vmem:[%s3 + $0x4b0] sm:$0xf]
    %v8257 = vld [vmem:[%s3 + $0x4b4] sm:$0xf]
    %v8258 = vld [vmem:[%s3 + $0x4b8] sm:$0xf]
    %v8259 = vld [vmem:[%s3 + $0x4bc] sm:$0xf]
    %v8260 = vld [vmem:[%s3 + $0x4c0] sm:$0xf]
    %v8261 = vld [vmem:[%s3 + $0x4c4] sm:$0xf]
    %v8262 = vld [vmem:[%s3 + $0x4c8] sm:$0xf]
    %v8263 = vld [vmem:[%s3 + $0x4cc] sm:$0xf]
    %v8264 = vld [vmem:[%s3 + $0x4d0] sm:$0xf]
    %v8265 = vld [vmem:[%s3 + $0x4d4] sm:$0xf]
    %v8266 = vld [vmem:[%s3 + $0x4d8] sm:$0xf]
    %v8267 = vunpack.c.l.bf16 %v8231
    %v8268 = vunpack.c.l.bf16 %v8232
    %v8269 = vunpack.c.l.bf16 %v8233
    %v8270 = vunpack.c.l.bf16 %v8234
    %v8271 = vunpack.c.l.bf16 %v8235
    %v8272 = vunpack.c.l.bf16 %v8236
    %v8273 = vunpack.c.l.bf16 %v8237
    %v8274 = vunpack.c.l.bf16 %v8238
    %v8275 = vunpack.c.l.bf16 %v8239
    %v8276 = vunpack.c.l.bf16 %v8240
    %v8277 = vunpack.c.l.bf16 %v8241
    %v8278 = vunpack.c.l.bf16 %v8242
    %v8279 = vunpack.c.l.bf16 %v8243
    %v8280 = vunpack.c.l.bf16 %v8244
    %v8281 = vunpack.c.l.bf16 %v8245
    %v8282 = vunpack.c.l.bf16 %v8246
    %v8283 = vunpack.c.l.bf16 %v8247
    %v8284 = vunpack.c.l.bf16 %v8248
    %v8285 = vunpack.c.l.bf16 %v8249
    %v8286 = vunpack.c.l.bf16 %v8250
    %v8287 = vunpack.c.l.bf16 %v8251
    %v8288 = vunpack.c.l.bf16 %v8252
    %v8289 = vunpack.c.l.bf16 %v8253
    %v8290 = vunpack.c.l.bf16 %v8254
    %v8291 = vunpack.c.l.bf16 %v8255
    %v8292 = vunpack.c.l.bf16 %v8256
    %v8293 = vunpack.c.l.bf16 %v8257
    %v8294 = vunpack.c.l.bf16 %v8258
    %v8295 = vunpack.c.l.bf16 %v8259
    %v8296 = vunpack.c.l.bf16 %v8260
    %v8297 = vunpack.c.l.bf16 %v8261
    %v8298 = vunpack.c.l.bf16 %v8262
    %v8299 = vunpack.c.l.bf16 %v8263
    %v8300 = vunpack.c.l.bf16 %v8264
    %v8301 = vunpack.c.l.bf16 %v8265
    %v8302 = vunpack.c.l.bf16 %v8266
    %v8303 = vmul.f32 %v8089, %v8267
    %v8304 = vmul.f32 %v8092, %v8268
    %v8305 = vmul.f32 %v8097, %v8269
    %v8306 = vmul.f32 %v8100, %v8270
    %v8307 = vmul.f32 %v8105, %v8271
    %v8308 = vmul.f32 %v8108, %v8272
    %v8309 = vmul.f32 %v8113, %v8273
    %v8310 = vmul.f32 %v8116, %v8274
    %v8311 = vmul.f32 %v8121, %v8275
    %v8312 = vmul.f32 %v8124, %v8276
    %v8313 = vmul.f32 %v8129, %v8277
    %v8314 = vmul.f32 %v8132, %v8278
    %v8315 = vmul.f32 %v8137, %v8279
    %v8316 = vmul.f32 %v8140, %v8280
    %v8317 = vmul.f32 %v8145, %v8281
    %v8318 = vmul.f32 %v8148, %v8282
    %v8319 = vmul.f32 %v8153, %v8283
    %v8320 = vmul.f32 %v8156, %v8284
    %v8321 = vmul.f32 %v8161, %v8285
    %v8322 = vmul.f32 %v8164, %v8286
    %v8323 = vmul.f32 %v8169, %v8287
    %v8324 = vmul.f32 %v8172, %v8288
    %v8325 = vmul.f32 %v8177, %v8289
    %v8326 = vmul.f32 %v8180, %v8290
    %v8327 = vmul.f32 %v8185, %v8291
    %v8328 = vmul.f32 %v8188, %v8292
    %v8329 = vmul.f32 %v8193, %v8293
    %v8330 = vmul.f32 %v8196, %v8294
    %v8331 = vmul.f32 %v8201, %v8295
    %v8332 = vmul.f32 %v8204, %v8296
    %v8333 = vmul.f32 %v8209, %v8297
    %v8334 = vmul.f32 %v8212, %v8298
    %v8335 = vmul.f32 %v8217, %v8299
    %v8336 = vmul.f32 %v8220, %v8300
    %v8337 = vmul.f32 %v8225, %v8301
    %v8338 = vmul.f32 %v8228, %v8302
    %v8339 = vadd.f32 %v8303, %v8307
    %v8340 = vadd.f32 %v8304, %v8308
    %v8341 = vadd.f32 %v8305, %v8309
    %v8342 = vadd.f32 %v8306, %v8310
    %v8343 = vadd.f32 %v8339, %v8311
    %v8344 = vadd.f32 %v8340, %v8312
    %v8345 = vadd.f32 %v8341, %v8313
    %v8346 = vadd.f32 %v8342, %v8314
    %v8347 = vadd.f32 %v8343, %v8315
    %v8348 = vadd.f32 %v8344, %v8316
    %v8349 = vadd.f32 %v8345, %v8317
    %v8350 = vadd.f32 %v8346, %v8318
    %v8351 = vadd.f32 %v8347, %v8319
    %v8352 = vadd.f32 %v8348, %v8320
    %v8353 = vadd.f32 %v8349, %v8321
    %v8354 = vadd.f32 %v8350, %v8322
    %v8355 = vadd.f32 %v8351, %v8323
    %v8356 = vadd.f32 %v8352, %v8324
    %v8357 = vadd.f32 %v8353, %v8325
    %v8358 = vadd.f32 %v8354, %v8326
    %v8359 = vadd.f32 %v8355, %v8327
    %v8360 = vadd.f32 %v8356, %v8328
    %v8361 = vadd.f32 %v8357, %v8329
    %v8362 = vadd.f32 %v8358, %v8330
    %v8363 = vadd.f32 %v8359, %v8331
    %v8364 = vadd.f32 %v8360, %v8332
    %v8365 = vadd.f32 %v8361, %v8333
    %v8366 = vadd.f32 %v8362, %v8334
    %v8367 = vadd.f32 %v8363, %v8335
    %v8368 = vadd.f32 %v8364, %v8336
    %v8369 = vadd.f32 %v8365, %v8337
    %v8370 = vadd.f32 %v8366, %v8338
    %v8371 = vld [vmem:[%s4 + $0x58] sm:$0x1]
    %v8372 = vlaneseq
    %v8373 = vshrl.u32 %v8372, 7
    %v8374 = vsub.s32 0, %v8373
    %v8375 = vrot.slane %v8371, %v8374
    %v8376 = vadd.f32 %v8367, %v8375
    %v8377 = vadd.f32 %v8368, %v8375
    %v8378 = vadd.f32 %v8369, %v8375
    %v8379 = vadd.f32 %v8370, %v8375
    %v8380 = vmax.f32 %v8376, 0.0
    %v8381 = vmax.f32 %v8377, 0.0
    %v8382 = vmax.f32 %v8378, 0.0
    %v8383 = vmax.f32 %v8379, 0.0
    %v8384 = vmin.f32 %v8380, 6.0
    %v8385 = vmin.f32 %v8381, 6.0
    %v8386 = vmin.f32 %v8382, 6.0
    %v8387 = vmin.f32 %v8383, 6.0
    %v8388 = vld [vmem:[%s3 + $0x4dc] sm:$0xf]
    %v8389 = vld [vmem:[%s3 + $0x4e0] sm:$0xf]
    %v8390 = vld [vmem:[%s3 + $0x4e4] sm:$0xf]
    %v8391 = vld [vmem:[%s3 + $0x4e8] sm:$0xf]
    %v8392 = vpack.c.bf16 %v8385, %v8384
    %v8393 = vpack.c.bf16 %v8387, %v8386
    %v8394 = vld [vmem:[%s4 + $0x60] sm:$0x1]
    %v8395 = vlaneseq
    %v8396 = vshrl.u32 %v8395, 7
    %v8397 = vsub.s32 0, %v8396
    %v8398 = vrot.slane %v8394, %v8397
    %v8403 = vunpack.c.l.b16 %v8388
    %v8404 = vunpack.c.l.b16 %v8389
    %v8405 = vunpack.c.l.b16 %v8390
    %v8406 = vunpack.c.l.b16 %v8391
    %v8407 = vpack.c.b16 %v8404, %v8403
    %v8408 = vpack.c.b16 %v8406, %v8405
    %v8412 = vsel %vm7503, %v8392, 0
    %v8415 = vsel %vm7503, %v8393, 0
    %8417 = vmatprep.subr.bf16.mxu0 0
    %8418 = vmatpush1.bf16.msra.mxu0 %v8407
    %8419 = vmatprep.subr.bf16.mxu0 0
    %8420 = vmatpush1.bf16.msra.mxu0 %v8408
    %8421 = vmatprep.subr.bf16.mxu0 0
    %8422 = vmatpush1.bf16.msra.mxu0 0
    %8423 = vmatprep.subr.bf16.mxu0 0
    %8424 = vmatpush1.bf16.msra.mxu0 0
    %8425 = vmatprep.subr.bf16.mxu0 0
    %8426 = vmatpush1.bf16.msra.mxu0 0
    %8427 = vmatprep.subr.bf16.mxu0 0
    %8428 = vmatpush1.bf16.msra.mxu0 0
    %8429 = vmatprep.subr.bf16.mxu0 0
    %8430 = vmatpush1.bf16.msra.mxu0 0
    %8431 = vmatprep.subr.bf16.mxu0 0
    %8432 = vmatpush1.bf16.msra.mxu0 0
    %8433 = vmatprep.subr.bf16.mxu0 0
    %8434 = vmatpush1.bf16.msra.mxu0 0
    %8435 = vmatprep.subr.bf16.mxu0 0
    %8436 = vmatpush1.bf16.msra.mxu0 0
    %8437 = vmatprep.subr.bf16.mxu0 0
    %8438 = vmatpush1.bf16.msra.mxu0 0
    %8439 = vmatprep.subr.bf16.mxu0 0
    %8440 = vmatpush1.bf16.msra.mxu0 0
    %8441 = vmatprep.subr.bf16.mxu0 0
    %8442 = vmatpush1.bf16.msra.mxu0 0
    %8443 = vmatprep.subr.bf16.mxu0 0
    %8444 = vmatpush1.bf16.msra.mxu0 0
    %8445 = vmatprep.subr.bf16.mxu0 0
    %8446 = vmatpush1.bf16.msra.mxu0 0
    %8447 = vmatprep.subr.bf16.mxu0 0
    %8448 = vmatpush1.bf16.msra.mxu0 0
    %8449 = vmatprep.mubr.bf16.mxu0 0
    %8450 = vmatmul.mubr.bf16.gmra.mrb[0].mxu0 %v8412
    %v8451 = vpop.f32.mrb[0].mxu0
    %v8452 = vadd.f32 %v8398, %v8451
    %v8453 = vpop.f32.mrb[0].mxu0
    %v8454 = vpop.f32.mrb[0].mxu0
    %v8455 = vadd.f32 %v8398, %v8454
    %v8456 = vpop.f32.mrb[0].mxu0
    %8457 = vmatprep.mubr.bf16.mxu0 0
    %8458 = vmatmul.mubr.bf16.gmra.mrb[0].mxu0 %v8415
    %v8459 = vpop.f32.mrb[0].mxu0
    %v8460 = vadd.f32 %v8398, %v8459
    %v8461 = vpop.f32.mrb[0].mxu0
    %v8462 = vpop.f32.mrb[0].mxu0
    %v8463 = vadd.f32 %v8398, %v8462
    %v8464 = vpop.f32.mrb[0].mxu0
    %8465 = vdwg.mxu0
    %v8466 = vadd.f32 %v8452, %v7970
    %v8467 = vadd.f32 %v8455, %v7971
    %v8468 = vadd.f32 %v8460, %v7972
    %v8469 = vadd.f32 %v8463, %v7973
    %v8470 = vld [vmem:[%s3 + $0x4ec] sm:$0xf]
    %v8471 = vld [vmem:[%s3 + $0x4f0] sm:$0xf]
    %v8472 = vpack.c.bf16 %v8467, %v8466
    %v8473 = vpack.c.bf16 %v8469, %v8468
    %v8474 = vld [vmem:[%s4 + $0x68] sm:$0x1]
    %v8475 = vlaneseq
    %v8476 = vshrl.u32 %v8475, 7
    %v8477 = vsub.s32 0, %v8476
    %v8478 = vrot.slane %v8474, %v8477
    %v8481 = vunpack.c.l.b16 %v8470
    %v8482 = vunpack.c.l.b16 %v8471
    %v8483 = vpack.c.b16 %v8482, %v8481
    %v8486 = vsel %vm6433, %v8472, 0
    %v8489 = vsel %vm6433, %v8473, 0
    %8491 = vmatprep.subr.bf16.mxu0 0
    %8492 = vmatpush1.bf16.msra.mxu0 %v8483
    %8493 = vmatprep.subr.bf16.mxu0 0
    %8494 = vmatpush1.bf16.msra.mxu0 0
    %8495 = vmatprep.subr.bf16.mxu0 0
    %8496 = vmatpush1.bf16.msra.mxu0 0
    %8497 = vmatprep.subr.bf16.mxu0 0
    %8498 = vmatpush1.bf16.msra.mxu0 0
    %8499 = vmatprep.subr.bf16.mxu0 0
    %8500 = vmatpush1.bf16.msra.mxu0 0
    %8501 = vmatprep.subr.bf16.mxu0 0
    %8502 = vmatpush1.bf16.msra.mxu0 0
    %8503 = vmatprep.subr.bf16.mxu0 0
    %8504 = vmatpush1.bf16.msra.mxu0 0
    %8505 = vmatprep.subr.bf16.mxu0 0
    %8506 = vmatpush1.bf16.msra.mxu0 0
    %8507 = vmatprep.subr.bf16.mxu0 0
    %8508 = vmatpush1.bf16.msra.mxu0 0
    %8509 = vmatprep.subr.bf16.mxu0 0
    %8510 = vmatpush1.bf16.msra.mxu0 0
    %8511 = vmatprep.subr.bf16.mxu0 0
    %8512 = vmatpush1.bf16.msra.mxu0 0
    %8513 = vmatprep.subr.bf16.mxu0 0
    %8514 = vmatpush1.bf16.msra.mxu0 0
    %8515 = vmatprep.subr.bf16.mxu0 0
    %8516 = vmatpush1.bf16.msra.mxu0 0
    %8517 = vmatprep.subr.bf16.mxu0 0
    %8518 = vmatpush1.bf16.msra.mxu0 0
    %8519 = vmatprep.subr.bf16.mxu0 0
    %8520 = vmatpush1.bf16.msra.mxu0 0
    %8521 = vmatprep.subr.bf16.mxu0 0
    %8522 = vmatpush1.bf16.msra.mxu0 0
    %8523 = vmatprep.mubr.bf16.mxu0 0
    %8524 = vmatmul.mubr.bf16.gmra.mrb[0].mxu0 %v8486
    %v8525 = vpop.f32.mrb[0].mxu0
    %v8526 = vadd.f32 %v8478, %v8525
    %v8527 = vpop.f32.mrb[0].mxu0
    %v8528 = vpop.f32.mrb[0].mxu0
    %v8529 = vadd.f32 %v8478, %v8528
    %v8530 = vpop.f32.mrb[0].mxu0
    %8531 = vmatprep.mubr.bf16.mxu0 0
    %8532 = vmatmul.mubr.bf16.gmra.mrb[0].mxu0 %v8489
    %v8533 = vpop.f32.mrb[0].mxu0
    %v8534 = vadd.f32 %v8478, %v8533
    %v8535 = vpop.f32.mrb[0].mxu0
    %v8536 = vpop.f32.mrb[0].mxu0
    %v8537 = vadd.f32 %v8478, %v8536
    %v8538 = vpop.f32.mrb[0].mxu0
    %8539 = vdwg.mxu0
    %v8540 = vmax.f32 %v8526, 0.0
    %v8541 = vmax.f32 %v8529, 0.0
    %v8542 = vmax.f32 %v8534, 0.0
    %v8543 = vmax.f32 %v8537, 0.0
    %v8544 = vmin.f32 %v8540, 6.0
    %v8545 = vmin.f32 %v8541, 6.0
    %v8546 = vmin.f32 %v8542, 6.0
    %v8547 = vmin.f32 %v8543, 6.0
    %v8548 = vpack.c.bf16 %v8545, %v8544
    %v8549 = vpack.c.bf16 %v8547, %v8546
    %8550 = vmatprep.subr.bf16.mxu0 0
    %8551 = vmatpush1.bf16.msra.mxu0 %v8548
    %8552 = vmatprep.subr.bf16.mxu0 0
    %8553 = vmatpush1.bf16.msra.mxu0 %v8549
    %8554 = vmatprep.subr.bf16.mxu0 0
    %8555 = vmatpush1.bf16.msra.mxu0 0
    %8556 = vmatprep.subr.bf16.mxu0 0
    %8557 = vmatpush1.bf16.msra.mxu0 0
    %8558 = vmatprep.subr.bf16.mxu0 0
    %8559 = vmatpush1.bf16.msra.mxu0 0
    %8560 = vmatprep.subr.bf16.mxu0 0
    %8561 = vmatpush1.bf16.msra.mxu0 0
    %8562 = vmatprep.subr.bf16.mxu0 0
    %8563 = vmatpush1.bf16.msra.mxu0 0
    %8564 = vmatprep.subr.bf16.mxu0 0
    %8565 = vmatpush1.bf16.msra.mxu0 0
    %8566 = vmatprep.subr.bf16.mxu0 0
    %8567 = vmatpush1.bf16.msra.mxu0 0
    %8568 = vmatprep.subr.bf16.mxu0 0
    %8569 = vmatpush1.bf16.msra.mxu0 0
    %8570 = vmatprep.subr.bf16.mxu0 0
    %8571 = vmatpush1.bf16.msra.mxu0 0
    %8572 = vmatprep.subr.bf16.mxu0 0
    %8573 = vmatpush1.bf16.msra.mxu0 0
    %8574 = vmatprep.subr.bf16.mxu0 0
    %8575 = vmatpush1.bf16.msra.mxu0 0
    %8576 = vmatprep.subr.bf16.mxu0 0
    %8577 = vmatpush1.bf16.msra.mxu0 0
    %8578 = vmatprep.subr.bf16.mxu0 0
    %8579 = vmatpush1.bf16.msra.mxu0 0
    %8580 = vmatprep.subr.bf16.mxu0 0
    %8581 = vmatpush1.bf16.msra.mxu0 0
    %8582 = vmatprep.mubr.bf16.mxu0 0
    %8583 = vmatmul.mubr.bf16.gmra.mrb[0].mxu0 %v7505
    %v8584 = vpop.f32.mrb[0].mxu0
    %v8585 = vadd.f32 0.0, %v8584
    %v8586 = vpop.f32.mrb[0].mxu0
    %v8587 = vpop.f32.mrb[0].mxu0
    %v8588 = vadd.f32 0.0, %v8587
    %v8589 = vpop.f32.mrb[0].mxu0
    %8590 = vmatprep.mubr.bf16.mxu0 0
    %8591 = vmatmul.mubr.bf16.gmra.mrb[0].mxu0 %v7508
    %v8592 = vpop.f32.mrb[0].mxu0
    %v8593 = vadd.f32 0.0, %v8592
    %v8594 = vpop.f32.mrb[0].mxu0
    %v8595 = vpop.f32.mrb[0].mxu0
    %v8596 = vadd.f32 0.0, %v8595
    %v8597 = vpop.f32.mrb[0].mxu0
    %8598 = vmatprep.mubr.bf16.mxu0 0
    %8599 = vmatmul.mubr.bf16.gmra.mrb[0].mxu0 %v7511
    %v8600 = vpop.f32.mrb[0].mxu0
    %v8601 = vadd.f32 0.0, %v8600
    %v8602 = vpop.f32.mrb[0].mxu0
    %v8603 = vpop.f32.mrb[0].mxu0
    %v8604 = vadd.f32 0.0, %v8603
    %v8605 = vpop.f32.mrb[0].mxu0
    %8606 = vmatprep.mubr.bf16.mxu0 0
    %8607 = vmatmul.mubr.bf16.gmra.mrb[0].mxu0 %v7514
    %v8608 = vpop.f32.mrb[0].mxu0
    %v8609 = vadd.f32 0.0, %v8608
    %v8610 = vpop.f32.mrb[0].mxu0
    %v8611 = vpop.f32.mrb[0].mxu0
    %v8612 = vadd.f32 0.0, %v8611
    %v8613 = vpop.f32.mrb[0].mxu0
    %8614 = vmatprep.mubr.bf16.mxu0 0
    %8615 = vmatmul.mubr.bf16.gmra.mrb[0].mxu0 %v7517
    %v8616 = vpop.f32.mrb[0].mxu0
    %v8617 = vadd.f32 0.0, %v8616
    %v8618 = vpop.f32.mrb[0].mxu0
    %v8619 = vpop.f32.mrb[0].mxu0
    %v8620 = vadd.f32 0.0, %v8619
    %v8621 = vpop.f32.mrb[0].mxu0
    %8622 = vmatprep.mubr.bf16.mxu0 0
    %8623 = vmatmul.mubr.bf16.gmra.mrb[0].mxu0 %v7520
    %v8624 = vpop.f32.mrb[0].mxu0
    %v8625 = vadd.f32 0.0, %v8624
    %v8626 = vpop.f32.mrb[0].mxu0
    %v8627 = vpop.f32.mrb[0].mxu0
    %v8628 = vadd.f32 0.0, %v8627
    %v8629 = vpop.f32.mrb[0].mxu0
    %8630 = vmatprep.mubr.bf16.mxu0 0
    %8631 = vmatmul.mubr.bf16.gmra.mrb[0].mxu0 %v7523
    %v8632 = vpop.f32.mrb[0].mxu0
    %v8633 = vadd.f32 0.0, %v8632
    %v8634 = vpop.f32.mrb[0].mxu0
    %v8635 = vpop.f32.mrb[0].mxu0
    %v8636 = vadd.f32 0.0, %v8635
    %v8637 = vpop.f32.mrb[0].mxu0
    %8638 = vmatprep.mubr.bf16.mxu0 0
    %8639 = vmatmul.mubr.bf16.gmra.mrb[0].mxu0 %v7526
    %v8640 = vpop.f32.mrb[0].mxu0
    %v8641 = vadd.f32 0.0, %v8640
    %v8642 = vpop.f32.mrb[0].mxu0
    %v8643 = vpop.f32.mrb[0].mxu0
    %v8644 = vadd.f32 0.0, %v8643
    %v8645 = vpop.f32.mrb[0].mxu0
    %8646 = vmatprep.mubr.bf16.mxu0 0
    %8647 = vmatmul.mubr.bf16.gmra.mrb[0].mxu0 %v7529
    %v8648 = vpop.f32.mrb[0].mxu0
    %v8649 = vadd.f32 0.0, %v8648
    %v8650 = vpop.f32.mrb[0].mxu0
    %v8651 = vpop.f32.mrb[0].mxu0
    %v8652 = vadd.f32 0.0, %v8651
    %v8653 = vpop.f32.mrb[0].mxu0
    %8654 = vmatprep.mubr.bf16.mxu0 0
    %8655 = vmatmul.mubr.bf16.gmra.mrb[0].mxu0 %v7532
    %v8656 = vpop.f32.mrb[0].mxu0
    %v8657 = vadd.f32 0.0, %v8656
    %v8658 = vpop.f32.mrb[0].mxu0
    %v8659 = vpop.f32.mrb[0].mxu0
    %v8660 = vadd.f32 0.0, %v8659
    %v8661 = vpop.f32.mrb[0].mxu0
    %8662 = vmatprep.mubr.bf16.mxu0 0
    %8663 = vmatmul.mubr.bf16.gmra.mrb[0].mxu0 %v7535
    %v8664 = vpop.f32.mrb[0].mxu0
    %v8665 = vadd.f32 0.0, %v8664
    %v8666 = vpop.f32.mrb[0].mxu0
    %v8667 = vpop.f32.mrb[0].mxu0
    %v8668 = vadd.f32 0.0, %v8667
    %v8669 = vpop.f32.mrb[0].mxu0
    %8670 = vmatprep.mubr.bf16.mxu0 0
    %8671 = vmatmul.mubr.bf16.gmra.mrb[0].mxu0 %v7538
    %v8672 = vpop.f32.mrb[0].mxu0
    %v8673 = vadd.f32 0.0, %v8672
    %v8674 = vpop.f32.mrb[0].mxu0
    %v8675 = vpop.f32.mrb[0].mxu0
    %v8676 = vadd.f32 0.0, %v8675
    %v8677 = vpop.f32.mrb[0].mxu0
    %8678 = vmatprep.mubr.bf16.mxu0 0
    %8679 = vmatmul.mubr.bf16.gmra.mrb[0].mxu0 %v7541
    %v8680 = vpop.f32.mrb[0].mxu0
    %v8681 = vadd.f32 0.0, %v8680
    %v8682 = vpop.f32.mrb[0].mxu0
    %v8683 = vpop.f32.mrb[0].mxu0
    %v8684 = vadd.f32 0.0, %v8683
    %v8685 = vpop.f32.mrb[0].mxu0
    %8686 = vmatprep.mubr.bf16.mxu0 0
    %8687 = vmatmul.mubr.bf16.gmra.mrb[0].mxu0 %v7544
    %v8688 = vpop.f32.mrb[0].mxu0
    %v8689 = vadd.f32 0.0, %v8688
    %v8690 = vpop.f32.mrb[0].mxu0
    %v8691 = vpop.f32.mrb[0].mxu0
    %v8692 = vadd.f32 0.0, %v8691
    %v8693 = vpop.f32.mrb[0].mxu0
    %8694 = vmatprep.mubr.bf16.mxu0 0
    %8695 = vmatmul.mubr.bf16.gmra.mrb[0].mxu0 %v7547
    %v8696 = vpop.f32.mrb[0].mxu0
    %v8697 = vadd.f32 0.0, %v8696
    %v8698 = vpop.f32.mrb[0].mxu0
    %v8699 = vpop.f32.mrb[0].mxu0
    %v8700 = vadd.f32 0.0, %v8699
    %v8701 = vpop.f32.mrb[0].mxu0
    %8702 = vmatprep.mubr.bf16.mxu0 0
    %8703 = vmatmul.mubr.bf16.gmra.mrb[0].mxu0 %v7550
    %v8704 = vpop.f32.mrb[0].mxu0
    %v8705 = vadd.f32 0.0, %v8704
    %v8706 = vpop.f32.mrb[0].mxu0
    %v8707 = vpop.f32.mrb[0].mxu0
    %v8708 = vadd.f32 0.0, %v8707
    %v8709 = vpop.f32.mrb[0].mxu0
    %8710 = vmatprep.mubr.bf16.mxu0 0
    %8711 = vmatmul.mubr.bf16.gmra.mrb[0].mxu0 %v7553
    %v8712 = vpop.f32.mrb[0].mxu0
    %v8713 = vadd.f32 0.0, %v8712
    %v8714 = vpop.f32.mrb[0].mxu0
    %v8715 = vpop.f32.mrb[0].mxu0
    %v8716 = vadd.f32 0.0, %v8715
    %v8717 = vpop.f32.mrb[0].mxu0
    %8718 = vmatprep.mubr.bf16.mxu0 0
    %8719 = vmatmul.mubr.bf16.gmra.mrb[0].mxu0 %v7556
    %v8720 = vpop.f32.mrb[0].mxu0
    %v8721 = vadd.f32 0.0, %v8720
    %v8722 = vpop.f32.mrb[0].mxu0
    %v8723 = vpop.f32.mrb[0].mxu0
    %v8724 = vadd.f32 0.0, %v8723
    %v8725 = vpop.f32.mrb[0].mxu0
    %8726 = vdwg.mxu0
    %v8727 = vld [vmem:[%s3 + $0x4f4] sm:$0xf]
    %v8728 = vld [vmem:[%s3 + $0x4f8] sm:$0xf]
    %v8729 = vld [vmem:[%s3 + $0x4fc] sm:$0xf]
    %v8730 = vld [vmem:[%s3 + $0x500] sm:$0xf]
    %v8731 = vld [vmem:[%s3 + $0x504] sm:$0xf]
    %v8732 = vld [vmem:[%s3 + $0x508] sm:$0xf]
    %v8733 = vld [vmem:[%s3 + $0x50c] sm:$0xf]
    %v8734 = vld [vmem:[%s3 + $0x510] sm:$0xf]
    %v8735 = vld [vmem:[%s3 + $0x514] sm:$0xf]
    %v8736 = vld [vmem:[%s3 + $0x518] sm:$0xf]
    %v8737 = vld [vmem:[%s3 + $0x51c] sm:$0xf]
    %v8738 = vld [vmem:[%s3 + $0x520] sm:$0xf]
    %v8739 = vld [vmem:[%s3 + $0x524] sm:$0xf]
    %v8740 = vld [vmem:[%s3 + $0x528] sm:$0xf]
    %v8741 = vld [vmem:[%s3 + $0x52c] sm:$0xf]
    %v8742 = vld [vmem:[%s3 + $0x530] sm:$0xf]
    %v8743 = vld [vmem:[%s3 + $0x534] sm:$0xf]
    %v8744 = vld [vmem:[%s3 + $0x538] sm:$0xf]
    %v8745 = vld [vmem:[%s3 + $0x53c] sm:$0xf]
    %v8746 = vld [vmem:[%s3 + $0x540] sm:$0xf]
    %v8747 = vld [vmem:[%s3 + $0x544] sm:$0xf]
    %v8748 = vld [vmem:[%s3 + $0x548] sm:$0xf]
    %v8749 = vld [vmem:[%s3 + $0x54c] sm:$0xf]
    %v8750 = vld [vmem:[%s3 + $0x550] sm:$0xf]
    %v8751 = vld [vmem:[%s3 + $0x554] sm:$0xf]
    %v8752 = vld [vmem:[%s3 + $0x558] sm:$0xf]
    %v8753 = vld [vmem:[%s3 + $0x55c] sm:$0xf]
    %v8754 = vld [vmem:[%s3 + $0x560] sm:$0xf]
    %v8755 = vld [vmem:[%s3 + $0x564] sm:$0xf]
    %v8756 = vld [vmem:[%s3 + $0x568] sm:$0xf]
    %v8757 = vld [vmem:[%s3 + $0x56c] sm:$0xf]
    %v8758 = vld [vmem:[%s3 + $0x570] sm:$0xf]
    %v8759 = vld [vmem:[%s3 + $0x574] sm:$0xf]
    %v8760 = vld [vmem:[%s3 + $0x578] sm:$0xf]
    %v8761 = vld [vmem:[%s3 + $0x57c] sm:$0xf]
    %v8762 = vld [vmem:[%s3 + $0x580] sm:$0xf]
    %v8763 = vunpack.c.l.bf16 %v8727
    %v8764 = vunpack.c.l.bf16 %v8728
    %v8765 = vunpack.c.l.bf16 %v8729
    %v8766 = vunpack.c.l.bf16 %v8730
    %v8767 = vunpack.c.l.bf16 %v8731
    %v8768 = vunpack.c.l.bf16 %v8732
    %v8769 = vunpack.c.l.bf16 %v8733
    %v8770 = vunpack.c.l.bf16 %v8734
    %v8771 = vunpack.c.l.bf16 %v8735
    %v8772 = vunpack.c.l.bf16 %v8736
    %v8773 = vunpack.c.l.bf16 %v8737
    %v8774 = vunpack.c.l.bf16 %v8738
    %v8775 = vunpack.c.l.bf16 %v8739
    %v8776 = vunpack.c.l.bf16 %v8740
    %v8777 = vunpack.c.l.bf16 %v8741
    %v8778 = vunpack.c.l.bf16 %v8742
    %v8779 = vunpack.c.l.bf16 %v8743
    %v8780 = vunpack.c.l.bf16 %v8744
    %v8781 = vunpack.c.l.bf16 %v8745
    %v8782 = vunpack.c.l.bf16 %v8746
    %v8783 = vunpack.c.l.bf16 %v8747
    %v8784 = vunpack.c.l.bf16 %v8748
    %v8785 = vunpack.c.l.bf16 %v8749
    %v8786 = vunpack.c.l.bf16 %v8750
    %v8787 = vunpack.c.l.bf16 %v8751
    %v8788 = vunpack.c.l.bf16 %v8752
    %v8789 = vunpack.c.l.bf16 %v8753
    %v8790 = vunpack.c.l.bf16 %v8754
    %v8791 = vunpack.c.l.bf16 %v8755
    %v8792 = vunpack.c.l.bf16 %v8756
    %v8793 = vunpack.c.l.bf16 %v8757
    %v8794 = vunpack.c.l.bf16 %v8758
    %v8795 = vunpack.c.l.bf16 %v8759
    %v8796 = vunpack.c.l.bf16 %v8760
    %v8797 = vunpack.c.l.bf16 %v8761
    %v8798 = vunpack.c.l.bf16 %v8762
    %v8799 = vmul.f32 %v8585, %v8763
    %v8800 = vmul.f32 %v8588, %v8764
    %v8801 = vmul.f32 %v8593, %v8765
    %v8802 = vmul.f32 %v8596, %v8766
    %v8803 = vmul.f32 %v8601, %v8767
    %v8804 = vmul.f32 %v8604, %v8768
    %v8805 = vmul.f32 %v8609, %v8769
    %v8806 = vmul.f32 %v8612, %v8770
    %v8807 = vmul.f32 %v8617, %v8771
    %v8808 = vmul.f32 %v8620, %v8772
    %v8809 = vmul.f32 %v8625, %v8773
    %v8810 = vmul.f32 %v8628, %v8774
    %v8811 = vmul.f32 %v8633, %v8775
    %v8812 = vmul.f32 %v8636, %v8776
    %v8813 = vmul.f32 %v8641, %v8777
    %v8814 = vmul.f32 %v8644, %v8778
    %v8815 = vmul.f32 %v8649, %v8779
    %v8816 = vmul.f32 %v8652, %v8780
    %v8817 = vmul.f32 %v8657, %v8781
    %v8818 = vmul.f32 %v8660, %v8782
    %v8819 = vmul.f32 %v8665, %v8783
    %v8820 = vmul.f32 %v8668, %v8784
    %v8821 = vmul.f32 %v8673, %v8785
    %v8822 = vmul.f32 %v8676, %v8786
    %v8823 = vmul.f32 %v8681, %v8787
    %v8824 = vmul.f32 %v8684, %v8788
    %v8825 = vmul.f32 %v8689, %v8789
    %v8826 = vmul.f32 %v8692, %v8790
    %v8827 = vmul.f32 %v8697, %v8791
    %v8828 = vmul.f32 %v8700, %v8792
    %v8829 = vmul.f32 %v8705, %v8793
    %v8830 = vmul.f32 %v8708, %v8794
    %v8831 = vmul.f32 %v8713, %v8795
    %v8832 = vmul.f32 %v8716, %v8796
    %v8833 = vmul.f32 %v8721, %v8797
    %v8834 = vmul.f32 %v8724, %v8798
    %v8835 = vadd.f32 %v8799, %v8803
    %v8836 = vadd.f32 %v8800, %v8804
    %v8837 = vadd.f32 %v8801, %v8805
    %v8838 = vadd.f32 %v8802, %v8806
    %v8839 = vadd.f32 %v8835, %v8807
    %v8840 = vadd.f32 %v8836, %v8808
    %v8841 = vadd.f32 %v8837, %v8809
    %v8842 = vadd.f32 %v8838, %v8810
    %v8843 = vadd.f32 %v8839, %v8811
    %v8844 = vadd.f32 %v8840, %v8812
    %v8845 = vadd.f32 %v8841, %v8813
    %v8846 = vadd.f32 %v8842, %v8814
    %v8847 = vadd.f32 %v8843, %v8815
    %v8848 = vadd.f32 %v8844, %v8816
    %v8849 = vadd.f32 %v8845, %v8817
    %v8850 = vadd.f32 %v8846, %v8818
    %v8851 = vadd.f32 %v8847, %v8819
    %v8852 = vadd.f32 %v8848, %v8820
    %v8853 = vadd.f32 %v8849, %v8821
    %v8854 = vadd.f32 %v8850, %v8822
    %v8855 = vadd.f32 %v8851, %v8823
    %v8856 = vadd.f32 %v8852, %v8824
    %v8857 = vadd.f32 %v8853, %v8825
    %v8858 = vadd.f32 %v8854, %v8826
    %v8859 = vadd.f32 %v8855, %v8827
    %v8860 = vadd.f32 %v8856, %v8828
    %v8861 = vadd.f32 %v8857, %v8829
    %v8862 = vadd.f32 %v8858, %v8830
    %v8863 = vadd.f32 %v8859, %v8831
    %v8864 = vadd.f32 %v8860, %v8832
    %v8865 = vadd.f32 %v8861, %v8833
    %v8866 = vadd.f32 %v8862, %v8834
    %v8867 = vld [vmem:[%s4 + $0x70] sm:$0x1]
    %v8868 = vlaneseq
    %v8869 = vshrl.u32 %v8868, 7
    %v8870 = vsub.s32 0, %v8869
    %v8871 = vrot.slane %v8867, %v8870
    %v8872 = vadd.f32 %v8863, %v8871
    %v8873 = vadd.f32 %v8864, %v8871
    %v8874 = vadd.f32 %v8865, %v8871
    %v8875 = vadd.f32 %v8866, %v8871
    %v8876 = vmax.f32 %v8872, 0.0
    %v8877 = vmax.f32 %v8873, 0.0
    %v8878 = vmax.f32 %v8874, 0.0
    %v8879 = vmax.f32 %v8875, 0.0
    %v8880 = vmin.f32 %v8876, 6.0
    %v8881 = vmin.f32 %v8877, 6.0
    %v8882 = vmin.f32 %v8878, 6.0
    %v8883 = vmin.f32 %v8879, 6.0
    %v8884 = vld [vmem:[%s3 + $0x584] sm:$0xf]
    %v8885 = vld [vmem:[%s3 + $0x588] sm:$0xf]
    %v8886 = vld [vmem:[%s3 + $0x58c] sm:$0xf]
    %v8887 = vld [vmem:[%s3 + $0x590] sm:$0xf]
    %v8888 = vpack.c.bf16 %v8881, %v8880
    %v8889 = vpack.c.bf16 %v8883, %v8882
    %v8890 = vld [vmem:[%s4 + $0x78] sm:$0x1]
    %v8891 = vlaneseq
    %v8892 = vshrl.u32 %v8891, 7
    %v8893 = vsub.s32 0, %v8892
    %v8894 = vrot.slane %v8890, %v8893
    %v8899 = vunpack.c.l.b16 %v8884
    %v8900 = vunpack.c.l.b16 %v8885
    %v8901 = vunpack.c.l.b16 %v8886
    %v8902 = vunpack.c.l.b16 %v8887
    %v8903 = vpack.c.b16 %v8900, %v8899
    %v8904 = vpack.c.b16 %v8902, %v8901
    %v8908 = vsel %vm7503, %v8888, 0
    %v8911 = vsel %vm7503, %v8889, 0
    %8913 = vmatprep.subr.bf16.mxu0 0
    %8914 = vmatpush1.bf16.msra.mxu0 %v8903
    %8915 = vmatprep.subr.bf16.mxu0 0
    %8916 = vmatpush1.bf16.msra.mxu0 %v8904
    %8917 = vmatprep.subr.bf16.mxu0 0
    %8918 = vmatpush1.bf16.msra.mxu0 0
    %8919 = vmatprep.subr.bf16.mxu0 0
    %8920 = vmatpush1.bf16.msra.mxu0 0
    %8921 = vmatprep.subr.bf16.mxu0 0
    %8922 = vmatpush1.bf16.msra.mxu0 0
    %8923 = vmatprep.subr.bf16.mxu0 0
    %8924 = vmatpush1.bf16.msra.mxu0 0
    %8925 = vmatprep.subr.bf16.mxu0 0
    %8926 = vmatpush1.bf16.msra.mxu0 0
    %8927 = vmatprep.subr.bf16.mxu0 0
    %8928 = vmatpush1.bf16.msra.mxu0 0
    %8929 = vmatprep.subr.bf16.mxu0 0
    %8930 = vmatpush1.bf16.msra.mxu0 0
    %8931 = vmatprep.subr.bf16.mxu0 0
    %8932 = vmatpush1.bf16.msra.mxu0 0
    %8933 = vmatprep.subr.bf16.mxu0 0
    %8934 = vmatpush1.bf16.msra.mxu0 0
    %8935 = vmatprep.subr.bf16.mxu0 0
    %8936 = vmatpush1.bf16.msra.mxu0 0
    %8937 = vmatprep.subr.bf16.mxu0 0
    %8938 = vmatpush1.bf16.msra.mxu0 0
    %8939 = vmatprep.subr.bf16.mxu0 0
    %8940 = vmatpush1.bf16.msra.mxu0 0
    %8941 = vmatprep.subr.bf16.mxu0 0
    %8942 = vmatpush1.bf16.msra.mxu0 0
    %8943 = vmatprep.subr.bf16.mxu0 0
    %8944 = vmatpush1.bf16.msra.mxu0 0
    %8945 = vmatprep.mubr.bf16.mxu0 0
    %8946 = vmatmul.mubr.bf16.gmra.mrb[0].mxu0 %v8908
    %v8947 = vpop.f32.mrb[0].mxu0
    %v8948 = vadd.f32 %v8894, %v8947
    %v8949 = vpop.f32.mrb[0].mxu0
    %v8950 = vpop.f32.mrb[0].mxu0
    %v8951 = vadd.f32 %v8894, %v8950
    %v8952 = vpop.f32.mrb[0].mxu0
    %8953 = vmatprep.mubr.bf16.mxu0 0
    %8954 = vmatmul.mubr.bf16.gmra.mrb[0].mxu0 %v8911
    %v8955 = vpop.f32.mrb[0].mxu0
    %v8956 = vadd.f32 %v8894, %v8955
    %v8957 = vpop.f32.mrb[0].mxu0
    %v8958 = vpop.f32.mrb[0].mxu0
    %v8959 = vadd.f32 %v8894, %v8958
    %v8960 = vpop.f32.mrb[0].mxu0
    %8961 = vdwg.mxu0
    %v8962 = vadd.f32 %v8948, %v8466
    %v8963 = vadd.f32 %v8951, %v8467
    %v8964 = vadd.f32 %v8956, %v8468
    %v8965 = vadd.f32 %v8959, %v8469
    %v8966 = vld [vmem:[%s3 + $0x594] sm:$0xf]
    %v8967 = vld [vmem:[%s3 + $0x598] sm:$0xf]
    %v8968 = vpack.c.bf16 %v8963, %v8962
    %v8969 = vpack.c.bf16 %v8965, %v8964
    %v8970 = vld [vmem:[%s4 + $0x80] sm:$0x1]
    %v8971 = vlaneseq
    %v8972 = vshrl.u32 %v8971, 7
    %v8973 = vsub.s32 0, %v8972
    %v8974 = vrot.slane %v8970, %v8973
    %v8977 = vunpack.c.l.b16 %v8966
    %v8978 = vunpack.c.l.b16 %v8967
    %v8979 = vpack.c.b16 %v8978, %v8977
    %v8982 = vsel %vm6433, %v8968, 0
    %v8985 = vsel %vm6433, %v8969, 0
    %8987 = vmatprep.subr.bf16.mxu0 0
    %8988 = vmatpush1.bf16.msra.mxu0 %v8979
    %8989 = vmatprep.subr.bf16.mxu0 0
    %8990 = vmatpush1.bf16.msra.mxu0 0
    %8991 = vmatprep.subr.bf16.mxu0 0
    %8992 = vmatpush1.bf16.msra.mxu0 0
    %8993 = vmatprep.subr.bf16.mxu0 0
    %8994 = vmatpush1.bf16.msra.mxu0 0
    %8995 = vmatprep.subr.bf16.mxu0 0
    %8996 = vmatpush1.bf16.msra.mxu0 0
    %8997 = vmatprep.subr.bf16.mxu0 0
    %8998 = vmatpush1.bf16.msra.mxu0 0
    %8999 = vmatprep.subr.bf16.mxu0 0
    %9000 = vmatpush1.bf16.msra.mxu0 0
    %9001 = vmatprep.subr.bf16.mxu0 0
    %9002 = vmatpush1.bf16.msra.mxu0 0
    %9003 = vmatprep.subr.bf16.mxu0 0
    %9004 = vmatpush1.bf16.msra.mxu0 0
    %9005 = vmatprep.subr.bf16.mxu0 0
    %9006 = vmatpush1.bf16.msra.mxu0 0
    %9007 = vmatprep.subr.bf16.mxu0 0
    %9008 = vmatpush1.bf16.msra.mxu0 0
    %9009 = vmatprep.subr.bf16.mxu0 0
    %9010 = vmatpush1.bf16.msra.mxu0 0
    %9011 = vmatprep.subr.bf16.mxu0 0
    %9012 = vmatpush1.bf16.msra.mxu0 0
    %9013 = vmatprep.subr.bf16.mxu0 0
    %9014 = vmatpush1.bf16.msra.mxu0 0
    %9015 = vmatprep.subr.bf16.mxu0 0
    %9016 = vmatpush1.bf16.msra.mxu0 0
    %9017 = vmatprep.subr.bf16.mxu0 0
    %9018 = vmatpush1.bf16.msra.mxu0 0
    %9019 = vmatprep.mubr.bf16.mxu0 0
    %9020 = vmatmul.mubr.bf16.gmra.mrb[0].mxu0 %v8982
    %v9021 = vpop.f32.mrb[0].mxu0
    %v9022 = vadd.f32 %v8974, %v9021
    %v9023 = vpop.f32.mrb[0].mxu0
    %v9024 = vpop.f32.mrb[0].mxu0
    %v9025 = vadd.f32 %v8974, %v9024
    %v9026 = vpop.f32.mrb[0].mxu0
    %9027 = vmatprep.mubr.bf16.mxu0 0
    %9028 = vmatmul.mubr.bf16.gmra.mrb[0].mxu0 %v8985
    %v9029 = vpop.f32.mrb[0].mxu0
    %v9030 = vadd.f32 %v8974, %v9029
    %v9031 = vpop.f32.mrb[0].mxu0
    %v9032 = vpop.f32.mrb[0].mxu0
    %v9033 = vadd.f32 %v8974, %v9032
    %v9034 = vpop.f32.mrb[0].mxu0
    %9035 = vdwg.mxu0
    %v9036 = vmax.f32 %v9022, 0.0
    %v9037 = vmax.f32 %v9025, 0.0
    %v9038 = vmax.f32 %v9030, 0.0
    %v9039 = vmax.f32 %v9033, 0.0
    %v9040 = vmin.f32 %v9036, 6.0
    %v9041 = vmin.f32 %v9037, 6.0
    %v9042 = vmin.f32 %v9038, 6.0
    %v9043 = vmin.f32 %v9039, 6.0
    %v9044 = vpack.c.bf16 %v9041, %v9040
    %v9045 = vpack.c.bf16 %v9043, %v9042
    %9046 = vmatprep.subr.bf16.mxu0 0
    %9047 = vmatpush1.bf16.msra.mxu0 %v9044
    %9048 = vmatprep.subr.bf16.mxu0 0
    %9049 = vmatpush1.bf16.msra.mxu0 %v9045
    %9050 = vmatprep.subr.bf16.mxu0 0
    %9051 = vmatpush1.bf16.msra.mxu0 0
    %9052 = vmatprep.subr.bf16.mxu0 0
    %9053 = vmatpush1.bf16.msra.mxu0 0
    %9054 = vmatprep.subr.bf16.mxu0 0
    %9055 = vmatpush1.bf16.msra.mxu0 0
    %9056 = vmatprep.subr.bf16.mxu0 0
    %9057 = vmatpush1.bf16.msra.mxu0 0
    %9058 = vmatprep.subr.bf16.mxu0 0
    %9059 = vmatpush1.bf16.msra.mxu0 0
    %9060 = vmatprep.subr.bf16.mxu0 0
    %9061 = vmatpush1.bf16.msra.mxu0 0
    %9062 = vmatprep.subr.bf16.mxu0 0
    %9063 = vmatpush1.bf16.msra.mxu0 0
    %9064 = vmatprep.subr.bf16.mxu0 0
    %9065 = vmatpush1.bf16.msra.mxu0 0
    %9066 = vmatprep.subr.bf16.mxu0 0
    %9067 = vmatpush1.bf16.msra.mxu0 0
    %9068 = vmatprep.subr.bf16.mxu0 0
    %9069 = vmatpush1.bf16.msra.mxu0 0
    %9070 = vmatprep.subr.bf16.mxu0 0
    %9071 = vmatpush1.bf16.msra.mxu0 0
    %9072 = vmatprep.subr.bf16.mxu0 0
    %9073 = vmatpush1.bf16.msra.mxu0 0
    %9074 = vmatprep.subr.bf16.mxu0 0
    %9075 = vmatpush1.bf16.msra.mxu0 0
    %9076 = vmatprep.subr.bf16.mxu0 0
    %9077 = vmatpush1.bf16.msra.mxu0 0
    %9078 = vmatprep.mubr.bf16.mxu0 0
    %9079 = vmatmul.mubr.bf16.gmra.mrb[0].mxu0 %v7505
    %v9080 = vpop.f32.mrb[0].mxu0
    %v9081 = vadd.f32 0.0, %v9080
    %v9082 = vpop.f32.mrb[0].mxu0
    %v9083 = vpop.f32.mrb[0].mxu0
    %v9084 = vadd.f32 0.0, %v9083
    %v9085 = vpop.f32.mrb[0].mxu0
    %9086 = vmatprep.mubr.bf16.mxu0 0
    %9087 = vmatmul.mubr.bf16.gmra.mrb[0].mxu0 %v7508
    %v9088 = vpop.f32.mrb[0].mxu0
    %v9089 = vadd.f32 0.0, %v9088
    %v9090 = vpop.f32.mrb[0].mxu0
    %v9091 = vpop.f32.mrb[0].mxu0
    %v9092 = vadd.f32 0.0, %v9091
    %v9093 = vpop.f32.mrb[0].mxu0
    %9094 = vmatprep.mubr.bf16.mxu0 0
    %9095 = vmatmul.mubr.bf16.gmra.mrb[0].mxu0 %v7511
    %v9096 = vpop.f32.mrb[0].mxu0
    %v9097 = vadd.f32 0.0, %v9096
    %v9098 = vpop.f32.mrb[0].mxu0
    %v9099 = vpop.f32.mrb[0].mxu0
    %v9100 = vadd.f32 0.0, %v9099
    %v9101 = vpop.f32.mrb[0].mxu0
    %9102 = vmatprep.mubr.bf16.mxu0 0
    %9103 = vmatmul.mubr.bf16.gmra.mrb[0].mxu0 %v7514
    %v9104 = vpop.f32.mrb[0].mxu0
    %v9105 = vadd.f32 0.0, %v9104
    %v9106 = vpop.f32.mrb[0].mxu0
    %v9107 = vpop.f32.mrb[0].mxu0
    %v9108 = vadd.f32 0.0, %v9107
    %v9109 = vpop.f32.mrb[0].mxu0
    %9110 = vmatprep.mubr.bf16.mxu0 0
    %9111 = vmatmul.mubr.bf16.gmra.mrb[0].mxu0 %v7517
    %v9112 = vpop.f32.mrb[0].mxu0
    %v9113 = vadd.f32 0.0, %v9112
    %v9114 = vpop.f32.mrb[0].mxu0
    %v9115 = vpop.f32.mrb[0].mxu0
    %v9116 = vadd.f32 0.0, %v9115
    %v9117 = vpop.f32.mrb[0].mxu0
    %9118 = vmatprep.mubr.bf16.mxu0 0
    %9119 = vmatmul.mubr.bf16.gmra.mrb[0].mxu0 %v7520
    %v9120 = vpop.f32.mrb[0].mxu0
    %v9121 = vadd.f32 0.0, %v9120
    %v9122 = vpop.f32.mrb[0].mxu0
    %v9123 = vpop.f32.mrb[0].mxu0
    %v9124 = vadd.f32 0.0, %v9123
    %v9125 = vpop.f32.mrb[0].mxu0
    %9126 = vmatprep.mubr.bf16.mxu0 0
    %9127 = vmatmul.mubr.bf16.gmra.mrb[0].mxu0 %v7523
    %v9128 = vpop.f32.mrb[0].mxu0
    %v9129 = vadd.f32 0.0, %v9128
    %v9130 = vpop.f32.mrb[0].mxu0
    %v9131 = vpop.f32.mrb[0].mxu0
    %v9132 = vadd.f32 0.0, %v9131
    %v9133 = vpop.f32.mrb[0].mxu0
    %9134 = vmatprep.mubr.bf16.mxu0 0
    %9135 = vmatmul.mubr.bf16.gmra.mrb[0].mxu0 %v7526
    %v9136 = vpop.f32.mrb[0].mxu0
    %v9137 = vadd.f32 0.0, %v9136
    %v9138 = vpop.f32.mrb[0].mxu0
    %v9139 = vpop.f32.mrb[0].mxu0
    %v9140 = vadd.f32 0.0, %v9139
    %v9141 = vpop.f32.mrb[0].mxu0
    %9142 = vmatprep.mubr.bf16.mxu0 0
    %9143 = vmatmul.mubr.bf16.gmra.mrb[0].mxu0 %v7529
    %v9144 = vpop.f32.mrb[0].mxu0
    %v9145 = vadd.f32 0.0, %v9144
    %v9146 = vpop.f32.mrb[0].mxu0
    %v9147 = vpop.f32.mrb[0].mxu0
    %v9148 = vadd.f32 0.0, %v9147
    %v9149 = vpop.f32.mrb[0].mxu0
    %9150 = vmatprep.mubr.bf16.mxu0 0
    %9151 = vmatmul.mubr.bf16.gmra.mrb[0].mxu0 %v7532
    %v9152 = vpop.f32.mrb[0].mxu0
    %v9153 = vadd.f32 0.0, %v9152
    %v9154 = vpop.f32.mrb[0].mxu0
    %v9155 = vpop.f32.mrb[0].mxu0
    %v9156 = vadd.f32 0.0, %v9155
    %v9157 = vpop.f32.mrb[0].mxu0
    %9158 = vmatprep.mubr.bf16.mxu0 0
    %9159 = vmatmul.mubr.bf16.gmra.mrb[0].mxu0 %v7535
    %v9160 = vpop.f32.mrb[0].mxu0
    %v9161 = vadd.f32 0.0, %v9160
    %v9162 = vpop.f32.mrb[0].mxu0
    %v9163 = vpop.f32.mrb[0].mxu0
    %v9164 = vadd.f32 0.0, %v9163
    %v9165 = vpop.f32.mrb[0].mxu0
    %9166 = vmatprep.mubr.bf16.mxu0 0
    %9167 = vmatmul.mubr.bf16.gmra.mrb[0].mxu0 %v7538
    %v9168 = vpop.f32.mrb[0].mxu0
    %v9169 = vadd.f32 0.0, %v9168
    %v9170 = vpop.f32.mrb[0].mxu0
    %v9171 = vpop.f32.mrb[0].mxu0
    %v9172 = vadd.f32 0.0, %v9171
    %v9173 = vpop.f32.mrb[0].mxu0
    %9174 = vmatprep.mubr.bf16.mxu0 0
    %9175 = vmatmul.mubr.bf16.gmra.mrb[0].mxu0 %v7541
    %v9176 = vpop.f32.mrb[0].mxu0
    %v9177 = vadd.f32 0.0, %v9176
    %v9178 = vpop.f32.mrb[0].mxu0
    %v9179 = vpop.f32.mrb[0].mxu0
    %v9180 = vadd.f32 0.0, %v9179
    %v9181 = vpop.f32.mrb[0].mxu0
    %9182 = vmatprep.mubr.bf16.mxu0 0
    %9183 = vmatmul.mubr.bf16.gmra.mrb[0].mxu0 %v7544
    %v9184 = vpop.f32.mrb[0].mxu0
    %v9185 = vadd.f32 0.0, %v9184
    %v9186 = vpop.f32.mrb[0].mxu0
    %v9187 = vpop.f32.mrb[0].mxu0
    %v9188 = vadd.f32 0.0, %v9187
    %v9189 = vpop.f32.mrb[0].mxu0
    %9190 = vmatprep.mubr.bf16.mxu0 0
    %9191 = vmatmul.mubr.bf16.gmra.mrb[0].mxu0 %v7547
    %v9192 = vpop.f32.mrb[0].mxu0
    %v9193 = vadd.f32 0.0, %v9192
    %v9194 = vpop.f32.mrb[0].mxu0
    %v9195 = vpop.f32.mrb[0].mxu0
    %v9196 = vadd.f32 0.0, %v9195
    %v9197 = vpop.f32.mrb[0].mxu0
    %9198 = vmatprep.mubr.bf16.mxu0 0
    %9199 = vmatmul.mubr.bf16.gmra.mrb[0].mxu0 %v7550
    %v9200 = vpop.f32.mrb[0].mxu0
    %v9201 = vadd.f32 0.0, %v9200
    %v9202 = vpop.f32.mrb[0].mxu0
    %v9203 = vpop.f32.mrb[0].mxu0
    %v9204 = vadd.f32 0.0, %v9203
    %v9205 = vpop.f32.mrb[0].mxu0
    %9206 = vmatprep.mubr.bf16.mxu0 0
    %9207 = vmatmul.mubr.bf16.gmra.mrb[0].mxu0 %v7553
    %v9208 = vpop.f32.mrb[0].mxu0
    %v9209 = vadd.f32 0.0, %v9208
    %v9210 = vpop.f32.mrb[0].mxu0
    %v9211 = vpop.f32.mrb[0].mxu0
    %v9212 = vadd.f32 0.0, %v9211
    %v9213 = vpop.f32.mrb[0].mxu0
    %9214 = vmatprep.mubr.bf16.mxu0 0
    %9215 = vmatmul.mubr.bf16.gmra.mrb[0].mxu0 %v7556
    %v9216 = vpop.f32.mrb[0].mxu0
    %v9217 = vadd.f32 0.0, %v9216
    %v9218 = vpop.f32.mrb[0].mxu0
    %v9219 = vpop.f32.mrb[0].mxu0
    %v9220 = vadd.f32 0.0, %v9219
    %v9221 = vpop.f32.mrb[0].mxu0
    %9222 = vdwg.mxu0
    %v9223 = vld [vmem:[%s3 + $0x59c] sm:$0xf]
    %v9224 = vld [vmem:[%s3 + $0x5a0] sm:$0xf]
    %v9225 = vld [vmem:[%s3 + $0x5a4] sm:$0xf]
    %v9226 = vld [vmem:[%s3 + $0x5a8] sm:$0xf]
    %v9227 = vld [vmem:[%s3 + $0x5ac] sm:$0xf]
    %v9228 = vld [vmem:[%s3 + $0x5b0] sm:$0xf]
    %v9229 = vld [vmem:[%s3 + $0x5b4] sm:$0xf]
    %v9230 = vld [vmem:[%s3 + $0x5b8] sm:$0xf]
    %v9231 = vld [vmem:[%s3 + $0x5bc] sm:$0xf]
    %v9232 = vld [vmem:[%s3 + $0x5c0] sm:$0xf]
    %v9233 = vld [vmem:[%s3 + $0x5c4] sm:$0xf]
    %v9234 = vld [vmem:[%s3 + $0x5c8] sm:$0xf]
    %v9235 = vld [vmem:[%s3 + $0x5cc] sm:$0xf]
    %v9236 = vld [vmem:[%s3 + $0x5d0] sm:$0xf]
    %v9237 = vld [vmem:[%s3 + $0x5d4] sm:$0xf]
    %v9238 = vld [vmem:[%s3 + $0x5d8] sm:$0xf]
    %v9239 = vld [vmem:[%s3 + $0x5dc] sm:$0xf]
    %v9240 = vld [vmem:[%s3 + $0x5e0] sm:$0xf]
    %v9241 = vld [vmem:[%s3 + $0x5e4] sm:$0xf]
    %v9242 = vld [vmem:[%s3 + $0x5e8] sm:$0xf]
    %v9243 = vld [vmem:[%s3 + $0x5ec] sm:$0xf]
    %v9244 = vld [vmem:[%s3 + $0x5f0] sm:$0xf]
    %v9245 = vld [vmem:[%s3 + $0x5f4] sm:$0xf]
    %v9246 = vld [vmem:[%s3 + $0x5f8] sm:$0xf]
    %v9247 = vld [vmem:[%s3 + $0x5fc] sm:$0xf]
    %v9248 = vld [vmem:[%s3 + $0x600] sm:$0xf]
    %v9249 = vld [vmem:[%s3 + $0x604] sm:$0xf]
    %v9250 = vld [vmem:[%s3 + $0x608] sm:$0xf]
    %v9251 = vld [vmem:[%s3 + $0x60c] sm:$0xf]
    %v9252 = vld [vmem:[%s3 + $0x610] sm:$0xf]
    %v9253 = vld [vmem:[%s3 + $0x614] sm:$0xf]
    %v9254 = vld [vmem:[%s3 + $0x618] sm:$0xf]
    %v9255 = vld [vmem:[%s3 + $0x61c] sm:$0xf]
    %v9256 = vld [vmem:[%s3 + $0x620] sm:$0xf]
    %v9257 = vld [vmem:[%s3 + $0x624] sm:$0xf]
    %v9258 = vld [vmem:[%s3 + $0x628] sm:$0xf]
    %v9259 = vunpack.c.l.bf16 %v9223
    %v9260 = vunpack.c.l.bf16 %v9224
    %v9261 = vunpack.c.l.bf16 %v9225
    %v9262 = vunpack.c.l.bf16 %v9226
    %v9263 = vunpack.c.l.bf16 %v9227
    %v9264 = vunpack.c.l.bf16 %v9228
    %v9265 = vunpack.c.l.bf16 %v9229
    %v9266 = vunpack.c.l.bf16 %v9230
    %v9267 = vunpack.c.l.bf16 %v9231
    %v9268 = vunpack.c.l.bf16 %v9232
    %v9269 = vunpack.c.l.bf16 %v9233
    %v9270 = vunpack.c.l.bf16 %v9234
    %v9271 = vunpack.c.l.bf16 %v9235
    %v9272 = vunpack.c.l.bf16 %v9236
    %v9273 = vunpack.c.l.bf16 %v9237
    %v9274 = vunpack.c.l.bf16 %v9238
    %v9275 = vunpack.c.l.bf16 %v9239
    %v9276 = vunpack.c.l.bf16 %v9240
    %v9277 = vunpack.c.l.bf16 %v9241
    %v9278 = vunpack.c.l.bf16 %v9242
    %v9279 = vunpack.c.l.bf16 %v9243
    %v9280 = vunpack.c.l.bf16 %v9244
    %v9281 = vunpack.c.l.bf16 %v9245
    %v9282 = vunpack.c.l.bf16 %v9246
    %v9283 = vunpack.c.l.bf16 %v9247
    %v9284 = vunpack.c.l.bf16 %v9248
    %v9285 = vunpack.c.l.bf16 %v9249
    %v9286 = vunpack.c.l.bf16 %v9250
    %v9287 = vunpack.c.l.bf16 %v9251
    %v9288 = vunpack.c.l.bf16 %v9252
    %v9289 = vunpack.c.l.bf16 %v9253
    %v9290 = vunpack.c.l.bf16 %v9254
    %v9291 = vunpack.c.l.bf16 %v9255
    %v9292 = vunpack.c.l.bf16 %v9256
    %v9293 = vunpack.c.l.bf16 %v9257
    %v9294 = vunpack.c.l.bf16 %v9258
    %v9295 = vmul.f32 %v9081, %v9259
    %v9296 = vmul.f32 %v9084, %v9260
    %v9297 = vmul.f32 %v9089, %v9261
    %v9298 = vmul.f32 %v9092, %v9262
    %v9299 = vmul.f32 %v9097, %v9263
    %v9300 = vmul.f32 %v9100, %v9264
    %v9301 = vmul.f32 %v9105, %v9265
    %v9302 = vmul.f32 %v9108, %v9266
    %v9303 = vmul.f32 %v9113, %v9267
    %v9304 = vmul.f32 %v9116, %v9268
    %v9305 = vmul.f32 %v9121, %v9269
    %v9306 = vmul.f32 %v9124, %v9270
    %v9307 = vmul.f32 %v9129, %v9271
    %v9308 = vmul.f32 %v9132, %v9272
    %v9309 = vmul.f32 %v9137, %v9273
    %v9310 = vmul.f32 %v9140, %v9274
    %v9311 = vmul.f32 %v9145, %v9275
    %v9312 = vmul.f32 %v9148, %v9276
    %v9313 = vmul.f32 %v9153, %v9277
    %v9314 = vmul.f32 %v9156, %v9278
    %v9315 = vmul.f32 %v9161, %v9279
    %v9316 = vmul.f32 %v9164, %v9280
    %v9317 = vmul.f32 %v9169, %v9281
    %v9318 = vmul.f32 %v9172, %v9282
    %v9319 = vmul.f32 %v9177, %v9283
    %v9320 = vmul.f32 %v9180, %v9284
    %v9321 = vmul.f32 %v9185, %v9285
    %v9322 = vmul.f32 %v9188, %v9286
    %v9323 = vmul.f32 %v9193, %v9287
    %v9324 = vmul.f32 %v9196, %v9288
    %v9325 = vmul.f32 %v9201, %v9289
    %v9326 = vmul.f32 %v9204, %v9290
    %v9327 = vmul.f32 %v9209, %v9291
    %v9328 = vmul.f32 %v9212, %v9292
    %v9329 = vmul.f32 %v9217, %v9293
    %v9330 = vmul.f32 %v9220, %v9294
    %v9331 = vadd.f32 %v9295, %v9299
    %v9332 = vadd.f32 %v9296, %v9300
    %v9333 = vadd.f32 %v9297, %v9301
    %v9334 = vadd.f32 %v9298, %v9302
    %v9335 = vadd.f32 %v9331, %v9303
    %v9336 = vadd.f32 %v9332, %v9304
    %v9337 = vadd.f32 %v9333, %v9305
    %v9338 = vadd.f32 %v9334, %v9306
    %v9339 = vadd.f32 %v9335, %v9307
    %v9340 = vadd.f32 %v9336, %v9308
    %v9341 = vadd.f32 %v9337, %v9309
    %v9342 = vadd.f32 %v9338, %v9310
    %v9343 = vadd.f32 %v9339, %v9311
    %v9344 = vadd.f32 %v9340, %v9312
    %v9345 = vadd.f32 %v9341, %v9313
    %v9346 = vadd.f32 %v9342, %v9314
    %v9347 = vadd.f32 %v9343, %v9315
    %v9348 = vadd.f32 %v9344, %v9316
    %v9349 = vadd.f32 %v9345, %v9317
    %v9350 = vadd.f32 %v9346, %v9318
    %v9351 = vadd.f32 %v9347, %v9319
    %v9352 = vadd.f32 %v9348, %v9320
    %v9353 = vadd.f32 %v9349, %v9321
    %v9354 = vadd.f32 %v9350, %v9322
    %v9355 = vadd.f32 %v9351, %v9323
    %v9356 = vadd.f32 %v9352, %v9324
    %v9357 = vadd.f32 %v9353, %v9325
    %v9358 = vadd.f32 %v9354, %v9326
    %v9359 = vadd.f32 %v9355, %v9327
    %v9360 = vadd.f32 %v9356, %v9328
    %v9361 = vadd.f32 %v9357, %v9329
    %v9362 = vadd.f32 %v9358, %v9330
    %v9363 = vld [vmem:[%s4 + $0x88] sm:$0x1]
    %v9364 = vlaneseq
    %v9365 = vshrl.u32 %v9364, 7
    %v9366 = vsub.s32 0, %v9365
    %v9367 = vrot.slane %v9363, %v9366
    %v9368 = vadd.f32 %v9359, %v9367
    %v9369 = vadd.f32 %v9360, %v9367
    %v9370 = vadd.f32 %v9361, %v9367
    %v9371 = vadd.f32 %v9362, %v9367
    %v9372 = vmax.f32 %v9368, 0.0
    %v9373 = vmax.f32 %v9369, 0.0
    %v9374 = vmax.f32 %v9370, 0.0
    %v9375 = vmax.f32 %v9371, 0.0
    %v9376 = vmin.f32 %v9372, 6.0
    %v9377 = vmin.f32 %v9373, 6.0
    %v9378 = vmin.f32 %v9374, 6.0
    %v9379 = vmin.f32 %v9375, 6.0
    %v9380 = vld [vmem:[%s3 + $0x62c] sm:$0xf]
    %v9381 = vld [vmem:[%s3 + $0x630] sm:$0xf]
    %v9382 = vld [vmem:[%s3 + $0x634] sm:$0xf]
    %v9383 = vld [vmem:[%s3 + $0x638] sm:$0xf]
    %v9384 = vpack.c.bf16 %v9377, %v9376
    %v9385 = vpack.c.bf16 %v9379, %v9378
    %v9386 = vld [vmem:[%s4 + $0x90] sm:$0x1]
    %v9387 = vlaneseq
    %v9388 = vshrl.u32 %v9387, 7
    %v9389 = vsub.s32 0, %v9388
    %v9390 = vrot.slane %v9386, %v9389
    %v9395 = vunpack.c.l.b16 %v9380
    %v9396 = vunpack.c.l.b16 %v9381
    %v9397 = vunpack.c.l.b16 %v9382
    %v9398 = vunpack.c.l.b16 %v9383
    %v9399 = vpack.c.b16 %v9396, %v9395
    %v9400 = vpack.c.b16 %v9398, %v9397
    %v9404 = vsel %vm7503, %v9384, 0
    %v9407 = vsel %vm7503, %v9385, 0
    %9409 = vmatprep.subr.bf16.mxu0 0
    %9410 = vmatpush1.bf16.msra.mxu0 %v9399
    %9411 = vmatprep.subr.bf16.mxu0 0
    %9412 = vmatpush1.bf16.msra.mxu0 %v9400
    %9413 = vmatprep.subr.bf16.mxu0 0
    %9414 = vmatpush1.bf16.msra.mxu0 0
    %9415 = vmatprep.subr.bf16.mxu0 0
    %9416 = vmatpush1.bf16.msra.mxu0 0
    %9417 = vmatprep.subr.bf16.mxu0 0
    %9418 = vmatpush1.bf16.msra.mxu0 0
    %9419 = vmatprep.subr.bf16.mxu0 0
    %9420 = vmatpush1.bf16.msra.mxu0 0
    %9421 = vmatprep.subr.bf16.mxu0 0
    %9422 = vmatpush1.bf16.msra.mxu0 0
    %9423 = vmatprep.subr.bf16.mxu0 0
    %9424 = vmatpush1.bf16.msra.mxu0 0
    %9425 = vmatprep.subr.bf16.mxu0 0
    %9426 = vmatpush1.bf16.msra.mxu0 0
    %9427 = vmatprep.subr.bf16.mxu0 0
    %9428 = vmatpush1.bf16.msra.mxu0 0
    %9429 = vmatprep.subr.bf16.mxu0 0
    %9430 = vmatpush1.bf16.msra.mxu0 0
    %9431 = vmatprep.subr.bf16.mxu0 0
    %9432 = vmatpush1.bf16.msra.mxu0 0
    %9433 = vmatprep.subr.bf16.mxu0 0
    %9434 = vmatpush1.bf16.msra.mxu0 0
    %9435 = vmatprep.subr.bf16.mxu0 0
    %9436 = vmatpush1.bf16.msra.mxu0 0
    %9437 = vmatprep.subr.bf16.mxu0 0
    %9438 = vmatpush1.bf16.msra.mxu0 0
    %9439 = vmatprep.subr.bf16.mxu0 0
    %9440 = vmatpush1.bf16.msra.mxu0 0
    %9441 = vmatprep.mubr.bf16.mxu0 0
    %9442 = vmatmul.mubr.bf16.gmra.mrb[0].mxu0 %v9404
    %v9443 = vpop.f32.mrb[0].mxu0
    %v9444 = vadd.f32 %v9390, %v9443
    %v9445 = vpop.f32.mrb[0].mxu0
    %v9446 = vpop.f32.mrb[0].mxu0
    %v9447 = vadd.f32 %v9390, %v9446
    %v9448 = vpop.f32.mrb[0].mxu0
    %9449 = vmatprep.mubr.bf16.mxu0 0
    %9450 = vmatmul.mubr.bf16.gmra.mrb[0].mxu0 %v9407
    %v9451 = vpop.f32.mrb[0].mxu0
    %v9452 = vadd.f32 %v9390, %v9451
    %v9453 = vpop.f32.mrb[0].mxu0
    %v9454 = vpop.f32.mrb[0].mxu0
    %v9455 = vadd.f32 %v9390, %v9454
    %v9456 = vpop.f32.mrb[0].mxu0
    %9457 = vdwg.mxu0
    %v9458 = vadd.f32 %v9444, %v8962
    %v9459 = vadd.f32 %v9447, %v8963
    %v9460 = vadd.f32 %v9452, %v8964
    %v9461 = vadd.f32 %v9455, %v8965
    %9462 = vst.msk [vmem:[#allocation2] sm:$0xff] %vm6433, %v9458
    %9463 = vst.msk [vmem:[#allocation2 + $0x8] sm:$0xff] %vm6433, %v9459
    %9464 = vst.msk [vmem:[#allocation2 + $0x10] sm:$0xff] %vm6433, %v9460
    %9465 = vst.msk [vmem:[#allocation2 + $0x18] sm:$0xff] %vm6433, %v9461
    %v9466 = vld [vmem:[%s3 + $0x660] sm:$0xf]
    %v9467 = vld [vmem:[%s3 + $0x664] sm:$0xf]
    %v9468 = vpack.c.bf16 %v9459, %v9458
    %v9469 = vpack.c.bf16 %v9461, %v9460
    %v9470 = vld [vmem:[%s4 + $0x98] sm:$0x1]
    %v9471 = vlaneseq
    %v9472 = vshrl.u32 %v9471, 7
    %v9473 = vsub.s32 0, %v9472
    %v9474 = vrot.slane %v9470, %v9473
    %v9477 = vunpack.c.l.b16 %v9466
    %v9478 = vunpack.c.l.b16 %v9467
    %v9479 = vpack.c.b16 %v9478, %v9477
    %v9482 = vsel %vm6433, %v9468, 0
    %v9485 = vsel %vm6433, %v9469, 0
    %9487 = vmatprep.subr.bf16.mxu0 0
    %9488 = vmatpush1.bf16.msra.mxu0 %v9479
    %9489 = vmatprep.subr.bf16.mxu0 0
    %9490 = vmatpush1.bf16.msra.mxu0 0
    %9491 = vmatprep.subr.bf16.mxu0 0
    %9492 = vmatpush1.bf16.msra.mxu0 0
    %9493 = vmatprep.subr.bf16.mxu0 0
    %9494 = vmatpush1.bf16.msra.mxu0 0
    %9495 = vmatprep.subr.bf16.mxu0 0
    %9496 = vmatpush1.bf16.msra.mxu0 0
    %9497 = vmatprep.subr.bf16.mxu0 0
    %9498 = vmatpush1.bf16.msra.mxu0 0
    %9499 = vmatprep.subr.bf16.mxu0 0
    %9500 = vmatpush1.bf16.msra.mxu0 0
    %9501 = vmatprep.subr.bf16.mxu0 0
    %9502 = vmatpush1.bf16.msra.mxu0 0
    %9503 = vmatprep.subr.bf16.mxu0 0
    %9504 = vmatpush1.bf16.msra.mxu0 0
    %9505 = vmatprep.subr.bf16.mxu0 0
    %9506 = vmatpush1.bf16.msra.mxu0 0
    %9507 = vmatprep.subr.bf16.mxu0 0
    %9508 = vmatpush1.bf16.msra.mxu0 0
    %9509 = vmatprep.subr.bf16.mxu0 0
    %9510 = vmatpush1.bf16.msra.mxu0 0
    %9511 = vmatprep.subr.bf16.mxu0 0
    %9512 = vmatpush1.bf16.msra.mxu0 0
    %9513 = vmatprep.subr.bf16.mxu0 0
    %9514 = vmatpush1.bf16.msra.mxu0 0
    %9515 = vmatprep.subr.bf16.mxu0 0
    %9516 = vmatpush1.bf16.msra.mxu0 0
    %9517 = vmatprep.subr.bf16.mxu0 0
    %9518 = vmatpush1.bf16.msra.mxu0 0
    %9519 = vmatprep.mubr.bf16.mxu0 0
    %9520 = vmatmul.mubr.bf16.gmra.mrb[0].mxu0 %v9482
    %v9521 = vpop.f32.mrb[0].mxu0
    %v9522 = vadd.f32 %v9474, %v9521
    %v9523 = vpop.f32.mrb[0].mxu0
    %v9524 = vpop.f32.mrb[0].mxu0
    %v9525 = vadd.f32 %v9474, %v9524
    %v9526 = vpop.f32.mrb[0].mxu0
    %9527 = vmatprep.mubr.bf16.mxu0 0
    %9528 = vmatmul.mubr.bf16.gmra.mrb[0].mxu0 %v9485
    %v9529 = vpop.f32.mrb[0].mxu0
    %v9530 = vadd.f32 %v9474, %v9529
    %v9531 = vpop.f32.mrb[0].mxu0
    %v9532 = vpop.f32.mrb[0].mxu0
    %v9533 = vadd.f32 %v9474, %v9532
    %v9534 = vpop.f32.mrb[0].mxu0
    %9535 = vdwg.mxu0
    %v9536 = vmax.f32 %v9522, 0.0
    %v9537 = vmax.f32 %v9525, 0.0
    %v9538 = vmax.f32 %v9530, 0.0
    %v9539 = vmax.f32 %v9533, 0.0
    %v9540 = vmin.f32 %v9536, 6.0
    %v9541 = vmin.f32 %v9537, 6.0
    %v9542 = vmin.f32 %v9538, 6.0
    %v9543 = vmin.f32 %v9539, 6.0
    %v9544 = vld [vmem:[%s3 + $0x63c] sm:$0xf]
    %v9545 = vld [vmem:[%s3 + $0x640] sm:$0xf]
    %v9546 = vld [vmem:[%s3 + $0x644] sm:$0xf]
    %v9547 = vld [vmem:[%s3 + $0x648] sm:$0xf]
    %v9548 = vld [vmem:[%s3 + $0x64c] sm:$0xf]
    %v9549 = vld [vmem:[%s3 + $0x650] sm:$0xf]
    %v9550 = vld [vmem:[%s3 + $0x654] sm:$0xf]
    %v9551 = vld [vmem:[%s3 + $0x658] sm:$0xf]
    %v9552 = vld [vmem:[%s3 + $0x65c] sm:$0xf]
    %v9553 = vpack.c.bf16 %v9541, %v9540
    %v9554 = vpack.c.bf16 %v9543, %v9542
    %v9564 = vunpack.c.l.b16 %v9544
    %v9565 = vunpack.c.l.b16 %v9545
    %v9566 = vunpack.c.l.b16 %v9546
    %v9567 = vunpack.c.l.b16 %v9547
    %v9568 = vunpack.c.l.b16 %v9548
    %v9569 = vunpack.c.l.b16 %v9549
    %v9570 = vunpack.c.l.b16 %v9550
    %v9571 = vunpack.c.l.b16 %v9551
    %v9572 = vunpack.c.l.b16 %v9552
    %v9573 = vpack.c.b16 %v9565, %v9564
    %v9574 = vpack.c.b16 %v9567, %v9566
    %v9575 = vpack.c.b16 %v9569, %v9568
    %v9576 = vpack.c.b16 %v9571, %v9570
    %v9577 = vpack.c.b16 %v9572, %v9572
    %v9579 = vsel %vm7503, %v9573, 0
    %v9582 = vsel %vm7503, %v9574, 0
    %v9585 = vsel %vm7503, %v9575, 0
    %v9588 = vsel %vm7503, %v9576, 0
    %v9591 = vsel %vm7503, %v9577, 0
    %9593 = vmatprep.subr.bf16.mxu0 0
    %9594 = vmatpush1.bf16.msra.mxu0 %v9553
    %9595 = vmatprep.subr.bf16.mxu0 0
    %9596 = vmatpush1.bf16.msra.mxu0 %v9554
    %9597 = vmatprep.subr.bf16.mxu0 0
    %9598 = vmatpush1.bf16.msra.mxu0 0
    %9599 = vmatprep.subr.bf16.mxu0 0
    %9600 = vmatpush1.bf16.msra.mxu0 0
    %9601 = vmatprep.subr.bf16.mxu0 0
    %9602 = vmatpush1.bf16.msra.mxu0 0
    %9603 = vmatprep.subr.bf16.mxu0 0
    %9604 = vmatpush1.bf16.msra.mxu0 0
    %9605 = vmatprep.subr.bf16.mxu0 0
    %9606 = vmatpush1.bf16.msra.mxu0 0
    %9607 = vmatprep.subr.bf16.mxu0 0
    %9608 = vmatpush1.bf16.msra.mxu0 0
    %9609 = vmatprep.subr.bf16.mxu0 0
    %9610 = vmatpush1.bf16.msra.mxu0 0
    %9611 = vmatprep.subr.bf16.mxu0 0
    %9612 = vmatpush1.bf16.msra.mxu0 0
    %9613 = vmatprep.subr.bf16.mxu0 0
    %9614 = vmatpush1.bf16.msra.mxu0 0
    %9615 = vmatprep.subr.bf16.mxu0 0
    %9616 = vmatpush1.bf16.msra.mxu0 0
    %9617 = vmatprep.subr.bf16.mxu0 0
    %9618 = vmatpush1.bf16.msra.mxu0 0
    %9619 = vmatprep.subr.bf16.mxu0 0
    %9620 = vmatpush1.bf16.msra.mxu0 0
    %9621 = vmatprep.subr.bf16.mxu0 0
    %9622 = vmatpush1.bf16.msra.mxu0 0
    %9623 = vmatprep.subr.bf16.mxu0 0
    %9624 = vmatpush1.bf16.msra.mxu0 0
    %9625 = vmatprep.mubr.bf16.mxu0 0
    %9626 = vmatmul.mubr.bf16.gmra.mrb[0].mxu0 %v9579
    %v9627 = vpop.f32.mrb[0].mxu0
    %v9628 = vadd.f32 0.0, %v9627
    %v9629 = vpop.f32.mrb[0].mxu0
    %v9630 = vpop.f32.mrb[0].mxu0
    %v9631 = vadd.f32 0.0, %v9630
    %v9632 = vpop.f32.mrb[0].mxu0
    %9633 = vmatprep.mubr.bf16.mxu0 0
    %9634 = vmatmul.mubr.bf16.gmra.mrb[0].mxu0 %v9582
    %v9635 = vpop.f32.mrb[0].mxu0
    %v9636 = vadd.f32 0.0, %v9635
    %v9637 = vpop.f32.mrb[0].mxu0
    %v9638 = vpop.f32.mrb[0].mxu0
    %v9639 = vadd.f32 0.0, %v9638
    %v9640 = vpop.f32.mrb[0].mxu0
    %9641 = vmatprep.mubr.bf16.mxu0 0
    %9642 = vmatmul.mubr.bf16.gmra.mrb[0].mxu0 %v9585
    %v9643 = vpop.f32.mrb[0].mxu0
    %v9644 = vadd.f32 0.0, %v9643
    %v9645 = vpop.f32.mrb[0].mxu0
    %v9646 = vpop.f32.mrb[0].mxu0
    %v9647 = vadd.f32 0.0, %v9646
    %v9648 = vpop.f32.mrb[0].mxu0
    %9649 = vmatprep.mubr.bf16.mxu0 0
    %9650 = vmatmul.mubr.bf16.gmra.mrb[0].mxu0 %v9588
    %v9651 = vpop.f32.mrb[0].mxu0
    %v9652 = vadd.f32 0.0, %v9651
    %v9653 = vpop.f32.mrb[0].mxu0
    %v9654 = vpop.f32.mrb[0].mxu0
    %v9655 = vadd.f32 0.0, %v9654
    %v9656 = vpop.f32.mrb[0].mxu0
    %9657 = vmatprep.mubr.bf16.mxu0 0
    %9658 = vmatmul.mubr.bf16.gmra.mrb[0].mxu0 %v9591
    %v9659 = vpop.f32.mrb[0].mxu0
    %v9660 = vadd.f32 0.0, %v9659
    %v9661 = vpop.f32.mrb[0].mxu0
    %v9662 = vpop.f32.mrb[0].mxu0
    %v9663 = vpop.f32.mrb[0].mxu0
    %9664 = vdwg.mxu0
    %v9665 = vld [vmem:[%s3 + $0x668] sm:$0xf]
    %v9666 = vld [vmem:[%s3 + $0x66c] sm:$0xf]
    %v9667 = vld [vmem:[%s3 + $0x670] sm:$0xf]
    %v9668 = vld [vmem:[%s3 + $0x674] sm:$0xf]
    %v9669 = vld [vmem:[%s3 + $0x678] sm:$0xf]
    %v9670 = vld [vmem:[%s3 + $0x67c] sm:$0xf]
    %v9671 = vld [vmem:[%s3 + $0x680] sm:$0xf]
    %v9672 = vld [vmem:[%s3 + $0x684] sm:$0xf]
    %v9673 = vld [vmem:[%s3 + $0x688] sm:$0xf]
    %v9674 = vunpack.c.l.bf16 %v9665
    %v9675 = vunpack.c.l.bf16 %v9666
    %v9676 = vunpack.c.l.bf16 %v9667
    %v9677 = vunpack.c.l.bf16 %v9668
    %v9678 = vunpack.c.l.bf16 %v9669
    %v9679 = vunpack.c.l.bf16 %v9670
    %v9680 = vunpack.c.l.bf16 %v9671
    %v9681 = vunpack.c.l.bf16 %v9672
    %v9682 = vunpack.c.l.bf16 %v9673
    %v9683 = vmul.f32 %v9628, %v9674
    %v9684 = vmul.f32 %v9631, %v9675
    %v9685 = vmul.f32 %v9636, %v9676
    %v9686 = vmul.f32 %v9639, %v9677
    %v9687 = vmul.f32 %v9644, %v9678
    %v9688 = vmul.f32 %v9647, %v9679
    %v9689 = vmul.f32 %v9652, %v9680
    %v9690 = vmul.f32 %v9655, %v9681
    %v9691 = vmul.f32 %v9660, %v9682
    %v9692 = vadd.f32 %v9683, %v9684
    %v9693 = vadd.f32 %v9692, %v9685
    %v9694 = vadd.f32 %v9693, %v9686
    %v9695 = vadd.f32 %v9694, %v9687
    %v9696 = vadd.f32 %v9695, %v9688
    %v9697 = vadd.f32 %v9696, %v9689
    %v9698 = vadd.f32 %v9697, %v9690
    %v9699 = vadd.f32 %v9698, %v9691
    %v9700 = vld [vmem:[%s4 + $0xa0] sm:$0x1]
    %v9701 = vlaneseq
    %v9702 = vshrl.u32 %v9701, 7
    %v9703 = vsub.s32 0, %v9702
    %v9704 = vrot.slane %v9700, %v9703
    %v9705 = vadd.f32 %v9699, %v9704
    %v9706 = vmax.f32 %v9705, 0.0
    %v9707 = vmin.f32 %v9706, 6.0
    %v9708 = vld [vmem:[%s3 + $0x68c] sm:$0xf]
    %v9709 = vld [vmem:[%s3 + $0x690] sm:$0xf]
    %v9710 = vld [vmem:[%s3 + $0x694] sm:$0xf]
    %v9711 = vld [vmem:[%s3 + $0x698] sm:$0xf]
    %v9712 = vpack.c.bf16 %v9707, %v9707
    %v9713 = vld [vmem:[%s4 + $0xa8] sm:$0x1]
    %v9714 = vlaneseq
    %v9715 = vshrl.u32 %v9714, 7
    %v9716 = vsub.s32 0, %v9715
    %v9717 = vrot.slane %v9713, %v9716
    %v9722 = vunpack.c.l.b16 %v9708
    %v9723 = vunpack.c.l.b16 %v9709
    %v9724 = vunpack.c.l.b16 %v9710
    %v9725 = vunpack.c.l.b16 %v9711
    %v9726 = vpack.c.b16 %v9723, %v9722
    %v9727 = vpack.c.b16 %v9725, %v9724
    %v9731 = vsel %vm7503, %v9712, 0
    %9733 = vmatprep.subr.bf16.mxu0 0
    %9734 = vmatpush1.bf16.msra.mxu0 %v9726
    %9735 = vmatprep.subr.bf16.mxu0 0
    %9736 = vmatpush1.bf16.msra.mxu0 %v9727
    %9737 = vmatprep.subr.bf16.mxu0 0
    %9738 = vmatpush1.bf16.msra.mxu0 0
    %9739 = vmatprep.subr.bf16.mxu0 0
    %9740 = vmatpush1.bf16.msra.mxu0 0
    %9741 = vmatprep.subr.bf16.mxu0 0
    %9742 = vmatpush1.bf16.msra.mxu0 0
    %9743 = vmatprep.subr.bf16.mxu0 0
    %9744 = vmatpush1.bf16.msra.mxu0 0
    %9745 = vmatprep.subr.bf16.mxu0 0
    %9746 = vmatpush1.bf16.msra.mxu0 0
    %9747 = vmatprep.subr.bf16.mxu0 0
    %9748 = vmatpush1.bf16.msra.mxu0 0
    %9749 = vmatprep.subr.bf16.mxu0 0
    %9750 = vmatpush1.bf16.msra.mxu0 0
    %9751 = vmatprep.subr.bf16.mxu0 0
    %9752 = vmatpush1.bf16.msra.mxu0 0
    %9753 = vmatprep.subr.bf16.mxu0 0
    %9754 = vmatpush1.bf16.msra.mxu0 0
    %9755 = vmatprep.subr.bf16.mxu0 0
    %9756 = vmatpush1.bf16.msra.mxu0 0
    %9757 = vmatprep.subr.bf16.mxu0 0
    %9758 = vmatpush1.bf16.msra.mxu0 0
    %9759 = vmatprep.subr.bf16.mxu0 0
    %9760 = vmatpush1.bf16.msra.mxu0 0
    %9761 = vmatprep.subr.bf16.mxu0 0
    %9762 = vmatpush1.bf16.msra.mxu0 0
    %9763 = vmatprep.subr.bf16.mxu0 0
    %9764 = vmatpush1.bf16.msra.mxu0 0
    %9765 = vmatprep.mubr.bf16.mxu0 0
    %9766 = vmatmul.mubr.bf16.gmra.mrb[0].mxu0 %v9731
    %v9767 = vpop.f32.mrb[0].mxu0
    %v9768 = vadd.f32 %v9717, %v9767
    %v9769 = vpop.f32.mrb[0].mxu0
    %v9770 = vpop.f32.mrb[0].mxu0
    %v9771 = vpop.f32.mrb[0].mxu0
    %9772 = vdwg.mxu0
    %v9773 = vld [vmem:[%s3 + $0x6c0] sm:$0xf]
    %v9774 = vld [vmem:[%s3 + $0x6c4] sm:$0xf]
    %v9775 = vld [vmem:[%s3 + $0x6c8] sm:$0xf]
    %v9776 = vld [vmem:[%s3 + $0x6cc] sm:$0xf]
    %v9777 = vpack.c.bf16 %v9768, %v9768
    %v9778 = vld [vmem:[%s4 + $0xb0] sm:$0x1]
    %v9779 = vlaneseq
    %v9780 = vshrl.u32 %v9779, 7
    %v9781 = vsub.s32 0, %v9780
    %v9782 = vrot.slane %v9778, %v9781
    %v9787 = vunpack.c.l.b16 %v9773
    %v9788 = vunpack.c.l.b16 %v9774
    %v9789 = vunpack.c.l.b16 %v9775
    %v9790 = vunpack.c.l.b16 %v9776
    %v9791 = vpack.c.b16 %v9788, %v9787
    %v9792 = vpack.c.b16 %v9790, %v9789
    %v9796 = vsel %vm7503, %v9777, 0
    %9798 = vmatprep.subr.bf16.mxu0 0
    %9799 = vmatpush1.bf16.msra.mxu0 %v9791
    %9800 = vmatprep.subr.bf16.mxu0 0
    %9801 = vmatpush1.bf16.msra.mxu0 %v9792
    %9802 = vmatprep.subr.bf16.mxu0 0
    %9803 = vmatpush1.bf16.msra.mxu0 0
    %9804 = vmatprep.subr.bf16.mxu0 0
    %9805 = vmatpush1.bf16.msra.mxu0 0
    %9806 = vmatprep.subr.bf16.mxu0 0
    %9807 = vmatpush1.bf16.msra.mxu0 0
    %9808 = vmatprep.subr.bf16.mxu0 0
    %9809 = vmatpush1.bf16.msra.mxu0 0
    %9810 = vmatprep.subr.bf16.mxu0 0
    %9811 = vmatpush1.bf16.msra.mxu0 0
    %9812 = vmatprep.subr.bf16.mxu0 0
    %9813 = vmatpush1.bf16.msra.mxu0 0
    %9814 = vmatprep.subr.bf16.mxu0 0
    %9815 = vmatpush1.bf16.msra.mxu0 0
    %9816 = vmatprep.subr.bf16.mxu0 0
    %9817 = vmatpush1.bf16.msra.mxu0 0
    %9818 = vmatprep.subr.bf16.mxu0 0
    %9819 = vmatpush1.bf16.msra.mxu0 0
    %9820 = vmatprep.subr.bf16.mxu0 0
    %9821 = vmatpush1.bf16.msra.mxu0 0
    %9822 = vmatprep.subr.bf16.mxu0 0
    %9823 = vmatpush1.bf16.msra.mxu0 0
    %9824 = vmatprep.subr.bf16.mxu0 0
    %9825 = vmatpush1.bf16.msra.mxu0 0
    %9826 = vmatprep.subr.bf16.mxu0 0
    %9827 = vmatpush1.bf16.msra.mxu0 0
    %9828 = vmatprep.subr.bf16.mxu0 0
    %9829 = vmatpush1.bf16.msra.mxu0 0
    %9830 = vmatprep.mubr.bf16.mxu0 0
    %9831 = vmatmul.mubr.bf16.gmra.mrb[0].mxu0 %v9796
    %v9832 = vpop.f32.mrb[0].mxu0
    %v9833 = vadd.f32 %v9782, %v9832
    %v9834 = vpop.f32.mrb[0].mxu0
    %v9835 = vpop.f32.mrb[0].mxu0
    %v9836 = vpop.f32.mrb[0].mxu0
    %9837 = vdwg.mxu0
    %v9838 = vmax.f32 %v9833, 0.0
    %v9839 = vmin.f32 %v9838, 6.0
    %v9840 = vld [vmem:[%s3 + $0x69c] sm:$0xf]
    %v9841 = vld [vmem:[%s3 + $0x6a0] sm:$0xf]
    %v9842 = vld [vmem:[%s3 + $0x6a4] sm:$0xf]
    %v9843 = vld [vmem:[%s3 + $0x6a8] sm:$0xf]
    %v9844 = vld [vmem:[%s3 + $0x6ac] sm:$0xf]
    %v9845 = vld [vmem:[%s3 + $0x6b0] sm:$0xf]
    %v9846 = vld [vmem:[%s3 + $0x6b4] sm:$0xf]
    %v9847 = vld [vmem:[%s3 + $0x6b8] sm:$0xf]
    %v9848 = vld [vmem:[%s3 + $0x6bc] sm:$0xf]
    %v9849 = vpack.c.bf16 %v9839, %v9839
    %v9859 = vunpack.c.l.b16 %v9840
    %v9860 = vunpack.c.l.b16 %v9841
    %v9861 = vunpack.c.l.b16 %v9842
    %v9862 = vunpack.c.l.b16 %v9843
    %v9863 = vunpack.c.l.b16 %v9844
    %v9864 = vunpack.c.l.b16 %v9845
    %v9865 = vunpack.c.l.b16 %v9846
    %v9866 = vunpack.c.l.b16 %v9847
    %v9867 = vunpack.c.l.b16 %v9848
    %v9868 = vpack.c.b16 %v9860, %v9859
    %v9869 = vpack.c.b16 %v9862, %v9861
    %v9870 = vpack.c.b16 %v9864, %v9863
    %v9871 = vpack.c.b16 %v9866, %v9865
    %v9872 = vpack.c.b16 %v9867, %v9867
    %v9874 = vsel %vm4448, %v9868, 0
    %v9877 = vsel %vm4448, %v9869, 0
    %v9880 = vsel %vm4448, %v9870, 0
    %v9883 = vsel %vm4448, %v9871, 0
    %v9886 = vsel %vm4448, %v9872, 0
    %v9889 = vsel %vm4473, %v9849, 0
    %9891 = vmatprep.subr.bf16.mxu0 0
    %9892 = vmatpush1.bf16.msra.mxu0 %v9889
    %9893 = vmatprep.subr.bf16.mxu0 0
    %9894 = vmatpush1.bf16.msra.mxu0 0
    %9895 = vmatprep.subr.bf16.mxu0 0
    %9896 = vmatpush1.bf16.msra.mxu0 0
    %9897 = vmatprep.subr.bf16.mxu0 0
    %9898 = vmatpush1.bf16.msra.mxu0 0
    %9899 = vmatprep.subr.bf16.mxu0 0
    %9900 = vmatpush1.bf16.msra.mxu0 0
    %9901 = vmatprep.subr.bf16.mxu0 0
    %9902 = vmatpush1.bf16.msra.mxu0 0
    %9903 = vmatprep.subr.bf16.mxu0 0
    %9904 = vmatpush1.bf16.msra.mxu0 0
    %9905 = vmatprep.subr.bf16.mxu0 0
    %9906 = vmatpush1.bf16.msra.mxu0 0
    %9907 = vmatprep.subr.bf16.mxu0 0
    %9908 = vmatpush1.bf16.msra.mxu0 0
    %9909 = vmatprep.subr.bf16.mxu0 0
    %9910 = vmatpush1.bf16.msra.mxu0 0
    %9911 = vmatprep.subr.bf16.mxu0 0
    %9912 = vmatpush1.bf16.msra.mxu0 0
    %9913 = vmatprep.subr.bf16.mxu0 0
    %9914 = vmatpush1.bf16.msra.mxu0 0
    %9915 = vmatprep.subr.bf16.mxu0 0
    %9916 = vmatpush1.bf16.msra.mxu0 0
    %9917 = vmatprep.subr.bf16.mxu0 0
    %9918 = vmatpush1.bf16.msra.mxu0 0
    %9919 = vmatprep.subr.bf16.mxu0 0
    %9920 = vmatpush1.bf16.msra.mxu0 0
    %9921 = vmatprep.subr.bf16.mxu0 0
    %9922 = vmatpush1.bf16.msra.mxu0 0
    %9923 = vmatprep.mubr.bf16.mxu0 0
    %9924 = vmatmul.mubr.bf16.gmra.mrb[0].mxu0 %v9874
    %v9925 = vpop.f32.mrb[0].mxu0
    %v9926 = vadd.f32 0.0, %v9925
    %v9927 = vpop.f32.mrb[0].mxu0
    %v9928 = vpop.f32.mrb[0].mxu0
    %v9929 = vadd.f32 0.0, %v9928
    %v9930 = vpop.f32.mrb[0].mxu0
    %9931 = vmatprep.mubr.bf16.mxu0 0
    %9932 = vmatmul.mubr.bf16.gmra.mrb[0].mxu0 %v9877
    %v9933 = vpop.f32.mrb[0].mxu0
    %v9934 = vadd.f32 0.0, %v9933
    %v9935 = vpop.f32.mrb[0].mxu0
    %v9936 = vpop.f32.mrb[0].mxu0
    %v9937 = vadd.f32 0.0, %v9936
    %v9938 = vpop.f32.mrb[0].mxu0
    %9939 = vmatprep.mubr.bf16.mxu0 0
    %9940 = vmatmul.mubr.bf16.gmra.mrb[0].mxu0 %v9880
    %v9941 = vpop.f32.mrb[0].mxu0
    %v9942 = vadd.f32 0.0, %v9941
    %v9943 = vpop.f32.mrb[0].mxu0
    %v9944 = vpop.f32.mrb[0].mxu0
    %v9945 = vadd.f32 0.0, %v9944
    %v9946 = vpop.f32.mrb[0].mxu0
    %9947 = vmatprep.mubr.bf16.mxu0 0
    %9948 = vmatmul.mubr.bf16.gmra.mrb[0].mxu0 %v9883
    %v9949 = vpop.f32.mrb[0].mxu0
    %v9950 = vadd.f32 0.0, %v9949
    %v9951 = vpop.f32.mrb[0].mxu0
    %v9952 = vpop.f32.mrb[0].mxu0
    %v9953 = vadd.f32 0.0, %v9952
    %v9954 = vpop.f32.mrb[0].mxu0
    %9955 = vmatprep.mubr.bf16.mxu0 0
    %9956 = vmatmul.mubr.bf16.gmra.mrb[0].mxu0 %v9886
    %v9957 = vpop.f32.mrb[0].mxu0
    %v9958 = vadd.f32 0.0, %v9957
    %v9959 = vpop.f32.mrb[0].mxu0
    %v9960 = vpop.f32.mrb[0].mxu0
    %v9961 = vpop.f32.mrb[0].mxu0
    %9962 = vdwg.mxu0
    %v9963 = vld [vmem:[%s3 + $0x6d0] sm:$0xf]
    %v9964 = vld [vmem:[%s3 + $0x6d4] sm:$0xf]
    %v9965 = vld [vmem:[%s3 + $0x6d8] sm:$0xf]
    %v9966 = vld [vmem:[%s3 + $0x6dc] sm:$0xf]
    %v9967 = vld [vmem:[%s3 + $0x6e0] sm:$0xf]
    %v9968 = vld [vmem:[%s3 + $0x6e4] sm:$0xf]
    %v9969 = vld [vmem:[%s3 + $0x6e8] sm:$0xf]
    %v9970 = vld [vmem:[%s3 + $0x6ec] sm:$0xf]
    %v9971 = vld [vmem:[%s3 + $0x6f0] sm:$0xf]
    %v9972 = vunpack.c.l.bf16 %v9963
    %v9973 = vunpack.c.l.bf16 %v9964
    %v9974 = vunpack.c.l.bf16 %v9965
    %v9975 = vunpack.c.l.bf16 %v9966
    %v9976 = vunpack.c.l.bf16 %v9967
    %v9977 = vunpack.c.l.bf16 %v9968
    %v9978 = vunpack.c.l.bf16 %v9969
    %v9979 = vunpack.c.l.bf16 %v9970
    %v9980 = vunpack.c.l.bf16 %v9971
    %v9981 = vmul.f32 %v9926, %v9972
    %v9982 = vmul.f32 %v9929, %v9973
    %v9983 = vmul.f32 %v9934, %v9974
    %v9984 = vmul.f32 %v9937, %v9975
    %v9985 = vmul.f32 %v9942, %v9976
    %v9986 = vmul.f32 %v9945, %v9977
    %v9987 = vmul.f32 %v9950, %v9978
    %v9988 = vmul.f32 %v9953, %v9979
    %v9989 = vmul.f32 %v9958, %v9980
    %v9990 = vadd.f32 %v9981, %v9982
    %v9991 = vadd.f32 %v9990, %v9983
    %v9992 = vadd.f32 %v9991, %v9984
    %v9993 = vadd.f32 %v9992, %v9985
    %v9994 = vadd.f32 %v9993, %v9986
    %v9995 = vadd.f32 %v9994, %v9987
    %v9996 = vadd.f32 %v9995, %v9988
    %v9997 = vadd.f32 %v9996, %v9989
    %v9998 = vld [vmem:[%s4 + $0xb8] sm:$0x1]
    %v9999 = vlaneseq
    %v10000 = vshrl.u32 %v9999, 7
    %v10001 = vsub.s32 0, %v10000
    %v10002 = vrot.slane %v9998, %v10001
    %v10003 = vadd.f32 %v9997, %v10002
    %v10004 = vmax.f32 %v10003, 0.0
    %v10005 = vmin.f32 %v10004, 6.0
    %v10006 = vld [vmem:[%s3 + $0x6f4] sm:$0xf]
    %v10007 = vld [vmem:[%s3 + $0x6f8] sm:$0xf]
    %v10008 = vld [vmem:[%s3 + $0x6fc] sm:$0xf]
    %v10009 = vld [vmem:[%s3 + $0x700] sm:$0xf]
    %v10010 = vld [vmem:[%s3 + $0x704] sm:$0xf]
    %v10011 = vld [vmem:[%s3 + $0x708] sm:$0xf]
    %v10012 = vld [vmem:[%s3 + $0x70c] sm:$0xf]
    %v10013 = vld [vmem:[%s3 + $0x710] sm:$0xf]
    %v10014 = vpack.c.bf16 %v10005, %v10005
    %v10015 = vld [vmem:[%s4 + $0xc0] sm:$0x1]
    %v10016 = vlaneseq
    %v10017 = vshrl.u32 %v10016, 7
    %v10018 = vsub.s32 0, %v10017
    %v10019 = vrot.slane %v10015, %v10018
    %v10028 = vunpack.c.l.b16 %v10006
    %v10029 = vunpack.c.l.b16 %v10007
    %v10030 = vunpack.c.l.b16 %v10008
    %v10031 = vunpack.c.l.b16 %v10009
    %v10032 = vunpack.c.l.b16 %v10010
    %v10033 = vunpack.c.l.b16 %v10011
    %v10034 = vunpack.c.l.b16 %v10012
    %v10035 = vunpack.c.l.b16 %v10013
    %v10036 = vpack.c.b16 %v10029, %v10028
    %v10037 = vpack.c.b16 %v10031, %v10030
    %v10038 = vpack.c.b16 %v10033, %v10032
    %v10039 = vpack.c.b16 %v10035, %v10034
    %vm10044 = vcmask 523264
    %v10046 = vsel %vm10044, %v10014, 0
    %10048 = vmatprep.subr.bf16.mxu0 0
    %10049 = vmatpush1.bf16.msra.mxu0 %v10036
    %10050 = vmatprep.subr.bf16.mxu0 0
    %10051 = vmatpush1.bf16.msra.mxu0 %v10037
    %10052 = vmatprep.subr.bf16.mxu0 0
    %10053 = vmatpush1.bf16.msra.mxu0 %v10038
    %10054 = vmatprep.subr.bf16.mxu0 0
    %10055 = vmatpush1.bf16.msra.mxu0 %v10039
    %10056 = vmatprep.subr.bf16.mxu0 0
    %10057 = vmatpush1.bf16.msra.mxu0 0
    %10058 = vmatprep.subr.bf16.mxu0 0
    %10059 = vmatpush1.bf16.msra.mxu0 0
    %10060 = vmatprep.subr.bf16.mxu0 0
    %10061 = vmatpush1.bf16.msra.mxu0 0
    %10062 = vmatprep.subr.bf16.mxu0 0
    %10063 = vmatpush1.bf16.msra.mxu0 0
    %10064 = vmatprep.subr.bf16.mxu0 0
    %10065 = vmatpush1.bf16.msra.mxu0 0
    %10066 = vmatprep.subr.bf16.mxu0 0
    %10067 = vmatpush1.bf16.msra.mxu0 0
    %10068 = vmatprep.subr.bf16.mxu0 0
    %10069 = vmatpush1.bf16.msra.mxu0 0
    %10070 = vmatprep.subr.bf16.mxu0 0
    %10071 = vmatpush1.bf16.msra.mxu0 0
    %10072 = vmatprep.subr.bf16.mxu0 0
    %10073 = vmatpush1.bf16.msra.mxu0 0
    %10074 = vmatprep.subr.bf16.mxu0 0
    %10075 = vmatpush1.bf16.msra.mxu0 0
    %10076 = vmatprep.subr.bf16.mxu0 0
    %10077 = vmatpush1.bf16.msra.mxu0 0
    %10078 = vmatprep.subr.bf16.mxu0 0
    %10079 = vmatpush1.bf16.msra.mxu0 0
    %10080 = vmatprep.mubr.bf16.mxu0 0
    %10081 = vmatmul.mubr.bf16.gmra.mrb[0].mxu0 %v10046
    %v10082 = vpop.f32.mrb[0].mxu0
    %v10083 = vadd.f32 %v10019, %v10082
    %v10084 = vpop.f32.mrb[0].mxu0
    %v10085 = vpop.f32.mrb[0].mxu0
    %v10086 = vpop.f32.mrb[0].mxu0
    %10087 = vdwg.mxu0
    %v10088 = vadd.f32 %v10083, %v9768
    %10089 = vst.msk [vmem:[#allocation4] sm:$0xff] %vm7503, %v10088
    %v10090 = vld [vmem:[%s3 + $0x714] sm:$0xf]
    %v10091 = vld [vmem:[%s3 + $0x718] sm:$0xf]
    %v10092 = vld [vmem:[%s3 + $0x71c] sm:$0xf]
    %v10093 = vld [vmem:[%s3 + $0x720] sm:$0xf]
    %v10094 = vpack.c.bf16 %v10088, %v10088
    %v10095 = vld [vmem:[%s4 + $0xc8] sm:$0x1]
    %v10096 = vlaneseq
    %v10097 = vshrl.u32 %v10096, 7
    %v10098 = vsub.s32 0, %v10097
    %v10099 = vrot.slane %v10095, %v10098
    %v10104 = vunpack.c.l.b16 %v10090
    %v10105 = vunpack.c.l.b16 %v10091
    %v10106 = vunpack.c.l.b16 %v10092
    %v10107 = vunpack.c.l.b16 %v10093
    %v10108 = vpack.c.b16 %v10105, %v10104
    %v10109 = vpack.c.b16 %v10107, %v10106
    %v10113 = vsel %vm7503, %v10094, 0
    %10115 = vmatprep.subr.bf16.mxu0 0
    %10116 = vmatpush1.bf16.msra.mxu0 %v10108
    %10117 = vmatprep.subr.bf16.mxu0 0
    %10118 = vmatpush1.bf16.msra.mxu0 %v10109
    %10119 = vmatprep.subr.bf16.mxu0 0
    %10120 = vmatpush1.bf16.msra.mxu0 0
    %10121 = vmatprep.subr.bf16.mxu0 0
    %10122 = vmatpush1.bf16.msra.mxu0 0
    %10123 = vmatprep.subr.bf16.mxu0 0
    %10124 = vmatpush1.bf16.msra.mxu0 0
    %10125 = vmatprep.subr.bf16.mxu0 0
    %10126 = vmatpush1.bf16.msra.mxu0 0
    %10127 = vmatprep.subr.bf16.mxu0 0
    %10128 = vmatpush1.bf16.msra.mxu0 0
    %10129 = vmatprep.subr.bf16.mxu0 0
    %10130 = vmatpush1.bf16.msra.mxu0 0
    %10131 = vmatprep.subr.bf16.mxu0 0
    %10132 = vmatpush1.bf16.msra.mxu0 0
    %10133 = vmatprep.subr.bf16.mxu0 0
    %10134 = vmatpush1.bf16.msra.mxu0 0
    %10135 = vmatprep.subr.bf16.mxu0 0
    %10136 = vmatpush1.bf16.msra.mxu0 0
    %10137 = vmatprep.subr.bf16.mxu0 0
    %10138 = vmatpush1.bf16.msra.mxu0 0
    %10139 = vmatprep.subr.bf16.mxu0 0
    %10140 = vmatpush1.bf16.msra.mxu0 0
    %10141 = vmatprep.subr.bf16.mxu0 0
    %10142 = vmatpush1.bf16.msra.mxu0 0
    %10143 = vmatprep.subr.bf16.mxu0 0
    %10144 = vmatpush1.bf16.msra.mxu0 0
    %10145 = vmatprep.subr.bf16.mxu0 0
    %10146 = vmatpush1.bf16.msra.mxu0 0
    %10147 = vmatprep.mubr.bf16.mxu0 0
    %10148 = vmatmul.mubr.bf16.gmra.mrb[0].mxu0 %v10113
    %v10149 = vpop.f32.mrb[0].mxu0
    %v10150 = vadd.f32 %v10099, %v10149
    %v10151 = vpop.f32.mrb[0].mxu0
    %v10152 = vpop.f32.mrb[0].mxu0
    %v10153 = vpop.f32.mrb[0].mxu0
    %10154 = vdwg.mxu0
    %v10155 = vmax.f32 %v10150, 0.0
    %v10156 = vld [vmem:[%s2 + $0x2d0] sm:$0xf]
    %v10157 = vld [vmem:[%s2 + $0x2d4] sm:$0xf]
    %v10158 = vpack.c.bf16 %v10155, %v10155
    %v10161 = vunpack.c.l.b16 %v10156
    %v10162 = vunpack.c.l.b16 %v10157
    %v10163 = vpack.c.b16 %v10162, %v10161
    %v10166 = vsel %vm6433, %v10158, 0
    %10168 = vmatprep.subr.bf16.mxu0 0
    %10169 = vmatpush1.bf16.msra.mxu0 %v10163
    %10170 = vmatprep.subr.bf16.mxu0 0
    %10171 = vmatpush1.bf16.msra.mxu0 0
    %10172 = vmatprep.subr.bf16.mxu0 0
    %10173 = vmatpush1.bf16.msra.mxu0 0
    %10174 = vmatprep.subr.bf16.mxu0 0
    %10175 = vmatpush1.bf16.msra.mxu0 0
    %10176 = vmatprep.subr.bf16.mxu0 0
    %10177 = vmatpush1.bf16.msra.mxu0 0
    %10178 = vmatprep.subr.bf16.mxu0 0
    %10179 = vmatpush1.bf16.msra.mxu0 0
    %10180 = vmatprep.subr.bf16.mxu0 0
    %10181 = vmatpush1.bf16.msra.mxu0 0
    %10182 = vmatprep.subr.bf16.mxu0 0
    %10183 = vmatpush1.bf16.msra.mxu0 0
    %10184 = vmatprep.subr.bf16.mxu0 0
    %10185 = vmatpush1.bf16.msra.mxu0 0
    %10186 = vmatprep.subr.bf16.mxu0 0
    %10187 = vmatpush1.bf16.msra.mxu0 0
    %10188 = vmatprep.subr.bf16.mxu0 0
    %10189 = vmatpush1.bf16.msra.mxu0 0
    %10190 = vmatprep.subr.bf16.mxu0 0
    %10191 = vmatpush1.bf16.msra.mxu0 0
    %10192 = vmatprep.subr.bf16.mxu0 0
    %10193 = vmatpush1.bf16.msra.mxu0 0
    %10194 = vmatprep.subr.bf16.mxu0 0
    %10195 = vmatpush1.bf16.msra.mxu0 0
    %10196 = vmatprep.subr.bf16.mxu0 0
    %10197 = vmatpush1.bf16.msra.mxu0 0
    %10198 = vmatprep.subr.bf16.mxu0 0
    %10199 = vmatpush1.bf16.msra.mxu0 0
    %10200 = vmatprep.mubr.bf16.mxu0 0
    %10201 = vmatmul.mubr.bf16.gmra.mrb[0].mxu0 %v10166
    %v10202 = vpop.f32.mrb[0].mxu0
    %v10203 = vadd.f32 0.0, %v10202
    %v10204 = vpop.f32.mrb[0].mxu0
    %v10205 = vpop.f32.mrb[0].mxu0
    %v10206 = vpop.f32.mrb[0].mxu0
    %10207 = vdwg.mxu0
    %v10208 = vld [vmem:[%s2 + $0x2d8] sm:$0xf]
    %v10209 = vunpack.c.l.bf16 %v10208
    %v10210 = vmul.f32 %v10203, %v10209
    %v10211 = vpack.c.bf16 %v10210, %v10210
    %v10212 = vld [vmem:[%s3 + $0x724] sm:$0xf]
    %v10213 = vld [vmem:[%s3 + $0x728] sm:$0xf]
    %v10214 = vld [vmem:[%s3 + $0x72c] sm:$0xf]
    %v10215 = vld [vmem:[%s3 + $0x730] sm:$0xf]
    %v10216 = vld [vmem:[%s3 + $0x734] sm:$0xf]
    %v10217 = vld [vmem:[%s3 + $0x738] sm:$0xf]
    %v10218 = vld [vmem:[%s3 + $0x73c] sm:$0xf]
    %v10219 = vld [vmem:[%s3 + $0x740] sm:$0xf]
    %v10220 = vld [vmem:[%s3 + $0x744] sm:$0xf]
    %v10221 = vld [vmem:[%s3 + $0x748] sm:$0xf]
    %v10222 = vld [vmem:[%s3 + $0x74c] sm:$0xf]
    %v10223 = vld [vmem:[%s3 + $0x750] sm:$0xf]
    %v10224 = vld [vmem:[%s3 + $0x754] sm:$0xf]
    %v10225 = vld [vmem:[%s3 + $0x758] sm:$0xf]
    %v10226 = vld [vmem:[%s3 + $0x75c] sm:$0xf]
    %v10227 = vld [vmem:[%s3 + $0x760] sm:$0xf]
    %v10244 = vunpack.c.l.b16 %v10212
    %v10245 = vunpack.c.l.b16 %v10213
    %v10246 = vunpack.c.l.b16 %v10214
    %v10247 = vunpack.c.l.b16 %v10215
    %v10248 = vunpack.c.l.b16 %v10216
    %v10249 = vunpack.c.l.b16 %v10217
    %v10250 = vunpack.c.l.b16 %v10218
    %v10251 = vunpack.c.l.b16 %v10219
    %v10252 = vunpack.c.l.b16 %v10220
    %v10253 = vunpack.c.l.b16 %v10221
    %v10254 = vunpack.c.l.b16 %v10222
    %v10255 = vunpack.c.l.b16 %v10223
    %v10256 = vunpack.c.l.b16 %v10224
    %v10257 = vunpack.c.l.b16 %v10225
    %v10258 = vunpack.c.l.b16 %v10226
    %v10259 = vunpack.c.l.b16 %v10227
    %v10260 = vpack.c.b16 %v10245, %v10244
    %v10261 = vpack.c.b16 %v10247, %v10246
    %v10262 = vpack.c.b16 %v10249, %v10248
    %v10263 = vpack.c.b16 %v10251, %v10250
    %v10264 = vpack.c.b16 %v10253, %v10252
    %v10265 = vpack.c.b16 %v10255, %v10254
    %v10266 = vpack.c.b16 %v10257, %v10256
    %v10267 = vpack.c.b16 %v10259, %v10258
    %10276 = vmatprep.subr.bf16.mxu0 0
    %10277 = vmatpush1.bf16.msra.mxu0 %v10260
    %10278 = vmatprep.subr.bf16.mxu0 0
    %10279 = vmatpush1.bf16.msra.mxu0 %v10261
    %10280 = vmatprep.subr.bf16.mxu0 0
    %10281 = vmatpush1.bf16.msra.mxu0 %v10262
    %10282 = vmatprep.subr.bf16.mxu0 0
    %10283 = vmatpush1.bf16.msra.mxu0 %v10263
    %10284 = vmatprep.subr.bf16.mxu0 0
    %10285 = vmatpush1.bf16.msra.mxu0 %v10264
    %10286 = vmatprep.subr.bf16.mxu0 0
    %10287 = vmatpush1.bf16.msra.mxu0 %v10265
    %10288 = vmatprep.subr.bf16.mxu0 0
    %10289 = vmatpush1.bf16.msra.mxu0 %v10266
    %10290 = vmatprep.subr.bf16.mxu0 0
    %10291 = vmatpush1.bf16.msra.mxu0 %v10267
    %10292 = vmatprep.subr.bf16.mxu0 0
    %10293 = vmatpush1.bf16.msra.mxu0 0
    %10294 = vmatprep.subr.bf16.mxu0 0
    %10295 = vmatpush1.bf16.msra.mxu0 0
    %10296 = vmatprep.subr.bf16.mxu0 0
    %10297 = vmatpush1.bf16.msra.mxu0 0
    %10298 = vmatprep.subr.bf16.mxu0 0
    %10299 = vmatpush1.bf16.msra.mxu0 0
    %10300 = vmatprep.subr.bf16.mxu0 0
    %10301 = vmatpush1.bf16.msra.mxu0 0
    %10302 = vmatprep.subr.bf16.mxu0 0
    %10303 = vmatpush1.bf16.msra.mxu0 0
    %10304 = vmatprep.subr.bf16.mxu0 0
    %10305 = vmatpush1.bf16.msra.mxu0 0
    %10306 = vmatprep.subr.bf16.mxu0 0
    %10307 = vmatpush1.bf16.msra.mxu0 0
    %10308 = vmatprep.mubr.bf16.mxu0 0
    %10309 = vmatmul.mubr.bf16.gmra.mrb[0].mxu0 %v10211
    %v10310 = vpop.f32.mrb[0].mxu0
    %v10311 = vadd.f32 0.0, %v10310
    %v10312 = vpop.f32.mrb[0].mxu0
    %v10313 = vpop.f32.mrb[0].mxu0
    %v10314 = vpop.f32.mrb[0].mxu0
    %10315 = vdwg.mxu0
    %v10316 = vld [vmem:[%s3 + $0x764] sm:$0xf]
    %v10317 = vpack.c.bf16 %v10311, %v10311
    %v10318 = vld [vmem:[%s4 + $0xd0] sm:$0x1]
    %v10319 = vlaneseq
    %v10320 = vshrl.u32 %v10319, 7
    %v10321 = vsub.s32 0, %v10320
    %v10322 = vrot.slane %v10318, %v10321
    %v10324 = vsel %vm4448, %v10316, 0
    %v10327 = vsel %vm4473, %v10317, 0
    %10329 = vmatprep.subr.bf16.mxu0 0
    %10330 = vmatpush1.bf16.msra.mxu0 %v10327
    %10331 = vmatprep.subr.bf16.mxu0 0
    %10332 = vmatpush1.bf16.msra.mxu0 0
    %10333 = vmatprep.subr.bf16.mxu0 0
    %10334 = vmatpush1.bf16.msra.mxu0 0
    %10335 = vmatprep.subr.bf16.mxu0 0
    %10336 = vmatpush1.bf16.msra.mxu0 0
    %10337 = vmatprep.subr.bf16.mxu0 0
    %10338 = vmatpush1.bf16.msra.mxu0 0
    %10339 = vmatprep.subr.bf16.mxu0 0
    %10340 = vmatpush1.bf16.msra.mxu0 0
    %10341 = vmatprep.subr.bf16.mxu0 0
    %10342 = vmatpush1.bf16.msra.mxu0 0
    %10343 = vmatprep.subr.bf16.mxu0 0
    %10344 = vmatpush1.bf16.msra.mxu0 0
    %10345 = vmatprep.subr.bf16.mxu0 0
    %10346 = vmatpush1.bf16.msra.mxu0 0
    %10347 = vmatprep.subr.bf16.mxu0 0
    %10348 = vmatpush1.bf16.msra.mxu0 0
    %10349 = vmatprep.subr.bf16.mxu0 0
    %10350 = vmatpush1.bf16.msra.mxu0 0
    %10351 = vmatprep.subr.bf16.mxu0 0
    %10352 = vmatpush1.bf16.msra.mxu0 0
    %10353 = vmatprep.subr.bf16.mxu0 0
    %10354 = vmatpush1.bf16.msra.mxu0 0
    %10355 = vmatprep.subr.bf16.mxu0 0
    %10356 = vmatpush1.bf16.msra.mxu0 0
    %10357 = vmatprep.subr.bf16.mxu0 0
    %10358 = vmatpush1.bf16.msra.mxu0 0
    %10359 = vmatprep.subr.bf16.mxu0 0
    %10360 = vmatpush1.bf16.msra.mxu0 0
    %10361 = vmatprep.mubr.bf16.mxu0 0
    %10362 = vmatmul.mubr.bf16.gmra.mrb[0].mxu0 %v10324
    %v10363 = vpop.f32.mrb[0].mxu0
    %v10364 = vadd.f32 %v10322, %v10363
    %v10365 = vpop.f32.mrb[0].mxu0
    %v10366 = vpop.f32.mrb[0].mxu0
    %v10367 = vpop.f32.mrb[0].mxu0
    %10368 = vdwg.mxu0
    %v10369 = vmax.f32 %v10364, 0.0
    %vm10370 = vcmask 254976
    %10371 = vst.msk [vmem:[#allocation6] sm:$0x3] %vm10370, %v10369
    %v10372 = vld [vmem:[%s3 + $0x768] sm:$0xf]
    %v10373 = vld [vmem:[%s3 + $0x76c] sm:$0xf]
    %v10374 = vld [vmem:[%s3 + $0x770] sm:$0xf]
    %v10375 = vld [vmem:[%s3 + $0x774] sm:$0xf]
    %v10376 = vpack.c.bf16 %v10369, %v10369
    %v10377 = vld [vmem:[%s4 + $0xd8] sm:$0x1]
    %v10378 = vlaneseq
    %v10379 = vshrl.u32 %v10378, 7
    %v10380 = vsub.s32 0, %v10379
    %v10381 = vrot.slane %v10377, %v10380
    %v10386 = vunpack.c.l.b16 %v10372
    %v10387 = vunpack.c.l.b16 %v10373
    %v10388 = vunpack.c.l.b16 %v10374
    %v10389 = vunpack.c.l.b16 %v10375
    %v10390 = vpack.c.b16 %v10387, %v10386
    %v10391 = vpack.c.b16 %v10389, %v10388
    %v10395 = vsel %vm7503, %v10376, 0
    %10397 = vmatprep.subr.bf16.mxu0 0
    %10398 = vmatpush1.bf16.msra.mxu0 %v10390
    %10399 = vmatprep.subr.bf16.mxu0 0
    %10400 = vmatpush1.bf16.msra.mxu0 %v10391
    %10401 = vmatprep.subr.bf16.mxu0 0
    %10402 = vmatpush1.bf16.msra.mxu0 0
    %10403 = vmatprep.subr.bf16.mxu0 0
    %10404 = vmatpush1.bf16.msra.mxu0 0
    %10405 = vmatprep.subr.bf16.mxu0 0
    %10406 = vmatpush1.bf16.msra.mxu0 0
    %10407 = vmatprep.subr.bf16.mxu0 0
    %10408 = vmatpush1.bf16.msra.mxu0 0
    %10409 = vmatprep.subr.bf16.mxu0 0
    %10410 = vmatpush1.bf16.msra.mxu0 0
    %10411 = vmatprep.subr.bf16.mxu0 0
    %10412 = vmatpush1.bf16.msra.mxu0 0
    %10413 = vmatprep.subr.bf16.mxu0 0
    %10414 = vmatpush1.bf16.msra.mxu0 0
    %10415 = vmatprep.subr.bf16.mxu0 0
    %10416 = vmatpush1.bf16.msra.mxu0 0
    %10417 = vmatprep.subr.bf16.mxu0 0
    %10418 = vmatpush1.bf16.msra.mxu0 0
    %10419 = vmatprep.subr.bf16.mxu0 0
    %10420 = vmatpush1.bf16.msra.mxu0 0
    %10421 = vmatprep.subr.bf16.mxu0 0
    %10422 = vmatpush1.bf16.msra.mxu0 0
    %10423 = vmatprep.subr.bf16.mxu0 0
    %10424 = vmatpush1.bf16.msra.mxu0 0
    %10425 = vmatprep.subr.bf16.mxu0 0
    %10426 = vmatpush1.bf16.msra.mxu0 0
    %10427 = vmatprep.subr.bf16.mxu0 0
    %10428 = vmatpush1.bf16.msra.mxu0 0
    %10429 = vmatprep.mubr.bf16.mxu0 0
    %10430 = vmatmul.mubr.bf16.gmra.mrb[0].mxu0 %v10395
    %v10431 = vpop.f32.mrb[0].mxu0
    %v10432 = vadd.f32 %v10381, %v10431
    %v10433 = vpop.f32.mrb[0].mxu0
    %v10434 = vpop.f32.mrb[0].mxu0
    %v10435 = vpop.f32.mrb[0].mxu0
    %10436 = vdwg.mxu0
    %v10437 = vmax.f32 %v10432, 0.0
    %v10438 = vld [vmem:[%s3 + $0x778] sm:$0xf]
    %v10439 = vld [vmem:[%s3 + $0x77c] sm:$0xf]
    %v10440 = vpack.c.bf16 %v10437, %v10437
    %v10441 = vld [vmem:[%s4 + $0xe0] sm:$0x1]
    %v10442 = vlaneseq
    %v10443 = vshrl.u32 %v10442, 7
    %v10444 = vsub.s32 0, %v10443
    %v10445 = vrot.slane %v10441, %v10444
    %v10448 = vunpack.c.l.b16 %v10438
    %v10449 = vunpack.c.l.b16 %v10439
    %v10450 = vpack.c.b16 %v10449, %v10448
    %v10453 = vsel %vm6433, %v10440, 0
    %10455 = vmatprep.subr.bf16.mxu0 0
    %10456 = vmatpush1.bf16.msra.mxu0 %v10450
    %10457 = vmatprep.subr.bf16.mxu0 0
    %10458 = vmatpush1.bf16.msra.mxu0 0
    %10459 = vmatprep.subr.bf16.mxu0 0
    %10460 = vmatpush1.bf16.msra.mxu0 0
    %10461 = vmatprep.subr.bf16.mxu0 0
    %10462 = vmatpush1.bf16.msra.mxu0 0
    %10463 = vmatprep.subr.bf16.mxu0 0
    %10464 = vmatpush1.bf16.msra.mxu0 0
    %10465 = vmatprep.subr.bf16.mxu0 0
    %10466 = vmatpush1.bf16.msra.mxu0 0
    %10467 = vmatprep.subr.bf16.mxu0 0
    %10468 = vmatpush1.bf16.msra.mxu0 0
    %10469 = vmatprep.subr.bf16.mxu0 0
    %10470 = vmatpush1.bf16.msra.mxu0 0
    %10471 = vmatprep.subr.bf16.mxu0 0
    %10472 = vmatpush1.bf16.msra.mxu0 0
    %10473 = vmatprep.subr.bf16.mxu0 0
    %10474 = vmatpush1.bf16.msra.mxu0 0
    %10475 = vmatprep.subr.bf16.mxu0 0
    %10476 = vmatpush1.bf16.msra.mxu0 0
    %10477 = vmatprep.subr.bf16.mxu0 0
    %10478 = vmatpush1.bf16.msra.mxu0 0
    %10479 = vmatprep.subr.bf16.mxu0 0
    %10480 = vmatpush1.bf16.msra.mxu0 0
    %10481 = vmatprep.subr.bf16.mxu0 0
    %10482 = vmatpush1.bf16.msra.mxu0 0
    %10483 = vmatprep.subr.bf16.mxu0 0
    %10484 = vmatpush1.bf16.msra.mxu0 0
    %10485 = vmatprep.subr.bf16.mxu0 0
    %10486 = vmatpush1.bf16.msra.mxu0 0
    %10487 = vmatprep.mubr.bf16.mxu0 0
    %10488 = vmatmul.mubr.bf16.gmra.mrb[0].mxu0 %v10453
    %v10489 = vpop.f32.mrb[0].mxu0
    %v10490 = vadd.f32 %v10445, %v10489
    %v10491 = vpop.f32.mrb[0].mxu0
    %v10492 = vpop.f32.mrb[0].mxu0
    %v10493 = vpop.f32.mrb[0].mxu0
    %10494 = vdwg.mxu0
    %v10495 = vmax.f32 %v10490, 0.0
    %10496 = vst.msk [vmem:[#allocation7] sm:$0x3] %vm10370, %v10495
    // Predicated region
    $region22: #{forward.1} parent=1 // pred_check
      _
    $region23: #{forward.1} parent=1 // pred_check_branch
      %10498 = sbr.rel (0) target = $region25
    $region24: #{forward.1} parent=1 // pred_region
      %s10500 = ssub.s32 512, 512
      %10501 = vsyncadd [#allocation3], %s10500
      %s10502 = sshll.u32 [#allocation2], 4
      %s10503 = int_to_ptr.vmem [resolvable:$true] %s10502
      %10508 = dma.vmem_to_hbm [thread:$0]  %s10503, 512, %s5, [#allocation3], 128, 128, 8
    $region25: #{forward.1} parent=1 // pred_fallthru
      _
    // Predicated region
    $region26: #{forward.1} parent=1 // pred_check
      _
    $region27: #{forward.1} parent=1 // pred_check_branch
      %10510 = sbr.rel (0) target = $region29
    $region28: #{forward.1} parent=1 // pred_region
      %s10512 = ssub.s32 128, 128
      %10513 = vsyncadd [#allocation5], %s10512
      %s10515 = sshll.u32 [#allocation4], 4
      %s10516 = int_to_ptr.vmem [resolvable:$true] %s10515
      %10518 = dma.vmem_to_hbm [thread:$0]  %s10516, 128, %s6, [#allocation5]
    $region29: #{forward.1} parent=1 // pred_fallthru
      _
    // Predicated region
    $region30: #{forward.1} parent=1 // pred_check
      _
    $region31: #{forward.1} parent=1 // pred_check_branch
      %10520 = sbr.rel (0) target = $region33
    $region32: #{forward.1} parent=1 // pred_region
      %s10522 = ssub.s32 32, 32
      %10523 = vsyncadd [#allocation5], %s10522
      %s10525 = sshll.u32 [#allocation6], 4
      %s10526 = int_to_ptr.vmem [resolvable:$true] %s10525
      %10528 = dma.vmem_to_hbm [thread:$0]  %s10526, 32, %s7, [#allocation5]
    $region33: #{forward.1} parent=1 // pred_fallthru
      _
    // Predicated region
    $region34: #{forward.1} parent=1 // pred_check
      _
    $region35: #{forward.1} parent=1 // pred_check_branch
      %10530 = sbr.rel (0) target = $region37
    $region36: #{forward.1} parent=1 // pred_region
      %s10532 = ssub.s32 32, 32
      %10533 = vsyncadd [#allocation8], %s10532
      %s10535 = sshll.u32 [#allocation7], 4
      %s10536 = int_to_ptr.vmem [resolvable:$true] %s10535
      %10538 = dma.vmem_to_hbm [thread:$0]  %s10536, 32, %s8, [#allocation8]
    $region37: #{forward.1} parent=1 // pred_fallthru
      _
    // Predicated region
    $region38: #{forward.1} parent=1 // pred_check
      _
    $region39: #{forward.1} parent=1 // pred_check_branch
      %10540 = sbr.rel (0) target = $region41
    $region40: #{forward.1} parent=1 // pred_region
      %10541 = dma.done [#allocation3], 512
    $region41: #{forward.1} parent=1 // pred_fallthru
      _
    // Predicated region
    $region42: #{forward.1} parent=1 // pred_check
      _
    $region43: #{forward.1} parent=1 // pred_check_branch
      %10543 = sbr.rel (0) target = $region45
    $region44: #{forward.1} parent=1 // pred_region
      %10544 = dma.done [#allocation5], 128
    $region45: #{forward.1} parent=1 // pred_fallthru
      _
    // Predicated region
    $region46: #{forward.1} parent=1 // pred_check
      _
    $region47: #{forward.1} parent=1 // pred_check_branch
      %10546 = sbr.rel (0) target = $region49
    $region48: #{forward.1} parent=1 // pred_region
      %10547 = dma.done [#allocation5], 32
    $region49: #{forward.1} parent=1 // pred_fallthru
      _
    // Predicated region
    $region50: #{forward.1} parent=1 // pred_check
      _
    $region51: #{forward.1} parent=1 // pred_check_branch
      %10549 = sbr.rel (0) target = $region53
    $region52: #{forward.1} parent=1 // pred_region
      %10550 = dma.done [#allocation8], 32
    $region53: #{forward.1} parent=1 // pred_fallthru
      _
    %10551 = vsyncpa [#allocation3], 1
    %10552 = vsyncpa [#allocation5], 1
    %10553 = vsyncpa [#allocation8], 1

</llo_original>
